<compile_context>
chip_gen: v5e
topology: v5e:2x2
jax: 0.10.0
libtpu: 0.0.40
codegen_flags: <defaults>
</compile_context>

<pallas_src>
import jax
import jax.numpy as jnp
from jax import lax
from jax.experimental import pallas as pl
from jax.experimental.pallas import tpu as pltpu

NOISE_DIM = 8          # constants.NOISE_DIM (synthetic small value)
CATEGORICAL_DIM = 4    # constants.CATEGORICAL_DIM (synthetic small value)
BN_EPS = 1e-5
LANE = 128


def _vmem_limit_bytes():
    # Chip-aware VMEM budget: v7x has only 64 MiB/TC (v5e/v6e have 128 MiB).
    try:
        cap = pltpu.get_tpu_info().vmem_capacity_bytes
    except Exception:
        cap = 64 << 20
    return int(min(cap * 3 // 4, 48 << 20))


_VMEM_LIMIT = _vmem_limit_bytes()


# ---------------------------------------------------------------------------
# Pallas kernels
# ---------------------------------------------------------------------------
def _bn_relu_rows(y, g, beta):
    # Training-mode BatchNorm over rows (per-column stats, biased var) + ReLU.
    mean = jnp.mean(y, axis=0, keepdims=True)
    var = jnp.mean(jnp.square(y - mean), axis=0, keepdims=True)
    return jnp.maximum((y - mean) * lax.rsqrt(var + BN_EPS) * g + beta, 0.0)


def _fc_block_kernel(x_ref, w1_ref, b1_ref, g1_ref, bt1_ref,
                     w2_ref, b2_ref, g2_ref, bt2_ref, o_ref):
    # Fused Linear->BN->ReLU->Linear(column tile)->BN->ReLU.
    x = x_ref[...]
    h = jnp.dot(x, w1_ref[...].astype(jnp.float32),
                preferred_element_type=jnp.float32) + b1_ref[...]
    h = _bn_relu_rows(h, g1_ref[...], bt1_ref[...])
    y = jnp.dot(h, w2_ref[...].astype(jnp.float32),
                preferred_element_type=jnp.float32) + b2_ref[...]
    o_ref[...] = _bn_relu_rows(y, g2_ref[...], bt2_ref[...])


def _deconv_bn_relu_kernel(a_ref, w_ref, b_ref, g_ref, bt_ref, o_ref):
    # a: (4, M, K) phase-im2col; w: (4, K, N) bf16 phase weights; b/g/bt: (1, N).
    for p in range(4):                           # static unroll, 4 plain dots
        o_ref[p] = jnp.dot(a_ref[p], w_ref[p].astype(jnp.float32),
                           preferred_element_type=jnp.float32) + b_ref[...]
    y = o_ref[...]                               # (4, M, N)
    cnt = float(y.shape[0] * y.shape[1])
    mean = jnp.sum(jnp.sum(y, axis=1, keepdims=True), axis=0, keepdims=True) / cnt
    d = y - mean
    var = jnp.sum(jnp.sum(d * d, axis=1, keepdims=True), axis=0, keepdims=True) / cnt
    y = d * lax.rsqrt(var + BN_EPS) * g_ref[...] + bt_ref[...]
    o_ref[...] = jnp.maximum(y, 0.0)


def _deconv_tanh_kernel(a_ref, w_ref, b_ref, o_ref):
    for p in range(4):
        y = jnp.dot(a_ref[p], w_ref[p].astype(jnp.float32),
                    preferred_element_type=jnp.float32)
        o_ref[p] = jnp.tanh(y + b_ref[...])


# ---------------------------------------------------------------------------
# Pallas wrappers
# ---------------------------------------------------------------------------
def fc_block(x, w1, b1, g1, bt1, w2, b2, g2, bt2, tile_n=896):
    m, k1 = x.shape
    hdim = w1.shape[1]
    n = w2.shape[1]
    if n % tile_n:
        tile_n = n
    grid = (n // tile_n,)
    full = lambda shape: pl.BlockSpec(shape, lambda j: (0, 0))
    tile = lambda shape: pl.BlockSpec(shape, lambda j: (0, j))
    row = lambda v: v.reshape(1, -1)
    return pl.pallas_call(
        _fc_block_kernel,
        out_shape=jax.ShapeDtypeStruct((m, n), jnp.float32),
        grid=grid,
        in_specs=[full((m, k1)), full((k1, hdim)),
                  full((1, hdim)), full((1, hdim)), full((1, hdim)),
                  tile((hdim, tile_n)),
                  tile((1, tile_n)), tile((1, tile_n)), tile((1, tile_n))],
        out_specs=tile((m, tile_n)),
        compiler_params=pltpu.CompilerParams(
            dimension_semantics=("parallel",),
            vmem_limit_bytes=_VMEM_LIMIT),
    )(x, w1, row(b1), row(g1), row(bt1), w2, row(b2), row(g2), row(bt2))


def _deconv_call(kernel, a, w, extras):
    p, m, _ = a.shape
    n = w.shape[2]
    return pl.pallas_call(
        kernel,
        out_shape=jax.ShapeDtypeStruct((p, m, n), jnp.float32),
        compiler_params=pltpu.CompilerParams(vmem_limit_bytes=_VMEM_LIMIT),
    )(a, w, *[e.reshape(1, -1) for e in extras])


# ---------------------------------------------------------------------------
# ConvTranspose2d(k=4, s=2, p=1) phase decomposition (plain-JAX glue)
#
# out[n, 2u+a, 2v+b, co] = sum_{di,dj in {0,1}, ci}
#     xpad[n, u+a+di, v+b+dj, ci] * w_pt[ci, co, 3-a-2*di, 3-b-2*dj]
# where xpad is x zero-padded by 1 on each spatial side.
# ---------------------------------------------------------------------------
def _phase_im2col(x_nhwc):
    n, h, w, cin = x_nhwc.shape
    xp = jnp.pad(x_nhwc, ((0, 0), (1, 1), (1, 1), (0, 0)))
    phases = []
    for a in range(2):
        for b in range(2):
            taps = []
            for di in range(2):
                for dj in range(2):
                    taps.append(xp[:, a + di:a + di + h, b + dj:b + dj + w, :])
            phases.append(jnp.concatenate(taps, axis=-1).reshape(n * h * w, 4 * cin))
    return jnp.stack(phases, axis=0)                     # (4, N*H*W, 4*Cin)


def _phase_weights(w_pt, cout_pad):
    # w_pt: PyTorch ConvTranspose2d weight (Cin, Cout, 4, 4) -> (4, 4*Cin, cout_pad)
    cout = w_pt.shape[1]
    ws = []
    for a in range(2):
        for b in range(2):
            taps = []
            for di in range(2):
                for dj in range(2):
                    taps.append(w_pt[:, :, 3 - a - 2 * di, 3 - b - 2 * dj])
            ws.append(jnp.concatenate(taps, axis=0))     # (4*Cin, Cout)
    w = jnp.stack(ws, axis=0)                            # (4, 4*Cin, Cout)
    if cout_pad > cout:
        w = jnp.pad(w, ((0, 0), (0, 0), (0, cout_pad - cout)))
    return w


def _assemble_phases(o, n, h, w, cout):
    # o: (4, n*h*w, cout_pad), phase index p = a*2 + b -> output (n, 2h, 2w, cout)
    o = o[:, :, :cout].reshape(2, 2, n, h, w, cout)      # (a, b, n, u, v, c)
    o = jnp.transpose(o, (2, 3, 0, 4, 1, 5))             # (n, u, a, v, b, c)
    return o.reshape(n, 2 * h, 2 * w, cout)


# ---------------------------------------------------------------------------
# Parameters
# ---------------------------------------------------------------------------
def init_params(key):
    ks = jax.random.split(key, 4)

    def lin(k, fan_in, fan_out):
        bound = 1.0 / jnp.sqrt(fan_in)
        kw, kb = jax.random.split(k)
        w = jax.random.uniform(kw, (fan_in, fan_out), jnp.float32, -bound, bound)
        b = jax.random.uniform(kb, (fan_out,), jnp.float32, -bound, bound)
        return w, b

    def deconv(k, cin, cout, ksz):
        bound = 1.0 / jnp.sqrt(cin * ksz * ksz)
        kw, kb = jax.random.split(k)
        w = jax.random.uniform(kw, (cin, cout, ksz, ksz), jnp.float32, -bound, bound)
        b = jax.random.uniform(kb, (cout,), jnp.float32, -bound, bound)
        return w, b

    p = {}
    p["fc1_w"], p["fc1_b"] = lin(ks[0], NOISE_DIM + CATEGORICAL_DIM, 1024)
    p["bn1_g"], p["bn1_b"] = jnp.ones((1024,)), jnp.zeros((1024,))
    p["fc2_w"], p["fc2_b"] = lin(ks[1], 1024, 128 * 7 * 7)
    p["bn2_g"], p["bn2_b"] = jnp.ones((128 * 7 * 7,)), jnp.zeros((128 * 7 * 7,))
    p["dc1_w"], p["dc1_b"] = deconv(ks[2], 128, 64, 4)
    p["bn3_g"], p["bn3_b"] = jnp.ones((64,)), jnp.zeros((64,))
    p["dc2_w"], p["dc2_b"] = deconv(ks[3], 64, 1, 4)
    return p


def prepare_kernel_params(p):
    pad_vec = lambda v: jnp.pad(v, (0, (-v.shape[0]) % LANE))
    kp = {
        "fc1_w": p["fc1_w"].astype(jnp.bfloat16),
        "fc1_b": p["fc1_b"], "bn1_g": p["bn1_g"], "bn1_b": p["bn1_b"],
        "fc2_w": p["fc2_w"].astype(jnp.bfloat16),
        "fc2_b": p["fc2_b"], "bn2_g": p["bn2_g"], "bn2_b": p["bn2_b"],
        "dc1_wp": _phase_weights(p["dc1_w"], LANE).astype(jnp.bfloat16),
        "dc1_b": pad_vec(p["dc1_b"]),
        "bn3_g": pad_vec(p["bn3_g"]), "bn3_b": pad_vec(p["bn3_b"]),
        "dc2_wp": _phase_weights(p["dc2_w"], LANE).astype(jnp.bfloat16),
        "dc2_b": pad_vec(p["dc2_b"]),
    }
    return kp


# ---------------------------------------------------------------------------
# Forward pass (Pallas) and pure-JAX reference (zero-stuffed im2col path)
# ---------------------------------------------------------------------------
def generator_forward(kp, z, c):
    x = jnp.concatenate([z, c], axis=-1)                                # (B, 12)
    x = fc_block(x, kp["fc1_w"], kp["fc1_b"], kp["bn1_g"], kp["bn1_b"],
                 kp["fc2_w"], kp["fc2_b"], kp["bn2_g"], kp["bn2_b"])    # (B, 6272)
    b = x.shape[0]
    x = jnp.transpose(x.reshape(b, 128, 7, 7), (0, 2, 3, 1))            # NHWC

    a1 = _phase_im2col(x)                                               # (4, B*49, 512)
    y = _deconv_call(_deconv_bn_relu_kernel, a1, kp["dc1_wp"],
                     [kp["dc1_b"], kp["bn3_g"], kp["bn3_b"]])
    y = _assemble_phases(y, b, 7, 7, 64)                                # (B,14,14,64)

    a2 = _phase_im2col(y)                                               # (4, B*196, 256)
    o = _deconv_call(_deconv_tanh_kernel, a2, kp["dc2_wp"], [kp["dc2_b"]])
    o = _assemble_phases(o, b, 14, 14, 1)                               # (B,28,28,1)
    return jnp.transpose(o, (0, 3, 1, 2))                               # NCHW


def conv_transpose_im2col(x_nhwc, w_pt, k=4, stride=2, padding=1):
    # Reference path: zero-stuffed input + flipped kernel im2col.
    n, h, wdim, cin = x_nhwc.shape
    oh = (h - 1) * stride - 2 * padding + k
    ow = (wdim - 1) * stride - 2 * padding + k
    xs = jnp.zeros((n, (h - 1) * stride + 1, (wdim - 1) * stride + 1, cin),
                   x_nhwc.dtype)
    xs = xs.at[:, ::stride, ::stride, :].set(x_nhwc)
    pad = k - 1 - padding
    xp = jnp.pad(xs, ((0, 0), (pad, pad), (pad, pad), (0, 0)))
    cols = []
    for kh in range(k):
        for kw in range(k):
            cols.append(xp[:, kh:kh + oh, kw:kw + ow, :])
    a = jnp.concatenate(cols, axis=-1).reshape(n * oh * ow, k * k * cin)
    wf = jnp.transpose(w_pt[:, :, ::-1, ::-1], (2, 3, 0, 1))
    wm = wf.reshape(k * k * cin, w_pt.shape[1])
    return a, wm, (n, oh, ow)


def reference_forward(p, z, c):
    def bn_relu(y, g, bt):
        mean = jnp.mean(y, axis=0, keepdims=True)
        var = jnp.mean(jnp.square(y - mean), axis=0, keepdims=True)
        return jnp.maximum((y - mean) / jnp.sqrt(var + BN_EPS) * g + bt, 0.0)

    rw = lambda w: w.astype(jnp.bfloat16).astype(jnp.float32)  # same rounding as kernel
    x = jnp.concatenate([z, c], axis=-1)
    x = bn_relu(x @ rw(p["fc1_w"]) + p["fc1_b"], p["bn1_g"], p["bn1_b"])
    x = bn_relu(x @ rw(p["fc2_w"]) + p["fc2_b"], p["bn2_g"], p["bn2_b"])
    b = x.shape[0]
    x = jnp.transpose(x.reshape(b, 128, 7, 7), (0, 2, 3, 1))
    a1, wm1, (n1, oh1, ow1) = conv_transpose_im2col(x, rw(p["dc1_w"]))
    y = bn_relu(a1 @ wm1 + p["dc1_b"], p["bn3_g"], p["bn3_b"]).reshape(n1, oh1, ow1, 64)
    a2, wm2, (n2, oh2, ow2) = conv_transpose_im2col(y, rw(p["dc2_w"]))
    out = jnp.tanh(a2 @ wm2 + p["dc2_b"]).reshape(n2, oh2, ow2, 1)
    return jnp.transpose(out, (0, 3, 1, 2))


if __name__ == "__main__":
    key = jax.random.PRNGKey(0)
    k_param, kz, kc = jax.random.split(key, 3)
    params = init_params(k_param)
    kparams = prepare_kernel_params(params)

    B = 2
    z = jax.random.normal(kz, (B, NOISE_DIM), dtype=jnp.float32)
    c_idx = jax.random.randint(kc, (B,), 0, CATEGORICAL_DIM)
    c = jax.nn.one_hot(c_idx, CATEGORICAL_DIM, dtype=jnp.float32)

    fwd = jax.jit(generator_forward)
    out = jax.block_until_ready(fwd(kparams, z, c))
    assert out.shape == (B, 1, 28, 28), out.shape

    ref = reference_forward(params, z, c)
    max_err = float(jnp.max(jnp.abs(out - ref)))
    assert max_err < 1e-2, f"mismatch vs reference: {max_err}"

    print("KERNEL_OK")
</pallas_src>

<mosaic_0001>
module attributes {stable_mosaic.version = 11 : i64} {
  func.func @_fc_block_kernel(%arg0: i32, %arg1: memref<2x12xf32, #tpu.memory_space<vmem>>, %arg2: memref<12x1024xbf16, #tpu.memory_space<vmem>>, %arg3: memref<1x1024xf32, #tpu.memory_space<vmem>>, %arg4: memref<1x1024xf32, #tpu.memory_space<vmem>>, %arg5: memref<1x1024xf32, #tpu.memory_space<vmem>>, %arg6: memref<1024x896xbf16, #tpu.memory_space<vmem>>, %arg7: memref<1x896xf32, #tpu.memory_space<vmem>>, %arg8: memref<1x896xf32, #tpu.memory_space<vmem>>, %arg9: memref<1x896xf32, #tpu.memory_space<vmem>>, %arg10: memref<2x896xf32, #tpu.memory_space<vmem>>) attributes {dimension_semantics = [#tpu.dimension_semantics<parallel>], iteration_bounds = array<i64: 7>, scalar_prefetch = 0 : i64, scratch_operands = 0 : i64, tpu.core_type = #tpu.core_type<tc>, window_params = [{pipeline_mode = #tpu.pipeline_mode<synchronous>, transform_indices = @transform_0, window_bounds = array<i64: 2, 12>}, {pipeline_mode = #tpu.pipeline_mode<synchronous>, transform_indices = @transform_1, window_bounds = array<i64: 12, 1024>}, {pipeline_mode = #tpu.pipeline_mode<synchronous>, transform_indices = @transform_2, window_bounds = array<i64: 1, 1024>}, {pipeline_mode = #tpu.pipeline_mode<synchronous>, transform_indices = @transform_3, window_bounds = array<i64: 1, 1024>}, {pipeline_mode = #tpu.pipeline_mode<synchronous>, transform_indices = @transform_4, window_bounds = array<i64: 1, 1024>}, {transform_indices = @transform_5, window_bounds = array<i64: 1024, 896>}, {transform_indices = @transform_6, window_bounds = array<i64: 1, 896>}, {transform_indices = @transform_7, window_bounds = array<i64: 1, 896>}, {transform_indices = @transform_8, window_bounds = array<i64: 1, 896>}, {transform_indices = @transform_9, window_bounds = array<i64: 2, 896>}]} {
    %c0 = arith.constant 0 : index
    %c0_0 = arith.constant 0 : index
    %0 = vector.load %arg1[%c0, %c0_0] : memref<2x12xf32, #tpu.memory_space<vmem>>, vector<2x12xf32>
    %c0_1 = arith.constant 0 : index
    %c0_2 = arith.constant 0 : index
    %1 = vector.load %arg2[%c0_1, %c0_2] : memref<12x1024xbf16, #tpu.memory_space<vmem>>, vector<12x1024xbf16>
    %2 = arith.extf %1 : vector<12x1024xbf16> to vector<12x1024xf32>
    %cst = arith.constant dense<0.000000e+00> : vector<2x1024xf32>
    %3 = tpu.matmul %0, %2, %cst {dimension_numbers = #tpu.dot_dimension_numbers<[1], [0], [0], [1], [0, 0, 1, 1], [], []>} : vector<2x12xf32>, vector<12x1024xf32>, vector<2x1024xf32> -> vector<2x1024xf32>
    %c0_3 = arith.constant 0 : index
    %c0_4 = arith.constant 0 : index
    %4 = vector.load %arg3[%c0_3, %c0_4] : memref<1x1024xf32, #tpu.memory_space<vmem>>, vector<1x1024xf32>
    %5 = vector.broadcast %4 : vector<1x1024xf32> to vector<2x1024xf32>
    %6 = arith.addf %3, %5 : vector<2x1024xf32>
    %c0_5 = arith.constant 0 : index
    %c0_6 = arith.constant 0 : index
    %7 = vector.load %arg4[%c0_5, %c0_6] : memref<1x1024xf32, #tpu.memory_space<vmem>>, vector<1x1024xf32>
    %c0_7 = arith.constant 0 : index
    %c0_8 = arith.constant 0 : index
    %8 = vector.load %arg5[%c0_7, %c0_8] : memref<1x1024xf32, #tpu.memory_space<vmem>>, vector<1x1024xf32>
    %cst_9 = arith.constant dense<0.000000e+00> : vector<1024xf32>
    %9 = vector.multi_reduction <add>, %6, %cst_9 [0] : vector<2x1024xf32> to vector<1024xf32>
    %10 = vector.shape_cast %9 : vector<1024xf32> to vector<1x1024xf32>
    %cst_10 = arith.constant 2.000000e+00 : f32
    %11 = vector.broadcast %cst_10 : f32 to vector<1x1024xf32>
    %12 = arith.divf %10, %11 : vector<1x1024xf32>
    %13 = vector.broadcast %12 : vector<1x1024xf32> to vector<2x1024xf32>
    %14 = arith.subf %6, %13 : vector<2x1024xf32>
    %15 = arith.mulf %14, %14 : vector<2x1024xf32>
    %cst_11 = arith.constant dense<0.000000e+00> : vector<1024xf32>
    %16 = vector.multi_reduction <add>, %15, %cst_11 [0] : vector<2x1024xf32> to vector<1024xf32>
    %17 = vector.shape_cast %16 : vector<1024xf32> to vector<1x1024xf32>
    %cst_12 = arith.constant 2.000000e+00 : f32
    %18 = vector.broadcast %cst_12 : f32 to vector<1x1024xf32>
    %19 = arith.divf %17, %18 : vector<1x1024xf32>
    %20 = vector.broadcast %12 : vector<1x1024xf32> to vector<2x1024xf32>
    %21 = arith.subf %6, %20 : vector<2x1024xf32>
    %cst_13 = arith.constant 9.99999974E-6 : f32
    %22 = vector.broadcast %cst_13 : f32 to vector<1x1024xf32>
    %23 = arith.addf %19, %22 : vector<1x1024xf32>
    %24 = math.rsqrt %23 : vector<1x1024xf32>
    %25 = vector.broadcast %24 : vector<1x1024xf32> to vector<2x1024xf32>
    %26 = arith.mulf %21, %25 : vector<2x1024xf32>
    %27 = vector.broadcast %7 : vector<1x1024xf32> to vector<2x1024xf32>
    %28 = arith.mulf %26, %27 : vector<2x1024xf32>
    %29 = vector.broadcast %8 : vector<1x1024xf32> to vector<2x1024xf32>
    %30 = arith.addf %28, %29 : vector<2x1024xf32>
    %cst_14 = arith.constant 0.000000e+00 : f32
    %31 = vector.broadcast %cst_14 : f32 to vector<2x1024xf32>
    %32 = arith.maximumf %30, %31 : vector<2x1024xf32>
    %c0_15 = arith.constant 0 : index
    %c0_16 = arith.constant 0 : index
    %33 = vector.load %arg6[%c0_15, %c0_16] : memref<1024x896xbf16, #tpu.memory_space<vmem>>, vector<1024x896xbf16>
    %34 = arith.extf %33 : vector<1024x896xbf16> to vector<1024x896xf32>
    %cst_17 = arith.constant dense<0.000000e+00> : vector<2x896xf32>
    %35 = tpu.matmul %32, %34, %cst_17 {dimension_numbers = #tpu.dot_dimension_numbers<[1], [0], [0], [1], [0, 0, 1, 1], [], []>} : vector<2x1024xf32>, vector<1024x896xf32>, vector<2x896xf32> -> vector<2x896xf32>
    %c0_18 = arith.constant 0 : index
    %c0_19 = arith.constant 0 : index
    %36 = vector.load %arg7[%c0_18, %c0_19] : memref<1x896xf32, #tpu.memory_space<vmem>>, vector<1x896xf32>
    %37 = vector.broadcast %36 : vector<1x896xf32> to vector<2x896xf32>
    %38 = arith.addf %35, %37 : vector<2x896xf32>
    %c0_20 = arith.constant 0 : index
    %c0_21 = arith.constant 0 : index
    %39 = vector.load %arg8[%c0_20, %c0_21] : memref<1x896xf32, #tpu.memory_space<vmem>>, vector<1x896xf32>
    %c0_22 = arith.constant 0 : index
    %c0_23 = arith.constant 0 : index
    %40 = vector.load %arg9[%c0_22, %c0_23] : memref<1x896xf32, #tpu.memory_space<vmem>>, vector<1x896xf32>
    %cst_24 = arith.constant dense<0.000000e+00> : vector<896xf32>
    %41 = vector.multi_reduction <add>, %38, %cst_24 [0] : vector<2x896xf32> to vector<896xf32>
    %42 = vector.shape_cast %41 : vector<896xf32> to vector<1x896xf32>
    %cst_25 = arith.constant 2.000000e+00 : f32
    %43 = vector.broadcast %cst_25 : f32 to vector<1x896xf32>
    %44 = arith.divf %42, %43 : vector<1x896xf32>
    %45 = vector.broadcast %44 : vector<1x896xf32> to vector<2x896xf32>
    %46 = arith.subf %38, %45 : vector<2x896xf32>
    %47 = arith.mulf %46, %46 : vector<2x896xf32>
    %cst_26 = arith.constant dense<0.000000e+00> : vector<896xf32>
    %48 = vector.multi_reduction <add>, %47, %cst_26 [0] : vector<2x896xf32> to vector<896xf32>
    %49 = vector.shape_cast %48 : vector<896xf32> to vector<1x896xf32>
    %cst_27 = arith.constant 2.000000e+00 : f32
    %50 = vector.broadcast %cst_27 : f32 to vector<1x896xf32>
    %51 = arith.divf %49, %50 : vector<1x896xf32>
    %52 = vector.broadcast %44 : vector<1x896xf32> to vector<2x896xf32>
    %53 = arith.subf %38, %52 : vector<2x896xf32>
    %cst_28 = arith.constant 9.99999974E-6 : f32
    %54 = vector.broadcast %cst_28 : f32 to vector<1x896xf32>
    %55 = arith.addf %51, %54 : vector<1x896xf32>
    %56 = math.rsqrt %55 : vector<1x896xf32>
    %57 = vector.broadcast %56 : vector<1x896xf32> to vector<2x896xf32>
    %58 = arith.mulf %53, %57 : vector<2x896xf32>
    %59 = vector.broadcast %39 : vector<1x896xf32> to vector<2x896xf32>
    %60 = arith.mulf %58, %59 : vector<2x896xf32>
    %61 = vector.broadcast %40 : vector<1x896xf32> to vector<2x896xf32>
    %62 = arith.addf %60, %61 : vector<2x896xf32>
    %cst_29 = arith.constant 0.000000e+00 : f32
    %63 = vector.broadcast %cst_29 : f32 to vector<2x896xf32>
    %64 = arith.maximumf %62, %63 : vector<2x896xf32>
    %c0_30 = arith.constant 0 : index
    %c0_31 = arith.constant 0 : index
    %65 = vector.load %arg10[%c0_30, %c0_31] : memref<2x896xf32, #tpu.memory_space<vmem>>, vector<2x896xf32>
    tpu.vector_store %arg10[%c0_30, %c0_31], %64 {strides = array<i32>} : memref<2x896xf32, #tpu.memory_space<vmem>>, vector<2x896xf32>,
    return
  }
  func.func @transform_0(%arg0: i32) -> (i32, i32) {
    %c0_i32 = arith.constant 0 : i32
    %c0_i32_0 = arith.constant 0 : i32
    %c0_i32_1 = arith.constant 0 : i32
    return %c0_i32, %c0_i32_0 : i32, i32
  }
  func.func @transform_1(%arg0: i32) -> (i32, i32) {
    %c0_i32 = arith.constant 0 : i32
    %c0_i32_0 = arith.constant 0 : i32
    %c0_i32_1 = arith.constant 0 : i32
    return %c0_i32, %c0_i32_0 : i32, i32
  }
  func.func @transform_2(%arg0: i32) -> (i32, i32) {
    %c0_i32 = arith.constant 0 : i32
    %c0_i32_0 = arith.constant 0 : i32
    %c0_i32_1 = arith.constant 0 : i32
    return %c0_i32, %c0_i32_0 : i32, i32
  }
  func.func @transform_3(%arg0: i32) -> (i32, i32) {
    %c0_i32 = arith.constant 0 : i32
    %c0_i32_0 = arith.constant 0 : i32
    %c0_i32_1 = arith.constant 0 : i32
    return %c0_i32, %c0_i32_0 : i32, i32
  }
  func.func @transform_4(%arg0: i32) -> (i32, i32) {
    %c0_i32 = arith.constant 0 : i32
    %c0_i32_0 = arith.constant 0 : i32
    %c0_i32_1 = arith.constant 0 : i32
    return %c0_i32, %c0_i32_0 : i32, i32
  }
  func.func @transform_5(%arg0: i32) -> (i32, i32) {
    %c0_i32 = arith.constant 0 : i32
    %c0_i32_0 = arith.constant 0 : i32
    return %c0_i32, %arg0 : i32, i32
  }
  func.func @transform_6(%arg0: i32) -> (i32, i32) {
    %c0_i32 = arith.constant 0 : i32
    %c0_i32_0 = arith.constant 0 : i32
    return %c0_i32, %arg0 : i32, i32
  }
  func.func @transform_7(%arg0: i32) -> (i32, i32) {
    %c0_i32 = arith.constant 0 : i32
    %c0_i32_0 = arith.constant 0 : i32
    return %c0_i32, %arg0 : i32, i32
  }
  func.func @transform_8(%arg0: i32) -> (i32, i32) {
    %c0_i32 = arith.constant 0 : i32
    %c0_i32_0 = arith.constant 0 : i32
    return %c0_i32, %arg0 : i32, i32
  }
  func.func @transform_9(%arg0: i32) -> (i32, i32) {
    %c0_i32 = arith.constant 0 : i32
    %c0_i32_0 = arith.constant 0 : i32
    return %c0_i32, %arg0 : i32, i32
  }
}

module attributes {stable_mosaic.version = 11 : i64} {
  func.func @_deconv_bn_relu_kernel(%arg0: memref<4x98x512xf32, #tpu.memory_space<vmem>>, %arg1: memref<4x512x128xbf16, #tpu.memory_space<vmem>>, %arg2: memref<1x128xf32, #tpu.memory_space<vmem>>, %arg3: memref<1x128xf32, #tpu.memory_space<vmem>>, %arg4: memref<1x128xf32, #tpu.memory_space<vmem>>, %arg5: memref<4x98x128xf32, #tpu.memory_space<vmem>>) attributes {dimension_semantics = [], scalar_prefetch = 0 : i64, scratch_operands = 0 : i64, tpu.core_type = #tpu.core_type<tc>} {
    %c0 = arith.constant 0 : index
    %c0_0 = arith.constant 0 : index
    %c0_1 = arith.constant 0 : index
    %0 = vector.load %arg0[%c0, %c0_0, %c0_1] : memref<4x98x512xf32, #tpu.memory_space<vmem>>, vector<1x98x512xf32>
    %1 = vector.shape_cast %0 : vector<1x98x512xf32> to vector<98x512xf32>
    %c0_2 = arith.constant 0 : index
    %c0_3 = arith.constant 0 : index
    %c0_4 = arith.constant 0 : index
    %2 = vector.load %arg1[%c0_2, %c0_3, %c0_4] : memref<4x512x128xbf16, #tpu.memory_space<vmem>>, vector<1x512x128xbf16>
    %3 = vector.shape_cast %2 : vector<1x512x128xbf16> to vector<512x128xbf16>
    %4 = arith.extf %3 : vector<512x128xbf16> to vector<512x128xf32>
    %cst = arith.constant dense<0.000000e+00> : vector<98x128xf32>
    %5 = tpu.matmul %1, %4, %cst {dimension_numbers = #tpu.dot_dimension_numbers<[1], [0], [0], [1], [0, 0, 1, 1], [], []>} : vector<98x512xf32>, vector<512x128xf32>, vector<98x128xf32> -> vector<98x128xf32>
    %c0_5 = arith.constant 0 : index
    %c0_6 = arith.constant 0 : index
    %6 = vector.load %arg2[%c0_5, %c0_6] : memref<1x128xf32, #tpu.memory_space<vmem>>, vector<1x128xf32>
    %7 = vector.broadcast %6 : vector<1x128xf32> to vector<98x128xf32>
    %8 = arith.addf %5, %7 : vector<98x128xf32>
    %c0_7 = arith.constant 0 : index
    %c0_8 = arith.constant 0 : index
    %c0_9 = arith.constant 0 : index
    %9 = vector.load %arg5[%c0_7, %c0_8, %c0_9] : memref<4x98x128xf32, #tpu.memory_space<vmem>>, vector<1x98x128xf32>
    %10 = vector.shape_cast %9 : vector<1x98x128xf32> to vector<98x128xf32>
    %11 = vector.shape_cast %8 : vector<98x128xf32> to vector<1x98x128xf32>
    tpu.vector_store %arg5[%c0_7, %c0_8, %c0_9], %11 {strides = array<i32>} : memref<4x98x128xf32, #tpu.memory_space<vmem>>, vector<1x98x128xf32>,
    %c1 = arith.constant 1 : index
    %c0_10 = arith.constant 0 : index
    %c0_11 = arith.constant 0 : index
    %12 = vector.load %arg0[%c1, %c0_10, %c0_11] : memref<4x98x512xf32, #tpu.memory_space<vmem>>, vector<1x98x512xf32>
    %13 = vector.shape_cast %12 : vector<1x98x512xf32> to vector<98x512xf32>
    %c1_12 = arith.constant 1 : index
    %c0_13 = arith.constant 0 : index
    %c0_14 = arith.constant 0 : index
    %14 = vector.load %arg1[%c1_12, %c0_13, %c0_14] : memref<4x512x128xbf16, #tpu.memory_space<vmem>>, vector<1x512x128xbf16>
    %15 = vector.shape_cast %14 : vector<1x512x128xbf16> to vector<512x128xbf16>
    %16 = arith.extf %15 : vector<512x128xbf16> to vector<512x128xf32>
    %cst_15 = arith.constant dense<0.000000e+00> : vector<98x128xf32>
    %17 = tpu.matmul %13, %16, %cst_15 {dimension_numbers = #tpu.dot_dimension_numbers<[1], [0], [0], [1], [0, 0, 1, 1], [], []>} : vector<98x512xf32>, vector<512x128xf32>, vector<98x128xf32> -> vector<98x128xf32>
    %c0_16 = arith.constant 0 : index
    %c0_17 = arith.constant 0 : index
    %18 = vector.load %arg2[%c0_16, %c0_17] : memref<1x128xf32, #tpu.memory_space<vmem>>, vector<1x128xf32>
    %19 = vector.broadcast %18 : vector<1x128xf32> to vector<98x128xf32>
    %20 = arith.addf %17, %19 : vector<98x128xf32>
    %c1_18 = arith.constant 1 : index
    %c0_19 = arith.constant 0 : index
    %c0_20 = arith.constant 0 : index
    %21 = vector.load %arg5[%c1_18, %c0_19, %c0_20] : memref<4x98x128xf32, #tpu.memory_space<vmem>>, vector<1x98x128xf32>
    %22 = vector.shape_cast %21 : vector<1x98x128xf32> to vector<98x128xf32>
    %23 = vector.shape_cast %20 : vector<98x128xf32> to vector<1x98x128xf32>
    tpu.vector_store %arg5[%c1_18, %c0_19, %c0_20], %23 {strides = array<i32>} : memref<4x98x128xf32, #tpu.memory_space<vmem>>, vector<1x98x128xf32>,
    %c2 = arith.constant 2 : index
    %c0_21 = arith.constant 0 : index
    %c0_22 = arith.constant 0 : index
    %24 = vector.load %arg0[%c2, %c0_21, %c0_22] : memref<4x98x512xf32, #tpu.memory_space<vmem>>, vector<1x98x512xf32>
    %25 = vector.shape_cast %24 : vector<1x98x512xf32> to vector<98x512xf32>
    %c2_23 = arith.constant 2 : index
    %c0_24 = arith.constant 0 : index
    %c0_25 = arith.constant 0 : index
    %26 = vector.load %arg1[%c2_23, %c0_24, %c0_25] : memref<4x512x128xbf16, #tpu.memory_space<vmem>>, vector<1x512x128xbf16>
    %27 = vector.shape_cast %26 : vector<1x512x128xbf16> to vector<512x128xbf16>
    %28 = arith.extf %27 : vector<512x128xbf16> to vector<512x128xf32>
    %cst_26 = arith.constant dense<0.000000e+00> : vector<98x128xf32>
    %29 = tpu.matmul %25, %28, %cst_26 {dimension_numbers = #tpu.dot_dimension_numbers<[1], [0], [0], [1], [0, 0, 1, 1], [], []>} : vector<98x512xf32>, vector<512x128xf32>, vector<98x128xf32> -> vector<98x128xf32>
    %c0_27 = arith.constant 0 : index
    %c0_28 = arith.constant 0 : index
    %30 = vector.load %arg2[%c0_27, %c0_28] : memref<1x128xf32, #tpu.memory_space<vmem>>, vector<1x128xf32>
    %31 = vector.broadcast %30 : vector<1x128xf32> to vector<98x128xf32>
    %32 = arith.addf %29, %31 : vector<98x128xf32>
    %c2_29 = arith.constant 2 : index
    %c0_30 = arith.constant 0 : index
    %c0_31 = arith.constant 0 : index
    %33 = vector.load %arg5[%c2_29, %c0_30, %c0_31] : memref<4x98x128xf32, #tpu.memory_space<vmem>>, vector<1x98x128xf32>
    %34 = vector.shape_cast %33 : vector<1x98x128xf32> to vector<98x128xf32>
    %35 = vector.shape_cast %32 : vector<98x128xf32> to vector<1x98x128xf32>
    tpu.vector_store %arg5[%c2_29, %c0_30, %c0_31], %35 {strides = array<i32>} : memref<4x98x128xf32, #tpu.memory_space<vmem>>, vector<1x98x128xf32>,
    %c3 = arith.constant 3 : index
    %c0_32 = arith.constant 0 : index
    %c0_33 = arith.constant 0 : index
    %36 = vector.load %arg0[%c3, %c0_32, %c0_33] : memref<4x98x512xf32, #tpu.memory_space<vmem>>, vector<1x98x512xf32>
    %37 = vector.shape_cast %36 : vector<1x98x512xf32> to vector<98x512xf32>
    %c3_34 = arith.constant 3 : index
    %c0_35 = arith.constant 0 : index
    %c0_36 = arith.constant 0 : index
    %38 = vector.load %arg1[%c3_34, %c0_35, %c0_36] : memref<4x512x128xbf16, #tpu.memory_space<vmem>>, vector<1x512x128xbf16>
    %39 = vector.shape_cast %38 : vector<1x512x128xbf16> to vector<512x128xbf16>
    %40 = arith.extf %39 : vector<512x128xbf16> to vector<512x128xf32>
    %cst_37 = arith.constant dense<0.000000e+00> : vector<98x128xf32>
    %41 = tpu.matmul %37, %40, %cst_37 {dimension_numbers = #tpu.dot_dimension_numbers<[1], [0], [0], [1], [0, 0, 1, 1], [], []>} : vector<98x512xf32>, vector<512x128xf32>, vector<98x128xf32> -> vector<98x128xf32>
    %c0_38 = arith.constant 0 : index
    %c0_39 = arith.constant 0 : index
    %42 = vector.load %arg2[%c0_38, %c0_39] : memref<1x128xf32, #tpu.memory_space<vmem>>, vector<1x128xf32>
    %43 = vector.broadcast %42 : vector<1x128xf32> to vector<98x128xf32>
    %44 = arith.addf %41, %43 : vector<98x128xf32>
    %c3_40 = arith.constant 3 : index
    %c0_41 = arith.constant 0 : index
    %c0_42 = arith.constant 0 : index
    %45 = vector.load %arg5[%c3_40, %c0_41, %c0_42] : memref<4x98x128xf32, #tpu.memory_space<vmem>>, vector<1x98x128xf32>
    %46 = vector.shape_cast %45 : vector<1x98x128xf32> to vector<98x128xf32>
    %47 = vector.shape_cast %44 : vector<98x128xf32> to vector<1x98x128xf32>
    tpu.vector_store %arg5[%c3_40, %c0_41, %c0_42], %47 {strides = array<i32>} : memref<4x98x128xf32, #tpu.memory_space<vmem>>, vector<1x98x128xf32>,
    %c0_43 = arith.constant 0 : index
    %c0_44 = arith.constant 0 : index
    %c0_45 = arith.constant 0 : index
    %48 = vector.load %arg5[%c0_43, %c0_44, %c0_45] : memref<4x98x128xf32, #tpu.memory_space<vmem>>, vector<4x98x128xf32>
    %cst_46 = arith.constant dense<0.000000e+00> : vector<4x128xf32>
    %49 = vector.multi_reduction <add>, %48, %cst_46 [1] : vector<4x98x128xf32> to vector<4x128xf32>
    %50 = vector.shape_cast %49 : vector<4x128xf32> to vector<4x1x128xf32>
    %cst_47 = arith.constant dense<0.000000e+00> : vector<1x128xf32>
    %51 = vector.multi_reduction <add>, %50, %cst_47 [0] : vector<4x1x128xf32> to vector<1x128xf32>
    %52 = vector.shape_cast %51 : vector<1x128xf32> to vector<1x1x128xf32>
    %cst_48 = arith.constant 3.920000e+02 : f32
    %53 = vector.broadcast %cst_48 : f32 to vector<1x1x128xf32>
    %54 = arith.divf %52, %53 : vector<1x1x128xf32>
    %55 = vector.broadcast %54 : vector<1x1x128xf32> to vector<4x98x128xf32>
    %56 = arith.subf %48, %55 : vector<4x98x128xf32>
    %57 = arith.mulf %56, %56 : vector<4x98x128xf32>
    %cst_49 = arith.constant dense<0.000000e+00> : vector<4x128xf32>
    %58 = vector.multi_reduction <add>, %57, %cst_49 [1] : vector<4x98x128xf32> to vector<4x128xf32>
    %59 = vector.shape_cast %58 : vector<4x128xf32> to vector<4x1x128xf32>
    %cst_50 = arith.constant dense<0.000000e+00> : vector<1x128xf32>
    %60 = vector.multi_reduction <add>, %59, %cst_50 [0] : vector<4x1x128xf32> to vector<1x128xf32>
    %61 = vector.shape_cast %60 : vector<1x128xf32> to vector<1x1x128xf32>
    %cst_51 = arith.constant 3.920000e+02 : f32
    %62 = vector.broadcast %cst_51 : f32 to vector<1x1x128xf32>
    %63 = arith.divf %61, %62 : vector<1x1x128xf32>
    %cst_52 = arith.constant 9.99999974E-6 : f32
    %64 = vector.broadcast %cst_52 : f32 to vector<1x1x128xf32>
    %65 = arith.addf %63, %64 : vector<1x1x128xf32>
    %66 = math.rsqrt %65 : vector<1x1x128xf32>
    %67 = vector.broadcast %66 : vector<1x1x128xf32> to vector<4x98x128xf32>
    %68 = arith.mulf %56, %67 : vector<4x98x128xf32>
    %c0_53 = arith.constant 0 : index
    %c0_54 = arith.constant 0 : index
    %69 = vector.load %arg3[%c0_53, %c0_54] : memref<1x128xf32, #tpu.memory_space<vmem>>, vector<1x128xf32>
    %70 = vector.shape_cast %69 : vector<1x128xf32> to vector<1x1x128xf32>
    %71 = vector.broadcast %70 : vector<1x1x128xf32> to vector<4x98x128xf32>
    %72 = arith.mulf %68, %71 : vector<4x98x128xf32>
    %c0_55 = arith.constant 0 : index
    %c0_56 = arith.constant 0 : index
    %73 = vector.load %arg4[%c0_55, %c0_56] : memref<1x128xf32, #tpu.memory_space<vmem>>, vector<1x128xf32>
    %74 = vector.shape_cast %73 : vector<1x128xf32> to vector<1x1x128xf32>
    %75 = vector.broadcast %74 : vector<1x1x128xf32> to vector<4x98x128xf32>
    %76 = arith.addf %72, %75 : vector<4x98x128xf32>
    %cst_57 = arith.constant 0.000000e+00 : f32
    %77 = vector.broadcast %cst_57 : f32 to vector<4x98x128xf32>
    %78 = arith.maximumf %76, %77 : vector<4x98x128xf32>
    %c0_58 = arith.constant 0 : index
    %c0_59 = arith.constant 0 : index
    %c0_60 = arith.constant 0 : index
    %79 = vector.load %arg5[%c0_58, %c0_59, %c0_60] : memref<4x98x128xf32, #tpu.memory_space<vmem>>, vector<4x98x128xf32>
    tpu.vector_store %arg5[%c0_58, %c0_59, %c0_60], %78 {strides = array<i32>} : memref<4x98x128xf32, #tpu.memory_space<vmem>>, vector<4x98x128xf32>,
    return
  }
}

module attributes {stable_mosaic.version = 11 : i64} {
  func.func @_deconv_tanh_kernel(%arg0: memref<4x392x256xf32, #tpu.memory_space<vmem>>, %arg1: memref<4x256x128xbf16, #tpu.memory_space<vmem>>, %arg2: memref<1x128xf32, #tpu.memory_space<vmem>>, %arg3: memref<4x392x128xf32, #tpu.memory_space<vmem>>) attributes {dimension_semantics = [], scalar_prefetch = 0 : i64, scratch_operands = 0 : i64, tpu.core_type = #tpu.core_type<tc>} {
    %c0 = arith.constant 0 : index
    %c0_0 = arith.constant 0 : index
    %c0_1 = arith.constant 0 : index
    %0 = vector.load %arg0[%c0, %c0_0, %c0_1] : memref<4x392x256xf32, #tpu.memory_space<vmem>>, vector<1x392x256xf32>
    %1 = vector.shape_cast %0 : vector<1x392x256xf32> to vector<392x256xf32>
    %c0_2 = arith.constant 0 : index
    %c0_3 = arith.constant 0 : index
    %c0_4 = arith.constant 0 : index
    %2 = vector.load %arg1[%c0_2, %c0_3, %c0_4] : memref<4x256x128xbf16, #tpu.memory_space<vmem>>, vector<1x256x128xbf16>
    %3 = vector.shape_cast %2 : vector<1x256x128xbf16> to vector<256x128xbf16>
    %4 = arith.extf %3 : vector<256x128xbf16> to vector<256x128xf32>
    %cst = arith.constant dense<0.000000e+00> : vector<392x128xf32>
    %5 = tpu.matmul %1, %4, %cst {dimension_numbers = #tpu.dot_dimension_numbers<[1], [0], [0], [1], [0, 0, 1, 1], [], []>} : vector<392x256xf32>, vector<256x128xf32>, vector<392x128xf32> -> vector<392x128xf32>
    %c0_5 = arith.constant 0 : index
    %c0_6 = arith.constant 0 : index
    %6 = vector.load %arg2[%c0_5, %c0_6] : memref<1x128xf32, #tpu.memory_space<vmem>>, vector<1x128xf32>
    %7 = vector.broadcast %6 : vector<1x128xf32> to vector<392x128xf32>
    %8 = arith.addf %5, %7 : vector<392x128xf32>
    %9 = math.tanh %8 : vector<392x128xf32>
    %c0_7 = arith.constant 0 : index
    %c0_8 = arith.constant 0 : index
    %c0_9 = arith.constant 0 : index
    %10 = vector.load %arg3[%c0_7, %c0_8, %c0_9] : memref<4x392x128xf32, #tpu.memory_space<vmem>>, vector<1x392x128xf32>
    %11 = vector.shape_cast %10 : vector<1x392x128xf32> to vector<392x128xf32>
    %12 = vector.shape_cast %9 : vector<392x128xf32> to vector<1x392x128xf32>
    tpu.vector_store %arg3[%c0_7, %c0_8, %c0_9], %12 {strides = array<i32>} : memref<4x392x128xf32, #tpu.memory_space<vmem>>, vector<1x392x128xf32>,
    %c1 = arith.constant 1 : index
    %c0_10 = arith.constant 0 : index
    %c0_11 = arith.constant 0 : index
    %13 = vector.load %arg0[%c1, %c0_10, %c0_11] : memref<4x392x256xf32, #tpu.memory_space<vmem>>, vector<1x392x256xf32>
    %14 = vector.shape_cast %13 : vector<1x392x256xf32> to vector<392x256xf32>
    %c1_12 = arith.constant 1 : index
    %c0_13 = arith.constant 0 : index
    %c0_14 = arith.constant 0 : index
    %15 = vector.load %arg1[%c1_12, %c0_13, %c0_14] : memref<4x256x128xbf16, #tpu.memory_space<vmem>>, vector<1x256x128xbf16>
    %16 = vector.shape_cast %15 : vector<1x256x128xbf16> to vector<256x128xbf16>
    %17 = arith.extf %16 : vector<256x128xbf16> to vector<256x128xf32>
    %cst_15 = arith.constant dense<0.000000e+00> : vector<392x128xf32>
    %18 = tpu.matmul %14, %17, %cst_15 {dimension_numbers = #tpu.dot_dimension_numbers<[1], [0], [0], [1], [0, 0, 1, 1], [], []>} : vector<392x256xf32>, vector<256x128xf32>, vector<392x128xf32> -> vector<392x128xf32>
    %c0_16 = arith.constant 0 : index
    %c0_17 = arith.constant 0 : index
    %19 = vector.load %arg2[%c0_16, %c0_17] : memref<1x128xf32, #tpu.memory_space<vmem>>, vector<1x128xf32>
    %20 = vector.broadcast %19 : vector<1x128xf32> to vector<392x128xf32>
    %21 = arith.addf %18, %20 : vector<392x128xf32>
    %22 = math.tanh %21 : vector<392x128xf32>
    %c1_18 = arith.constant 1 : index
    %c0_19 = arith.constant 0 : index
    %c0_20 = arith.constant 0 : index
    %23 = vector.load %arg3[%c1_18, %c0_19, %c0_20] : memref<4x392x128xf32, #tpu.memory_space<vmem>>, vector<1x392x128xf32>
    %24 = vector.shape_cast %23 : vector<1x392x128xf32> to vector<392x128xf32>
    %25 = vector.shape_cast %22 : vector<392x128xf32> to vector<1x392x128xf32>
    tpu.vector_store %arg3[%c1_18, %c0_19, %c0_20], %25 {strides = array<i32>} : memref<4x392x128xf32, #tpu.memory_space<vmem>>, vector<1x392x128xf32>,
    %c2 = arith.constant 2 : index
    %c0_21 = arith.constant 0 : index
    %c0_22 = arith.constant 0 : index
    %26 = vector.load %arg0[%c2, %c0_21, %c0_22] : memref<4x392x256xf32, #tpu.memory_space<vmem>>, vector<1x392x256xf32>
    %27 = vector.shape_cast %26 : vector<1x392x256xf32> to vector<392x256xf32>
    %c2_23 = arith.constant 2 : index
    %c0_24 = arith.constant 0 : index
    %c0_25 = arith.constant 0 : index
    %28 = vector.load %arg1[%c2_23, %c0_24, %c0_25] : memref<4x256x128xbf16, #tpu.memory_space<vmem>>, vector<1x256x128xbf16>
    %29 = vector.shape_cast %28 : vector<1x256x128xbf16> to vector<256x128xbf16>
    %30 = arith.extf %29 : vector<256x128xbf16> to vector<256x128xf32>
    %cst_26 = arith.constant dense<0.000000e+00> : vector<392x128xf32>
    %31 = tpu.matmul %27, %30, %cst_26 {dimension_numbers = #tpu.dot_dimension_numbers<[1], [0], [0], [1], [0, 0, 1, 1], [], []>} : vector<392x256xf32>, vector<256x128xf32>, vector<392x128xf32> -> vector<392x128xf32>
    %c0_27 = arith.constant 0 : index
    %c0_28 = arith.constant 0 : index
    %32 = vector.load %arg2[%c0_27, %c0_28] : memref<1x128xf32, #tpu.memory_space<vmem>>, vector<1x128xf32>
    %33 = vector.broadcast %32 : vector<1x128xf32> to vector<392x128xf32>
    %34 = arith.addf %31, %33 : vector<392x128xf32>
    %35 = math.tanh %34 : vector<392x128xf32>
    %c2_29 = arith.constant 2 : index
    %c0_30 = arith.constant 0 : index
    %c0_31 = arith.constant 0 : index
    %36 = vector.load %arg3[%c2_29, %c0_30, %c0_31] : memref<4x392x128xf32, #tpu.memory_space<vmem>>, vector<1x392x128xf32>
    %37 = vector.shape_cast %36 : vector<1x392x128xf32> to vector<392x128xf32>
    %38 = vector.shape_cast %35 : vector<392x128xf32> to vector<1x392x128xf32>
    tpu.vector_store %arg3[%c2_29, %c0_30, %c0_31], %38 {strides = array<i32>} : memref<4x392x128xf32, #tpu.memory_space<vmem>>, vector<1x392x128xf32>,
    %c3 = arith.constant 3 : index
    %c0_32 = arith.constant 0 : index
    %c0_33 = arith.constant 0 : index
    %39 = vector.load %arg0[%c3, %c0_32, %c0_33] : memref<4x392x256xf32, #tpu.memory_space<vmem>>, vector<1x392x256xf32>
    %40 = vector.shape_cast %39 : vector<1x392x256xf32> to vector<392x256xf32>
    %c3_34 = arith.constant 3 : index
    %c0_35 = arith.constant 0 : index
    %c0_36 = arith.constant 0 : index
    %41 = vector.load %arg1[%c3_34, %c0_35, %c0_36] : memref<4x256x128xbf16, #tpu.memory_space<vmem>>, vector<1x256x128xbf16>
    %42 = vector.shape_cast %41 : vector<1x256x128xbf16> to vector<256x128xbf16>
    %43 = arith.extf %42 : vector<256x128xbf16> to vector<256x128xf32>
    %cst_37 = arith.constant dense<0.000000e+00> : vector<392x128xf32>
    %44 = tpu.matmul %40, %43, %cst_37 {dimension_numbers = #tpu.dot_dimension_numbers<[1], [0], [0], [1], [0, 0, 1, 1], [], []>} : vector<392x256xf32>, vector<256x128xf32>, vector<392x128xf32> -> vector<392x128xf32>
    %c0_38 = arith.constant 0 : index
    %c0_39 = arith.constant 0 : index
    %45 = vector.load %arg2[%c0_38, %c0_39] : memref<1x128xf32, #tpu.memory_space<vmem>>, vector<1x128xf32>
    %46 = vector.broadcast %45 : vector<1x128xf32> to vector<392x128xf32>
    %47 = arith.addf %44, %46 : vector<392x128xf32>
    %48 = math.tanh %47 : vector<392x128xf32>
    %c3_40 = arith.constant 3 : index
    %c0_41 = arith.constant 0 : index
    %c0_42 = arith.constant 0 : index
    %49 = vector.load %arg3[%c3_40, %c0_41, %c0_42] : memref<4x392x128xf32, #tpu.memory_space<vmem>>, vector<1x392x128xf32>
    %50 = vector.shape_cast %49 : vector<1x392x128xf32> to vector<392x128xf32>
    %51 = vector.shape_cast %48 : vector<392x128xf32> to vector<1x392x128xf32>
    tpu.vector_store %arg3[%c3_40, %c0_41, %c0_42], %51 {strides = array<i32>} : memref<4x392x128xf32, #tpu.memory_space<vmem>>, vector<1x392x128xf32>,
    return
  }
}

</mosaic_0001>

<llo_original>
// kernel: generator_forward.3
$region0: #{generator_forward.3}
  #allocation0 [shape = 'u32[]', space=smem, size = 0x4, offset = 0x4, fixed_abs, tag = 'smem constant byte address 0x4 - core index']
  #allocation1 [shape = 'u32[72,128]{1,0:T(1,128)}', space=vmem, size = 0x9000, scoped, tag = 'internal scratch']
  %s0 = inlined_call_operand.vmem [shape: f32[2,12], index: 0, kind: input, shape index: {}]
  %s1 = inlined_call_operand.hbm [shape: bf16[12,1024], index: 1, kind: input, shape index: {}]
  %s2 = inlined_call_operand.hbm [shape: f32[1,1024], index: 2, kind: input, shape index: {}]
  %s3 = inlined_call_operand.hbm [shape: f32[1,1024], index: 3, kind: input, shape index: {}]
  %s4 = inlined_call_operand.hbm [shape: f32[1,1024], index: 4, kind: input, shape index: {}]
  %s5 = inlined_call_operand.hbm [shape: bf16[1024,6272], index: 5, kind: input, shape index: {}]
  %s6 = inlined_call_operand.vmem [shape: f32[1,6272], index: 6, kind: input, shape index: {}]
  %s7 = inlined_call_operand.vmem [shape: f32[1,6272], index: 7, kind: input, shape index: {}]
  %s8 = inlined_call_operand.vmem [shape: f32[1,6272], index: 8, kind: input, shape index: {}]
  %s9 = inlined_call_operand.vmem [shape: f32[2,6272], index: 9, kind: output, shape index: {}]
  %s10 = sld [smem:[#allocation0]]
  $region89: #{generator_forward.3} parent=0
    _
  %s12 = ssub.s32 1, %s10
  %s13 = scalar_select 0, %s12, %s10
  $region1: #{generator_forward.3} parent=0
    #allocation2 [shape = 'u8[32768]{0}', space=vmem, size = 0x8000, scoped, tag = 'input window, operand 1, single buffered']
    #allocation3 [shape = 's32[2]{0}', space=sflag, size = 0x8, scoped, tag = 'scoped memory for generator_forward.3']
    #allocation4 [shape = 'u8[4096]{0}', space=vmem, size = 0x1000, scoped, tag = 'input window, operand 2, single buffered']
    #allocation5 [shape = 's32[1]{0}', space=sflag, size = 0x4, scoped, tag = 'scoped memory for generator_forward.3']
    #allocation6 [shape = 'u8[4096]{0}', space=vmem, size = 0x1000, scoped, tag = 'input window, operand 3, single buffered']
    #allocation7 [shape = 'u8[4096]{0}', space=vmem, size = 0x1000, scoped, tag = 'input window, operand 4, single buffered']
    #allocation8 [shape = 's32[1]{0}', space=sflag, size = 0x4, scoped, tag = 'scoped memory for generator_forward.3']
    #allocation9 [shape = 'u8[3670016]{0}', space=vmem, size = 0x380000, scoped, tag = 'input window, operand 5']
    %14 = vsyncpa [#allocation3], 0
    %15 = vsyncpa [#allocation5], 0
    %16 = vsyncpa [#allocation8], 0
    loop: start=0, step=1, limit=9
    $region2: #{generator_forward.3} parent=1 // loop_pre_header
      _
    $region3: #{generator_forward.3} parent=1 // loop_header
      %s18 = sphi 0, %s22
      %p19 = scmp.ge.s32.totalorder %s18, 9
      %s26 = sphi 0, %s26
      %s28 = sphi 0, %s26
      %s29 = sphi 0, %s28
      %s43 = sphi 0, %s29
      %s47 = sphi 0, %s47
      %s49 = sphi 0, %s47
      %s50 = sphi 0, %s49
      %s64 = sphi 0, %s50
      %s68 = sphi 0, %s68
      %s70 = sphi 0, %s68
      %s71 = sphi 0, %s70
      %s85 = sphi 0, %s71
      %s89 = sphi 0, %s89
      %s91 = sphi 0, %s89
      %s92 = sphi 0, %s91
      %s106 = sphi 0, %s92
      %s110 = sphi 0, %s110
      %s112 = sphi 0, %s110
      %s113 = sphi 0, %s112
      %s127 = sphi 0, %s113
      %s133 = sphi 0, %s135
      %s136 = sphi 0, %s133
      %s137 = sphi 0, %s136
      %s153 = sphi 0, %s137
      %s159 = sphi 0, %s161
      %s162 = sphi 0, %s159
      %s163 = sphi 0, %s162
      %s179 = sphi 0, %s163
      %s185 = sphi 0, %s187
      %s188 = sphi 0, %s185
      %s189 = sphi 0, %s188
      %s205 = sphi 0, %s189
      %s211 = sphi 0, %s213
      %s214 = sphi 0, %s211
      %s215 = sphi 0, %s214
      %s231 = sphi 0, %s215
      %s237 = sphi 0, %s239
      %s240 = sphi 0, %s237
      %s241 = sphi 0, %s240
      %s257 = sphi 0, %s241
    $region4: #{generator_forward.3} parent=1 // loop_header_branch
      %21 = sbr.rel (%p19) target = $region8
    $region5: #{generator_forward.3} parent=1 // loop_body
      %s23 = ssub.s32 %s18, 1
      %s24 = ssub.s32 %s18, 2
      %s25 = sadd.s32 %s18, 1
      %s27 = sadd.s32 %s26, 1
      %p30 = scmp.eq.s32.totalorder %s18, 6
      %p31 = scmp.ne.s32.totalorder %s26, %s28
      %p32 = scmp.eq.s32.totalorder %s18, 0
      %p33 = por %p31, %p32
      %p34 = scmp.ne.s32.totalorder %s26, %s28
      %p35 = scmp.eq.s32.totalorder %s23, 6
      %p36 = por %p34, %p35
      %p37 = scmp.ne.s32.totalorder %s28, %s29
      %p38 = scmp.eq.s32.totalorder %s23, 0
      %p39 = por %p37, %p38
      %p40 = scmp.ne.s32.totalorder %s28, %s29
      %p41 = scmp.eq.s32.totalorder %s24, 6
      %p42 = por %p40, %p41
      %p44 = scmp.ne.s32.totalorder %s29, %s43
      %p45 = scmp.eq.s32.totalorder %s24, 0
      %p46 = por %p44, %p45
      %s48 = sadd.s32 %s47, 1
      %p51 = scmp.eq.s32.totalorder %s18, 6
      %p52 = scmp.ne.s32.totalorder %s47, %s49
      %p53 = scmp.eq.s32.totalorder %s18, 0
      %p54 = por %p52, %p53
      %p55 = scmp.ne.s32.totalorder %s47, %s49
      %p56 = scmp.eq.s32.totalorder %s23, 6
      %p57 = por %p55, %p56
      %p58 = scmp.ne.s32.totalorder %s49, %s50
      %p59 = scmp.eq.s32.totalorder %s23, 0
      %p60 = por %p58, %p59
      %p61 = scmp.ne.s32.totalorder %s49, %s50
      %p62 = scmp.eq.s32.totalorder %s24, 6
      %p63 = por %p61, %p62
      %p65 = scmp.ne.s32.totalorder %s50, %s64
      %p66 = scmp.eq.s32.totalorder %s24, 0
      %p67 = por %p65, %p66
      %s69 = sadd.s32 %s68, 1
      %p72 = scmp.eq.s32.totalorder %s18, 6
      %p73 = scmp.ne.s32.totalorder %s68, %s70
      %p74 = scmp.eq.s32.totalorder %s18, 0
      %p75 = por %p73, %p74
      %p76 = scmp.ne.s32.totalorder %s68, %s70
      %p77 = scmp.eq.s32.totalorder %s23, 6
      %p78 = por %p76, %p77
      %p79 = scmp.ne.s32.totalorder %s70, %s71
      %p80 = scmp.eq.s32.totalorder %s23, 0
      %p81 = por %p79, %p80
      %p82 = scmp.ne.s32.totalorder %s70, %s71
      %p83 = scmp.eq.s32.totalorder %s24, 6
      %p84 = por %p82, %p83
      %p86 = scmp.ne.s32.totalorder %s71, %s85
      %p87 = scmp.eq.s32.totalorder %s24, 0
      %p88 = por %p86, %p87
      %s90 = sadd.s32 %s89, 1
      %p93 = scmp.eq.s32.totalorder %s18, 6
      %p94 = scmp.ne.s32.totalorder %s89, %s91
      %p95 = scmp.eq.s32.totalorder %s18, 0
      %p96 = por %p94, %p95
      %p97 = scmp.ne.s32.totalorder %s89, %s91
      %p98 = scmp.eq.s32.totalorder %s23, 6
      %p99 = por %p97, %p98
      %p100 = scmp.ne.s32.totalorder %s91, %s92
      %p101 = scmp.eq.s32.totalorder %s23, 0
      %p102 = por %p100, %p101
      %p103 = scmp.ne.s32.totalorder %s91, %s92
      %p104 = scmp.eq.s32.totalorder %s24, 6
      %p105 = por %p103, %p104
      %p107 = scmp.ne.s32.totalorder %s92, %s106
      %p108 = scmp.eq.s32.totalorder %s24, 0
      %p109 = por %p107, %p108
      %s111 = sadd.s32 %s110, 1
      %p114 = scmp.eq.s32.totalorder %s18, 6
      %p115 = scmp.ne.s32.totalorder %s110, %s112
      %p116 = scmp.eq.s32.totalorder %s18, 0
      %p117 = por %p115, %p116
      %p118 = scmp.ne.s32.totalorder %s110, %s112
      %p119 = scmp.eq.s32.totalorder %s23, 6
      %p120 = por %p118, %p119
      %p121 = scmp.ne.s32.totalorder %s112, %s113
      %p122 = scmp.eq.s32.totalorder %s23, 0
      %p123 = por %p121, %p122
      %p124 = scmp.ne.s32.totalorder %s112, %s113
      %p125 = scmp.eq.s32.totalorder %s24, 6
      %p126 = por %p124, %p125
      %p128 = scmp.ne.s32.totalorder %s113, %s127
      %p129 = scmp.eq.s32.totalorder %s24, 0
      %p130 = por %p128, %p129
      %s131 = ssub.s32 %s18, %s25
      %p132 = scmp.eq.s32.totalorder %s131, 0
      %s134 = sadd.s32 %s133, 1
      %s135 = scalar_select %p132, %s133, %s134
      %p138 = pneg %p132
      %p139 = scmp.eq.s32.totalorder %s18, 6
      %p140 = por %p138, %p139
      %p141 = scmp.ne.s32.totalorder %s133, %s136
      %p142 = scmp.eq.s32.totalorder %s18, 0
      %p143 = por %p141, %p142
      %p144 = scmp.ne.s32.totalorder %s133, %s136
      %p145 = scmp.eq.s32.totalorder %s23, 6
      %p146 = por %p144, %p145
      %p147 = scmp.ne.s32.totalorder %s136, %s137
      %p148 = scmp.eq.s32.totalorder %s23, 0
      %p149 = por %p147, %p148
      %p150 = scmp.ne.s32.totalorder %s136, %s137
      %p151 = scmp.eq.s32.totalorder %s24, 6
      %p152 = por %p150, %p151
      %p154 = scmp.ne.s32.totalorder %s137, %s153
      %p155 = scmp.eq.s32.totalorder %s24, 0
      %p156 = por %p154, %p155
      %s157 = ssub.s32 %s18, %s25
      %p158 = scmp.eq.s32.totalorder %s157, 0
      %s160 = sadd.s32 %s159, 1
      %s161 = scalar_select %p158, %s159, %s160
      %p164 = pneg %p158
      %p165 = scmp.eq.s32.totalorder %s18, 6
      %p166 = por %p164, %p165
      %p167 = scmp.ne.s32.totalorder %s159, %s162
      %p168 = scmp.eq.s32.totalorder %s18, 0
      %p169 = por %p167, %p168
      %p170 = scmp.ne.s32.totalorder %s159, %s162
      %p171 = scmp.eq.s32.totalorder %s23, 6
      %p172 = por %p170, %p171
      %p173 = scmp.ne.s32.totalorder %s162, %s163
      %p174 = scmp.eq.s32.totalorder %s23, 0
      %p175 = por %p173, %p174
      %p176 = scmp.ne.s32.totalorder %s162, %s163
      %p177 = scmp.eq.s32.totalorder %s24, 6
      %p178 = por %p176, %p177
      %p180 = scmp.ne.s32.totalorder %s163, %s179
      %p181 = scmp.eq.s32.totalorder %s24, 0
      %p182 = por %p180, %p181
      %s183 = ssub.s32 %s18, %s25
      %p184 = scmp.eq.s32.totalorder %s183, 0
      %s186 = sadd.s32 %s185, 1
      %s187 = scalar_select %p184, %s185, %s186
      %p190 = pneg %p184
      %p191 = scmp.eq.s32.totalorder %s18, 6
      %p192 = por %p190, %p191
      %p193 = scmp.ne.s32.totalorder %s185, %s188
      %p194 = scmp.eq.s32.totalorder %s18, 0
      %p195 = por %p193, %p194
      %p196 = scmp.ne.s32.totalorder %s185, %s188
      %p197 = scmp.eq.s32.totalorder %s23, 6
      %p198 = por %p196, %p197
      %p199 = scmp.ne.s32.totalorder %s188, %s189
      %p200 = scmp.eq.s32.totalorder %s23, 0
      %p201 = por %p199, %p200
      %p202 = scmp.ne.s32.totalorder %s188, %s189
      %p203 = scmp.eq.s32.totalorder %s24, 6
      %p204 = por %p202, %p203
      %p206 = scmp.ne.s32.totalorder %s189, %s205
      %p207 = scmp.eq.s32.totalorder %s24, 0
      %p208 = por %p206, %p207
      %s209 = ssub.s32 %s18, %s25
      %p210 = scmp.eq.s32.totalorder %s209, 0
      %s212 = sadd.s32 %s211, 1
      %s213 = scalar_select %p210, %s211, %s212
      %p216 = pneg %p210
      %p217 = scmp.eq.s32.totalorder %s18, 6
      %p218 = por %p216, %p217
      %p219 = scmp.ne.s32.totalorder %s211, %s214
      %p220 = scmp.eq.s32.totalorder %s18, 0
      %p221 = por %p219, %p220
      %p222 = scmp.ne.s32.totalorder %s211, %s214
      %p223 = scmp.eq.s32.totalorder %s23, 6
      %p224 = por %p222, %p223
      %p225 = scmp.ne.s32.totalorder %s214, %s215
      %p226 = scmp.eq.s32.totalorder %s23, 0
      %p227 = por %p225, %p226
      %p228 = scmp.ne.s32.totalorder %s214, %s215
      %p229 = scmp.eq.s32.totalorder %s24, 6
      %p230 = por %p228, %p229
      %p232 = scmp.ne.s32.totalorder %s215, %s231
      %p233 = scmp.eq.s32.totalorder %s24, 0
      %p234 = por %p232, %p233
      %s235 = ssub.s32 %s18, %s25
      %p236 = scmp.eq.s32.totalorder %s235, 0
      %s238 = sadd.s32 %s237, 1
      %s239 = scalar_select %p236, %s237, %s238
      %p242 = pneg %p236
      %p243 = scmp.eq.s32.totalorder %s18, 6
      %p244 = por %p242, %p243
      %p245 = scmp.ne.s32.totalorder %s237, %s240
      %p246 = scmp.eq.s32.totalorder %s18, 0
      %p247 = por %p245, %p246
      %p248 = scmp.ne.s32.totalorder %s237, %s240
      %p249 = scmp.eq.s32.totalorder %s23, 6
      %p250 = por %p248, %p249
      %p251 = scmp.ne.s32.totalorder %s240, %s241
      %p252 = scmp.eq.s32.totalorder %s23, 0
      %p253 = por %p251, %p252
      %p254 = scmp.ne.s32.totalorder %s240, %s241
      %p255 = scmp.eq.s32.totalorder %s24, 6
      %p256 = por %p254, %p255
      %p258 = scmp.ne.s32.totalorder %s241, %s257
      %p259 = scmp.eq.s32.totalorder %s24, 0
      %p260 = por %p258, %p259
      %p261 = scmp.le.s32.totalorder 1, %s18
      %p262 = scmp.lt.s32.totalorder %s18, 8
      %p263 = pnand %p261, %p262
      %p264 = pneg %p263
      // Predicated region
      $region9: #{generator_forward.3} parent=5 // pred_check
        _
      $region10: #{generator_forward.3} parent=5 // pred_check_branch
        %266 = sbr.rel (%p263) target = $region12
      $region11: #{generator_forward.3} parent=5 // pred_region
        %s267 = ssub.s32 %s18, 1
        // Predicated region
        $region13: #{generator_forward.3} parent=11 // pred_check
          %p268 = pneg %p39
        $region14: #{generator_forward.3} parent=11 // pred_check_branch
          %270 = sbr.rel (%p268) target = $region16
        $region15: #{generator_forward.3} parent=11 // pred_region
          _
        $region16: #{generator_forward.3} parent=11 // pred_fallthru
          _
        // Predicated region
        $region17: #{generator_forward.3} parent=11 // pred_check
          %p271 = pneg %p60
        $region18: #{generator_forward.3} parent=11 // pred_check_branch
          %273 = sbr.rel (%p271) target = $region20
        $region19: #{generator_forward.3} parent=11 // pred_region
          %275 = vsyncadd [#allocation3], 0
          %s276 = sshll.u32 %s1, 4
          %s277 = int_to_ptr.hbm [resolvable:$true] %s276
          %s278 = sshll.u32 [#allocation2], 4
          %s279 = int_to_ptr.vmem [resolvable:$true] %s278
          %284 = dma.hbm_to_vmem [thread:$0]  %s277, 1024, %s279, [#allocation3], 512, 512, 32
        $region20: #{generator_forward.3} parent=11 // pred_fallthru
          _
        // Predicated region
        $region21: #{generator_forward.3} parent=11 // pred_check
          %p285 = pneg %p81
        $region22: #{generator_forward.3} parent=11 // pred_check_branch
          %287 = sbr.rel (%p285) target = $region24
        $region23: #{generator_forward.3} parent=11 // pred_region
          %289 = vsyncadd [#allocation5], 0
          %s291 = sshll.u32 %s2, 4
          %s292 = int_to_ptr.hbm [resolvable:$true] %s291
          %s293 = sshll.u32 [#allocation4], 4
          %s294 = int_to_ptr.vmem [resolvable:$true] %s293
          %296 = dma.hbm_to_vmem [thread:$0]  %s292, 128, %s294, [#allocation5]
        $region24: #{generator_forward.3} parent=11 // pred_fallthru
          _
        // Predicated region
        $region25: #{generator_forward.3} parent=11 // pred_check
          %p297 = pneg %p102
        $region26: #{generator_forward.3} parent=11 // pred_check_branch
          %299 = sbr.rel (%p297) target = $region28
        $region27: #{generator_forward.3} parent=11 // pred_region
          %301 = vsyncadd [#allocation5], 0
          %s303 = sshll.u32 %s3, 4
          %s304 = int_to_ptr.hbm [resolvable:$true] %s303
          %s305 = sshll.u32 [#allocation6], 4
          %s306 = int_to_ptr.vmem [resolvable:$true] %s305
          %308 = dma.hbm_to_vmem [thread:$0]  %s304, 128, %s306, [#allocation5]
        $region28: #{generator_forward.3} parent=11 // pred_fallthru
          _
        // Predicated region
        $region29: #{generator_forward.3} parent=11 // pred_check
          %p309 = pneg %p123
        $region30: #{generator_forward.3} parent=11 // pred_check_branch
          %311 = sbr.rel (%p309) target = $region32
        $region31: #{generator_forward.3} parent=11 // pred_region
          %313 = vsyncadd [#allocation8], 0
          %s315 = sshll.u32 %s4, 4
          %s316 = int_to_ptr.hbm [resolvable:$true] %s315
          %s317 = sshll.u32 [#allocation7], 4
          %s318 = int_to_ptr.vmem [resolvable:$true] %s317
          %320 = dma.hbm_to_vmem [thread:$0]  %s316, 128, %s318, [#allocation8]
        $region32: #{generator_forward.3} parent=11 // pred_fallthru
          _
      $region12: #{generator_forward.3} parent=5 // pred_fallthru
        _
      %p321 = scmp.lt.s32.totalorder %s18, 7
      // Predicated region
      $region33: #{generator_forward.3} parent=5 // pred_check
        %p322 = pneg %p321
      $region34: #{generator_forward.3} parent=5 // pred_check_branch
        %324 = sbr.rel (%p322) target = $region36
      $region35: #{generator_forward.3} parent=5 // pred_region
        // Predicated region
        $region37: #{generator_forward.3} parent=35 // pred_check
          %p325 = pneg %p143
        $region38: #{generator_forward.3} parent=35 // pred_check_branch
          %327 = sbr.rel (%p325) target = $region40
        $region39: #{generator_forward.3} parent=35 // pred_region
          %s328 = sand.u32 %s18, 1
          %s329 = scalar_lea.sflag [#allocation3], %s328
          %s330 = sand.u32 %s133, 1
          %s331 = smul.addr %s330, 3584
          %s332 = scalar_lea.vmem [#allocation9], %s331
          %s333 = smul.u32 7, %s18
          %335 = vsyncadd %s329, 0
          %s336 = smul.addr %s333, 4
          %s337 = scalar_lea.hbm %s5, %s336
          %s338 = sshll.u32 %s337, 4
          %s339 = int_to_ptr.hbm [resolvable:$true] %s338
          %s340 = sshll.u32 %s332, 4
          %s341 = int_to_ptr.vmem [resolvable:$true] %s340
          %346 = dma.hbm_to_vmem [thread:$0]  %s339, 57344, %s341, %s329, 3136, 448, 28
        $region40: #{generator_forward.3} parent=35 // pred_fallthru
          _
        // Predicated region
        $region41: #{generator_forward.3} parent=35 // pred_check
          %p347 = pneg %p169
        $region42: #{generator_forward.3} parent=35 // pred_check_branch
          %349 = sbr.rel (%p347) target = $region44
        $region43: #{generator_forward.3} parent=35 // pred_region
          %s350 = smul.u32 7, %s18
          %p351 = scmp.lt.s32.totalorder %s350, 48
          %s352 = scalar_select %p351, %s350, 48
          %s353 = scalar_lea.vmem %s6, %s352
          %s354 = smul.u32 7, %s18
        $region44: #{generator_forward.3} parent=35 // pred_fallthru
          _
        // Predicated region
        $region45: #{generator_forward.3} parent=35 // pred_check
          %p355 = pneg %p195
        $region46: #{generator_forward.3} parent=35 // pred_check_branch
          %357 = sbr.rel (%p355) target = $region48
        $region47: #{generator_forward.3} parent=35 // pred_region
          %s358 = smul.u32 7, %s18
          %p359 = scmp.lt.s32.totalorder %s358, 48
          %s360 = scalar_select %p359, %s358, 48
          %s361 = scalar_lea.vmem %s7, %s360
          %s362 = smul.u32 7, %s18
        $region48: #{generator_forward.3} parent=35 // pred_fallthru
          _
        // Predicated region
        $region49: #{generator_forward.3} parent=35 // pred_check
          %p363 = pneg %p221
        $region50: #{generator_forward.3} parent=35 // pred_check_branch
          %365 = sbr.rel (%p363) target = $region52
        $region51: #{generator_forward.3} parent=35 // pred_region
          %s366 = smul.u32 7, %s18
          %p367 = scmp.lt.s32.totalorder %s366, 48
          %s368 = scalar_select %p367, %s366, 48
          %s369 = scalar_lea.vmem %s8, %s368
          %s370 = smul.u32 7, %s18
        $region52: #{generator_forward.3} parent=35 // pred_fallthru
          _
      $region36: #{generator_forward.3} parent=5 // pred_fallthru
        _
      %p371 = scmp.le.s32.totalorder 1, %s18
      %p372 = scmp.lt.s32.totalorder %s18, 8
      %p373 = pnand %p371, %p372
      %p374 = pneg %p373
      // Predicated region
      $region53: #{generator_forward.3} parent=5 // pred_check
        _
      $region54: #{generator_forward.3} parent=5 // pred_check_branch
        %376 = sbr.rel (%p373) target = $region56
      $region55: #{generator_forward.3} parent=5 // pred_region
        %s377 = ssub.s32 %s18, 1
        // Predicated region
        $region57: #{generator_forward.3} parent=55 // pred_check
          %p378 = pneg %p60
        $region58: #{generator_forward.3} parent=55 // pred_check_branch
          %380 = sbr.rel (%p378) target = $region60
        $region59: #{generator_forward.3} parent=55 // pred_region
          %382 = dma.done [#allocation3], 1024
        $region60: #{generator_forward.3} parent=55 // pred_fallthru
          _
        // Predicated region
        $region61: #{generator_forward.3} parent=55 // pred_check
          %p383 = pneg %p81
        $region62: #{generator_forward.3} parent=55 // pred_check_branch
          %385 = sbr.rel (%p383) target = $region64
        $region63: #{generator_forward.3} parent=55 // pred_region
          %387 = dma.done [#allocation5], 128
        $region64: #{generator_forward.3} parent=55 // pred_fallthru
          _
        // Predicated region
        $region65: #{generator_forward.3} parent=55 // pred_check
          %p388 = pneg %p102
        $region66: #{generator_forward.3} parent=55 // pred_check_branch
          %390 = sbr.rel (%p388) target = $region68
        $region67: #{generator_forward.3} parent=55 // pred_region
          %392 = dma.done [#allocation5], 128
        $region68: #{generator_forward.3} parent=55 // pred_fallthru
          _
        // Predicated region
        $region69: #{generator_forward.3} parent=55 // pred_check
          %p393 = pneg %p123
        $region70: #{generator_forward.3} parent=55 // pred_check_branch
          %395 = sbr.rel (%p393) target = $region72
        $region71: #{generator_forward.3} parent=55 // pred_region
          %397 = dma.done [#allocation8], 128
        $region72: #{generator_forward.3} parent=55 // pred_fallthru
          _
        %s398 = sand.u32 %s23, 1
        %s399 = scalar_lea.sflag [#allocation3], %s398
        %s400 = sand.u32 %s136, 1
        %s401 = smul.addr %s400, 3584
        %s402 = scalar_lea.vmem [#allocation9], %s401
        // Predicated region
        $region73: #{generator_forward.3} parent=55 // pred_check
          %p403 = pneg %p149
        $region74: #{generator_forward.3} parent=55 // pred_check_branch
          %405 = sbr.rel (%p403) target = $region76
        $region75: #{generator_forward.3} parent=55 // pred_region
          %407 = dma.done %s399, 57344
        $region76: #{generator_forward.3} parent=55 // pred_fallthru
          _
        %p408 = pneg %p39
        %p409 = pneg %p36
        %p410 = pneg %p60
        %p411 = pneg %p57
        %p412 = pneg %p81
        %p413 = pneg %p78
        %p414 = pneg %p102
        %p415 = pneg %p99
        %p416 = pneg %p123
        %p417 = pneg %p120
        %s418 = sand.u32 %s23, 1
        %s419 = scalar_lea.sflag [#allocation3], %s418
        %s420 = sand.u32 %s136, 1
        %s421 = smul.addr %s420, 3584
        %s422 = scalar_lea.vmem [#allocation9], %s421
        %p423 = pneg %p149
        %p424 = pneg %p146
        %s425 = smul.u32 7, %s23
        %p426 = scmp.lt.s32.totalorder %s425, 48
        %s427 = scalar_select %p426, %s425, 48
        %s428 = scalar_lea.vmem %s6, %s427
        %p429 = pneg %p175
        %p430 = pneg %p172
        %s431 = smul.u32 7, %s23
        %p432 = scmp.lt.s32.totalorder %s431, 48
        %s433 = scalar_select %p432, %s431, 48
        %s434 = scalar_lea.vmem %s7, %s433
        %p435 = pneg %p201
        %p436 = pneg %p198
        %s437 = smul.u32 7, %s23
        %p438 = scmp.lt.s32.totalorder %s437, 48
        %s439 = scalar_select %p438, %s437, 48
        %s440 = scalar_lea.vmem %s8, %s439
        %p441 = pneg %p227
        %p442 = pneg %p224
        %p443 = pneg %p253
        %p444 = pneg %p250
        %s445 = smul.u32 7, %s23
        %p446 = scmp.lt.s32.totalorder %s445, 48
        %s447 = scalar_select %p446, %s445, 48
        %s448 = smul.addr %s447, 2
        %s449 = scalar_lea.vmem %s9, %s448
        %s450 = smul.u32 7, %s23
        %s451 = smul.u32 7, %s23
        %p452 = scmp.lt.s32.totalorder %s451, 48
        %s453 = scalar_select %p452, %s451, 48
        %s454 = scalar_lea.vmem %s6, %s453
        %s455 = smul.u32 7, %s23
        %s456 = smul.u32 7, %s23
        %p457 = scmp.lt.s32.totalorder %s456, 48
        %s458 = scalar_select %p457, %s456, 48
        %s459 = scalar_lea.vmem %s7, %s458
        %s460 = smul.u32 7, %s23
        %s461 = smul.u32 7, %s23
        %p462 = scmp.lt.s32.totalorder %s461, 48
        %s463 = scalar_select %p462, %s461, 48
        %s464 = scalar_lea.vmem %s8, %s463
        %s465 = smul.u32 7, %s23
        %s466 = smul.u32 7, %s23
        %p467 = scmp.lt.s32.totalorder %s466, 48
        %s468 = scalar_select %p467, %s466, 48
        %s469 = smul.addr %s468, 2
        %s470 = scalar_lea.vmem %s9, %s469
        %s471 = smul.u32 7, %s23
        %v472 = vld [vmem:[%s0] sm:$0x3]
        %v473 = vld [vmem:[#allocation2] sm:$0xff]
        %v474 = vld [vmem:[#allocation2 + $0x8] sm:$0xff]
        %v475 = vld [vmem:[#allocation2 + $0x10] sm:$0xff]
        %v476 = vld [vmem:[#allocation2 + $0x18] sm:$0xff]
        %v477 = vld [vmem:[#allocation2 + $0x20] sm:$0x33]
        %v478 = vld [vmem:[#allocation2 + $0x28] sm:$0x33]
        %v479 = vld [vmem:[#allocation2 + $0x30] sm:$0x33]
        %v480 = vld [vmem:[#allocation2 + $0x38] sm:$0x33]
        %v481 = vunpack.c.l.bf16 %v473
        %v482 = vunpack.c.h.bf16 %v473
        %v483 = vunpack.c.l.bf16 %v474
        %v484 = vunpack.c.h.bf16 %v474
        %v485 = vunpack.c.l.bf16 %v475
        %v486 = vunpack.c.h.bf16 %v475
        %v487 = vunpack.c.l.bf16 %v476
        %v488 = vunpack.c.h.bf16 %v476
        %v489 = vunpack.c.l.bf16 %v477
        %v490 = vunpack.c.h.bf16 %v477
        %v491 = vunpack.c.l.bf16 %v478
        %v492 = vunpack.c.h.bf16 %v478
        %v493 = vunpack.c.l.bf16 %v479
        %v494 = vunpack.c.h.bf16 %v479
        %v495 = vunpack.c.l.bf16 %v480
        %v496 = vunpack.c.h.bf16 %v480
        %v497 = vld [vmem:[#allocation4] sm:$0xff]
        %v499 = vperm.slane %v497, 0
        %v500 = vperm.slane %v497, 1
        %v501 = vperm.slane %v497, 2
        %v502 = vperm.slane %v497, 3
        %v503 = vperm.slane %v497, 4
        %v504 = vperm.slane %v497, 5
        %v505 = vperm.slane %v497, 6
        %v506 = vperm.slane %v497, 7
        %vm515 = vcmask 97280
        %v517 = vsel %vm515, %v472, 0
        %vm519 = vcmask 1043456
        %v521 = vsel %vm519, %v489, 0
        %v524 = vsel %vm519, %v490, 0
        %v527 = vsel %vm519, %v491, 0
        %v530 = vsel %vm519, %v492, 0
        %v533 = vsel %vm519, %v493, 0
        %v536 = vsel %vm519, %v494, 0
        %v539 = vsel %vm519, %v495, 0
        %v542 = vsel %vm519, %v496, 0
        %544 = vmatpush.msra.mxu0 0.0
        %545 = vmatpush.msra.mxu0 0.0
        %546 = vmatpush.msra.mxu0 0.0
        %547 = vmatpush.msra.mxu0 0.0
        %548 = vmatpush.msra.mxu0 0.0
        %549 = vmatpush.msra.mxu0 0.0
        %550 = vmatpush.msra.mxu0 0.0
        %551 = vmatpush.msra.mxu0 0.0
        %552 = vmatpush.msra.mxu0 0.0
        %553 = vmatpush.msra.mxu0 0.0
        %554 = vmatpush.msra.mxu0 0.0
        %555 = vmatpush.msra.mxu0 0.0
        %556 = vmatpush.msra.mxu0 0.0
        %557 = vmatpush.msra.mxu0 0.0
        %558 = vmatpush.msra.mxu0 %v521
        %559 = vmatpush.msra.mxu0 %v481
        %560 = vmatmul.f32.gmra.mxu0 %v517
        %v561 = vpop.f32.mrf.mxu0
        %v562 = vadd.f32 %v499, %v561
        %563 = vdwg.mxu0
        %564 = vmatpush.msra.mxu0 0.0
        %565 = vmatpush.msra.mxu0 0.0
        %566 = vmatpush.msra.mxu0 0.0
        %567 = vmatpush.msra.mxu0 0.0
        %568 = vmatpush.msra.mxu0 0.0
        %569 = vmatpush.msra.mxu0 0.0
        %570 = vmatpush.msra.mxu0 0.0
        %571 = vmatpush.msra.mxu0 0.0
        %572 = vmatpush.msra.mxu0 0.0
        %573 = vmatpush.msra.mxu0 0.0
        %574 = vmatpush.msra.mxu0 0.0
        %575 = vmatpush.msra.mxu0 0.0
        %576 = vmatpush.msra.mxu0 0.0
        %577 = vmatpush.msra.mxu0 0.0
        %578 = vmatpush.msra.mxu0 %v524
        %579 = vmatpush.msra.mxu0 %v482
        %580 = vmatmul.f32.gmra.mxu0 %v517
        %v581 = vpop.f32.mrf.mxu0
        %v582 = vadd.f32 %v500, %v581
        %583 = vdwg.mxu0
        %584 = vmatpush.msra.mxu0 0.0
        %585 = vmatpush.msra.mxu0 0.0
        %586 = vmatpush.msra.mxu0 0.0
        %587 = vmatpush.msra.mxu0 0.0
        %588 = vmatpush.msra.mxu0 0.0
        %589 = vmatpush.msra.mxu0 0.0
        %590 = vmatpush.msra.mxu0 0.0
        %591 = vmatpush.msra.mxu0 0.0
        %592 = vmatpush.msra.mxu0 0.0
        %593 = vmatpush.msra.mxu0 0.0
        %594 = vmatpush.msra.mxu0 0.0
        %595 = vmatpush.msra.mxu0 0.0
        %596 = vmatpush.msra.mxu0 0.0
        %597 = vmatpush.msra.mxu0 0.0
        %598 = vmatpush.msra.mxu0 %v527
        %599 = vmatpush.msra.mxu0 %v483
        %600 = vmatmul.f32.gmra.mxu0 %v517
        %v601 = vpop.f32.mrf.mxu0
        %v602 = vadd.f32 %v501, %v601
        %603 = vdwg.mxu0
        %604 = vmatpush.msra.mxu0 0.0
        %605 = vmatpush.msra.mxu0 0.0
        %606 = vmatpush.msra.mxu0 0.0
        %607 = vmatpush.msra.mxu0 0.0
        %608 = vmatpush.msra.mxu0 0.0
        %609 = vmatpush.msra.mxu0 0.0
        %610 = vmatpush.msra.mxu0 0.0
        %611 = vmatpush.msra.mxu0 0.0
        %612 = vmatpush.msra.mxu0 0.0
        %613 = vmatpush.msra.mxu0 0.0
        %614 = vmatpush.msra.mxu0 0.0
        %615 = vmatpush.msra.mxu0 0.0
        %616 = vmatpush.msra.mxu0 0.0
        %617 = vmatpush.msra.mxu0 0.0
        %618 = vmatpush.msra.mxu0 %v530
        %619 = vmatpush.msra.mxu0 %v484
        %620 = vmatmul.f32.gmra.mxu0 %v517
        %v621 = vpop.f32.mrf.mxu0
        %v622 = vadd.f32 %v502, %v621
        %623 = vdwg.mxu0
        %624 = vmatpush.msra.mxu0 0.0
        %625 = vmatpush.msra.mxu0 0.0
        %626 = vmatpush.msra.mxu0 0.0
        %627 = vmatpush.msra.mxu0 0.0
        %628 = vmatpush.msra.mxu0 0.0
        %629 = vmatpush.msra.mxu0 0.0
        %630 = vmatpush.msra.mxu0 0.0
        %631 = vmatpush.msra.mxu0 0.0
        %632 = vmatpush.msra.mxu0 0.0
        %633 = vmatpush.msra.mxu0 0.0
        %634 = vmatpush.msra.mxu0 0.0
        %635 = vmatpush.msra.mxu0 0.0
        %636 = vmatpush.msra.mxu0 0.0
        %637 = vmatpush.msra.mxu0 0.0
        %638 = vmatpush.msra.mxu0 %v533
        %639 = vmatpush.msra.mxu0 %v485
        %640 = vmatmul.f32.gmra.mxu0 %v517
        %v641 = vpop.f32.mrf.mxu0
        %v642 = vadd.f32 %v503, %v641
        %643 = vdwg.mxu0
        %644 = vmatpush.msra.mxu0 0.0
        %645 = vmatpush.msra.mxu0 0.0
        %646 = vmatpush.msra.mxu0 0.0
        %647 = vmatpush.msra.mxu0 0.0
        %648 = vmatpush.msra.mxu0 0.0
        %649 = vmatpush.msra.mxu0 0.0
        %650 = vmatpush.msra.mxu0 0.0
        %651 = vmatpush.msra.mxu0 0.0
        %652 = vmatpush.msra.mxu0 0.0
        %653 = vmatpush.msra.mxu0 0.0
        %654 = vmatpush.msra.mxu0 0.0
        %655 = vmatpush.msra.mxu0 0.0
        %656 = vmatpush.msra.mxu0 0.0
        %657 = vmatpush.msra.mxu0 0.0
        %658 = vmatpush.msra.mxu0 %v536
        %659 = vmatpush.msra.mxu0 %v486
        %660 = vmatmul.f32.gmra.mxu0 %v517
        %v661 = vpop.f32.mrf.mxu0
        %v662 = vadd.f32 %v504, %v661
        %663 = vdwg.mxu0
        %664 = vmatpush.msra.mxu0 0.0
        %665 = vmatpush.msra.mxu0 0.0
        %666 = vmatpush.msra.mxu0 0.0
        %667 = vmatpush.msra.mxu0 0.0
        %668 = vmatpush.msra.mxu0 0.0
        %669 = vmatpush.msra.mxu0 0.0
        %670 = vmatpush.msra.mxu0 0.0
        %671 = vmatpush.msra.mxu0 0.0
        %672 = vmatpush.msra.mxu0 0.0
        %673 = vmatpush.msra.mxu0 0.0
        %674 = vmatpush.msra.mxu0 0.0
        %675 = vmatpush.msra.mxu0 0.0
        %676 = vmatpush.msra.mxu0 0.0
        %677 = vmatpush.msra.mxu0 0.0
        %678 = vmatpush.msra.mxu0 %v539
        %679 = vmatpush.msra.mxu0 %v487
        %680 = vmatmul.f32.gmra.mxu0 %v517
        %v681 = vpop.f32.mrf.mxu0
        %v682 = vadd.f32 %v505, %v681
        %683 = vdwg.mxu0
        %684 = vmatpush.msra.mxu0 0.0
        %685 = vmatpush.msra.mxu0 0.0
        %686 = vmatpush.msra.mxu0 0.0
        %687 = vmatpush.msra.mxu0 0.0
        %688 = vmatpush.msra.mxu0 0.0
        %689 = vmatpush.msra.mxu0 0.0
        %690 = vmatpush.msra.mxu0 0.0
        %691 = vmatpush.msra.mxu0 0.0
        %692 = vmatpush.msra.mxu0 0.0
        %693 = vmatpush.msra.mxu0 0.0
        %694 = vmatpush.msra.mxu0 0.0
        %695 = vmatpush.msra.mxu0 0.0
        %696 = vmatpush.msra.mxu0 0.0
        %697 = vmatpush.msra.mxu0 0.0
        %698 = vmatpush.msra.mxu0 %v542
        %699 = vmatpush.msra.mxu0 %v488
        %700 = vmatmul.f32.gmra.mxu0 %v517
        %v701 = vpop.f32.mrf.mxu0
        %v702 = vadd.f32 %v506, %v701
        %703 = vdwg.mxu0
        %v704 = vld [vmem:[#allocation6] sm:$0xff]
        %v705 = vld [vmem:[#allocation7] sm:$0xff]
        %vm706 = vcmask 1041408
        %v707 = vsel %vm706, %v562, 0.0
        %v708 = vrot.slane %v707, 4
        %v709 = vadd.f32 %v707, %v708
        %v710 = vrot.slane %v709, 2
        %v711 = vadd.f32 %v709, %v710
        %v712 = vrot.slane %v711, 1
        %v713 = vadd.f32 %v711, %v712
        %v714 = vsel %vm706, %v582, 0.0
        %v715 = vrot.slane %v714, 4
        %v716 = vadd.f32 %v714, %v715
        %v717 = vrot.slane %v716, 2
        %v718 = vadd.f32 %v716, %v717
        %v719 = vrot.slane %v718, 1
        %v720 = vadd.f32 %v718, %v719
        %v721 = vsel %vm706, %v602, 0.0
        %v722 = vrot.slane %v721, 4
        %v723 = vadd.f32 %v721, %v722
        %v724 = vrot.slane %v723, 2
        %v725 = vadd.f32 %v723, %v724
        %v726 = vrot.slane %v725, 1
        %v727 = vadd.f32 %v725, %v726
        %v728 = vsel %vm706, %v622, 0.0
        %v729 = vrot.slane %v728, 4
        %v730 = vadd.f32 %v728, %v729
        %v731 = vrot.slane %v730, 2
        %v732 = vadd.f32 %v730, %v731
        %v733 = vrot.slane %v732, 1
        %v734 = vadd.f32 %v732, %v733
        %v735 = vsel %vm706, %v642, 0.0
        %v736 = vrot.slane %v735, 4
        %v737 = vadd.f32 %v735, %v736
        %v738 = vrot.slane %v737, 2
        %v739 = vadd.f32 %v737, %v738
        %v740 = vrot.slane %v739, 1
        %v741 = vadd.f32 %v739, %v740
        %v742 = vsel %vm706, %v662, 0.0
        %v743 = vrot.slane %v742, 4
        %v744 = vadd.f32 %v742, %v743
        %v745 = vrot.slane %v744, 2
        %v746 = vadd.f32 %v744, %v745
        %v747 = vrot.slane %v746, 1
        %v748 = vadd.f32 %v746, %v747
        %v749 = vsel %vm706, %v682, 0.0
        %v750 = vrot.slane %v749, 4
        %v751 = vadd.f32 %v749, %v750
        %v752 = vrot.slane %v751, 2
        %v753 = vadd.f32 %v751, %v752
        %v754 = vrot.slane %v753, 1
        %v755 = vadd.f32 %v753, %v754
        %v756 = vsel %vm706, %v702, 0.0
        %v757 = vrot.slane %v756, 4
        %v758 = vadd.f32 %v756, %v757
        %v759 = vrot.slane %v758, 2
        %v760 = vadd.f32 %v758, %v759
        %v761 = vrot.slane %v760, 1
        %v762 = vadd.f32 %v760, %v761
        %v763 = vrcp.pop 2.0
        %v764 = vmul.f32 2.0, %v763
        %v765 = vsub.f32 1.0, %v764
        %v766 = vmul.f32 %v763, %v765
        %v767 = vadd.f32 %v763, %v766
        %vm768 = vweird.f32 %v763
        %v769 = vsel %vm768, %v763, %v767
        %v770 = vmul.f32 %v713, %v769
        %v771 = vmul.f32 %v720, %v769
        %v772 = vmul.f32 %v727, %v769
        %v773 = vmul.f32 %v734, %v769
        %v774 = vmul.f32 %v741, %v769
        %v775 = vmul.f32 %v748, %v769
        %v776 = vmul.f32 %v755, %v769
        %v777 = vmul.f32 %v762, %v769
        %v778 = vsub.f32 %v562, %v770
        %v779 = vsub.f32 %v582, %v771
        %v780 = vsub.f32 %v602, %v772
        %v781 = vsub.f32 %v622, %v773
        %v782 = vsub.f32 %v642, %v774
        %v783 = vsub.f32 %v662, %v775
        %v784 = vsub.f32 %v682, %v776
        %v785 = vsub.f32 %v702, %v777
        %v786 = vmul.f32 %v778, %v778
        %v787 = vmul.f32 %v779, %v779
        %v788 = vmul.f32 %v780, %v780
        %v789 = vmul.f32 %v781, %v781
        %v790 = vmul.f32 %v782, %v782
        %v791 = vmul.f32 %v783, %v783
        %v792 = vmul.f32 %v784, %v784
        %v793 = vmul.f32 %v785, %v785
        %v794 = vsel %vm706, %v786, 0.0
        %v795 = vrot.slane %v794, 4
        %v796 = vadd.f32 %v794, %v795
        %v797 = vrot.slane %v796, 2
        %v798 = vadd.f32 %v796, %v797
        %v799 = vrot.slane %v798, 1
        %v800 = vadd.f32 %v798, %v799
        %v801 = vsel %vm706, %v787, 0.0
        %v802 = vrot.slane %v801, 4
        %v803 = vadd.f32 %v801, %v802
        %v804 = vrot.slane %v803, 2
        %v805 = vadd.f32 %v803, %v804
        %v806 = vrot.slane %v805, 1
        %v807 = vadd.f32 %v805, %v806
        %v808 = vsel %vm706, %v788, 0.0
        %v809 = vrot.slane %v808, 4
        %v810 = vadd.f32 %v808, %v809
        %v811 = vrot.slane %v810, 2
        %v812 = vadd.f32 %v810, %v811
        %v813 = vrot.slane %v812, 1
        %v814 = vadd.f32 %v812, %v813
        %v815 = vsel %vm706, %v789, 0.0
        %v816 = vrot.slane %v815, 4
        %v817 = vadd.f32 %v815, %v816
        %v818 = vrot.slane %v817, 2
        %v819 = vadd.f32 %v817, %v818
        %v820 = vrot.slane %v819, 1
        %v821 = vadd.f32 %v819, %v820
        %v822 = vsel %vm706, %v790, 0.0
        %v823 = vrot.slane %v822, 4
        %v824 = vadd.f32 %v822, %v823
        %v825 = vrot.slane %v824, 2
        %v826 = vadd.f32 %v824, %v825
        %v827 = vrot.slane %v826, 1
        %v828 = vadd.f32 %v826, %v827
        %v829 = vsel %vm706, %v791, 0.0
        %v830 = vrot.slane %v829, 4
        %v831 = vadd.f32 %v829, %v830
        %v832 = vrot.slane %v831, 2
        %v833 = vadd.f32 %v831, %v832
        %v834 = vrot.slane %v833, 1
        %v835 = vadd.f32 %v833, %v834
        %v836 = vsel %vm706, %v792, 0.0
        %v837 = vrot.slane %v836, 4
        %v838 = vadd.f32 %v836, %v837
        %v839 = vrot.slane %v838, 2
        %v840 = vadd.f32 %v838, %v839
        %v841 = vrot.slane %v840, 1
        %v842 = vadd.f32 %v840, %v841
        %v843 = vsel %vm706, %v793, 0.0
        %v844 = vrot.slane %v843, 4
        %v845 = vadd.f32 %v843, %v844
        %v846 = vrot.slane %v845, 2
        %v847 = vadd.f32 %v845, %v846
        %v848 = vrot.slane %v847, 1
        %v849 = vadd.f32 %v847, %v848
        %v850 = vmul.f32 %v800, %v769
        %v851 = vmul.f32 %v807, %v769
        %v852 = vmul.f32 %v814, %v769
        %v853 = vmul.f32 %v821, %v769
        %v854 = vmul.f32 %v828, %v769
        %v855 = vmul.f32 %v835, %v769
        %v856 = vmul.f32 %v842, %v769
        %v857 = vmul.f32 %v849, %v769
        %v858 = vadd.f32 %v850, 1e-05
        %v859 = vadd.f32 %v851, 1e-05
        %v860 = vadd.f32 %v852, 1e-05
        %v861 = vadd.f32 %v853, 1e-05
        %v862 = vadd.f32 %v854, 1e-05
        %v863 = vadd.f32 %v855, 1e-05
        %v864 = vadd.f32 %v856, 1e-05
        %v865 = vadd.f32 %v857, 1e-05
        %v866 = vrsqrt.pop %v858
        %v867 = vmul.f32 %v866, %v858
        %v868 = vmul.f32 %v867, %v866
        %v869 = vmul.f32 0.5, %v868
        %v870 = vsub.f32 1.5, %v869
        %v871 = vmul.f32 %v866, %v870
        %vm872 = vweird.f32 %v858
        %vm873 = vweird.f32 %v866
        %vm874 = vmor %vm872, %vm873
        %v875 = vsel %vm874, %v866, %v871
        %v876 = vrsqrt.pop %v859
        %v877 = vmul.f32 %v876, %v859
        %v878 = vmul.f32 %v877, %v876
        %v879 = vmul.f32 0.5, %v878
        %v880 = vsub.f32 1.5, %v879
        %v881 = vmul.f32 %v876, %v880
        %vm882 = vweird.f32 %v859
        %vm883 = vweird.f32 %v876
        %vm884 = vmor %vm882, %vm883
        %v885 = vsel %vm884, %v876, %v881
        %v886 = vrsqrt.pop %v860
        %v887 = vmul.f32 %v886, %v860
        %v888 = vmul.f32 %v887, %v886
        %v889 = vmul.f32 0.5, %v888
        %v890 = vsub.f32 1.5, %v889
        %v891 = vmul.f32 %v886, %v890
        %vm892 = vweird.f32 %v860
        %vm893 = vweird.f32 %v886
        %vm894 = vmor %vm892, %vm893
        %v895 = vsel %vm894, %v886, %v891
        %v896 = vrsqrt.pop %v861
        %v897 = vmul.f32 %v896, %v861
        %v898 = vmul.f32 %v897, %v896
        %v899 = vmul.f32 0.5, %v898
        %v900 = vsub.f32 1.5, %v899
        %v901 = vmul.f32 %v896, %v900
        %vm902 = vweird.f32 %v861
        %vm903 = vweird.f32 %v896
        %vm904 = vmor %vm902, %vm903
        %v905 = vsel %vm904, %v896, %v901
        %v906 = vrsqrt.pop %v862
        %v907 = vmul.f32 %v906, %v862
        %v908 = vmul.f32 %v907, %v906
        %v909 = vmul.f32 0.5, %v908
        %v910 = vsub.f32 1.5, %v909
        %v911 = vmul.f32 %v906, %v910
        %vm912 = vweird.f32 %v862
        %vm913 = vweird.f32 %v906
        %vm914 = vmor %vm912, %vm913
        %v915 = vsel %vm914, %v906, %v911
        %v916 = vrsqrt.pop %v863
        %v917 = vmul.f32 %v916, %v863
        %v918 = vmul.f32 %v917, %v916
        %v919 = vmul.f32 0.5, %v918
        %v920 = vsub.f32 1.5, %v919
        %v921 = vmul.f32 %v916, %v920
        %vm922 = vweird.f32 %v863
        %vm923 = vweird.f32 %v916
        %vm924 = vmor %vm922, %vm923
        %v925 = vsel %vm924, %v916, %v921
        %v926 = vrsqrt.pop %v864
        %v927 = vmul.f32 %v926, %v864
        %v928 = vmul.f32 %v927, %v926
        %v929 = vmul.f32 0.5, %v928
        %v930 = vsub.f32 1.5, %v929
        %v931 = vmul.f32 %v926, %v930
        %vm932 = vweird.f32 %v864
        %vm933 = vweird.f32 %v926
        %vm934 = vmor %vm932, %vm933
        %v935 = vsel %vm934, %v926, %v931
        %v936 = vrsqrt.pop %v865
        %v937 = vmul.f32 %v936, %v865
        %v938 = vmul.f32 %v937, %v936
        %v939 = vmul.f32 0.5, %v938
        %v940 = vsub.f32 1.5, %v939
        %v941 = vmul.f32 %v936, %v940
        %vm942 = vweird.f32 %v865
        %vm943 = vweird.f32 %v936
        %vm944 = vmor %vm942, %vm943
        %v945 = vsel %vm944, %v936, %v941
        %v946 = vmul.f32 %v778, %v875
        %v947 = vmul.f32 %v779, %v885
        %v948 = vmul.f32 %v780, %v895
        %v949 = vmul.f32 %v781, %v905
        %v950 = vmul.f32 %v782, %v915
        %v951 = vmul.f32 %v783, %v925
        %v952 = vmul.f32 %v784, %v935
        %v953 = vmul.f32 %v785, %v945
        %v955 = vperm.slane %v704, 0
        %v956 = vperm.slane %v704, 1
        %v957 = vperm.slane %v704, 2
        %v958 = vperm.slane %v704, 3
        %v959 = vperm.slane %v704, 4
        %v960 = vperm.slane %v704, 5
        %v961 = vperm.slane %v704, 6
        %v962 = vperm.slane %v704, 7
        %v971 = vmul.f32 %v946, %v955
        %v972 = vmul.f32 %v947, %v956
        %v973 = vmul.f32 %v948, %v957
        %v974 = vmul.f32 %v949, %v958
        %v975 = vmul.f32 %v950, %v959
        %v976 = vmul.f32 %v951, %v960
        %v977 = vmul.f32 %v952, %v961
        %v978 = vmul.f32 %v953, %v962
        %v980 = vperm.slane %v705, 0
        %v981 = vperm.slane %v705, 1
        %v982 = vperm.slane %v705, 2
        %v983 = vperm.slane %v705, 3
        %v984 = vperm.slane %v705, 4
        %v985 = vperm.slane %v705, 5
        %v986 = vperm.slane %v705, 6
        %v987 = vperm.slane %v705, 7
        %v996 = vadd.f32 %v971, %v980
        %v997 = vadd.f32 %v972, %v981
        %v998 = vadd.f32 %v973, %v982
        %v999 = vadd.f32 %v974, %v983
        %v1000 = vadd.f32 %v975, %v984
        %v1001 = vadd.f32 %v976, %v985
        %v1002 = vadd.f32 %v977, %v986
        %v1003 = vadd.f32 %v978, %v987
        %v1004 = vmax.f32 %v996, 0.0
        %v1005 = vmax.f32 %v997, 0.0
        %v1006 = vmax.f32 %v998, 0.0
        %v1007 = vmax.f32 %v999, 0.0
        %v1008 = vmax.f32 %v1000, 0.0
        %v1009 = vmax.f32 %v1001, 0.0
        %v1010 = vmax.f32 %v1002, 0.0
        %v1011 = vmax.f32 %v1003, 0.0
        %v1012 = vld [vmem:[%s402] sm:$0xff]
        %v1013 = vld [vmem:[%s402 + $0x8] sm:$0xff]
        %v1014 = vld [vmem:[%s402 + $0x10] sm:$0xff]
        %v1015 = vld [vmem:[%s402 + $0x18] sm:$0xf]
        %v1016 = vld [vmem:[%s402 + $0x1c] sm:$0xff]
        %v1017 = vld [vmem:[%s402 + $0x24] sm:$0xff]
        %v1018 = vld [vmem:[%s402 + $0x2c] sm:$0xff]
        %v1019 = vld [vmem:[%s402 + $0x34] sm:$0xf]
        %v1020 = vld [vmem:[%s402 + $0x38] sm:$0xff]
        %v1021 = vld [vmem:[%s402 + $0x40] sm:$0xff]
        %v1022 = vld [vmem:[%s402 + $0x48] sm:$0xff]
        %v1023 = vld [vmem:[%s402 + $0x50] sm:$0xf]
        %v1024 = vld [vmem:[%s402 + $0x54] sm:$0xff]
        %v1025 = vld [vmem:[%s402 + $0x5c] sm:$0xff]
        %v1026 = vld [vmem:[%s402 + $0x64] sm:$0xff]
        %v1027 = vld [vmem:[%s402 + $0x6c] sm:$0xf]
        %v1028 = vld [vmem:[%s402 + $0x70] sm:$0xff]
        %v1029 = vld [vmem:[%s402 + $0x78] sm:$0xff]
        %v1030 = vld [vmem:[%s402 + $0x80] sm:$0xff]
        %v1031 = vld [vmem:[%s402 + $0x88] sm:$0xf]
        %v1032 = vld [vmem:[%s402 + $0x8c] sm:$0xff]
        %v1033 = vld [vmem:[%s402 + $0x94] sm:$0xff]
        %v1034 = vld [vmem:[%s402 + $0x9c] sm:$0xff]
        %v1035 = vld [vmem:[%s402 + $0xa4] sm:$0xf]
        %v1036 = vld [vmem:[%s402 + $0xa8] sm:$0xff]
        %v1037 = vld [vmem:[%s402 + $0xb0] sm:$0xff]
        %v1038 = vld [vmem:[%s402 + $0xb8] sm:$0xff]
        %v1039 = vld [vmem:[%s402 + $0xc0] sm:$0xf]
        %v1040 = vld [vmem:[%s402 + $0xc4] sm:$0xff]
        %v1041 = vld [vmem:[%s402 + $0xcc] sm:$0xff]
        %v1042 = vld [vmem:[%s402 + $0xd4] sm:$0xff]
        %v1043 = vld [vmem:[%s402 + $0xdc] sm:$0xf]
        %v1044 = vld [vmem:[%s402 + $0xe0] sm:$0xff]
        %v1045 = vld [vmem:[%s402 + $0xe8] sm:$0xff]
        %v1046 = vld [vmem:[%s402 + $0xf0] sm:$0xff]
        %v1047 = vld [vmem:[%s402 + $0xf8] sm:$0xf]
        %v1048 = vld [vmem:[%s402 + $0xfc] sm:$0xff]
        %v1049 = vld [vmem:[%s402 + $0x104] sm:$0xff]
        %v1050 = vld [vmem:[%s402 + $0x10c] sm:$0xff]
        %v1051 = vld [vmem:[%s402 + $0x114] sm:$0xf]
        %v1052 = vld [vmem:[%s402 + $0x118] sm:$0xff]
        %v1053 = vld [vmem:[%s402 + $0x120] sm:$0xff]
        %v1054 = vld [vmem:[%s402 + $0x128] sm:$0xff]
        %v1055 = vld [vmem:[%s402 + $0x130] sm:$0xf]
        %v1056 = vld [vmem:[%s402 + $0x134] sm:$0xff]
        %v1057 = vld [vmem:[%s402 + $0x13c] sm:$0xff]
        %v1058 = vld [vmem:[%s402 + $0x144] sm:$0xff]
        %v1059 = vld [vmem:[%s402 + $0x14c] sm:$0xf]
        %v1060 = vld [vmem:[%s402 + $0x150] sm:$0xff]
        %v1061 = vld [vmem:[%s402 + $0x158] sm:$0xff]
        %v1062 = vld [vmem:[%s402 + $0x160] sm:$0xff]
        %v1063 = vld [vmem:[%s402 + $0x168] sm:$0xf]
        %v1064 = vld [vmem:[%s402 + $0x16c] sm:$0xff]
        %v1065 = vld [vmem:[%s402 + $0x174] sm:$0xff]
        %v1066 = vld [vmem:[%s402 + $0x17c] sm:$0xff]
        %v1067 = vld [vmem:[%s402 + $0x184] sm:$0xf]
        %v1068 = vld [vmem:[%s402 + $0x188] sm:$0xff]
        %v1069 = vld [vmem:[%s402 + $0x190] sm:$0xff]
        %v1070 = vld [vmem:[%s402 + $0x198] sm:$0xff]
        %v1071 = vld [vmem:[%s402 + $0x1a0] sm:$0xf]
        %v1072 = vld [vmem:[%s402 + $0x1a4] sm:$0xff]
        %v1073 = vld [vmem:[%s402 + $0x1ac] sm:$0xff]
        %v1074 = vld [vmem:[%s402 + $0x1b4] sm:$0xff]
        %v1075 = vld [vmem:[%s402 + $0x1bc] sm:$0xf]
        %v1076 = vld [vmem:[%s402 + $0x1c0] sm:$0xff]
        %v1077 = vld [vmem:[%s402 + $0x1c8] sm:$0xff]
        %v1078 = vld [vmem:[%s402 + $0x1d0] sm:$0xff]
        %v1079 = vld [vmem:[%s402 + $0x1d8] sm:$0xf]
        %v1080 = vld [vmem:[%s402 + $0x1dc] sm:$0xff]
        %v1081 = vld [vmem:[%s402 + $0x1e4] sm:$0xff]
        %v1082 = vld [vmem:[%s402 + $0x1ec] sm:$0xff]
        %v1083 = vld [vmem:[%s402 + $0x1f4] sm:$0xf]
        %v1084 = vld [vmem:[%s402 + $0x1f8] sm:$0xff]
        %v1085 = vld [vmem:[%s402 + $0x200] sm:$0xff]
        %v1086 = vld [vmem:[%s402 + $0x208] sm:$0xff]
        %v1087 = vld [vmem:[%s402 + $0x210] sm:$0xf]
        %v1088 = vld [vmem:[%s402 + $0x214] sm:$0xff]
        %v1089 = vld [vmem:[%s402 + $0x21c] sm:$0xff]
        %v1090 = vld [vmem:[%s402 + $0x224] sm:$0xff]
        %v1091 = vld [vmem:[%s402 + $0x22c] sm:$0xf]
        %v1092 = vld [vmem:[%s402 + $0x230] sm:$0xff]
        %v1093 = vld [vmem:[%s402 + $0x238] sm:$0xff]
        %v1094 = vld [vmem:[%s402 + $0x240] sm:$0xff]
        %v1095 = vld [vmem:[%s402 + $0x248] sm:$0xf]
        %v1096 = vld [vmem:[%s402 + $0x24c] sm:$0xff]
        %v1097 = vld [vmem:[%s402 + $0x254] sm:$0xff]
        %v1098 = vld [vmem:[%s402 + $0x25c] sm:$0xff]
        %v1099 = vld [vmem:[%s402 + $0x264] sm:$0xf]
        %v1100 = vld [vmem:[%s402 + $0x268] sm:$0xff]
        %v1101 = vld [vmem:[%s402 + $0x270] sm:$0xff]
        %v1102 = vld [vmem:[%s402 + $0x278] sm:$0xff]
        %v1103 = vld [vmem:[%s402 + $0x280] sm:$0xf]
        %v1104 = vld [vmem:[%s402 + $0x284] sm:$0xff]
        %v1105 = vld [vmem:[%s402 + $0x28c] sm:$0xff]
        %v1106 = vld [vmem:[%s402 + $0x294] sm:$0xff]
        %v1107 = vld [vmem:[%s402 + $0x29c] sm:$0xf]
        %v1108 = vld [vmem:[%s402 + $0x2a0] sm:$0xff]
        %v1109 = vld [vmem:[%s402 + $0x2a8] sm:$0xff]
        %v1110 = vld [vmem:[%s402 + $0x2b0] sm:$0xff]
        %v1111 = vld [vmem:[%s402 + $0x2b8] sm:$0xf]
        %v1112 = vld [vmem:[%s402 + $0x2bc] sm:$0xff]
        %v1113 = vld [vmem:[%s402 + $0x2c4] sm:$0xff]
        %v1114 = vld [vmem:[%s402 + $0x2cc] sm:$0xff]
        %v1115 = vld [vmem:[%s402 + $0x2d4] sm:$0xf]
        %v1116 = vld [vmem:[%s402 + $0x2d8] sm:$0xff]
        %v1117 = vld [vmem:[%s402 + $0x2e0] sm:$0xff]
        %v1118 = vld [vmem:[%s402 + $0x2e8] sm:$0xff]
        %v1119 = vld [vmem:[%s402 + $0x2f0] sm:$0xf]
        %v1120 = vld [vmem:[%s402 + $0x2f4] sm:$0xff]
        %v1121 = vld [vmem:[%s402 + $0x2fc] sm:$0xff]
        %v1122 = vld [vmem:[%s402 + $0x304] sm:$0xff]
        %v1123 = vld [vmem:[%s402 + $0x30c] sm:$0xf]
        %v1124 = vld [vmem:[%s402 + $0x310] sm:$0xff]
        %v1125 = vld [vmem:[%s402 + $0x318] sm:$0xff]
        %v1126 = vld [vmem:[%s402 + $0x320] sm:$0xff]
        %v1127 = vld [vmem:[%s402 + $0x328] sm:$0xf]
        %v1128 = vld [vmem:[%s402 + $0x32c] sm:$0xff]
        %v1129 = vld [vmem:[%s402 + $0x334] sm:$0xff]
        %v1130 = vld [vmem:[%s402 + $0x33c] sm:$0xff]
        %v1131 = vld [vmem:[%s402 + $0x344] sm:$0xf]
        %v1132 = vld [vmem:[%s402 + $0x348] sm:$0xff]
        %v1133 = vld [vmem:[%s402 + $0x350] sm:$0xff]
        %v1134 = vld [vmem:[%s402 + $0x358] sm:$0xff]
        %v1135 = vld [vmem:[%s402 + $0x360] sm:$0xf]
        %v1136 = vld [vmem:[%s402 + $0x364] sm:$0xff]
        %v1137 = vld [vmem:[%s402 + $0x36c] sm:$0xff]
        %v1138 = vld [vmem:[%s402 + $0x374] sm:$0xff]
        %v1139 = vld [vmem:[%s402 + $0x37c] sm:$0xf]
        %v1140 = vld [vmem:[%s402 + $0x380] sm:$0xff]
        %v1141 = vld [vmem:[%s402 + $0x388] sm:$0xff]
        %v1142 = vld [vmem:[%s402 + $0x390] sm:$0xff]
        %v1143 = vld [vmem:[%s402 + $0x398] sm:$0xf]
        %v1144 = vld [vmem:[%s402 + $0x39c] sm:$0xff]
        %v1145 = vld [vmem:[%s402 + $0x3a4] sm:$0xff]
        %v1146 = vld [vmem:[%s402 + $0x3ac] sm:$0xff]
        %v1147 = vld [vmem:[%s402 + $0x3b4] sm:$0xf]
        %v1148 = vld [vmem:[%s402 + $0x3b8] sm:$0xff]
        %v1149 = vld [vmem:[%s402 + $0x3c0] sm:$0xff]
        %v1150 = vld [vmem:[%s402 + $0x3c8] sm:$0xff]
        %v1151 = vld [vmem:[%s402 + $0x3d0] sm:$0xf]
        %v1152 = vld [vmem:[%s402 + $0x3d4] sm:$0xff]
        %v1153 = vld [vmem:[%s402 + $0x3dc] sm:$0xff]
        %v1154 = vld [vmem:[%s402 + $0x3e4] sm:$0xff]
        %v1155 = vld [vmem:[%s402 + $0x3ec] sm:$0xf]
        %v1156 = vld [vmem:[%s402 + $0x3f0] sm:$0xff]
        %v1157 = vld [vmem:[%s402 + $0x3f8] sm:$0xff]
        %v1158 = vld [vmem:[%s402 + $0x400] sm:$0xff]
        %v1159 = vld [vmem:[%s402 + $0x408] sm:$0xf]
        %v1160 = vld [vmem:[%s402 + $0x40c] sm:$0xff]
        %v1161 = vld [vmem:[%s402 + $0x414] sm:$0xff]
        %v1162 = vld [vmem:[%s402 + $0x41c] sm:$0xff]
        %v1163 = vld [vmem:[%s402 + $0x424] sm:$0xf]
        %v1164 = vld [vmem:[%s402 + $0x428] sm:$0xff]
        %v1165 = vld [vmem:[%s402 + $0x430] sm:$0xff]
        %v1166 = vld [vmem:[%s402 + $0x438] sm:$0xff]
        %v1167 = vld [vmem:[%s402 + $0x440] sm:$0xf]
        %v1168 = vld [vmem:[%s402 + $0x444] sm:$0xff]
        %v1169 = vld [vmem:[%s402 + $0x44c] sm:$0xff]
        %v1170 = vld [vmem:[%s402 + $0x454] sm:$0xff]
        %v1171 = vld [vmem:[%s402 + $0x45c] sm:$0xf]
        %v1172 = vld [vmem:[%s402 + $0x460] sm:$0xff]
        %v1173 = vld [vmem:[%s402 + $0x468] sm:$0xff]
        %v1174 = vld [vmem:[%s402 + $0x470] sm:$0xff]
        %v1175 = vld [vmem:[%s402 + $0x478] sm:$0xf]
        %v1176 = vld [vmem:[%s402 + $0x47c] sm:$0xff]
        %v1177 = vld [vmem:[%s402 + $0x484] sm:$0xff]
        %v1178 = vld [vmem:[%s402 + $0x48c] sm:$0xff]
        %v1179 = vld [vmem:[%s402 + $0x494] sm:$0xf]
        %v1180 = vld [vmem:[%s402 + $0x498] sm:$0xff]
        %v1181 = vld [vmem:[%s402 + $0x4a0] sm:$0xff]
        %v1182 = vld [vmem:[%s402 + $0x4a8] sm:$0xff]
        %v1183 = vld [vmem:[%s402 + $0x4b0] sm:$0xf]
        %v1184 = vld [vmem:[%s402 + $0x4b4] sm:$0xff]
        %v1185 = vld [vmem:[%s402 + $0x4bc] sm:$0xff]
        %v1186 = vld [vmem:[%s402 + $0x4c4] sm:$0xff]
        %v1187 = vld [vmem:[%s402 + $0x4cc] sm:$0xf]
        %v1188 = vld [vmem:[%s402 + $0x4d0] sm:$0xff]
        %v1189 = vld [vmem:[%s402 + $0x4d8] sm:$0xff]
        %v1190 = vld [vmem:[%s402 + $0x4e0] sm:$0xff]
        %v1191 = vld [vmem:[%s402 + $0x4e8] sm:$0xf]
        %v1192 = vld [vmem:[%s402 + $0x4ec] sm:$0xff]
        %v1193 = vld [vmem:[%s402 + $0x4f4] sm:$0xff]
        %v1194 = vld [vmem:[%s402 + $0x4fc] sm:$0xff]
        %v1195 = vld [vmem:[%s402 + $0x504] sm:$0xf]
        %v1196 = vld [vmem:[%s402 + $0x508] sm:$0xff]
        %v1197 = vld [vmem:[%s402 + $0x510] sm:$0xff]
        %v1198 = vld [vmem:[%s402 + $0x518] sm:$0xff]
        %v1199 = vld [vmem:[%s402 + $0x520] sm:$0xf]
        %v1200 = vld [vmem:[%s402 + $0x524] sm:$0xff]
        %v1201 = vld [vmem:[%s402 + $0x52c] sm:$0xff]
        %v1202 = vld [vmem:[%s402 + $0x534] sm:$0xff]
        %v1203 = vld [vmem:[%s402 + $0x53c] sm:$0xf]
        %v1204 = vld [vmem:[%s402 + $0x540] sm:$0xff]
        %v1205 = vld [vmem:[%s402 + $0x548] sm:$0xff]
        %v1206 = vld [vmem:[%s402 + $0x550] sm:$0xff]
        %v1207 = vld [vmem:[%s402 + $0x558] sm:$0xf]
        %v1208 = vld [vmem:[%s402 + $0x55c] sm:$0xff]
        %v1209 = vld [vmem:[%s402 + $0x564] sm:$0xff]
        %v1210 = vld [vmem:[%s402 + $0x56c] sm:$0xff]
        %v1211 = vld [vmem:[%s402 + $0x574] sm:$0xf]
        %v1212 = vld [vmem:[%s402 + $0x578] sm:$0xff]
        %v1213 = vld [vmem:[%s402 + $0x580] sm:$0xff]
        %v1214 = vld [vmem:[%s402 + $0x588] sm:$0xff]
        %v1215 = vld [vmem:[%s402 + $0x590] sm:$0xf]
        %v1216 = vld [vmem:[%s402 + $0x594] sm:$0xff]
        %v1217 = vld [vmem:[%s402 + $0x59c] sm:$0xff]
        %v1218 = vld [vmem:[%s402 + $0x5a4] sm:$0xff]
        %v1219 = vld [vmem:[%s402 + $0x5ac] sm:$0xf]
        %v1220 = vld [vmem:[%s402 + $0x5b0] sm:$0xff]
        %v1221 = vld [vmem:[%s402 + $0x5b8] sm:$0xff]
        %v1222 = vld [vmem:[%s402 + $0x5c0] sm:$0xff]
        %v1223 = vld [vmem:[%s402 + $0x5c8] sm:$0xf]
        %v1224 = vld [vmem:[%s402 + $0x5cc] sm:$0xff]
        %v1225 = vld [vmem:[%s402 + $0x5d4] sm:$0xff]
        %v1226 = vld [vmem:[%s402 + $0x5dc] sm:$0xff]
        %v1227 = vld [vmem:[%s402 + $0x5e4] sm:$0xf]
        %v1228 = vld [vmem:[%s402 + $0x5e8] sm:$0xff]
        %v1229 = vld [vmem:[%s402 + $0x5f0] sm:$0xff]
        %v1230 = vld [vmem:[%s402 + $0x5f8] sm:$0xff]
        %v1231 = vld [vmem:[%s402 + $0x600] sm:$0xf]
        %v1232 = vld [vmem:[%s402 + $0x604] sm:$0xff]
        %v1233 = vld [vmem:[%s402 + $0x60c] sm:$0xff]
        %v1234 = vld [vmem:[%s402 + $0x614] sm:$0xff]
        %v1235 = vld [vmem:[%s402 + $0x61c] sm:$0xf]
        %v1236 = vld [vmem:[%s402 + $0x620] sm:$0xff]
        %v1237 = vld [vmem:[%s402 + $0x628] sm:$0xff]
        %v1238 = vld [vmem:[%s402 + $0x630] sm:$0xff]
        %v1239 = vld [vmem:[%s402 + $0x638] sm:$0xf]
        %v1240 = vld [vmem:[%s402 + $0x63c] sm:$0xff]
        %v1241 = vld [vmem:[%s402 + $0x644] sm:$0xff]
        %v1242 = vld [vmem:[%s402 + $0x64c] sm:$0xff]
        %v1243 = vld [vmem:[%s402 + $0x654] sm:$0xf]
        %v1244 = vld [vmem:[%s402 + $0x658] sm:$0xff]
        %v1245 = vld [vmem:[%s402 + $0x660] sm:$0xff]
        %v1246 = vld [vmem:[%s402 + $0x668] sm:$0xff]
        %v1247 = vld [vmem:[%s402 + $0x670] sm:$0xf]
        %v1248 = vld [vmem:[%s402 + $0x674] sm:$0xff]
        %v1249 = vld [vmem:[%s402 + $0x67c] sm:$0xff]
        %v1250 = vld [vmem:[%s402 + $0x684] sm:$0xff]
        %v1251 = vld [vmem:[%s402 + $0x68c] sm:$0xf]
        %v1252 = vld [vmem:[%s402 + $0x690] sm:$0xff]
        %v1253 = vld [vmem:[%s402 + $0x698] sm:$0xff]
        %v1254 = vld [vmem:[%s402 + $0x6a0] sm:$0xff]
        %v1255 = vld [vmem:[%s402 + $0x6a8] sm:$0xf]
        %v1256 = vld [vmem:[%s402 + $0x6ac] sm:$0xff]
        %v1257 = vld [vmem:[%s402 + $0x6b4] sm:$0xff]
        %v1258 = vld [vmem:[%s402 + $0x6bc] sm:$0xff]
        %v1259 = vld [vmem:[%s402 + $0x6c4] sm:$0xf]
        %v1260 = vld [vmem:[%s402 + $0x6c8] sm:$0xff]
        %v1261 = vld [vmem:[%s402 + $0x6d0] sm:$0xff]
        %v1262 = vld [vmem:[%s402 + $0x6d8] sm:$0xff]
        %v1263 = vld [vmem:[%s402 + $0x6e0] sm:$0xf]
        %v1264 = vld [vmem:[%s402 + $0x6e4] sm:$0xff]
        %v1265 = vld [vmem:[%s402 + $0x6ec] sm:$0xff]
        %v1266 = vld [vmem:[%s402 + $0x6f4] sm:$0xff]
        %v1267 = vld [vmem:[%s402 + $0x6fc] sm:$0xf]
        %v1268 = vld [vmem:[%s402 + $0x700] sm:$0xff]
        %v1269 = vld [vmem:[%s402 + $0x708] sm:$0xff]
        %v1270 = vld [vmem:[%s402 + $0x710] sm:$0xff]
        %v1271 = vld [vmem:[%s402 + $0x718] sm:$0xf]
        %v1272 = vld [vmem:[%s402 + $0x71c] sm:$0xff]
        %v1273 = vld [vmem:[%s402 + $0x724] sm:$0xff]
        %v1274 = vld [vmem:[%s402 + $0x72c] sm:$0xff]
        %v1275 = vld [vmem:[%s402 + $0x734] sm:$0xf]
        %v1276 = vld [vmem:[%s402 + $0x738] sm:$0xff]
        %v1277 = vld [vmem:[%s402 + $0x740] sm:$0xff]
        %v1278 = vld [vmem:[%s402 + $0x748] sm:$0xff]
        %v1279 = vld [vmem:[%s402 + $0x750] sm:$0xf]
        %v1280 = vld [vmem:[%s402 + $0x754] sm:$0xff]
        %v1281 = vld [vmem:[%s402 + $0x75c] sm:$0xff]
        %v1282 = vld [vmem:[%s402 + $0x764] sm:$0xff]
        %v1283 = vld [vmem:[%s402 + $0x76c] sm:$0xf]
        %v1284 = vld [vmem:[%s402 + $0x770] sm:$0xff]
        %v1285 = vld [vmem:[%s402 + $0x778] sm:$0xff]
        %v1286 = vld [vmem:[%s402 + $0x780] sm:$0xff]
        %v1287 = vld [vmem:[%s402 + $0x788] sm:$0xf]
        %v1288 = vld [vmem:[%s402 + $0x78c] sm:$0xff]
        %v1289 = vld [vmem:[%s402 + $0x794] sm:$0xff]
        %v1290 = vld [vmem:[%s402 + $0x79c] sm:$0xff]
        %v1291 = vld [vmem:[%s402 + $0x7a4] sm:$0xf]
        %v1292 = vld [vmem:[%s402 + $0x7a8] sm:$0xff]
        %v1293 = vld [vmem:[%s402 + $0x7b0] sm:$0xff]
        %v1294 = vld [vmem:[%s402 + $0x7b8] sm:$0xff]
        %v1295 = vld [vmem:[%s402 + $0x7c0] sm:$0xf]
        %v1296 = vld [vmem:[%s402 + $0x7c4] sm:$0xff]
        %v1297 = vld [vmem:[%s402 + $0x7cc] sm:$0xff]
        %v1298 = vld [vmem:[%s402 + $0x7d4] sm:$0xff]
        %v1299 = vld [vmem:[%s402 + $0x7dc] sm:$0xf]
        %v1300 = vld [vmem:[%s402 + $0x7e0] sm:$0xff]
        %v1301 = vld [vmem:[%s402 + $0x7e8] sm:$0xff]
        %v1302 = vld [vmem:[%s402 + $0x7f0] sm:$0xff]
        %v1303 = vld [vmem:[%s402 + $0x7f8] sm:$0xf]
        %v1304 = vld [vmem:[%s402 + $0x7fc] sm:$0xff]
        %v1305 = vld [vmem:[%s402 + $0x804] sm:$0xff]
        %v1306 = vld [vmem:[%s402 + $0x80c] sm:$0xff]
        %v1307 = vld [vmem:[%s402 + $0x814] sm:$0xf]
        %v1308 = vld [vmem:[%s402 + $0x818] sm:$0xff]
        %v1309 = vld [vmem:[%s402 + $0x820] sm:$0xff]
        %v1310 = vld [vmem:[%s402 + $0x828] sm:$0xff]
        %v1311 = vld [vmem:[%s402 + $0x830] sm:$0xf]
        %v1312 = vld [vmem:[%s402 + $0x834] sm:$0xff]
        %v1313 = vld [vmem:[%s402 + $0x83c] sm:$0xff]
        %v1314 = vld [vmem:[%s402 + $0x844] sm:$0xff]
        %v1315 = vld [vmem:[%s402 + $0x84c] sm:$0xf]
        %v1316 = vld [vmem:[%s402 + $0x850] sm:$0xff]
        %v1317 = vld [vmem:[%s402 + $0x858] sm:$0xff]
        %v1318 = vld [vmem:[%s402 + $0x860] sm:$0xff]
        %v1319 = vld [vmem:[%s402 + $0x868] sm:$0xf]
        %v1320 = vld [vmem:[%s402 + $0x86c] sm:$0xff]
        %v1321 = vld [vmem:[%s402 + $0x874] sm:$0xff]
        %v1322 = vld [vmem:[%s402 + $0x87c] sm:$0xff]
        %v1323 = vld [vmem:[%s402 + $0x884] sm:$0xf]
        %v1324 = vld [vmem:[%s402 + $0x888] sm:$0xff]
        %v1325 = vld [vmem:[%s402 + $0x890] sm:$0xff]
        %v1326 = vld [vmem:[%s402 + $0x898] sm:$0xff]
        %v1327 = vld [vmem:[%s402 + $0x8a0] sm:$0xf]
        %v1328 = vld [vmem:[%s402 + $0x8a4] sm:$0xff]
        %v1329 = vld [vmem:[%s402 + $0x8ac] sm:$0xff]
        %v1330 = vld [vmem:[%s402 + $0x8b4] sm:$0xff]
        %v1331 = vld [vmem:[%s402 + $0x8bc] sm:$0xf]
        %v1332 = vld [vmem:[%s402 + $0x8c0] sm:$0xff]
        %v1333 = vld [vmem:[%s402 + $0x8c8] sm:$0xff]
        %v1334 = vld [vmem:[%s402 + $0x8d0] sm:$0xff]
        %v1335 = vld [vmem:[%s402 + $0x8d8] sm:$0xf]
        %v1336 = vld [vmem:[%s402 + $0x8dc] sm:$0xff]
        %v1337 = vld [vmem:[%s402 + $0x8e4] sm:$0xff]
        %v1338 = vld [vmem:[%s402 + $0x8ec] sm:$0xff]
        %v1339 = vld [vmem:[%s402 + $0x8f4] sm:$0xf]
        %v1340 = vld [vmem:[%s402 + $0x8f8] sm:$0xff]
        %v1341 = vld [vmem:[%s402 + $0x900] sm:$0xff]
        %v1342 = vld [vmem:[%s402 + $0x908] sm:$0xff]
        %v1343 = vld [vmem:[%s402 + $0x910] sm:$0xf]
        %v1344 = vld [vmem:[%s402 + $0x914] sm:$0xff]
        %v1345 = vld [vmem:[%s402 + $0x91c] sm:$0xff]
        %v1346 = vld [vmem:[%s402 + $0x924] sm:$0xff]
        %v1347 = vld [vmem:[%s402 + $0x92c] sm:$0xf]
        %v1348 = vld [vmem:[%s402 + $0x930] sm:$0xff]
        %v1349 = vld [vmem:[%s402 + $0x938] sm:$0xff]
        %v1350 = vld [vmem:[%s402 + $0x940] sm:$0xff]
        %v1351 = vld [vmem:[%s402 + $0x948] sm:$0xf]
        %v1352 = vld [vmem:[%s402 + $0x94c] sm:$0xff]
        %v1353 = vld [vmem:[%s402 + $0x954] sm:$0xff]
        %v1354 = vld [vmem:[%s402 + $0x95c] sm:$0xff]
        %v1355 = vld [vmem:[%s402 + $0x964] sm:$0xf]
        %v1356 = vld [vmem:[%s402 + $0x968] sm:$0xff]
        %v1357 = vld [vmem:[%s402 + $0x970] sm:$0xff]
        %v1358 = vld [vmem:[%s402 + $0x978] sm:$0xff]
        %v1359 = vld [vmem:[%s402 + $0x980] sm:$0xf]
        %v1360 = vld [vmem:[%s402 + $0x984] sm:$0xff]
        %v1361 = vld [vmem:[%s402 + $0x98c] sm:$0xff]
        %v1362 = vld [vmem:[%s402 + $0x994] sm:$0xff]
        %v1363 = vld [vmem:[%s402 + $0x99c] sm:$0xf]
        %v1364 = vld [vmem:[%s402 + $0x9a0] sm:$0xff]
        %v1365 = vld [vmem:[%s402 + $0x9a8] sm:$0xff]
        %v1366 = vld [vmem:[%s402 + $0x9b0] sm:$0xff]
        %v1367 = vld [vmem:[%s402 + $0x9b8] sm:$0xf]
        %v1368 = vld [vmem:[%s402 + $0x9bc] sm:$0xff]
        %v1369 = vld [vmem:[%s402 + $0x9c4] sm:$0xff]
        %v1370 = vld [vmem:[%s402 + $0x9cc] sm:$0xff]
        %v1371 = vld [vmem:[%s402 + $0x9d4] sm:$0xf]
        %v1372 = vld [vmem:[%s402 + $0x9d8] sm:$0xff]
        %v1373 = vld [vmem:[%s402 + $0x9e0] sm:$0xff]
        %v1374 = vld [vmem:[%s402 + $0x9e8] sm:$0xff]
        %v1375 = vld [vmem:[%s402 + $0x9f0] sm:$0xf]
        %v1376 = vld [vmem:[%s402 + $0x9f4] sm:$0xff]
        %v1377 = vld [vmem:[%s402 + $0x9fc] sm:$0xff]
        %v1378 = vld [vmem:[%s402 + $0xa04] sm:$0xff]
        %v1379 = vld [vmem:[%s402 + $0xa0c] sm:$0xf]
        %v1380 = vld [vmem:[%s402 + $0xa10] sm:$0xff]
        %v1381 = vld [vmem:[%s402 + $0xa18] sm:$0xff]
        %v1382 = vld [vmem:[%s402 + $0xa20] sm:$0xff]
        %v1383 = vld [vmem:[%s402 + $0xa28] sm:$0xf]
        %v1384 = vld [vmem:[%s402 + $0xa2c] sm:$0xff]
        %v1385 = vld [vmem:[%s402 + $0xa34] sm:$0xff]
        %v1386 = vld [vmem:[%s402 + $0xa3c] sm:$0xff]
        %v1387 = vld [vmem:[%s402 + $0xa44] sm:$0xf]
        %v1388 = vld [vmem:[%s402 + $0xa48] sm:$0xff]
        %v1389 = vld [vmem:[%s402 + $0xa50] sm:$0xff]
        %v1390 = vld [vmem:[%s402 + $0xa58] sm:$0xff]
        %v1391 = vld [vmem:[%s402 + $0xa60] sm:$0xf]
        %v1392 = vld [vmem:[%s402 + $0xa64] sm:$0xff]
        %v1393 = vld [vmem:[%s402 + $0xa6c] sm:$0xff]
        %v1394 = vld [vmem:[%s402 + $0xa74] sm:$0xff]
        %v1395 = vld [vmem:[%s402 + $0xa7c] sm:$0xf]
        %v1396 = vld [vmem:[%s402 + $0xa80] sm:$0xff]
        %v1397 = vld [vmem:[%s402 + $0xa88] sm:$0xff]
        %v1398 = vld [vmem:[%s402 + $0xa90] sm:$0xff]
        %v1399 = vld [vmem:[%s402 + $0xa98] sm:$0xf]
        %v1400 = vld [vmem:[%s402 + $0xa9c] sm:$0xff]
        %v1401 = vld [vmem:[%s402 + $0xaa4] sm:$0xff]
        %v1402 = vld [vmem:[%s402 + $0xaac] sm:$0xff]
        %v1403 = vld [vmem:[%s402 + $0xab4] sm:$0xf]
        %v1404 = vld [vmem:[%s402 + $0xab8] sm:$0xff]
        %v1405 = vld [vmem:[%s402 + $0xac0] sm:$0xff]
        %v1406 = vld [vmem:[%s402 + $0xac8] sm:$0xff]
        %v1407 = vld [vmem:[%s402 + $0xad0] sm:$0xf]
        %v1408 = vld [vmem:[%s402 + $0xad4] sm:$0xff]
        %v1409 = vld [vmem:[%s402 + $0xadc] sm:$0xff]
        %v1410 = vld [vmem:[%s402 + $0xae4] sm:$0xff]
        %v1411 = vld [vmem:[%s402 + $0xaec] sm:$0xf]
        %v1412 = vld [vmem:[%s402 + $0xaf0] sm:$0xff]
        %v1413 = vld [vmem:[%s402 + $0xaf8] sm:$0xff]
        %v1414 = vld [vmem:[%s402 + $0xb00] sm:$0xff]
        %v1415 = vld [vmem:[%s402 + $0xb08] sm:$0xf]
        %v1416 = vld [vmem:[%s402 + $0xb0c] sm:$0xff]
        %v1417 = vld [vmem:[%s402 + $0xb14] sm:$0xff]
        %v1418 = vld [vmem:[%s402 + $0xb1c] sm:$0xff]
        %v1419 = vld [vmem:[%s402 + $0xb24] sm:$0xf]
        %v1420 = vld [vmem:[%s402 + $0xb28] sm:$0xff]
        %v1421 = vld [vmem:[%s402 + $0xb30] sm:$0xff]
        %v1422 = vld [vmem:[%s402 + $0xb38] sm:$0xff]
        %v1423 = vld [vmem:[%s402 + $0xb40] sm:$0xf]
        %v1424 = vld [vmem:[%s402 + $0xb44] sm:$0xff]
        %v1425 = vld [vmem:[%s402 + $0xb4c] sm:$0xff]
        %v1426 = vld [vmem:[%s402 + $0xb54] sm:$0xff]
        %v1427 = vld [vmem:[%s402 + $0xb5c] sm:$0xf]
        %v1428 = vld [vmem:[%s402 + $0xb60] sm:$0xff]
        %v1429 = vld [vmem:[%s402 + $0xb68] sm:$0xff]
        %v1430 = vld [vmem:[%s402 + $0xb70] sm:$0xff]
        %v1431 = vld [vmem:[%s402 + $0xb78] sm:$0xf]
        %v1432 = vld [vmem:[%s402 + $0xb7c] sm:$0xff]
        %v1433 = vld [vmem:[%s402 + $0xb84] sm:$0xff]
        %v1434 = vld [vmem:[%s402 + $0xb8c] sm:$0xff]
        %v1435 = vld [vmem:[%s402 + $0xb94] sm:$0xf]
        %v1436 = vld [vmem:[%s402 + $0xb98] sm:$0xff]
        %v1437 = vld [vmem:[%s402 + $0xba0] sm:$0xff]
        %v1438 = vld [vmem:[%s402 + $0xba8] sm:$0xff]
        %v1439 = vld [vmem:[%s402 + $0xbb0] sm:$0xf]
        %v1440 = vld [vmem:[%s402 + $0xbb4] sm:$0xff]
        %v1441 = vld [vmem:[%s402 + $0xbbc] sm:$0xff]
        %v1442 = vld [vmem:[%s402 + $0xbc4] sm:$0xff]
        %v1443 = vld [vmem:[%s402 + $0xbcc] sm:$0xf]
        %v1444 = vld [vmem:[%s402 + $0xbd0] sm:$0xff]
        %v1445 = vld [vmem:[%s402 + $0xbd8] sm:$0xff]
        %v1446 = vld [vmem:[%s402 + $0xbe0] sm:$0xff]
        %v1447 = vld [vmem:[%s402 + $0xbe8] sm:$0xf]
        %v1448 = vld [vmem:[%s402 + $0xbec] sm:$0xff]
        %v1449 = vld [vmem:[%s402 + $0xbf4] sm:$0xff]
        %v1450 = vld [vmem:[%s402 + $0xbfc] sm:$0xff]
        %v1451 = vld [vmem:[%s402 + $0xc04] sm:$0xf]
        %v1452 = vld [vmem:[%s402 + $0xc08] sm:$0xff]
        %v1453 = vld [vmem:[%s402 + $0xc10] sm:$0xff]
        %v1454 = vld [vmem:[%s402 + $0xc18] sm:$0xff]
        %v1455 = vld [vmem:[%s402 + $0xc20] sm:$0xf]
        %v1456 = vld [vmem:[%s402 + $0xc24] sm:$0xff]
        %v1457 = vld [vmem:[%s402 + $0xc2c] sm:$0xff]
        %v1458 = vld [vmem:[%s402 + $0xc34] sm:$0xff]
        %v1459 = vld [vmem:[%s402 + $0xc3c] sm:$0xf]
        %v1460 = vld [vmem:[%s402 + $0xc40] sm:$0xff]
        %v1461 = vld [vmem:[%s402 + $0xc48] sm:$0xff]
        %v1462 = vld [vmem:[%s402 + $0xc50] sm:$0xff]
        %v1463 = vld [vmem:[%s402 + $0xc58] sm:$0xf]
        %v1464 = vld [vmem:[%s402 + $0xc5c] sm:$0xff]
        %v1465 = vld [vmem:[%s402 + $0xc64] sm:$0xff]
        %v1466 = vld [vmem:[%s402 + $0xc6c] sm:$0xff]
        %v1467 = vld [vmem:[%s402 + $0xc74] sm:$0xf]
        %v1468 = vld [vmem:[%s402 + $0xc78] sm:$0xff]
        %v1469 = vld [vmem:[%s402 + $0xc80] sm:$0xff]
        %v1470 = vld [vmem:[%s402 + $0xc88] sm:$0xff]
        %v1471 = vld [vmem:[%s402 + $0xc90] sm:$0xf]
        %v1472 = vld [vmem:[%s402 + $0xc94] sm:$0xff]
        %v1473 = vld [vmem:[%s402 + $0xc9c] sm:$0xff]
        %v1474 = vld [vmem:[%s402 + $0xca4] sm:$0xff]
        %v1475 = vld [vmem:[%s402 + $0xcac] sm:$0xf]
        %v1476 = vld [vmem:[%s402 + $0xcb0] sm:$0xff]
        %v1477 = vld [vmem:[%s402 + $0xcb8] sm:$0xff]
        %v1478 = vld [vmem:[%s402 + $0xcc0] sm:$0xff]
        %v1479 = vld [vmem:[%s402 + $0xcc8] sm:$0xf]
        %v1480 = vld [vmem:[%s402 + $0xccc] sm:$0xff]
        %v1481 = vld [vmem:[%s402 + $0xcd4] sm:$0xff]
        %v1482 = vld [vmem:[%s402 + $0xcdc] sm:$0xff]
        %v1483 = vld [vmem:[%s402 + $0xce4] sm:$0xf]
        %v1484 = vld [vmem:[%s402 + $0xce8] sm:$0xff]
        %v1485 = vld [vmem:[%s402 + $0xcf0] sm:$0xff]
        %v1486 = vld [vmem:[%s402 + $0xcf8] sm:$0xff]
        %v1487 = vld [vmem:[%s402 + $0xd00] sm:$0xf]
        %v1488 = vld [vmem:[%s402 + $0xd04] sm:$0xff]
        %v1489 = vld [vmem:[%s402 + $0xd0c] sm:$0xff]
        %v1490 = vld [vmem:[%s402 + $0xd14] sm:$0xff]
        %v1491 = vld [vmem:[%s402 + $0xd1c] sm:$0xf]
        %v1492 = vld [vmem:[%s402 + $0xd20] sm:$0xff]
        %v1493 = vld [vmem:[%s402 + $0xd28] sm:$0xff]
        %v1494 = vld [vmem:[%s402 + $0xd30] sm:$0xff]
        %v1495 = vld [vmem:[%s402 + $0xd38] sm:$0xf]
        %v1496 = vld [vmem:[%s402 + $0xd3c] sm:$0xff]
        %v1497 = vld [vmem:[%s402 + $0xd44] sm:$0xff]
        %v1498 = vld [vmem:[%s402 + $0xd4c] sm:$0xff]
        %v1499 = vld [vmem:[%s402 + $0xd54] sm:$0xf]
        %v1500 = vld [vmem:[%s402 + $0xd58] sm:$0xff]
        %v1501 = vld [vmem:[%s402 + $0xd60] sm:$0xff]
        %v1502 = vld [vmem:[%s402 + $0xd68] sm:$0xff]
        %v1503 = vld [vmem:[%s402 + $0xd70] sm:$0xf]
        %v1504 = vld [vmem:[%s402 + $0xd74] sm:$0xff]
        %v1505 = vld [vmem:[%s402 + $0xd7c] sm:$0xff]
        %v1506 = vld [vmem:[%s402 + $0xd84] sm:$0xff]
        %v1507 = vld [vmem:[%s402 + $0xd8c] sm:$0xf]
        %v1508 = vld [vmem:[%s402 + $0xd90] sm:$0xff]
        %v1509 = vld [vmem:[%s402 + $0xd98] sm:$0xff]
        %v1510 = vld [vmem:[%s402 + $0xda0] sm:$0xff]
        %v1511 = vld [vmem:[%s402 + $0xda8] sm:$0xf]
        %v1512 = vld [vmem:[%s402 + $0xdac] sm:$0xff]
        %v1513 = vld [vmem:[%s402 + $0xdb4] sm:$0xff]
        %v1514 = vld [vmem:[%s402 + $0xdbc] sm:$0xff]
        %v1515 = vld [vmem:[%s402 + $0xdc4] sm:$0xf]
        %v1516 = vld [vmem:[%s402 + $0xdc8] sm:$0xff]
        %v1517 = vld [vmem:[%s402 + $0xdd0] sm:$0xff]
        %v1518 = vld [vmem:[%s402 + $0xdd8] sm:$0xff]
        %v1519 = vld [vmem:[%s402 + $0xde0] sm:$0xf]
        %v1520 = vld [vmem:[%s402 + $0xde4] sm:$0xff]
        %v1521 = vld [vmem:[%s402 + $0xdec] sm:$0xff]
        %v1522 = vld [vmem:[%s402 + $0xdf4] sm:$0xff]
        %v1523 = vld [vmem:[%s402 + $0xdfc] sm:$0xf]
        %v1524 = vunpack.c.l.bf16 %v1012
        %v1525 = vunpack.c.h.bf16 %v1012
        %v1526 = vunpack.c.l.bf16 %v1013
        %v1527 = vunpack.c.h.bf16 %v1013
        %v1528 = vunpack.c.l.bf16 %v1014
        %v1529 = vunpack.c.h.bf16 %v1014
        %v1530 = vunpack.c.l.bf16 %v1015
        %v1531 = vunpack.c.l.bf16 %v1016
        %v1532 = vunpack.c.h.bf16 %v1016
        %v1533 = vunpack.c.l.bf16 %v1017
        %v1534 = vunpack.c.h.bf16 %v1017
        %v1535 = vunpack.c.l.bf16 %v1018
        %v1536 = vunpack.c.h.bf16 %v1018
        %v1537 = vunpack.c.l.bf16 %v1019
        %v1538 = vunpack.c.l.bf16 %v1020
        %v1539 = vunpack.c.h.bf16 %v1020
        %v1540 = vunpack.c.l.bf16 %v1021
        %v1541 = vunpack.c.h.bf16 %v1021
        %v1542 = vunpack.c.l.bf16 %v1022
        %v1543 = vunpack.c.h.bf16 %v1022
        %v1544 = vunpack.c.l.bf16 %v1023
        %v1545 = vunpack.c.l.bf16 %v1024
        %v1546 = vunpack.c.h.bf16 %v1024
        %v1547 = vunpack.c.l.bf16 %v1025
        %v1548 = vunpack.c.h.bf16 %v1025
        %v1549 = vunpack.c.l.bf16 %v1026
        %v1550 = vunpack.c.h.bf16 %v1026
        %v1551 = vunpack.c.l.bf16 %v1027
        %v1552 = vunpack.c.l.bf16 %v1028
        %v1553 = vunpack.c.h.bf16 %v1028
        %v1554 = vunpack.c.l.bf16 %v1029
        %v1555 = vunpack.c.h.bf16 %v1029
        %v1556 = vunpack.c.l.bf16 %v1030
        %v1557 = vunpack.c.h.bf16 %v1030
        %v1558 = vunpack.c.l.bf16 %v1031
        %v1559 = vunpack.c.l.bf16 %v1032
        %v1560 = vunpack.c.h.bf16 %v1032
        %v1561 = vunpack.c.l.bf16 %v1033
        %v1562 = vunpack.c.h.bf16 %v1033
        %v1563 = vunpack.c.l.bf16 %v1034
        %v1564 = vunpack.c.h.bf16 %v1034
        %v1565 = vunpack.c.l.bf16 %v1035
        %v1566 = vunpack.c.l.bf16 %v1036
        %v1567 = vunpack.c.h.bf16 %v1036
        %v1568 = vunpack.c.l.bf16 %v1037
        %v1569 = vunpack.c.h.bf16 %v1037
        %v1570 = vunpack.c.l.bf16 %v1038
        %v1571 = vunpack.c.h.bf16 %v1038
        %v1572 = vunpack.c.l.bf16 %v1039
        %v1573 = vunpack.c.l.bf16 %v1040
        %v1574 = vunpack.c.h.bf16 %v1040
        %v1575 = vunpack.c.l.bf16 %v1041
        %v1576 = vunpack.c.h.bf16 %v1041
        %v1577 = vunpack.c.l.bf16 %v1042
        %v1578 = vunpack.c.h.bf16 %v1042
        %v1579 = vunpack.c.l.bf16 %v1043
        %v1580 = vunpack.c.l.bf16 %v1044
        %v1581 = vunpack.c.h.bf16 %v1044
        %v1582 = vunpack.c.l.bf16 %v1045
        %v1583 = vunpack.c.h.bf16 %v1045
        %v1584 = vunpack.c.l.bf16 %v1046
        %v1585 = vunpack.c.h.bf16 %v1046
        %v1586 = vunpack.c.l.bf16 %v1047
        %v1587 = vunpack.c.l.bf16 %v1048
        %v1588 = vunpack.c.h.bf16 %v1048
        %v1589 = vunpack.c.l.bf16 %v1049
        %v1590 = vunpack.c.h.bf16 %v1049
        %v1591 = vunpack.c.l.bf16 %v1050
        %v1592 = vunpack.c.h.bf16 %v1050
        %v1593 = vunpack.c.l.bf16 %v1051
        %v1594 = vunpack.c.l.bf16 %v1052
        %v1595 = vunpack.c.h.bf16 %v1052
        %v1596 = vunpack.c.l.bf16 %v1053
        %v1597 = vunpack.c.h.bf16 %v1053
        %v1598 = vunpack.c.l.bf16 %v1054
        %v1599 = vunpack.c.h.bf16 %v1054
        %v1600 = vunpack.c.l.bf16 %v1055
        %v1601 = vunpack.c.l.bf16 %v1056
        %v1602 = vunpack.c.h.bf16 %v1056
        %v1603 = vunpack.c.l.bf16 %v1057
        %v1604 = vunpack.c.h.bf16 %v1057
        %v1605 = vunpack.c.l.bf16 %v1058
        %v1606 = vunpack.c.h.bf16 %v1058
        %v1607 = vunpack.c.l.bf16 %v1059
        %v1608 = vunpack.c.l.bf16 %v1060
        %v1609 = vunpack.c.h.bf16 %v1060
        %v1610 = vunpack.c.l.bf16 %v1061
        %v1611 = vunpack.c.h.bf16 %v1061
        %v1612 = vunpack.c.l.bf16 %v1062
        %v1613 = vunpack.c.h.bf16 %v1062
        %v1614 = vunpack.c.l.bf16 %v1063
        %v1615 = vunpack.c.l.bf16 %v1064
        %v1616 = vunpack.c.h.bf16 %v1064
        %v1617 = vunpack.c.l.bf16 %v1065
        %v1618 = vunpack.c.h.bf16 %v1065
        %v1619 = vunpack.c.l.bf16 %v1066
        %v1620 = vunpack.c.h.bf16 %v1066
        %v1621 = vunpack.c.l.bf16 %v1067
        %v1622 = vunpack.c.l.bf16 %v1068
        %v1623 = vunpack.c.h.bf16 %v1068
        %v1624 = vunpack.c.l.bf16 %v1069
        %v1625 = vunpack.c.h.bf16 %v1069
        %v1626 = vunpack.c.l.bf16 %v1070
        %v1627 = vunpack.c.h.bf16 %v1070
        %v1628 = vunpack.c.l.bf16 %v1071
        %v1629 = vunpack.c.l.bf16 %v1072
        %v1630 = vunpack.c.h.bf16 %v1072
        %v1631 = vunpack.c.l.bf16 %v1073
        %v1632 = vunpack.c.h.bf16 %v1073
        %v1633 = vunpack.c.l.bf16 %v1074
        %v1634 = vunpack.c.h.bf16 %v1074
        %v1635 = vunpack.c.l.bf16 %v1075
        %v1636 = vunpack.c.l.bf16 %v1076
        %v1637 = vunpack.c.h.bf16 %v1076
        %v1638 = vunpack.c.l.bf16 %v1077
        %v1639 = vunpack.c.h.bf16 %v1077
        %v1640 = vunpack.c.l.bf16 %v1078
        %v1641 = vunpack.c.h.bf16 %v1078
        %v1642 = vunpack.c.l.bf16 %v1079
        %v1643 = vunpack.c.l.bf16 %v1080
        %v1644 = vunpack.c.h.bf16 %v1080
        %v1645 = vunpack.c.l.bf16 %v1081
        %v1646 = vunpack.c.h.bf16 %v1081
        %v1647 = vunpack.c.l.bf16 %v1082
        %v1648 = vunpack.c.h.bf16 %v1082
        %v1649 = vunpack.c.l.bf16 %v1083
        %v1650 = vunpack.c.l.bf16 %v1084
        %v1651 = vunpack.c.h.bf16 %v1084
        %v1652 = vunpack.c.l.bf16 %v1085
        %v1653 = vunpack.c.h.bf16 %v1085
        %v1654 = vunpack.c.l.bf16 %v1086
        %v1655 = vunpack.c.h.bf16 %v1086
        %v1656 = vunpack.c.l.bf16 %v1087
        %v1657 = vunpack.c.l.bf16 %v1088
        %v1658 = vunpack.c.h.bf16 %v1088
        %v1659 = vunpack.c.l.bf16 %v1089
        %v1660 = vunpack.c.h.bf16 %v1089
        %v1661 = vunpack.c.l.bf16 %v1090
        %v1662 = vunpack.c.h.bf16 %v1090
        %v1663 = vunpack.c.l.bf16 %v1091
        %v1664 = vunpack.c.l.bf16 %v1092
        %v1665 = vunpack.c.h.bf16 %v1092
        %v1666 = vunpack.c.l.bf16 %v1093
        %v1667 = vunpack.c.h.bf16 %v1093
        %v1668 = vunpack.c.l.bf16 %v1094
        %v1669 = vunpack.c.h.bf16 %v1094
        %v1670 = vunpack.c.l.bf16 %v1095
        %v1671 = vunpack.c.l.bf16 %v1096
        %v1672 = vunpack.c.h.bf16 %v1096
        %v1673 = vunpack.c.l.bf16 %v1097
        %v1674 = vunpack.c.h.bf16 %v1097
        %v1675 = vunpack.c.l.bf16 %v1098
        %v1676 = vunpack.c.h.bf16 %v1098
        %v1677 = vunpack.c.l.bf16 %v1099
        %v1678 = vunpack.c.l.bf16 %v1100
        %v1679 = vunpack.c.h.bf16 %v1100
        %v1680 = vunpack.c.l.bf16 %v1101
        %v1681 = vunpack.c.h.bf16 %v1101
        %v1682 = vunpack.c.l.bf16 %v1102
        %v1683 = vunpack.c.h.bf16 %v1102
        %v1684 = vunpack.c.l.bf16 %v1103
        %v1685 = vunpack.c.l.bf16 %v1104
        %v1686 = vunpack.c.h.bf16 %v1104
        %v1687 = vunpack.c.l.bf16 %v1105
        %v1688 = vunpack.c.h.bf16 %v1105
        %v1689 = vunpack.c.l.bf16 %v1106
        %v1690 = vunpack.c.h.bf16 %v1106
        %v1691 = vunpack.c.l.bf16 %v1107
        %v1692 = vunpack.c.l.bf16 %v1108
        %v1693 = vunpack.c.h.bf16 %v1108
        %v1694 = vunpack.c.l.bf16 %v1109
        %v1695 = vunpack.c.h.bf16 %v1109
        %v1696 = vunpack.c.l.bf16 %v1110
        %v1697 = vunpack.c.h.bf16 %v1110
        %v1698 = vunpack.c.l.bf16 %v1111
        %v1699 = vunpack.c.l.bf16 %v1112
        %v1700 = vunpack.c.h.bf16 %v1112
        %v1701 = vunpack.c.l.bf16 %v1113
        %v1702 = vunpack.c.h.bf16 %v1113
        %v1703 = vunpack.c.l.bf16 %v1114
        %v1704 = vunpack.c.h.bf16 %v1114
        %v1705 = vunpack.c.l.bf16 %v1115
        %v1706 = vunpack.c.l.bf16 %v1116
        %v1707 = vunpack.c.h.bf16 %v1116
        %v1708 = vunpack.c.l.bf16 %v1117
        %v1709 = vunpack.c.h.bf16 %v1117
        %v1710 = vunpack.c.l.bf16 %v1118
        %v1711 = vunpack.c.h.bf16 %v1118
        %v1712 = vunpack.c.l.bf16 %v1119
        %v1713 = vunpack.c.l.bf16 %v1120
        %v1714 = vunpack.c.h.bf16 %v1120
        %v1715 = vunpack.c.l.bf16 %v1121
        %v1716 = vunpack.c.h.bf16 %v1121
        %v1717 = vunpack.c.l.bf16 %v1122
        %v1718 = vunpack.c.h.bf16 %v1122
        %v1719 = vunpack.c.l.bf16 %v1123
        %v1720 = vunpack.c.l.bf16 %v1124
        %v1721 = vunpack.c.h.bf16 %v1124
        %v1722 = vunpack.c.l.bf16 %v1125
        %v1723 = vunpack.c.h.bf16 %v1125
        %v1724 = vunpack.c.l.bf16 %v1126
        %v1725 = vunpack.c.h.bf16 %v1126
        %v1726 = vunpack.c.l.bf16 %v1127
        %v1727 = vunpack.c.l.bf16 %v1128
        %v1728 = vunpack.c.h.bf16 %v1128
        %v1729 = vunpack.c.l.bf16 %v1129
        %v1730 = vunpack.c.h.bf16 %v1129
        %v1731 = vunpack.c.l.bf16 %v1130
        %v1732 = vunpack.c.h.bf16 %v1130
        %v1733 = vunpack.c.l.bf16 %v1131
        %v1734 = vunpack.c.l.bf16 %v1132
        %v1735 = vunpack.c.h.bf16 %v1132
        %v1736 = vunpack.c.l.bf16 %v1133
        %v1737 = vunpack.c.h.bf16 %v1133
        %v1738 = vunpack.c.l.bf16 %v1134
        %v1739 = vunpack.c.h.bf16 %v1134
        %v1740 = vunpack.c.l.bf16 %v1135
        %v1741 = vunpack.c.l.bf16 %v1136
        %v1742 = vunpack.c.h.bf16 %v1136
        %v1743 = vunpack.c.l.bf16 %v1137
        %v1744 = vunpack.c.h.bf16 %v1137
        %v1745 = vunpack.c.l.bf16 %v1138
        %v1746 = vunpack.c.h.bf16 %v1138
        %v1747 = vunpack.c.l.bf16 %v1139
        %v1748 = vunpack.c.l.bf16 %v1140
        %v1749 = vunpack.c.h.bf16 %v1140
        %v1750 = vunpack.c.l.bf16 %v1141
        %v1751 = vunpack.c.h.bf16 %v1141
        %v1752 = vunpack.c.l.bf16 %v1142
        %v1753 = vunpack.c.h.bf16 %v1142
        %v1754 = vunpack.c.l.bf16 %v1143
        %v1755 = vunpack.c.l.bf16 %v1144
        %v1756 = vunpack.c.h.bf16 %v1144
        %v1757 = vunpack.c.l.bf16 %v1145
        %v1758 = vunpack.c.h.bf16 %v1145
        %v1759 = vunpack.c.l.bf16 %v1146
        %v1760 = vunpack.c.h.bf16 %v1146
        %v1761 = vunpack.c.l.bf16 %v1147
        %v1762 = vunpack.c.l.bf16 %v1148
        %v1763 = vunpack.c.h.bf16 %v1148
        %v1764 = vunpack.c.l.bf16 %v1149
        %v1765 = vunpack.c.h.bf16 %v1149
        %v1766 = vunpack.c.l.bf16 %v1150
        %v1767 = vunpack.c.h.bf16 %v1150
        %v1768 = vunpack.c.l.bf16 %v1151
        %v1769 = vunpack.c.l.bf16 %v1152
        %v1770 = vunpack.c.h.bf16 %v1152
        %v1771 = vunpack.c.l.bf16 %v1153
        %v1772 = vunpack.c.h.bf16 %v1153
        %v1773 = vunpack.c.l.bf16 %v1154
        %v1774 = vunpack.c.h.bf16 %v1154
        %v1775 = vunpack.c.l.bf16 %v1155
        %v1776 = vunpack.c.l.bf16 %v1156
        %v1777 = vunpack.c.h.bf16 %v1156
        %v1778 = vunpack.c.l.bf16 %v1157
        %v1779 = vunpack.c.h.bf16 %v1157
        %v1780 = vunpack.c.l.bf16 %v1158
        %v1781 = vunpack.c.h.bf16 %v1158
        %v1782 = vunpack.c.l.bf16 %v1159
        %v1783 = vunpack.c.l.bf16 %v1160
        %v1784 = vunpack.c.h.bf16 %v1160
        %v1785 = vunpack.c.l.bf16 %v1161
        %v1786 = vunpack.c.h.bf16 %v1161
        %v1787 = vunpack.c.l.bf16 %v1162
        %v1788 = vunpack.c.h.bf16 %v1162
        %v1789 = vunpack.c.l.bf16 %v1163
        %v1790 = vunpack.c.l.bf16 %v1164
        %v1791 = vunpack.c.h.bf16 %v1164
        %v1792 = vunpack.c.l.bf16 %v1165
        %v1793 = vunpack.c.h.bf16 %v1165
        %v1794 = vunpack.c.l.bf16 %v1166
        %v1795 = vunpack.c.h.bf16 %v1166
        %v1796 = vunpack.c.l.bf16 %v1167
        %v1797 = vunpack.c.l.bf16 %v1168
        %v1798 = vunpack.c.h.bf16 %v1168
        %v1799 = vunpack.c.l.bf16 %v1169
        %v1800 = vunpack.c.h.bf16 %v1169
        %v1801 = vunpack.c.l.bf16 %v1170
        %v1802 = vunpack.c.h.bf16 %v1170
        %v1803 = vunpack.c.l.bf16 %v1171
        %v1804 = vunpack.c.l.bf16 %v1172
        %v1805 = vunpack.c.h.bf16 %v1172
        %v1806 = vunpack.c.l.bf16 %v1173
        %v1807 = vunpack.c.h.bf16 %v1173
        %v1808 = vunpack.c.l.bf16 %v1174
        %v1809 = vunpack.c.h.bf16 %v1174
        %v1810 = vunpack.c.l.bf16 %v1175
        %v1811 = vunpack.c.l.bf16 %v1176
        %v1812 = vunpack.c.h.bf16 %v1176
        %v1813 = vunpack.c.l.bf16 %v1177
        %v1814 = vunpack.c.h.bf16 %v1177
        %v1815 = vunpack.c.l.bf16 %v1178
        %v1816 = vunpack.c.h.bf16 %v1178
        %v1817 = vunpack.c.l.bf16 %v1179
        %v1818 = vunpack.c.l.bf16 %v1180
        %v1819 = vunpack.c.h.bf16 %v1180
        %v1820 = vunpack.c.l.bf16 %v1181
        %v1821 = vunpack.c.h.bf16 %v1181
        %v1822 = vunpack.c.l.bf16 %v1182
        %v1823 = vunpack.c.h.bf16 %v1182
        %v1824 = vunpack.c.l.bf16 %v1183
        %v1825 = vunpack.c.l.bf16 %v1184
        %v1826 = vunpack.c.h.bf16 %v1184
        %v1827 = vunpack.c.l.bf16 %v1185
        %v1828 = vunpack.c.h.bf16 %v1185
        %v1829 = vunpack.c.l.bf16 %v1186
        %v1830 = vunpack.c.h.bf16 %v1186
        %v1831 = vunpack.c.l.bf16 %v1187
        %v1832 = vunpack.c.l.bf16 %v1188
        %v1833 = vunpack.c.h.bf16 %v1188
        %v1834 = vunpack.c.l.bf16 %v1189
        %v1835 = vunpack.c.h.bf16 %v1189
        %v1836 = vunpack.c.l.bf16 %v1190
        %v1837 = vunpack.c.h.bf16 %v1190
        %v1838 = vunpack.c.l.bf16 %v1191
        %v1839 = vunpack.c.l.bf16 %v1192
        %v1840 = vunpack.c.h.bf16 %v1192
        %v1841 = vunpack.c.l.bf16 %v1193
        %v1842 = vunpack.c.h.bf16 %v1193
        %v1843 = vunpack.c.l.bf16 %v1194
        %v1844 = vunpack.c.h.bf16 %v1194
        %v1845 = vunpack.c.l.bf16 %v1195
        %v1846 = vunpack.c.l.bf16 %v1196
        %v1847 = vunpack.c.h.bf16 %v1196
        %v1848 = vunpack.c.l.bf16 %v1197
        %v1849 = vunpack.c.h.bf16 %v1197
        %v1850 = vunpack.c.l.bf16 %v1198
        %v1851 = vunpack.c.h.bf16 %v1198
        %v1852 = vunpack.c.l.bf16 %v1199
        %v1853 = vunpack.c.l.bf16 %v1200
        %v1854 = vunpack.c.h.bf16 %v1200
        %v1855 = vunpack.c.l.bf16 %v1201
        %v1856 = vunpack.c.h.bf16 %v1201
        %v1857 = vunpack.c.l.bf16 %v1202
        %v1858 = vunpack.c.h.bf16 %v1202
        %v1859 = vunpack.c.l.bf16 %v1203
        %v1860 = vunpack.c.l.bf16 %v1204
        %v1861 = vunpack.c.h.bf16 %v1204
        %v1862 = vunpack.c.l.bf16 %v1205
        %v1863 = vunpack.c.h.bf16 %v1205
        %v1864 = vunpack.c.l.bf16 %v1206
        %v1865 = vunpack.c.h.bf16 %v1206
        %v1866 = vunpack.c.l.bf16 %v1207
        %v1867 = vunpack.c.l.bf16 %v1208
        %v1868 = vunpack.c.h.bf16 %v1208
        %v1869 = vunpack.c.l.bf16 %v1209
        %v1870 = vunpack.c.h.bf16 %v1209
        %v1871 = vunpack.c.l.bf16 %v1210
        %v1872 = vunpack.c.h.bf16 %v1210
        %v1873 = vunpack.c.l.bf16 %v1211
        %v1874 = vunpack.c.l.bf16 %v1212
        %v1875 = vunpack.c.h.bf16 %v1212
        %v1876 = vunpack.c.l.bf16 %v1213
        %v1877 = vunpack.c.h.bf16 %v1213
        %v1878 = vunpack.c.l.bf16 %v1214
        %v1879 = vunpack.c.h.bf16 %v1214
        %v1880 = vunpack.c.l.bf16 %v1215
        %v1881 = vunpack.c.l.bf16 %v1216
        %v1882 = vunpack.c.h.bf16 %v1216
        %v1883 = vunpack.c.l.bf16 %v1217
        %v1884 = vunpack.c.h.bf16 %v1217
        %v1885 = vunpack.c.l.bf16 %v1218
        %v1886 = vunpack.c.h.bf16 %v1218
        %v1887 = vunpack.c.l.bf16 %v1219
        %v1888 = vunpack.c.l.bf16 %v1220
        %v1889 = vunpack.c.h.bf16 %v1220
        %v1890 = vunpack.c.l.bf16 %v1221
        %v1891 = vunpack.c.h.bf16 %v1221
        %v1892 = vunpack.c.l.bf16 %v1222
        %v1893 = vunpack.c.h.bf16 %v1222
        %v1894 = vunpack.c.l.bf16 %v1223
        %v1895 = vunpack.c.l.bf16 %v1224
        %v1896 = vunpack.c.h.bf16 %v1224
        %v1897 = vunpack.c.l.bf16 %v1225
        %v1898 = vunpack.c.h.bf16 %v1225
        %v1899 = vunpack.c.l.bf16 %v1226
        %v1900 = vunpack.c.h.bf16 %v1226
        %v1901 = vunpack.c.l.bf16 %v1227
        %v1902 = vunpack.c.l.bf16 %v1228
        %v1903 = vunpack.c.h.bf16 %v1228
        %v1904 = vunpack.c.l.bf16 %v1229
        %v1905 = vunpack.c.h.bf16 %v1229
        %v1906 = vunpack.c.l.bf16 %v1230
        %v1907 = vunpack.c.h.bf16 %v1230
        %v1908 = vunpack.c.l.bf16 %v1231
        %v1909 = vunpack.c.l.bf16 %v1232
        %v1910 = vunpack.c.h.bf16 %v1232
        %v1911 = vunpack.c.l.bf16 %v1233
        %v1912 = vunpack.c.h.bf16 %v1233
        %v1913 = vunpack.c.l.bf16 %v1234
        %v1914 = vunpack.c.h.bf16 %v1234
        %v1915 = vunpack.c.l.bf16 %v1235
        %v1916 = vunpack.c.l.bf16 %v1236
        %v1917 = vunpack.c.h.bf16 %v1236
        %v1918 = vunpack.c.l.bf16 %v1237
        %v1919 = vunpack.c.h.bf16 %v1237
        %v1920 = vunpack.c.l.bf16 %v1238
        %v1921 = vunpack.c.h.bf16 %v1238
        %v1922 = vunpack.c.l.bf16 %v1239
        %v1923 = vunpack.c.l.bf16 %v1240
        %v1924 = vunpack.c.h.bf16 %v1240
        %v1925 = vunpack.c.l.bf16 %v1241
        %v1926 = vunpack.c.h.bf16 %v1241
        %v1927 = vunpack.c.l.bf16 %v1242
        %v1928 = vunpack.c.h.bf16 %v1242
        %v1929 = vunpack.c.l.bf16 %v1243
        %v1930 = vunpack.c.l.bf16 %v1244
        %v1931 = vunpack.c.h.bf16 %v1244
        %v1932 = vunpack.c.l.bf16 %v1245
        %v1933 = vunpack.c.h.bf16 %v1245
        %v1934 = vunpack.c.l.bf16 %v1246
        %v1935 = vunpack.c.h.bf16 %v1246
        %v1936 = vunpack.c.l.bf16 %v1247
        %v1937 = vunpack.c.l.bf16 %v1248
        %v1938 = vunpack.c.h.bf16 %v1248
        %v1939 = vunpack.c.l.bf16 %v1249
        %v1940 = vunpack.c.h.bf16 %v1249
        %v1941 = vunpack.c.l.bf16 %v1250
        %v1942 = vunpack.c.h.bf16 %v1250
        %v1943 = vunpack.c.l.bf16 %v1251
        %v1944 = vunpack.c.l.bf16 %v1252
        %v1945 = vunpack.c.h.bf16 %v1252
        %v1946 = vunpack.c.l.bf16 %v1253
        %v1947 = vunpack.c.h.bf16 %v1253
        %v1948 = vunpack.c.l.bf16 %v1254
        %v1949 = vunpack.c.h.bf16 %v1254
        %v1950 = vunpack.c.l.bf16 %v1255
        %v1951 = vunpack.c.l.bf16 %v1256
        %v1952 = vunpack.c.h.bf16 %v1256
        %v1953 = vunpack.c.l.bf16 %v1257
        %v1954 = vunpack.c.h.bf16 %v1257
        %v1955 = vunpack.c.l.bf16 %v1258
        %v1956 = vunpack.c.h.bf16 %v1258
        %v1957 = vunpack.c.l.bf16 %v1259
        %v1958 = vunpack.c.l.bf16 %v1260
        %v1959 = vunpack.c.h.bf16 %v1260
        %v1960 = vunpack.c.l.bf16 %v1261
        %v1961 = vunpack.c.h.bf16 %v1261
        %v1962 = vunpack.c.l.bf16 %v1262
        %v1963 = vunpack.c.h.bf16 %v1262
        %v1964 = vunpack.c.l.bf16 %v1263
        %v1965 = vunpack.c.l.bf16 %v1264
        %v1966 = vunpack.c.h.bf16 %v1264
        %v1967 = vunpack.c.l.bf16 %v1265
        %v1968 = vunpack.c.h.bf16 %v1265
        %v1969 = vunpack.c.l.bf16 %v1266
        %v1970 = vunpack.c.h.bf16 %v1266
        %v1971 = vunpack.c.l.bf16 %v1267
        %v1972 = vunpack.c.l.bf16 %v1268
        %v1973 = vunpack.c.h.bf16 %v1268
        %v1974 = vunpack.c.l.bf16 %v1269
        %v1975 = vunpack.c.h.bf16 %v1269
        %v1976 = vunpack.c.l.bf16 %v1270
        %v1977 = vunpack.c.h.bf16 %v1270
        %v1978 = vunpack.c.l.bf16 %v1271
        %v1979 = vunpack.c.l.bf16 %v1272
        %v1980 = vunpack.c.h.bf16 %v1272
        %v1981 = vunpack.c.l.bf16 %v1273
        %v1982 = vunpack.c.h.bf16 %v1273
        %v1983 = vunpack.c.l.bf16 %v1274
        %v1984 = vunpack.c.h.bf16 %v1274
        %v1985 = vunpack.c.l.bf16 %v1275
        %v1986 = vunpack.c.l.bf16 %v1276
        %v1987 = vunpack.c.h.bf16 %v1276
        %v1988 = vunpack.c.l.bf16 %v1277
        %v1989 = vunpack.c.h.bf16 %v1277
        %v1990 = vunpack.c.l.bf16 %v1278
        %v1991 = vunpack.c.h.bf16 %v1278
        %v1992 = vunpack.c.l.bf16 %v1279
        %v1993 = vunpack.c.l.bf16 %v1280
        %v1994 = vunpack.c.h.bf16 %v1280
        %v1995 = vunpack.c.l.bf16 %v1281
        %v1996 = vunpack.c.h.bf16 %v1281
        %v1997 = vunpack.c.l.bf16 %v1282
        %v1998 = vunpack.c.h.bf16 %v1282
        %v1999 = vunpack.c.l.bf16 %v1283
        %v2000 = vunpack.c.l.bf16 %v1284
        %v2001 = vunpack.c.h.bf16 %v1284
        %v2002 = vunpack.c.l.bf16 %v1285
        %v2003 = vunpack.c.h.bf16 %v1285
        %v2004 = vunpack.c.l.bf16 %v1286
        %v2005 = vunpack.c.h.bf16 %v1286
        %v2006 = vunpack.c.l.bf16 %v1287
        %v2007 = vunpack.c.l.bf16 %v1288
        %v2008 = vunpack.c.h.bf16 %v1288
        %v2009 = vunpack.c.l.bf16 %v1289
        %v2010 = vunpack.c.h.bf16 %v1289
        %v2011 = vunpack.c.l.bf16 %v1290
        %v2012 = vunpack.c.h.bf16 %v1290
        %v2013 = vunpack.c.l.bf16 %v1291
        %v2014 = vunpack.c.l.bf16 %v1292
        %v2015 = vunpack.c.h.bf16 %v1292
        %v2016 = vunpack.c.l.bf16 %v1293
        %v2017 = vunpack.c.h.bf16 %v1293
        %v2018 = vunpack.c.l.bf16 %v1294
        %v2019 = vunpack.c.h.bf16 %v1294
        %v2020 = vunpack.c.l.bf16 %v1295
        %v2021 = vunpack.c.l.bf16 %v1296
        %v2022 = vunpack.c.h.bf16 %v1296
        %v2023 = vunpack.c.l.bf16 %v1297
        %v2024 = vunpack.c.h.bf16 %v1297
        %v2025 = vunpack.c.l.bf16 %v1298
        %v2026 = vunpack.c.h.bf16 %v1298
        %v2027 = vunpack.c.l.bf16 %v1299
        %v2028 = vunpack.c.l.bf16 %v1300
        %v2029 = vunpack.c.h.bf16 %v1300
        %v2030 = vunpack.c.l.bf16 %v1301
        %v2031 = vunpack.c.h.bf16 %v1301
        %v2032 = vunpack.c.l.bf16 %v1302
        %v2033 = vunpack.c.h.bf16 %v1302
        %v2034 = vunpack.c.l.bf16 %v1303
        %v2035 = vunpack.c.l.bf16 %v1304
        %v2036 = vunpack.c.h.bf16 %v1304
        %v2037 = vunpack.c.l.bf16 %v1305
        %v2038 = vunpack.c.h.bf16 %v1305
        %v2039 = vunpack.c.l.bf16 %v1306
        %v2040 = vunpack.c.h.bf16 %v1306
        %v2041 = vunpack.c.l.bf16 %v1307
        %v2042 = vunpack.c.l.bf16 %v1308
        %v2043 = vunpack.c.h.bf16 %v1308
        %v2044 = vunpack.c.l.bf16 %v1309
        %v2045 = vunpack.c.h.bf16 %v1309
        %v2046 = vunpack.c.l.bf16 %v1310
        %v2047 = vunpack.c.h.bf16 %v1310
        %v2048 = vunpack.c.l.bf16 %v1311
        %v2049 = vunpack.c.l.bf16 %v1312
        %v2050 = vunpack.c.h.bf16 %v1312
        %v2051 = vunpack.c.l.bf16 %v1313
        %v2052 = vunpack.c.h.bf16 %v1313
        %v2053 = vunpack.c.l.bf16 %v1314
        %v2054 = vunpack.c.h.bf16 %v1314
        %v2055 = vunpack.c.l.bf16 %v1315
        %v2056 = vunpack.c.l.bf16 %v1316
        %v2057 = vunpack.c.h.bf16 %v1316
        %v2058 = vunpack.c.l.bf16 %v1317
        %v2059 = vunpack.c.h.bf16 %v1317
        %v2060 = vunpack.c.l.bf16 %v1318
        %v2061 = vunpack.c.h.bf16 %v1318
        %v2062 = vunpack.c.l.bf16 %v1319
        %v2063 = vunpack.c.l.bf16 %v1320
        %v2064 = vunpack.c.h.bf16 %v1320
        %v2065 = vunpack.c.l.bf16 %v1321
        %v2066 = vunpack.c.h.bf16 %v1321
        %v2067 = vunpack.c.l.bf16 %v1322
        %v2068 = vunpack.c.h.bf16 %v1322
        %v2069 = vunpack.c.l.bf16 %v1323
        %v2070 = vunpack.c.l.bf16 %v1324
        %v2071 = vunpack.c.h.bf16 %v1324
        %v2072 = vunpack.c.l.bf16 %v1325
        %v2073 = vunpack.c.h.bf16 %v1325
        %v2074 = vunpack.c.l.bf16 %v1326
        %v2075 = vunpack.c.h.bf16 %v1326
        %v2076 = vunpack.c.l.bf16 %v1327
        %v2077 = vunpack.c.l.bf16 %v1328
        %v2078 = vunpack.c.h.bf16 %v1328
        %v2079 = vunpack.c.l.bf16 %v1329
        %v2080 = vunpack.c.h.bf16 %v1329
        %v2081 = vunpack.c.l.bf16 %v1330
        %v2082 = vunpack.c.h.bf16 %v1330
        %v2083 = vunpack.c.l.bf16 %v1331
        %v2084 = vunpack.c.l.bf16 %v1332
        %v2085 = vunpack.c.h.bf16 %v1332
        %v2086 = vunpack.c.l.bf16 %v1333
        %v2087 = vunpack.c.h.bf16 %v1333
        %v2088 = vunpack.c.l.bf16 %v1334
        %v2089 = vunpack.c.h.bf16 %v1334
        %v2090 = vunpack.c.l.bf16 %v1335
        %v2091 = vunpack.c.l.bf16 %v1336
        %v2092 = vunpack.c.h.bf16 %v1336
        %v2093 = vunpack.c.l.bf16 %v1337
        %v2094 = vunpack.c.h.bf16 %v1337
        %v2095 = vunpack.c.l.bf16 %v1338
        %v2096 = vunpack.c.h.bf16 %v1338
        %v2097 = vunpack.c.l.bf16 %v1339
        %v2098 = vunpack.c.l.bf16 %v1340
        %v2099 = vunpack.c.h.bf16 %v1340
        %v2100 = vunpack.c.l.bf16 %v1341
        %v2101 = vunpack.c.h.bf16 %v1341
        %v2102 = vunpack.c.l.bf16 %v1342
        %v2103 = vunpack.c.h.bf16 %v1342
        %v2104 = vunpack.c.l.bf16 %v1343
        %v2105 = vunpack.c.l.bf16 %v1344
        %v2106 = vunpack.c.h.bf16 %v1344
        %v2107 = vunpack.c.l.bf16 %v1345
        %v2108 = vunpack.c.h.bf16 %v1345
        %v2109 = vunpack.c.l.bf16 %v1346
        %v2110 = vunpack.c.h.bf16 %v1346
        %v2111 = vunpack.c.l.bf16 %v1347
        %v2112 = vunpack.c.l.bf16 %v1348
        %v2113 = vunpack.c.h.bf16 %v1348
        %v2114 = vunpack.c.l.bf16 %v1349
        %v2115 = vunpack.c.h.bf16 %v1349
        %v2116 = vunpack.c.l.bf16 %v1350
        %v2117 = vunpack.c.h.bf16 %v1350
        %v2118 = vunpack.c.l.bf16 %v1351
        %v2119 = vunpack.c.l.bf16 %v1352
        %v2120 = vunpack.c.h.bf16 %v1352
        %v2121 = vunpack.c.l.bf16 %v1353
        %v2122 = vunpack.c.h.bf16 %v1353
        %v2123 = vunpack.c.l.bf16 %v1354
        %v2124 = vunpack.c.h.bf16 %v1354
        %v2125 = vunpack.c.l.bf16 %v1355
        %v2126 = vunpack.c.l.bf16 %v1356
        %v2127 = vunpack.c.h.bf16 %v1356
        %v2128 = vunpack.c.l.bf16 %v1357
        %v2129 = vunpack.c.h.bf16 %v1357
        %v2130 = vunpack.c.l.bf16 %v1358
        %v2131 = vunpack.c.h.bf16 %v1358
        %v2132 = vunpack.c.l.bf16 %v1359
        %v2133 = vunpack.c.l.bf16 %v1360
        %v2134 = vunpack.c.h.bf16 %v1360
        %v2135 = vunpack.c.l.bf16 %v1361
        %v2136 = vunpack.c.h.bf16 %v1361
        %v2137 = vunpack.c.l.bf16 %v1362
        %v2138 = vunpack.c.h.bf16 %v1362
        %v2139 = vunpack.c.l.bf16 %v1363
        %v2140 = vunpack.c.l.bf16 %v1364
        %v2141 = vunpack.c.h.bf16 %v1364
        %v2142 = vunpack.c.l.bf16 %v1365
        %v2143 = vunpack.c.h.bf16 %v1365
        %v2144 = vunpack.c.l.bf16 %v1366
        %v2145 = vunpack.c.h.bf16 %v1366
        %v2146 = vunpack.c.l.bf16 %v1367
        %v2147 = vunpack.c.l.bf16 %v1368
        %v2148 = vunpack.c.h.bf16 %v1368
        %v2149 = vunpack.c.l.bf16 %v1369
        %v2150 = vunpack.c.h.bf16 %v1369
        %v2151 = vunpack.c.l.bf16 %v1370
        %v2152 = vunpack.c.h.bf16 %v1370
        %v2153 = vunpack.c.l.bf16 %v1371
        %v2154 = vunpack.c.l.bf16 %v1372
        %v2155 = vunpack.c.h.bf16 %v1372
        %v2156 = vunpack.c.l.bf16 %v1373
        %v2157 = vunpack.c.h.bf16 %v1373
        %v2158 = vunpack.c.l.bf16 %v1374
        %v2159 = vunpack.c.h.bf16 %v1374
        %v2160 = vunpack.c.l.bf16 %v1375
        %v2161 = vunpack.c.l.bf16 %v1376
        %v2162 = vunpack.c.h.bf16 %v1376
        %v2163 = vunpack.c.l.bf16 %v1377
        %v2164 = vunpack.c.h.bf16 %v1377
        %v2165 = vunpack.c.l.bf16 %v1378
        %v2166 = vunpack.c.h.bf16 %v1378
        %v2167 = vunpack.c.l.bf16 %v1379
        %v2168 = vunpack.c.l.bf16 %v1380
        %v2169 = vunpack.c.h.bf16 %v1380
        %v2170 = vunpack.c.l.bf16 %v1381
        %v2171 = vunpack.c.h.bf16 %v1381
        %v2172 = vunpack.c.l.bf16 %v1382
        %v2173 = vunpack.c.h.bf16 %v1382
        %v2174 = vunpack.c.l.bf16 %v1383
        %v2175 = vunpack.c.l.bf16 %v1384
        %v2176 = vunpack.c.h.bf16 %v1384
        %v2177 = vunpack.c.l.bf16 %v1385
        %v2178 = vunpack.c.h.bf16 %v1385
        %v2179 = vunpack.c.l.bf16 %v1386
        %v2180 = vunpack.c.h.bf16 %v1386
        %v2181 = vunpack.c.l.bf16 %v1387
        %v2182 = vunpack.c.l.bf16 %v1388
        %v2183 = vunpack.c.h.bf16 %v1388
        %v2184 = vunpack.c.l.bf16 %v1389
        %v2185 = vunpack.c.h.bf16 %v1389
        %v2186 = vunpack.c.l.bf16 %v1390
        %v2187 = vunpack.c.h.bf16 %v1390
        %v2188 = vunpack.c.l.bf16 %v1391
        %v2189 = vunpack.c.l.bf16 %v1392
        %v2190 = vunpack.c.h.bf16 %v1392
        %v2191 = vunpack.c.l.bf16 %v1393
        %v2192 = vunpack.c.h.bf16 %v1393
        %v2193 = vunpack.c.l.bf16 %v1394
        %v2194 = vunpack.c.h.bf16 %v1394
        %v2195 = vunpack.c.l.bf16 %v1395
        %v2196 = vunpack.c.l.bf16 %v1396
        %v2197 = vunpack.c.h.bf16 %v1396
        %v2198 = vunpack.c.l.bf16 %v1397
        %v2199 = vunpack.c.h.bf16 %v1397
        %v2200 = vunpack.c.l.bf16 %v1398
        %v2201 = vunpack.c.h.bf16 %v1398
        %v2202 = vunpack.c.l.bf16 %v1399
        %v2203 = vunpack.c.l.bf16 %v1400
        %v2204 = vunpack.c.h.bf16 %v1400
        %v2205 = vunpack.c.l.bf16 %v1401
        %v2206 = vunpack.c.h.bf16 %v1401
        %v2207 = vunpack.c.l.bf16 %v1402
        %v2208 = vunpack.c.h.bf16 %v1402
        %v2209 = vunpack.c.l.bf16 %v1403
        %v2210 = vunpack.c.l.bf16 %v1404
        %v2211 = vunpack.c.h.bf16 %v1404
        %v2212 = vunpack.c.l.bf16 %v1405
        %v2213 = vunpack.c.h.bf16 %v1405
        %v2214 = vunpack.c.l.bf16 %v1406
        %v2215 = vunpack.c.h.bf16 %v1406
        %v2216 = vunpack.c.l.bf16 %v1407
        %v2217 = vunpack.c.l.bf16 %v1408
        %v2218 = vunpack.c.h.bf16 %v1408
        %v2219 = vunpack.c.l.bf16 %v1409
        %v2220 = vunpack.c.h.bf16 %v1409
        %v2221 = vunpack.c.l.bf16 %v1410
        %v2222 = vunpack.c.h.bf16 %v1410
        %v2223 = vunpack.c.l.bf16 %v1411
        %v2224 = vunpack.c.l.bf16 %v1412
        %v2225 = vunpack.c.h.bf16 %v1412
        %v2226 = vunpack.c.l.bf16 %v1413
        %v2227 = vunpack.c.h.bf16 %v1413
        %v2228 = vunpack.c.l.bf16 %v1414
        %v2229 = vunpack.c.h.bf16 %v1414
        %v2230 = vunpack.c.l.bf16 %v1415
        %v2231 = vunpack.c.l.bf16 %v1416
        %v2232 = vunpack.c.h.bf16 %v1416
        %v2233 = vunpack.c.l.bf16 %v1417
        %v2234 = vunpack.c.h.bf16 %v1417
        %v2235 = vunpack.c.l.bf16 %v1418
        %v2236 = vunpack.c.h.bf16 %v1418
        %v2237 = vunpack.c.l.bf16 %v1419
        %v2238 = vunpack.c.l.bf16 %v1420
        %v2239 = vunpack.c.h.bf16 %v1420
        %v2240 = vunpack.c.l.bf16 %v1421
        %v2241 = vunpack.c.h.bf16 %v1421
        %v2242 = vunpack.c.l.bf16 %v1422
        %v2243 = vunpack.c.h.bf16 %v1422
        %v2244 = vunpack.c.l.bf16 %v1423
        %v2245 = vunpack.c.l.bf16 %v1424
        %v2246 = vunpack.c.h.bf16 %v1424
        %v2247 = vunpack.c.l.bf16 %v1425
        %v2248 = vunpack.c.h.bf16 %v1425
        %v2249 = vunpack.c.l.bf16 %v1426
        %v2250 = vunpack.c.h.bf16 %v1426
        %v2251 = vunpack.c.l.bf16 %v1427
        %v2252 = vunpack.c.l.bf16 %v1428
        %v2253 = vunpack.c.h.bf16 %v1428
        %v2254 = vunpack.c.l.bf16 %v1429
        %v2255 = vunpack.c.h.bf16 %v1429
        %v2256 = vunpack.c.l.bf16 %v1430
        %v2257 = vunpack.c.h.bf16 %v1430
        %v2258 = vunpack.c.l.bf16 %v1431
        %v2259 = vunpack.c.l.bf16 %v1432
        %v2260 = vunpack.c.h.bf16 %v1432
        %v2261 = vunpack.c.l.bf16 %v1433
        %v2262 = vunpack.c.h.bf16 %v1433
        %v2263 = vunpack.c.l.bf16 %v1434
        %v2264 = vunpack.c.h.bf16 %v1434
        %v2265 = vunpack.c.l.bf16 %v1435
        %v2266 = vunpack.c.l.bf16 %v1436
        %v2267 = vunpack.c.h.bf16 %v1436
        %v2268 = vunpack.c.l.bf16 %v1437
        %v2269 = vunpack.c.h.bf16 %v1437
        %v2270 = vunpack.c.l.bf16 %v1438
        %v2271 = vunpack.c.h.bf16 %v1438
        %v2272 = vunpack.c.l.bf16 %v1439
        %v2273 = vunpack.c.l.bf16 %v1440
        %v2274 = vunpack.c.h.bf16 %v1440
        %v2275 = vunpack.c.l.bf16 %v1441
        %v2276 = vunpack.c.h.bf16 %v1441
        %v2277 = vunpack.c.l.bf16 %v1442
        %v2278 = vunpack.c.h.bf16 %v1442
        %v2279 = vunpack.c.l.bf16 %v1443
        %v2280 = vunpack.c.l.bf16 %v1444
        %v2281 = vunpack.c.h.bf16 %v1444
        %v2282 = vunpack.c.l.bf16 %v1445
        %v2283 = vunpack.c.h.bf16 %v1445
        %v2284 = vunpack.c.l.bf16 %v1446
        %v2285 = vunpack.c.h.bf16 %v1446
        %v2286 = vunpack.c.l.bf16 %v1447
        %v2287 = vunpack.c.l.bf16 %v1448
        %v2288 = vunpack.c.h.bf16 %v1448
        %v2289 = vunpack.c.l.bf16 %v1449
        %v2290 = vunpack.c.h.bf16 %v1449
        %v2291 = vunpack.c.l.bf16 %v1450
        %v2292 = vunpack.c.h.bf16 %v1450
        %v2293 = vunpack.c.l.bf16 %v1451
        %v2294 = vunpack.c.l.bf16 %v1452
        %v2295 = vunpack.c.h.bf16 %v1452
        %v2296 = vunpack.c.l.bf16 %v1453
        %v2297 = vunpack.c.h.bf16 %v1453
        %v2298 = vunpack.c.l.bf16 %v1454
        %v2299 = vunpack.c.h.bf16 %v1454
        %v2300 = vunpack.c.l.bf16 %v1455
        %v2301 = vunpack.c.l.bf16 %v1456
        %v2302 = vunpack.c.h.bf16 %v1456
        %v2303 = vunpack.c.l.bf16 %v1457
        %v2304 = vunpack.c.h.bf16 %v1457
        %v2305 = vunpack.c.l.bf16 %v1458
        %v2306 = vunpack.c.h.bf16 %v1458
        %v2307 = vunpack.c.l.bf16 %v1459
        %v2308 = vunpack.c.l.bf16 %v1460
        %v2309 = vunpack.c.h.bf16 %v1460
        %v2310 = vunpack.c.l.bf16 %v1461
        %v2311 = vunpack.c.h.bf16 %v1461
        %v2312 = vunpack.c.l.bf16 %v1462
        %v2313 = vunpack.c.h.bf16 %v1462
        %v2314 = vunpack.c.l.bf16 %v1463
        %v2315 = vunpack.c.l.bf16 %v1464
        %v2316 = vunpack.c.h.bf16 %v1464
        %v2317 = vunpack.c.l.bf16 %v1465
        %v2318 = vunpack.c.h.bf16 %v1465
        %v2319 = vunpack.c.l.bf16 %v1466
        %v2320 = vunpack.c.h.bf16 %v1466
        %v2321 = vunpack.c.l.bf16 %v1467
        %v2322 = vunpack.c.l.bf16 %v1468
        %v2323 = vunpack.c.h.bf16 %v1468
        %v2324 = vunpack.c.l.bf16 %v1469
        %v2325 = vunpack.c.h.bf16 %v1469
        %v2326 = vunpack.c.l.bf16 %v1470
        %v2327 = vunpack.c.h.bf16 %v1470
        %v2328 = vunpack.c.l.bf16 %v1471
        %v2329 = vunpack.c.l.bf16 %v1472
        %v2330 = vunpack.c.h.bf16 %v1472
        %v2331 = vunpack.c.l.bf16 %v1473
        %v2332 = vunpack.c.h.bf16 %v1473
        %v2333 = vunpack.c.l.bf16 %v1474
        %v2334 = vunpack.c.h.bf16 %v1474
        %v2335 = vunpack.c.l.bf16 %v1475
        %v2336 = vunpack.c.l.bf16 %v1476
        %v2337 = vunpack.c.h.bf16 %v1476
        %v2338 = vunpack.c.l.bf16 %v1477
        %v2339 = vunpack.c.h.bf16 %v1477
        %v2340 = vunpack.c.l.bf16 %v1478
        %v2341 = vunpack.c.h.bf16 %v1478
        %v2342 = vunpack.c.l.bf16 %v1479
        %v2343 = vunpack.c.l.bf16 %v1480
        %v2344 = vunpack.c.h.bf16 %v1480
        %v2345 = vunpack.c.l.bf16 %v1481
        %v2346 = vunpack.c.h.bf16 %v1481
        %v2347 = vunpack.c.l.bf16 %v1482
        %v2348 = vunpack.c.h.bf16 %v1482
        %v2349 = vunpack.c.l.bf16 %v1483
        %v2350 = vunpack.c.l.bf16 %v1484
        %v2351 = vunpack.c.h.bf16 %v1484
        %v2352 = vunpack.c.l.bf16 %v1485
        %v2353 = vunpack.c.h.bf16 %v1485
        %v2354 = vunpack.c.l.bf16 %v1486
        %v2355 = vunpack.c.h.bf16 %v1486
        %v2356 = vunpack.c.l.bf16 %v1487
        %v2357 = vunpack.c.l.bf16 %v1488
        %v2358 = vunpack.c.h.bf16 %v1488
        %v2359 = vunpack.c.l.bf16 %v1489
        %v2360 = vunpack.c.h.bf16 %v1489
        %v2361 = vunpack.c.l.bf16 %v1490
        %v2362 = vunpack.c.h.bf16 %v1490
        %v2363 = vunpack.c.l.bf16 %v1491
        %v2364 = vunpack.c.l.bf16 %v1492
        %v2365 = vunpack.c.h.bf16 %v1492
        %v2366 = vunpack.c.l.bf16 %v1493
        %v2367 = vunpack.c.h.bf16 %v1493
        %v2368 = vunpack.c.l.bf16 %v1494
        %v2369 = vunpack.c.h.bf16 %v1494
        %v2370 = vunpack.c.l.bf16 %v1495
        %v2371 = vunpack.c.l.bf16 %v1496
        %v2372 = vunpack.c.h.bf16 %v1496
        %v2373 = vunpack.c.l.bf16 %v1497
        %v2374 = vunpack.c.h.bf16 %v1497
        %v2375 = vunpack.c.l.bf16 %v1498
        %v2376 = vunpack.c.h.bf16 %v1498
        %v2377 = vunpack.c.l.bf16 %v1499
        %v2378 = vunpack.c.l.bf16 %v1500
        %v2379 = vunpack.c.h.bf16 %v1500
        %v2380 = vunpack.c.l.bf16 %v1501
        %v2381 = vunpack.c.h.bf16 %v1501
        %v2382 = vunpack.c.l.bf16 %v1502
        %v2383 = vunpack.c.h.bf16 %v1502
        %v2384 = vunpack.c.l.bf16 %v1503
        %v2385 = vunpack.c.l.bf16 %v1504
        %v2386 = vunpack.c.h.bf16 %v1504
        %v2387 = vunpack.c.l.bf16 %v1505
        %v2388 = vunpack.c.h.bf16 %v1505
        %v2389 = vunpack.c.l.bf16 %v1506
        %v2390 = vunpack.c.h.bf16 %v1506
        %v2391 = vunpack.c.l.bf16 %v1507
        %v2392 = vunpack.c.l.bf16 %v1508
        %v2393 = vunpack.c.h.bf16 %v1508
        %v2394 = vunpack.c.l.bf16 %v1509
        %v2395 = vunpack.c.h.bf16 %v1509
        %v2396 = vunpack.c.l.bf16 %v1510
        %v2397 = vunpack.c.h.bf16 %v1510
        %v2398 = vunpack.c.l.bf16 %v1511
        %v2399 = vunpack.c.l.bf16 %v1512
        %v2400 = vunpack.c.h.bf16 %v1512
        %v2401 = vunpack.c.l.bf16 %v1513
        %v2402 = vunpack.c.h.bf16 %v1513
        %v2403 = vunpack.c.l.bf16 %v1514
        %v2404 = vunpack.c.h.bf16 %v1514
        %v2405 = vunpack.c.l.bf16 %v1515
        %v2406 = vunpack.c.l.bf16 %v1516
        %v2407 = vunpack.c.h.bf16 %v1516
        %v2408 = vunpack.c.l.bf16 %v1517
        %v2409 = vunpack.c.h.bf16 %v1517
        %v2410 = vunpack.c.l.bf16 %v1518
        %v2411 = vunpack.c.h.bf16 %v1518
        %v2412 = vunpack.c.l.bf16 %v1519
        %v2413 = vunpack.c.l.bf16 %v1520
        %v2414 = vunpack.c.h.bf16 %v1520
        %v2415 = vunpack.c.l.bf16 %v1521
        %v2416 = vunpack.c.h.bf16 %v1521
        %v2417 = vunpack.c.l.bf16 %v1522
        %v2418 = vunpack.c.h.bf16 %v1522
        %v2419 = vunpack.c.l.bf16 %v1523
        %v2420 = vld [vmem:[%s454] sm:$0xff]
        %v2422 = vperm.slane %v2420, 0
        %v2423 = vperm.slane %v2420, 1
        %v2424 = vperm.slane %v2420, 2
        %v2425 = vperm.slane %v2420, 3
        %v2426 = vperm.slane %v2420, 4
        %v2427 = vperm.slane %v2420, 5
        %v2428 = vperm.slane %v2420, 6
        %2436 = vmatpush.msra.mxu0 %v1629
        %2437 = vmatpush.msra.mxu0 %v1622
        %2438 = vmatpush.msra.mxu0 %v1615
        %2439 = vmatpush.msra.mxu0 %v1608
        %2440 = vmatpush.msra.mxu0 %v1601
        %2441 = vmatpush.msra.mxu0 %v1594
        %2442 = vmatpush.msra.mxu0 %v1587
        %2443 = vmatpush.msra.mxu0 %v1580
        %2444 = vmatpush.msra.mxu0 %v1573
        %2445 = vmatpush.msra.mxu0 %v1566
        %2446 = vmatpush.msra.mxu0 %v1559
        %2447 = vmatpush.msra.mxu0 %v1552
        %2448 = vmatpush.msra.mxu0 %v1545
        %2449 = vmatpush.msra.mxu0 %v1538
        %2450 = vmatpush.msra.mxu0 %v1531
        %2451 = vmatpush.msra.mxu0 %v1524
        %2452 = vmatmul.f32.gmra.mxu0 %v1004
        %v2453 = vpop.f32.mrf.mxu0
        %v2454 = vadd.f32 %v2422, %v2453
        %2455 = vdwg.mxu0
        %2456 = vmatpush.msra.mxu0 %v1741
        %2457 = vmatpush.msra.mxu0 %v1734
        %2458 = vmatpush.msra.mxu0 %v1727
        %2459 = vmatpush.msra.mxu0 %v1720
        %2460 = vmatpush.msra.mxu0 %v1713
        %2461 = vmatpush.msra.mxu0 %v1706
        %2462 = vmatpush.msra.mxu0 %v1699
        %2463 = vmatpush.msra.mxu0 %v1692
        %2464 = vmatpush.msra.mxu0 %v1685
        %2465 = vmatpush.msra.mxu0 %v1678
        %2466 = vmatpush.msra.mxu0 %v1671
        %2467 = vmatpush.msra.mxu0 %v1664
        %2468 = vmatpush.msra.mxu0 %v1657
        %2469 = vmatpush.msra.mxu0 %v1650
        %2470 = vmatpush.msra.mxu0 %v1643
        %2471 = vmatpush.msra.mxu0 %v1636
        %2472 = vmatmul.f32.gmra.mxu0 %v1005
        %v2473 = vpop.f32.mrf.mxu0
        %v2474 = vadd.f32 %v2454, %v2473
        %2475 = vdwg.mxu0
        %2476 = vmatpush.msra.mxu0 %v1853
        %2477 = vmatpush.msra.mxu0 %v1846
        %2478 = vmatpush.msra.mxu0 %v1839
        %2479 = vmatpush.msra.mxu0 %v1832
        %2480 = vmatpush.msra.mxu0 %v1825
        %2481 = vmatpush.msra.mxu0 %v1818
        %2482 = vmatpush.msra.mxu0 %v1811
        %2483 = vmatpush.msra.mxu0 %v1804
        %2484 = vmatpush.msra.mxu0 %v1797
        %2485 = vmatpush.msra.mxu0 %v1790
        %2486 = vmatpush.msra.mxu0 %v1783
        %2487 = vmatpush.msra.mxu0 %v1776
        %2488 = vmatpush.msra.mxu0 %v1769
        %2489 = vmatpush.msra.mxu0 %v1762
        %2490 = vmatpush.msra.mxu0 %v1755
        %2491 = vmatpush.msra.mxu0 %v1748
        %2492 = vmatmul.f32.gmra.mxu0 %v1006
        %v2493 = vpop.f32.mrf.mxu0
        %v2494 = vadd.f32 %v2474, %v2493
        %2495 = vdwg.mxu0
        %2496 = vmatpush.msra.mxu0 %v1965
        %2497 = vmatpush.msra.mxu0 %v1958
        %2498 = vmatpush.msra.mxu0 %v1951
        %2499 = vmatpush.msra.mxu0 %v1944
        %2500 = vmatpush.msra.mxu0 %v1937
        %2501 = vmatpush.msra.mxu0 %v1930
        %2502 = vmatpush.msra.mxu0 %v1923
        %2503 = vmatpush.msra.mxu0 %v1916
        %2504 = vmatpush.msra.mxu0 %v1909
        %2505 = vmatpush.msra.mxu0 %v1902
        %2506 = vmatpush.msra.mxu0 %v1895
        %2507 = vmatpush.msra.mxu0 %v1888
        %2508 = vmatpush.msra.mxu0 %v1881
        %2509 = vmatpush.msra.mxu0 %v1874
        %2510 = vmatpush.msra.mxu0 %v1867
        %2511 = vmatpush.msra.mxu0 %v1860
        %2512 = vmatmul.f32.gmra.mxu0 %v1007
        %v2513 = vpop.f32.mrf.mxu0
        %v2514 = vadd.f32 %v2494, %v2513
        %2515 = vdwg.mxu0
        %2516 = vmatpush.msra.mxu0 %v2077
        %2517 = vmatpush.msra.mxu0 %v2070
        %2518 = vmatpush.msra.mxu0 %v2063
        %2519 = vmatpush.msra.mxu0 %v2056
        %2520 = vmatpush.msra.mxu0 %v2049
        %2521 = vmatpush.msra.mxu0 %v2042
        %2522 = vmatpush.msra.mxu0 %v2035
        %2523 = vmatpush.msra.mxu0 %v2028
        %2524 = vmatpush.msra.mxu0 %v2021
        %2525 = vmatpush.msra.mxu0 %v2014
        %2526 = vmatpush.msra.mxu0 %v2007
        %2527 = vmatpush.msra.mxu0 %v2000
        %2528 = vmatpush.msra.mxu0 %v1993
        %2529 = vmatpush.msra.mxu0 %v1986
        %2530 = vmatpush.msra.mxu0 %v1979
        %2531 = vmatpush.msra.mxu0 %v1972
        %2532 = vmatmul.f32.gmra.mxu0 %v1008
        %v2533 = vpop.f32.mrf.mxu0
        %v2534 = vadd.f32 %v2514, %v2533
        %2535 = vdwg.mxu0
        %2536 = vmatpush.msra.mxu0 %v2189
        %2537 = vmatpush.msra.mxu0 %v2182
        %2538 = vmatpush.msra.mxu0 %v2175
        %2539 = vmatpush.msra.mxu0 %v2168
        %2540 = vmatpush.msra.mxu0 %v2161
        %2541 = vmatpush.msra.mxu0 %v2154
        %2542 = vmatpush.msra.mxu0 %v2147
        %2543 = vmatpush.msra.mxu0 %v2140
        %2544 = vmatpush.msra.mxu0 %v2133
        %2545 = vmatpush.msra.mxu0 %v2126
        %2546 = vmatpush.msra.mxu0 %v2119
        %2547 = vmatpush.msra.mxu0 %v2112
        %2548 = vmatpush.msra.mxu0 %v2105
        %2549 = vmatpush.msra.mxu0 %v2098
        %2550 = vmatpush.msra.mxu0 %v2091
        %2551 = vmatpush.msra.mxu0 %v2084
        %2552 = vmatmul.f32.gmra.mxu0 %v1009
        %v2553 = vpop.f32.mrf.mxu0
        %v2554 = vadd.f32 %v2534, %v2553
        %2555 = vdwg.mxu0
        %2556 = vmatpush.msra.mxu0 %v2301
        %2557 = vmatpush.msra.mxu0 %v2294
        %2558 = vmatpush.msra.mxu0 %v2287
        %2559 = vmatpush.msra.mxu0 %v2280
        %2560 = vmatpush.msra.mxu0 %v2273
        %2561 = vmatpush.msra.mxu0 %v2266
        %2562 = vmatpush.msra.mxu0 %v2259
        %2563 = vmatpush.msra.mxu0 %v2252
        %2564 = vmatpush.msra.mxu0 %v2245
        %2565 = vmatpush.msra.mxu0 %v2238
        %2566 = vmatpush.msra.mxu0 %v2231
        %2567 = vmatpush.msra.mxu0 %v2224
        %2568 = vmatpush.msra.mxu0 %v2217
        %2569 = vmatpush.msra.mxu0 %v2210
        %2570 = vmatpush.msra.mxu0 %v2203
        %2571 = vmatpush.msra.mxu0 %v2196
        %2572 = vmatmul.f32.gmra.mxu0 %v1010
        %v2573 = vpop.f32.mrf.mxu0
        %v2574 = vadd.f32 %v2554, %v2573
        %2575 = vdwg.mxu0
        %2576 = vmatpush.msra.mxu0 %v2413
        %2577 = vmatpush.msra.mxu0 %v2406
        %2578 = vmatpush.msra.mxu0 %v2399
        %2579 = vmatpush.msra.mxu0 %v2392
        %2580 = vmatpush.msra.mxu0 %v2385
        %2581 = vmatpush.msra.mxu0 %v2378
        %2582 = vmatpush.msra.mxu0 %v2371
        %2583 = vmatpush.msra.mxu0 %v2364
        %2584 = vmatpush.msra.mxu0 %v2357
        %2585 = vmatpush.msra.mxu0 %v2350
        %2586 = vmatpush.msra.mxu0 %v2343
        %2587 = vmatpush.msra.mxu0 %v2336
        %2588 = vmatpush.msra.mxu0 %v2329
        %2589 = vmatpush.msra.mxu0 %v2322
        %2590 = vmatpush.msra.mxu0 %v2315
        %2591 = vmatpush.msra.mxu0 %v2308
        %2592 = vmatmul.f32.gmra.mxu0 %v1011
        %v2593 = vpop.f32.mrf.mxu0
        %v2594 = vadd.f32 %v2574, %v2593
        %2595 = vdwg.mxu0
        %2596 = vmatpush.msra.mxu0 %v1630
        %2597 = vmatpush.msra.mxu0 %v1623
        %2598 = vmatpush.msra.mxu0 %v1616
        %2599 = vmatpush.msra.mxu0 %v1609
        %2600 = vmatpush.msra.mxu0 %v1602
        %2601 = vmatpush.msra.mxu0 %v1595
        %2602 = vmatpush.msra.mxu0 %v1588
        %2603 = vmatpush.msra.mxu0 %v1581
        %2604 = vmatpush.msra.mxu0 %v1574
        %2605 = vmatpush.msra.mxu0 %v1567
        %2606 = vmatpush.msra.mxu0 %v1560
        %2607 = vmatpush.msra.mxu0 %v1553
        %2608 = vmatpush.msra.mxu0 %v1546
        %2609 = vmatpush.msra.mxu0 %v1539
        %2610 = vmatpush.msra.mxu0 %v1532
        %2611 = vmatpush.msra.mxu0 %v1525
        %2612 = vmatmul.f32.gmra.mxu0 %v1004
        %v2613 = vpop.f32.mrf.mxu0
        %v2614 = vadd.f32 %v2423, %v2613
        %2615 = vdwg.mxu0
        %2616 = vmatpush.msra.mxu0 %v1742
        %2617 = vmatpush.msra.mxu0 %v1735
        %2618 = vmatpush.msra.mxu0 %v1728
        %2619 = vmatpush.msra.mxu0 %v1721
        %2620 = vmatpush.msra.mxu0 %v1714
        %2621 = vmatpush.msra.mxu0 %v1707
        %2622 = vmatpush.msra.mxu0 %v1700
        %2623 = vmatpush.msra.mxu0 %v1693
        %2624 = vmatpush.msra.mxu0 %v1686
        %2625 = vmatpush.msra.mxu0 %v1679
        %2626 = vmatpush.msra.mxu0 %v1672
        %2627 = vmatpush.msra.mxu0 %v1665
        %2628 = vmatpush.msra.mxu0 %v1658
        %2629 = vmatpush.msra.mxu0 %v1651
        %2630 = vmatpush.msra.mxu0 %v1644
        %2631 = vmatpush.msra.mxu0 %v1637
        %2632 = vmatmul.f32.gmra.mxu0 %v1005
        %v2633 = vpop.f32.mrf.mxu0
        %v2634 = vadd.f32 %v2614, %v2633
        %2635 = vdwg.mxu0
        %2636 = vmatpush.msra.mxu0 %v1854
        %2637 = vmatpush.msra.mxu0 %v1847
        %2638 = vmatpush.msra.mxu0 %v1840
        %2639 = vmatpush.msra.mxu0 %v1833
        %2640 = vmatpush.msra.mxu0 %v1826
        %2641 = vmatpush.msra.mxu0 %v1819
        %2642 = vmatpush.msra.mxu0 %v1812
        %2643 = vmatpush.msra.mxu0 %v1805
        %2644 = vmatpush.msra.mxu0 %v1798
        %2645 = vmatpush.msra.mxu0 %v1791
        %2646 = vmatpush.msra.mxu0 %v1784
        %2647 = vmatpush.msra.mxu0 %v1777
        %2648 = vmatpush.msra.mxu0 %v1770
        %2649 = vmatpush.msra.mxu0 %v1763
        %2650 = vmatpush.msra.mxu0 %v1756
        %2651 = vmatpush.msra.mxu0 %v1749
        %2652 = vmatmul.f32.gmra.mxu0 %v1006
        %v2653 = vpop.f32.mrf.mxu0
        %v2654 = vadd.f32 %v2634, %v2653
        %2655 = vdwg.mxu0
        %2656 = vmatpush.msra.mxu0 %v1966
        %2657 = vmatpush.msra.mxu0 %v1959
        %2658 = vmatpush.msra.mxu0 %v1952
        %2659 = vmatpush.msra.mxu0 %v1945
        %2660 = vmatpush.msra.mxu0 %v1938
        %2661 = vmatpush.msra.mxu0 %v1931
        %2662 = vmatpush.msra.mxu0 %v1924
        %2663 = vmatpush.msra.mxu0 %v1917
        %2664 = vmatpush.msra.mxu0 %v1910
        %2665 = vmatpush.msra.mxu0 %v1903
        %2666 = vmatpush.msra.mxu0 %v1896
        %2667 = vmatpush.msra.mxu0 %v1889
        %2668 = vmatpush.msra.mxu0 %v1882
        %2669 = vmatpush.msra.mxu0 %v1875
        %2670 = vmatpush.msra.mxu0 %v1868
        %2671 = vmatpush.msra.mxu0 %v1861
        %2672 = vmatmul.f32.gmra.mxu0 %v1007
        %v2673 = vpop.f32.mrf.mxu0
        %v2674 = vadd.f32 %v2654, %v2673
        %2675 = vdwg.mxu0
        %2676 = vmatpush.msra.mxu0 %v2078
        %2677 = vmatpush.msra.mxu0 %v2071
        %2678 = vmatpush.msra.mxu0 %v2064
        %2679 = vmatpush.msra.mxu0 %v2057
        %2680 = vmatpush.msra.mxu0 %v2050
        %2681 = vmatpush.msra.mxu0 %v2043
        %2682 = vmatpush.msra.mxu0 %v2036
        %2683 = vmatpush.msra.mxu0 %v2029
        %2684 = vmatpush.msra.mxu0 %v2022
        %2685 = vmatpush.msra.mxu0 %v2015
        %2686 = vmatpush.msra.mxu0 %v2008
        %2687 = vmatpush.msra.mxu0 %v2001
        %2688 = vmatpush.msra.mxu0 %v1994
        %2689 = vmatpush.msra.mxu0 %v1987
        %2690 = vmatpush.msra.mxu0 %v1980
        %2691 = vmatpush.msra.mxu0 %v1973
        %2692 = vmatmul.f32.gmra.mxu0 %v1008
        %v2693 = vpop.f32.mrf.mxu0
        %v2694 = vadd.f32 %v2674, %v2693
        %2695 = vdwg.mxu0
        %2696 = vmatpush.msra.mxu0 %v2190
        %2697 = vmatpush.msra.mxu0 %v2183
        %2698 = vmatpush.msra.mxu0 %v2176
        %2699 = vmatpush.msra.mxu0 %v2169
        %2700 = vmatpush.msra.mxu0 %v2162
        %2701 = vmatpush.msra.mxu0 %v2155
        %2702 = vmatpush.msra.mxu0 %v2148
        %2703 = vmatpush.msra.mxu0 %v2141
        %2704 = vmatpush.msra.mxu0 %v2134
        %2705 = vmatpush.msra.mxu0 %v2127
        %2706 = vmatpush.msra.mxu0 %v2120
        %2707 = vmatpush.msra.mxu0 %v2113
        %2708 = vmatpush.msra.mxu0 %v2106
        %2709 = vmatpush.msra.mxu0 %v2099
        %2710 = vmatpush.msra.mxu0 %v2092
        %2711 = vmatpush.msra.mxu0 %v2085
        %2712 = vmatmul.f32.gmra.mxu0 %v1009
        %v2713 = vpop.f32.mrf.mxu0
        %v2714 = vadd.f32 %v2694, %v2713
        %2715 = vdwg.mxu0
        %2716 = vmatpush.msra.mxu0 %v2302
        %2717 = vmatpush.msra.mxu0 %v2295
        %2718 = vmatpush.msra.mxu0 %v2288
        %2719 = vmatpush.msra.mxu0 %v2281
        %2720 = vmatpush.msra.mxu0 %v2274
        %2721 = vmatpush.msra.mxu0 %v2267
        %2722 = vmatpush.msra.mxu0 %v2260
        %2723 = vmatpush.msra.mxu0 %v2253
        %2724 = vmatpush.msra.mxu0 %v2246
        %2725 = vmatpush.msra.mxu0 %v2239
        %2726 = vmatpush.msra.mxu0 %v2232
        %2727 = vmatpush.msra.mxu0 %v2225
        %2728 = vmatpush.msra.mxu0 %v2218
        %2729 = vmatpush.msra.mxu0 %v2211
        %2730 = vmatpush.msra.mxu0 %v2204
        %2731 = vmatpush.msra.mxu0 %v2197
        %2732 = vmatmul.f32.gmra.mxu0 %v1010
        %v2733 = vpop.f32.mrf.mxu0
        %v2734 = vadd.f32 %v2714, %v2733
        %2735 = vdwg.mxu0
        %2736 = vmatpush.msra.mxu0 %v2414
        %2737 = vmatpush.msra.mxu0 %v2407
        %2738 = vmatpush.msra.mxu0 %v2400
        %2739 = vmatpush.msra.mxu0 %v2393
        %2740 = vmatpush.msra.mxu0 %v2386
        %2741 = vmatpush.msra.mxu0 %v2379
        %2742 = vmatpush.msra.mxu0 %v2372
        %2743 = vmatpush.msra.mxu0 %v2365
        %2744 = vmatpush.msra.mxu0 %v2358
        %2745 = vmatpush.msra.mxu0 %v2351
        %2746 = vmatpush.msra.mxu0 %v2344
        %2747 = vmatpush.msra.mxu0 %v2337
        %2748 = vmatpush.msra.mxu0 %v2330
        %2749 = vmatpush.msra.mxu0 %v2323
        %2750 = vmatpush.msra.mxu0 %v2316
        %2751 = vmatpush.msra.mxu0 %v2309
        %2752 = vmatmul.f32.gmra.mxu0 %v1011
        %v2753 = vpop.f32.mrf.mxu0
        %v2754 = vadd.f32 %v2734, %v2753
        %2755 = vdwg.mxu0
        %2756 = vmatpush.msra.mxu0 %v1631
        %2757 = vmatpush.msra.mxu0 %v1624
        %2758 = vmatpush.msra.mxu0 %v1617
        %2759 = vmatpush.msra.mxu0 %v1610
        %2760 = vmatpush.msra.mxu0 %v1603
        %2761 = vmatpush.msra.mxu0 %v1596
        %2762 = vmatpush.msra.mxu0 %v1589
        %2763 = vmatpush.msra.mxu0 %v1582
        %2764 = vmatpush.msra.mxu0 %v1575
        %2765 = vmatpush.msra.mxu0 %v1568
        %2766 = vmatpush.msra.mxu0 %v1561
        %2767 = vmatpush.msra.mxu0 %v1554
        %2768 = vmatpush.msra.mxu0 %v1547
        %2769 = vmatpush.msra.mxu0 %v1540
        %2770 = vmatpush.msra.mxu0 %v1533
        %2771 = vmatpush.msra.mxu0 %v1526
        %2772 = vmatmul.f32.gmra.mxu0 %v1004
        %v2773 = vpop.f32.mrf.mxu0
        %v2774 = vadd.f32 %v2424, %v2773
        %2775 = vdwg.mxu0
        %2776 = vmatpush.msra.mxu0 %v1743
        %2777 = vmatpush.msra.mxu0 %v1736
        %2778 = vmatpush.msra.mxu0 %v1729
        %2779 = vmatpush.msra.mxu0 %v1722
        %2780 = vmatpush.msra.mxu0 %v1715
        %2781 = vmatpush.msra.mxu0 %v1708
        %2782 = vmatpush.msra.mxu0 %v1701
        %2783 = vmatpush.msra.mxu0 %v1694
        %2784 = vmatpush.msra.mxu0 %v1687
        %2785 = vmatpush.msra.mxu0 %v1680
        %2786 = vmatpush.msra.mxu0 %v1673
        %2787 = vmatpush.msra.mxu0 %v1666
        %2788 = vmatpush.msra.mxu0 %v1659
        %2789 = vmatpush.msra.mxu0 %v1652
        %2790 = vmatpush.msra.mxu0 %v1645
        %2791 = vmatpush.msra.mxu0 %v1638
        %2792 = vmatmul.f32.gmra.mxu0 %v1005
        %v2793 = vpop.f32.mrf.mxu0
        %v2794 = vadd.f32 %v2774, %v2793
        %2795 = vdwg.mxu0
        %2796 = vmatpush.msra.mxu0 %v1855
        %2797 = vmatpush.msra.mxu0 %v1848
        %2798 = vmatpush.msra.mxu0 %v1841
        %2799 = vmatpush.msra.mxu0 %v1834
        %2800 = vmatpush.msra.mxu0 %v1827
        %2801 = vmatpush.msra.mxu0 %v1820
        %2802 = vmatpush.msra.mxu0 %v1813
        %2803 = vmatpush.msra.mxu0 %v1806
        %2804 = vmatpush.msra.mxu0 %v1799
        %2805 = vmatpush.msra.mxu0 %v1792
        %2806 = vmatpush.msra.mxu0 %v1785
        %2807 = vmatpush.msra.mxu0 %v1778
        %2808 = vmatpush.msra.mxu0 %v1771
        %2809 = vmatpush.msra.mxu0 %v1764
        %2810 = vmatpush.msra.mxu0 %v1757
        %2811 = vmatpush.msra.mxu0 %v1750
        %2812 = vmatmul.f32.gmra.mxu0 %v1006
        %v2813 = vpop.f32.mrf.mxu0
        %v2814 = vadd.f32 %v2794, %v2813
        %2815 = vdwg.mxu0
        %2816 = vmatpush.msra.mxu0 %v1967
        %2817 = vmatpush.msra.mxu0 %v1960
        %2818 = vmatpush.msra.mxu0 %v1953
        %2819 = vmatpush.msra.mxu0 %v1946
        %2820 = vmatpush.msra.mxu0 %v1939
        %2821 = vmatpush.msra.mxu0 %v1932
        %2822 = vmatpush.msra.mxu0 %v1925
        %2823 = vmatpush.msra.mxu0 %v1918
        %2824 = vmatpush.msra.mxu0 %v1911
        %2825 = vmatpush.msra.mxu0 %v1904
        %2826 = vmatpush.msra.mxu0 %v1897
        %2827 = vmatpush.msra.mxu0 %v1890
        %2828 = vmatpush.msra.mxu0 %v1883
        %2829 = vmatpush.msra.mxu0 %v1876
        %2830 = vmatpush.msra.mxu0 %v1869
        %2831 = vmatpush.msra.mxu0 %v1862
        %2832 = vmatmul.f32.gmra.mxu0 %v1007
        %v2833 = vpop.f32.mrf.mxu0
        %v2834 = vadd.f32 %v2814, %v2833
        %2835 = vdwg.mxu0
        %2836 = vmatpush.msra.mxu0 %v2079
        %2837 = vmatpush.msra.mxu0 %v2072
        %2838 = vmatpush.msra.mxu0 %v2065
        %2839 = vmatpush.msra.mxu0 %v2058
        %2840 = vmatpush.msra.mxu0 %v2051
        %2841 = vmatpush.msra.mxu0 %v2044
        %2842 = vmatpush.msra.mxu0 %v2037
        %2843 = vmatpush.msra.mxu0 %v2030
        %2844 = vmatpush.msra.mxu0 %v2023
        %2845 = vmatpush.msra.mxu0 %v2016
        %2846 = vmatpush.msra.mxu0 %v2009
        %2847 = vmatpush.msra.mxu0 %v2002
        %2848 = vmatpush.msra.mxu0 %v1995
        %2849 = vmatpush.msra.mxu0 %v1988
        %2850 = vmatpush.msra.mxu0 %v1981
        %2851 = vmatpush.msra.mxu0 %v1974
        %2852 = vmatmul.f32.gmra.mxu0 %v1008
        %v2853 = vpop.f32.mrf.mxu0
        %v2854 = vadd.f32 %v2834, %v2853
        %2855 = vdwg.mxu0
        %2856 = vmatpush.msra.mxu0 %v2191
        %2857 = vmatpush.msra.mxu0 %v2184
        %2858 = vmatpush.msra.mxu0 %v2177
        %2859 = vmatpush.msra.mxu0 %v2170
        %2860 = vmatpush.msra.mxu0 %v2163
        %2861 = vmatpush.msra.mxu0 %v2156
        %2862 = vmatpush.msra.mxu0 %v2149
        %2863 = vmatpush.msra.mxu0 %v2142
        %2864 = vmatpush.msra.mxu0 %v2135
        %2865 = vmatpush.msra.mxu0 %v2128
        %2866 = vmatpush.msra.mxu0 %v2121
        %2867 = vmatpush.msra.mxu0 %v2114
        %2868 = vmatpush.msra.mxu0 %v2107
        %2869 = vmatpush.msra.mxu0 %v2100
        %2870 = vmatpush.msra.mxu0 %v2093
        %2871 = vmatpush.msra.mxu0 %v2086
        %2872 = vmatmul.f32.gmra.mxu0 %v1009
        %v2873 = vpop.f32.mrf.mxu0
        %v2874 = vadd.f32 %v2854, %v2873
        %2875 = vdwg.mxu0
        %2876 = vmatpush.msra.mxu0 %v2303
        %2877 = vmatpush.msra.mxu0 %v2296
        %2878 = vmatpush.msra.mxu0 %v2289
        %2879 = vmatpush.msra.mxu0 %v2282
        %2880 = vmatpush.msra.mxu0 %v2275
        %2881 = vmatpush.msra.mxu0 %v2268
        %2882 = vmatpush.msra.mxu0 %v2261
        %2883 = vmatpush.msra.mxu0 %v2254
        %2884 = vmatpush.msra.mxu0 %v2247
        %2885 = vmatpush.msra.mxu0 %v2240
        %2886 = vmatpush.msra.mxu0 %v2233
        %2887 = vmatpush.msra.mxu0 %v2226
        %2888 = vmatpush.msra.mxu0 %v2219
        %2889 = vmatpush.msra.mxu0 %v2212
        %2890 = vmatpush.msra.mxu0 %v2205
        %2891 = vmatpush.msra.mxu0 %v2198
        %2892 = vmatmul.f32.gmra.mxu0 %v1010
        %v2893 = vpop.f32.mrf.mxu0
        %v2894 = vadd.f32 %v2874, %v2893
        %2895 = vdwg.mxu0
        %2896 = vmatpush.msra.mxu0 %v2415
        %2897 = vmatpush.msra.mxu0 %v2408
        %2898 = vmatpush.msra.mxu0 %v2401
        %2899 = vmatpush.msra.mxu0 %v2394
        %2900 = vmatpush.msra.mxu0 %v2387
        %2901 = vmatpush.msra.mxu0 %v2380
        %2902 = vmatpush.msra.mxu0 %v2373
        %2903 = vmatpush.msra.mxu0 %v2366
        %2904 = vmatpush.msra.mxu0 %v2359
        %2905 = vmatpush.msra.mxu0 %v2352
        %2906 = vmatpush.msra.mxu0 %v2345
        %2907 = vmatpush.msra.mxu0 %v2338
        %2908 = vmatpush.msra.mxu0 %v2331
        %2909 = vmatpush.msra.mxu0 %v2324
        %2910 = vmatpush.msra.mxu0 %v2317
        %2911 = vmatpush.msra.mxu0 %v2310
        %2912 = vmatmul.f32.gmra.mxu0 %v1011
        %v2913 = vpop.f32.mrf.mxu0
        %v2914 = vadd.f32 %v2894, %v2913
        %2915 = vdwg.mxu0
        %2916 = vmatpush.msra.mxu0 %v1632
        %2917 = vmatpush.msra.mxu0 %v1625
        %2918 = vmatpush.msra.mxu0 %v1618
        %2919 = vmatpush.msra.mxu0 %v1611
        %2920 = vmatpush.msra.mxu0 %v1604
        %2921 = vmatpush.msra.mxu0 %v1597
        %2922 = vmatpush.msra.mxu0 %v1590
        %2923 = vmatpush.msra.mxu0 %v1583
        %2924 = vmatpush.msra.mxu0 %v1576
        %2925 = vmatpush.msra.mxu0 %v1569
        %2926 = vmatpush.msra.mxu0 %v1562
        %2927 = vmatpush.msra.mxu0 %v1555
        %2928 = vmatpush.msra.mxu0 %v1548
        %2929 = vmatpush.msra.mxu0 %v1541
        %2930 = vmatpush.msra.mxu0 %v1534
        %2931 = vmatpush.msra.mxu0 %v1527
        %2932 = vmatmul.f32.gmra.mxu0 %v1004
        %v2933 = vpop.f32.mrf.mxu0
        %v2934 = vadd.f32 %v2425, %v2933
        %2935 = vdwg.mxu0
        %2936 = vmatpush.msra.mxu0 %v1744
        %2937 = vmatpush.msra.mxu0 %v1737
        %2938 = vmatpush.msra.mxu0 %v1730
        %2939 = vmatpush.msra.mxu0 %v1723
        %2940 = vmatpush.msra.mxu0 %v1716
        %2941 = vmatpush.msra.mxu0 %v1709
        %2942 = vmatpush.msra.mxu0 %v1702
        %2943 = vmatpush.msra.mxu0 %v1695
        %2944 = vmatpush.msra.mxu0 %v1688
        %2945 = vmatpush.msra.mxu0 %v1681
        %2946 = vmatpush.msra.mxu0 %v1674
        %2947 = vmatpush.msra.mxu0 %v1667
        %2948 = vmatpush.msra.mxu0 %v1660
        %2949 = vmatpush.msra.mxu0 %v1653
        %2950 = vmatpush.msra.mxu0 %v1646
        %2951 = vmatpush.msra.mxu0 %v1639
        %2952 = vmatmul.f32.gmra.mxu0 %v1005
        %v2953 = vpop.f32.mrf.mxu0
        %v2954 = vadd.f32 %v2934, %v2953
        %2955 = vdwg.mxu0
        %2956 = vmatpush.msra.mxu0 %v1856
        %2957 = vmatpush.msra.mxu0 %v1849
        %2958 = vmatpush.msra.mxu0 %v1842
        %2959 = vmatpush.msra.mxu0 %v1835
        %2960 = vmatpush.msra.mxu0 %v1828
        %2961 = vmatpush.msra.mxu0 %v1821
        %2962 = vmatpush.msra.mxu0 %v1814
        %2963 = vmatpush.msra.mxu0 %v1807
        %2964 = vmatpush.msra.mxu0 %v1800
        %2965 = vmatpush.msra.mxu0 %v1793
        %2966 = vmatpush.msra.mxu0 %v1786
        %2967 = vmatpush.msra.mxu0 %v1779
        %2968 = vmatpush.msra.mxu0 %v1772
        %2969 = vmatpush.msra.mxu0 %v1765
        %2970 = vmatpush.msra.mxu0 %v1758
        %2971 = vmatpush.msra.mxu0 %v1751
        %2972 = vmatmul.f32.gmra.mxu0 %v1006
        %v2973 = vpop.f32.mrf.mxu0
        %v2974 = vadd.f32 %v2954, %v2973
        %2975 = vdwg.mxu0
        %2976 = vmatpush.msra.mxu0 %v1968
        %2977 = vmatpush.msra.mxu0 %v1961
        %2978 = vmatpush.msra.mxu0 %v1954
        %2979 = vmatpush.msra.mxu0 %v1947
        %2980 = vmatpush.msra.mxu0 %v1940
        %2981 = vmatpush.msra.mxu0 %v1933
        %2982 = vmatpush.msra.mxu0 %v1926
        %2983 = vmatpush.msra.mxu0 %v1919
        %2984 = vmatpush.msra.mxu0 %v1912
        %2985 = vmatpush.msra.mxu0 %v1905
        %2986 = vmatpush.msra.mxu0 %v1898
        %2987 = vmatpush.msra.mxu0 %v1891
        %2988 = vmatpush.msra.mxu0 %v1884
        %2989 = vmatpush.msra.mxu0 %v1877
        %2990 = vmatpush.msra.mxu0 %v1870
        %2991 = vmatpush.msra.mxu0 %v1863
        %2992 = vmatmul.f32.gmra.mxu0 %v1007
        %v2993 = vpop.f32.mrf.mxu0
        %v2994 = vadd.f32 %v2974, %v2993
        %2995 = vdwg.mxu0
        %2996 = vmatpush.msra.mxu0 %v2080
        %2997 = vmatpush.msra.mxu0 %v2073
        %2998 = vmatpush.msra.mxu0 %v2066
        %2999 = vmatpush.msra.mxu0 %v2059
        %3000 = vmatpush.msra.mxu0 %v2052
        %3001 = vmatpush.msra.mxu0 %v2045
        %3002 = vmatpush.msra.mxu0 %v2038
        %3003 = vmatpush.msra.mxu0 %v2031
        %3004 = vmatpush.msra.mxu0 %v2024
        %3005 = vmatpush.msra.mxu0 %v2017
        %3006 = vmatpush.msra.mxu0 %v2010
        %3007 = vmatpush.msra.mxu0 %v2003
        %3008 = vmatpush.msra.mxu0 %v1996
        %3009 = vmatpush.msra.mxu0 %v1989
        %3010 = vmatpush.msra.mxu0 %v1982
        %3011 = vmatpush.msra.mxu0 %v1975
        %3012 = vmatmul.f32.gmra.mxu0 %v1008
        %v3013 = vpop.f32.mrf.mxu0
        %v3014 = vadd.f32 %v2994, %v3013
        %3015 = vdwg.mxu0
        %3016 = vmatpush.msra.mxu0 %v2192
        %3017 = vmatpush.msra.mxu0 %v2185
        %3018 = vmatpush.msra.mxu0 %v2178
        %3019 = vmatpush.msra.mxu0 %v2171
        %3020 = vmatpush.msra.mxu0 %v2164
        %3021 = vmatpush.msra.mxu0 %v2157
        %3022 = vmatpush.msra.mxu0 %v2150
        %3023 = vmatpush.msra.mxu0 %v2143
        %3024 = vmatpush.msra.mxu0 %v2136
        %3025 = vmatpush.msra.mxu0 %v2129
        %3026 = vmatpush.msra.mxu0 %v2122
        %3027 = vmatpush.msra.mxu0 %v2115
        %3028 = vmatpush.msra.mxu0 %v2108
        %3029 = vmatpush.msra.mxu0 %v2101
        %3030 = vmatpush.msra.mxu0 %v2094
        %3031 = vmatpush.msra.mxu0 %v2087
        %3032 = vmatmul.f32.gmra.mxu0 %v1009
        %v3033 = vpop.f32.mrf.mxu0
        %v3034 = vadd.f32 %v3014, %v3033
        %3035 = vdwg.mxu0
        %3036 = vmatpush.msra.mxu0 %v2304
        %3037 = vmatpush.msra.mxu0 %v2297
        %3038 = vmatpush.msra.mxu0 %v2290
        %3039 = vmatpush.msra.mxu0 %v2283
        %3040 = vmatpush.msra.mxu0 %v2276
        %3041 = vmatpush.msra.mxu0 %v2269
        %3042 = vmatpush.msra.mxu0 %v2262
        %3043 = vmatpush.msra.mxu0 %v2255
        %3044 = vmatpush.msra.mxu0 %v2248
        %3045 = vmatpush.msra.mxu0 %v2241
        %3046 = vmatpush.msra.mxu0 %v2234
        %3047 = vmatpush.msra.mxu0 %v2227
        %3048 = vmatpush.msra.mxu0 %v2220
        %3049 = vmatpush.msra.mxu0 %v2213
        %3050 = vmatpush.msra.mxu0 %v2206
        %3051 = vmatpush.msra.mxu0 %v2199
        %3052 = vmatmul.f32.gmra.mxu0 %v1010
        %v3053 = vpop.f32.mrf.mxu0
        %v3054 = vadd.f32 %v3034, %v3053
        %3055 = vdwg.mxu0
        %3056 = vmatpush.msra.mxu0 %v2416
        %3057 = vmatpush.msra.mxu0 %v2409
        %3058 = vmatpush.msra.mxu0 %v2402
        %3059 = vmatpush.msra.mxu0 %v2395
        %3060 = vmatpush.msra.mxu0 %v2388
        %3061 = vmatpush.msra.mxu0 %v2381
        %3062 = vmatpush.msra.mxu0 %v2374
        %3063 = vmatpush.msra.mxu0 %v2367
        %3064 = vmatpush.msra.mxu0 %v2360
        %3065 = vmatpush.msra.mxu0 %v2353
        %3066 = vmatpush.msra.mxu0 %v2346
        %3067 = vmatpush.msra.mxu0 %v2339
        %3068 = vmatpush.msra.mxu0 %v2332
        %3069 = vmatpush.msra.mxu0 %v2325
        %3070 = vmatpush.msra.mxu0 %v2318
        %3071 = vmatpush.msra.mxu0 %v2311
        %3072 = vmatmul.f32.gmra.mxu0 %v1011
        %v3073 = vpop.f32.mrf.mxu0
        %v3074 = vadd.f32 %v3054, %v3073
        %3075 = vdwg.mxu0
        %3076 = vmatpush.msra.mxu0 %v1633
        %3077 = vmatpush.msra.mxu0 %v1626
        %3078 = vmatpush.msra.mxu0 %v1619
        %3079 = vmatpush.msra.mxu0 %v1612
        %3080 = vmatpush.msra.mxu0 %v1605
        %3081 = vmatpush.msra.mxu0 %v1598
        %3082 = vmatpush.msra.mxu0 %v1591
        %3083 = vmatpush.msra.mxu0 %v1584
        %3084 = vmatpush.msra.mxu0 %v1577
        %3085 = vmatpush.msra.mxu0 %v1570
        %3086 = vmatpush.msra.mxu0 %v1563
        %3087 = vmatpush.msra.mxu0 %v1556
        %3088 = vmatpush.msra.mxu0 %v1549
        %3089 = vmatpush.msra.mxu0 %v1542
        %3090 = vmatpush.msra.mxu0 %v1535
        %3091 = vmatpush.msra.mxu0 %v1528
        %3092 = vmatmul.f32.gmra.mxu0 %v1004
        %v3093 = vpop.f32.mrf.mxu0
        %v3094 = vadd.f32 %v2426, %v3093
        %3095 = vdwg.mxu0
        %3096 = vmatpush.msra.mxu0 %v1745
        %3097 = vmatpush.msra.mxu0 %v1738
        %3098 = vmatpush.msra.mxu0 %v1731
        %3099 = vmatpush.msra.mxu0 %v1724
        %3100 = vmatpush.msra.mxu0 %v1717
        %3101 = vmatpush.msra.mxu0 %v1710
        %3102 = vmatpush.msra.mxu0 %v1703
        %3103 = vmatpush.msra.mxu0 %v1696
        %3104 = vmatpush.msra.mxu0 %v1689
        %3105 = vmatpush.msra.mxu0 %v1682
        %3106 = vmatpush.msra.mxu0 %v1675
        %3107 = vmatpush.msra.mxu0 %v1668
        %3108 = vmatpush.msra.mxu0 %v1661
        %3109 = vmatpush.msra.mxu0 %v1654
        %3110 = vmatpush.msra.mxu0 %v1647
        %3111 = vmatpush.msra.mxu0 %v1640
        %3112 = vmatmul.f32.gmra.mxu0 %v1005
        %v3113 = vpop.f32.mrf.mxu0
        %v3114 = vadd.f32 %v3094, %v3113
        %3115 = vdwg.mxu0
        %3116 = vmatpush.msra.mxu0 %v1857
        %3117 = vmatpush.msra.mxu0 %v1850
        %3118 = vmatpush.msra.mxu0 %v1843
        %3119 = vmatpush.msra.mxu0 %v1836
        %3120 = vmatpush.msra.mxu0 %v1829
        %3121 = vmatpush.msra.mxu0 %v1822
        %3122 = vmatpush.msra.mxu0 %v1815
        %3123 = vmatpush.msra.mxu0 %v1808
        %3124 = vmatpush.msra.mxu0 %v1801
        %3125 = vmatpush.msra.mxu0 %v1794
        %3126 = vmatpush.msra.mxu0 %v1787
        %3127 = vmatpush.msra.mxu0 %v1780
        %3128 = vmatpush.msra.mxu0 %v1773
        %3129 = vmatpush.msra.mxu0 %v1766
        %3130 = vmatpush.msra.mxu0 %v1759
        %3131 = vmatpush.msra.mxu0 %v1752
        %3132 = vmatmul.f32.gmra.mxu0 %v1006
        %v3133 = vpop.f32.mrf.mxu0
        %v3134 = vadd.f32 %v3114, %v3133
        %3135 = vdwg.mxu0
        %3136 = vmatpush.msra.mxu0 %v1969
        %3137 = vmatpush.msra.mxu0 %v1962
        %3138 = vmatpush.msra.mxu0 %v1955
        %3139 = vmatpush.msra.mxu0 %v1948
        %3140 = vmatpush.msra.mxu0 %v1941
        %3141 = vmatpush.msra.mxu0 %v1934
        %3142 = vmatpush.msra.mxu0 %v1927
        %3143 = vmatpush.msra.mxu0 %v1920
        %3144 = vmatpush.msra.mxu0 %v1913
        %3145 = vmatpush.msra.mxu0 %v1906
        %3146 = vmatpush.msra.mxu0 %v1899
        %3147 = vmatpush.msra.mxu0 %v1892
        %3148 = vmatpush.msra.mxu0 %v1885
        %3149 = vmatpush.msra.mxu0 %v1878
        %3150 = vmatpush.msra.mxu0 %v1871
        %3151 = vmatpush.msra.mxu0 %v1864
        %3152 = vmatmul.f32.gmra.mxu0 %v1007
        %v3153 = vpop.f32.mrf.mxu0
        %v3154 = vadd.f32 %v3134, %v3153
        %3155 = vdwg.mxu0
        %3156 = vmatpush.msra.mxu0 %v2081
        %3157 = vmatpush.msra.mxu0 %v2074
        %3158 = vmatpush.msra.mxu0 %v2067
        %3159 = vmatpush.msra.mxu0 %v2060
        %3160 = vmatpush.msra.mxu0 %v2053
        %3161 = vmatpush.msra.mxu0 %v2046
        %3162 = vmatpush.msra.mxu0 %v2039
        %3163 = vmatpush.msra.mxu0 %v2032
        %3164 = vmatpush.msra.mxu0 %v2025
        %3165 = vmatpush.msra.mxu0 %v2018
        %3166 = vmatpush.msra.mxu0 %v2011
        %3167 = vmatpush.msra.mxu0 %v2004
        %3168 = vmatpush.msra.mxu0 %v1997
        %3169 = vmatpush.msra.mxu0 %v1990
        %3170 = vmatpush.msra.mxu0 %v1983
        %3171 = vmatpush.msra.mxu0 %v1976
        %3172 = vmatmul.f32.gmra.mxu0 %v1008
        %v3173 = vpop.f32.mrf.mxu0
        %v3174 = vadd.f32 %v3154, %v3173
        %3175 = vdwg.mxu0
        %3176 = vmatpush.msra.mxu0 %v2193
        %3177 = vmatpush.msra.mxu0 %v2186
        %3178 = vmatpush.msra.mxu0 %v2179
        %3179 = vmatpush.msra.mxu0 %v2172
        %3180 = vmatpush.msra.mxu0 %v2165
        %3181 = vmatpush.msra.mxu0 %v2158
        %3182 = vmatpush.msra.mxu0 %v2151
        %3183 = vmatpush.msra.mxu0 %v2144
        %3184 = vmatpush.msra.mxu0 %v2137
        %3185 = vmatpush.msra.mxu0 %v2130
        %3186 = vmatpush.msra.mxu0 %v2123
        %3187 = vmatpush.msra.mxu0 %v2116
        %3188 = vmatpush.msra.mxu0 %v2109
        %3189 = vmatpush.msra.mxu0 %v2102
        %3190 = vmatpush.msra.mxu0 %v2095
        %3191 = vmatpush.msra.mxu0 %v2088
        %3192 = vmatmul.f32.gmra.mxu0 %v1009
        %v3193 = vpop.f32.mrf.mxu0
        %v3194 = vadd.f32 %v3174, %v3193
        %3195 = vdwg.mxu0
        %3196 = vmatpush.msra.mxu0 %v2305
        %3197 = vmatpush.msra.mxu0 %v2298
        %3198 = vmatpush.msra.mxu0 %v2291
        %3199 = vmatpush.msra.mxu0 %v2284
        %3200 = vmatpush.msra.mxu0 %v2277
        %3201 = vmatpush.msra.mxu0 %v2270
        %3202 = vmatpush.msra.mxu0 %v2263
        %3203 = vmatpush.msra.mxu0 %v2256
        %3204 = vmatpush.msra.mxu0 %v2249
        %3205 = vmatpush.msra.mxu0 %v2242
        %3206 = vmatpush.msra.mxu0 %v2235
        %3207 = vmatpush.msra.mxu0 %v2228
        %3208 = vmatpush.msra.mxu0 %v2221
        %3209 = vmatpush.msra.mxu0 %v2214
        %3210 = vmatpush.msra.mxu0 %v2207
        %3211 = vmatpush.msra.mxu0 %v2200
        %3212 = vmatmul.f32.gmra.mxu0 %v1010
        %v3213 = vpop.f32.mrf.mxu0
        %v3214 = vadd.f32 %v3194, %v3213
        %3215 = vdwg.mxu0
        %3216 = vmatpush.msra.mxu0 %v2417
        %3217 = vmatpush.msra.mxu0 %v2410
        %3218 = vmatpush.msra.mxu0 %v2403
        %3219 = vmatpush.msra.mxu0 %v2396
        %3220 = vmatpush.msra.mxu0 %v2389
        %3221 = vmatpush.msra.mxu0 %v2382
        %3222 = vmatpush.msra.mxu0 %v2375
        %3223 = vmatpush.msra.mxu0 %v2368
        %3224 = vmatpush.msra.mxu0 %v2361
        %3225 = vmatpush.msra.mxu0 %v2354
        %3226 = vmatpush.msra.mxu0 %v2347
        %3227 = vmatpush.msra.mxu0 %v2340
        %3228 = vmatpush.msra.mxu0 %v2333
        %3229 = vmatpush.msra.mxu0 %v2326
        %3230 = vmatpush.msra.mxu0 %v2319
        %3231 = vmatpush.msra.mxu0 %v2312
        %3232 = vmatmul.f32.gmra.mxu0 %v1011
        %v3233 = vpop.f32.mrf.mxu0
        %v3234 = vadd.f32 %v3214, %v3233
        %3235 = vdwg.mxu0
        %3236 = vmatpush.msra.mxu0 %v1634
        %3237 = vmatpush.msra.mxu0 %v1627
        %3238 = vmatpush.msra.mxu0 %v1620
        %3239 = vmatpush.msra.mxu0 %v1613
        %3240 = vmatpush.msra.mxu0 %v1606
        %3241 = vmatpush.msra.mxu0 %v1599
        %3242 = vmatpush.msra.mxu0 %v1592
        %3243 = vmatpush.msra.mxu0 %v1585
        %3244 = vmatpush.msra.mxu0 %v1578
        %3245 = vmatpush.msra.mxu0 %v1571
        %3246 = vmatpush.msra.mxu0 %v1564
        %3247 = vmatpush.msra.mxu0 %v1557
        %3248 = vmatpush.msra.mxu0 %v1550
        %3249 = vmatpush.msra.mxu0 %v1543
        %3250 = vmatpush.msra.mxu0 %v1536
        %3251 = vmatpush.msra.mxu0 %v1529
        %3252 = vmatmul.f32.gmra.mxu0 %v1004
        %v3253 = vpop.f32.mrf.mxu0
        %v3254 = vadd.f32 %v2427, %v3253
        %3255 = vdwg.mxu0
        %3256 = vmatpush.msra.mxu0 %v1746
        %3257 = vmatpush.msra.mxu0 %v1739
        %3258 = vmatpush.msra.mxu0 %v1732
        %3259 = vmatpush.msra.mxu0 %v1725
        %3260 = vmatpush.msra.mxu0 %v1718
        %3261 = vmatpush.msra.mxu0 %v1711
        %3262 = vmatpush.msra.mxu0 %v1704
        %3263 = vmatpush.msra.mxu0 %v1697
        %3264 = vmatpush.msra.mxu0 %v1690
        %3265 = vmatpush.msra.mxu0 %v1683
        %3266 = vmatpush.msra.mxu0 %v1676
        %3267 = vmatpush.msra.mxu0 %v1669
        %3268 = vmatpush.msra.mxu0 %v1662
        %3269 = vmatpush.msra.mxu0 %v1655
        %3270 = vmatpush.msra.mxu0 %v1648
        %3271 = vmatpush.msra.mxu0 %v1641
        %3272 = vmatmul.f32.gmra.mxu0 %v1005
        %v3273 = vpop.f32.mrf.mxu0
        %v3274 = vadd.f32 %v3254, %v3273
        %3275 = vdwg.mxu0
        %3276 = vmatpush.msra.mxu0 %v1858
        %3277 = vmatpush.msra.mxu0 %v1851
        %3278 = vmatpush.msra.mxu0 %v1844
        %3279 = vmatpush.msra.mxu0 %v1837
        %3280 = vmatpush.msra.mxu0 %v1830
        %3281 = vmatpush.msra.mxu0 %v1823
        %3282 = vmatpush.msra.mxu0 %v1816
        %3283 = vmatpush.msra.mxu0 %v1809
        %3284 = vmatpush.msra.mxu0 %v1802
        %3285 = vmatpush.msra.mxu0 %v1795
        %3286 = vmatpush.msra.mxu0 %v1788
        %3287 = vmatpush.msra.mxu0 %v1781
        %3288 = vmatpush.msra.mxu0 %v1774
        %3289 = vmatpush.msra.mxu0 %v1767
        %3290 = vmatpush.msra.mxu0 %v1760
        %3291 = vmatpush.msra.mxu0 %v1753
        %3292 = vmatmul.f32.gmra.mxu0 %v1006
        %v3293 = vpop.f32.mrf.mxu0
        %v3294 = vadd.f32 %v3274, %v3293
        %3295 = vdwg.mxu0
        %3296 = vmatpush.msra.mxu0 %v1970
        %3297 = vmatpush.msra.mxu0 %v1963
        %3298 = vmatpush.msra.mxu0 %v1956
        %3299 = vmatpush.msra.mxu0 %v1949
        %3300 = vmatpush.msra.mxu0 %v1942
        %3301 = vmatpush.msra.mxu0 %v1935
        %3302 = vmatpush.msra.mxu0 %v1928
        %3303 = vmatpush.msra.mxu0 %v1921
        %3304 = vmatpush.msra.mxu0 %v1914
        %3305 = vmatpush.msra.mxu0 %v1907
        %3306 = vmatpush.msra.mxu0 %v1900
        %3307 = vmatpush.msra.mxu0 %v1893
        %3308 = vmatpush.msra.mxu0 %v1886
        %3309 = vmatpush.msra.mxu0 %v1879
        %3310 = vmatpush.msra.mxu0 %v1872
        %3311 = vmatpush.msra.mxu0 %v1865
        %3312 = vmatmul.f32.gmra.mxu0 %v1007
        %v3313 = vpop.f32.mrf.mxu0
        %v3314 = vadd.f32 %v3294, %v3313
        %3315 = vdwg.mxu0
        %3316 = vmatpush.msra.mxu0 %v2082
        %3317 = vmatpush.msra.mxu0 %v2075
        %3318 = vmatpush.msra.mxu0 %v2068
        %3319 = vmatpush.msra.mxu0 %v2061
        %3320 = vmatpush.msra.mxu0 %v2054
        %3321 = vmatpush.msra.mxu0 %v2047
        %3322 = vmatpush.msra.mxu0 %v2040
        %3323 = vmatpush.msra.mxu0 %v2033
        %3324 = vmatpush.msra.mxu0 %v2026
        %3325 = vmatpush.msra.mxu0 %v2019
        %3326 = vmatpush.msra.mxu0 %v2012
        %3327 = vmatpush.msra.mxu0 %v2005
        %3328 = vmatpush.msra.mxu0 %v1998
        %3329 = vmatpush.msra.mxu0 %v1991
        %3330 = vmatpush.msra.mxu0 %v1984
        %3331 = vmatpush.msra.mxu0 %v1977
        %3332 = vmatmul.f32.gmra.mxu0 %v1008
        %v3333 = vpop.f32.mrf.mxu0
        %v3334 = vadd.f32 %v3314, %v3333
        %3335 = vdwg.mxu0
        %3336 = vmatpush.msra.mxu0 %v2194
        %3337 = vmatpush.msra.mxu0 %v2187
        %3338 = vmatpush.msra.mxu0 %v2180
        %3339 = vmatpush.msra.mxu0 %v2173
        %3340 = vmatpush.msra.mxu0 %v2166
        %3341 = vmatpush.msra.mxu0 %v2159
        %3342 = vmatpush.msra.mxu0 %v2152
        %3343 = vmatpush.msra.mxu0 %v2145
        %3344 = vmatpush.msra.mxu0 %v2138
        %3345 = vmatpush.msra.mxu0 %v2131
        %3346 = vmatpush.msra.mxu0 %v2124
        %3347 = vmatpush.msra.mxu0 %v2117
        %3348 = vmatpush.msra.mxu0 %v2110
        %3349 = vmatpush.msra.mxu0 %v2103
        %3350 = vmatpush.msra.mxu0 %v2096
        %3351 = vmatpush.msra.mxu0 %v2089
        %3352 = vmatmul.f32.gmra.mxu0 %v1009
        %v3353 = vpop.f32.mrf.mxu0
        %v3354 = vadd.f32 %v3334, %v3353
        %3355 = vdwg.mxu0
        %3356 = vmatpush.msra.mxu0 %v2306
        %3357 = vmatpush.msra.mxu0 %v2299
        %3358 = vmatpush.msra.mxu0 %v2292
        %3359 = vmatpush.msra.mxu0 %v2285
        %3360 = vmatpush.msra.mxu0 %v2278
        %3361 = vmatpush.msra.mxu0 %v2271
        %3362 = vmatpush.msra.mxu0 %v2264
        %3363 = vmatpush.msra.mxu0 %v2257
        %3364 = vmatpush.msra.mxu0 %v2250
        %3365 = vmatpush.msra.mxu0 %v2243
        %3366 = vmatpush.msra.mxu0 %v2236
        %3367 = vmatpush.msra.mxu0 %v2229
        %3368 = vmatpush.msra.mxu0 %v2222
        %3369 = vmatpush.msra.mxu0 %v2215
        %3370 = vmatpush.msra.mxu0 %v2208
        %3371 = vmatpush.msra.mxu0 %v2201
        %3372 = vmatmul.f32.gmra.mxu0 %v1010
        %v3373 = vpop.f32.mrf.mxu0
        %v3374 = vadd.f32 %v3354, %v3373
        %3375 = vdwg.mxu0
        %3376 = vmatpush.msra.mxu0 %v2418
        %3377 = vmatpush.msra.mxu0 %v2411
        %3378 = vmatpush.msra.mxu0 %v2404
        %3379 = vmatpush.msra.mxu0 %v2397
        %3380 = vmatpush.msra.mxu0 %v2390
        %3381 = vmatpush.msra.mxu0 %v2383
        %3382 = vmatpush.msra.mxu0 %v2376
        %3383 = vmatpush.msra.mxu0 %v2369
        %3384 = vmatpush.msra.mxu0 %v2362
        %3385 = vmatpush.msra.mxu0 %v2355
        %3386 = vmatpush.msra.mxu0 %v2348
        %3387 = vmatpush.msra.mxu0 %v2341
        %3388 = vmatpush.msra.mxu0 %v2334
        %3389 = vmatpush.msra.mxu0 %v2327
        %3390 = vmatpush.msra.mxu0 %v2320
        %3391 = vmatpush.msra.mxu0 %v2313
        %3392 = vmatmul.f32.gmra.mxu0 %v1011
        %v3393 = vpop.f32.mrf.mxu0
        %v3394 = vadd.f32 %v3374, %v3393
        %3395 = vdwg.mxu0
        %3396 = vmatpush.msra.mxu0 %v1635
        %3397 = vmatpush.msra.mxu0 %v1628
        %3398 = vmatpush.msra.mxu0 %v1621
        %3399 = vmatpush.msra.mxu0 %v1614
        %3400 = vmatpush.msra.mxu0 %v1607
        %3401 = vmatpush.msra.mxu0 %v1600
        %3402 = vmatpush.msra.mxu0 %v1593
        %3403 = vmatpush.msra.mxu0 %v1586
        %3404 = vmatpush.msra.mxu0 %v1579
        %3405 = vmatpush.msra.mxu0 %v1572
        %3406 = vmatpush.msra.mxu0 %v1565
        %3407 = vmatpush.msra.mxu0 %v1558
        %3408 = vmatpush.msra.mxu0 %v1551
        %3409 = vmatpush.msra.mxu0 %v1544
        %3410 = vmatpush.msra.mxu0 %v1537
        %3411 = vmatpush.msra.mxu0 %v1530
        %3412 = vmatmul.f32.gmra.mxu0 %v1004
        %v3413 = vpop.f32.mrf.mxu0
        %v3414 = vadd.f32 %v2428, %v3413
        %3415 = vdwg.mxu0
        %3416 = vmatpush.msra.mxu0 %v1747
        %3417 = vmatpush.msra.mxu0 %v1740
        %3418 = vmatpush.msra.mxu0 %v1733
        %3419 = vmatpush.msra.mxu0 %v1726
        %3420 = vmatpush.msra.mxu0 %v1719
        %3421 = vmatpush.msra.mxu0 %v1712
        %3422 = vmatpush.msra.mxu0 %v1705
        %3423 = vmatpush.msra.mxu0 %v1698
        %3424 = vmatpush.msra.mxu0 %v1691
        %3425 = vmatpush.msra.mxu0 %v1684
        %3426 = vmatpush.msra.mxu0 %v1677
        %3427 = vmatpush.msra.mxu0 %v1670
        %3428 = vmatpush.msra.mxu0 %v1663
        %3429 = vmatpush.msra.mxu0 %v1656
        %3430 = vmatpush.msra.mxu0 %v1649
        %3431 = vmatpush.msra.mxu0 %v1642
        %3432 = vmatmul.f32.gmra.mxu0 %v1005
        %v3433 = vpop.f32.mrf.mxu0
        %v3434 = vadd.f32 %v3414, %v3433
        %3435 = vdwg.mxu0
        %3436 = vmatpush.msra.mxu0 %v1859
        %3437 = vmatpush.msra.mxu0 %v1852
        %3438 = vmatpush.msra.mxu0 %v1845
        %3439 = vmatpush.msra.mxu0 %v1838
        %3440 = vmatpush.msra.mxu0 %v1831
        %3441 = vmatpush.msra.mxu0 %v1824
        %3442 = vmatpush.msra.mxu0 %v1817
        %3443 = vmatpush.msra.mxu0 %v1810
        %3444 = vmatpush.msra.mxu0 %v1803
        %3445 = vmatpush.msra.mxu0 %v1796
        %3446 = vmatpush.msra.mxu0 %v1789
        %3447 = vmatpush.msra.mxu0 %v1782
        %3448 = vmatpush.msra.mxu0 %v1775
        %3449 = vmatpush.msra.mxu0 %v1768
        %3450 = vmatpush.msra.mxu0 %v1761
        %3451 = vmatpush.msra.mxu0 %v1754
        %3452 = vmatmul.f32.gmra.mxu0 %v1006
        %v3453 = vpop.f32.mrf.mxu0
        %v3454 = vadd.f32 %v3434, %v3453
        %3455 = vdwg.mxu0
        %3456 = vmatpush.msra.mxu0 %v1971
        %3457 = vmatpush.msra.mxu0 %v1964
        %3458 = vmatpush.msra.mxu0 %v1957
        %3459 = vmatpush.msra.mxu0 %v1950
        %3460 = vmatpush.msra.mxu0 %v1943
        %3461 = vmatpush.msra.mxu0 %v1936
        %3462 = vmatpush.msra.mxu0 %v1929
        %3463 = vmatpush.msra.mxu0 %v1922
        %3464 = vmatpush.msra.mxu0 %v1915
        %3465 = vmatpush.msra.mxu0 %v1908
        %3466 = vmatpush.msra.mxu0 %v1901
        %3467 = vmatpush.msra.mxu0 %v1894
        %3468 = vmatpush.msra.mxu0 %v1887
        %3469 = vmatpush.msra.mxu0 %v1880
        %3470 = vmatpush.msra.mxu0 %v1873
        %3471 = vmatpush.msra.mxu0 %v1866
        %3472 = vmatmul.f32.gmra.mxu0 %v1007
        %v3473 = vpop.f32.mrf.mxu0
        %v3474 = vadd.f32 %v3454, %v3473
        %3475 = vdwg.mxu0
        %3476 = vmatpush.msra.mxu0 %v2083
        %3477 = vmatpush.msra.mxu0 %v2076
        %3478 = vmatpush.msra.mxu0 %v2069
        %3479 = vmatpush.msra.mxu0 %v2062
        %3480 = vmatpush.msra.mxu0 %v2055
        %3481 = vmatpush.msra.mxu0 %v2048
        %3482 = vmatpush.msra.mxu0 %v2041
        %3483 = vmatpush.msra.mxu0 %v2034
        %3484 = vmatpush.msra.mxu0 %v2027
        %3485 = vmatpush.msra.mxu0 %v2020
        %3486 = vmatpush.msra.mxu0 %v2013
        %3487 = vmatpush.msra.mxu0 %v2006
        %3488 = vmatpush.msra.mxu0 %v1999
        %3489 = vmatpush.msra.mxu0 %v1992
        %3490 = vmatpush.msra.mxu0 %v1985
        %3491 = vmatpush.msra.mxu0 %v1978
        %3492 = vmatmul.f32.gmra.mxu0 %v1008
        %v3493 = vpop.f32.mrf.mxu0
        %v3494 = vadd.f32 %v3474, %v3493
        %3495 = vdwg.mxu0
        %3496 = vmatpush.msra.mxu0 %v2195
        %3497 = vmatpush.msra.mxu0 %v2188
        %3498 = vmatpush.msra.mxu0 %v2181
        %3499 = vmatpush.msra.mxu0 %v2174
        %3500 = vmatpush.msra.mxu0 %v2167
        %3501 = vmatpush.msra.mxu0 %v2160
        %3502 = vmatpush.msra.mxu0 %v2153
        %3503 = vmatpush.msra.mxu0 %v2146
        %3504 = vmatpush.msra.mxu0 %v2139
        %3505 = vmatpush.msra.mxu0 %v2132
        %3506 = vmatpush.msra.mxu0 %v2125
        %3507 = vmatpush.msra.mxu0 %v2118
        %3508 = vmatpush.msra.mxu0 %v2111
        %3509 = vmatpush.msra.mxu0 %v2104
        %3510 = vmatpush.msra.mxu0 %v2097
        %3511 = vmatpush.msra.mxu0 %v2090
        %3512 = vmatmul.f32.gmra.mxu0 %v1009
        %v3513 = vpop.f32.mrf.mxu0
        %v3514 = vadd.f32 %v3494, %v3513
        %3515 = vdwg.mxu0
        %3516 = vmatpush.msra.mxu0 %v2307
        %3517 = vmatpush.msra.mxu0 %v2300
        %3518 = vmatpush.msra.mxu0 %v2293
        %3519 = vmatpush.msra.mxu0 %v2286
        %3520 = vmatpush.msra.mxu0 %v2279
        %3521 = vmatpush.msra.mxu0 %v2272
        %3522 = vmatpush.msra.mxu0 %v2265
        %3523 = vmatpush.msra.mxu0 %v2258
        %3524 = vmatpush.msra.mxu0 %v2251
        %3525 = vmatpush.msra.mxu0 %v2244
        %3526 = vmatpush.msra.mxu0 %v2237
        %3527 = vmatpush.msra.mxu0 %v2230
        %3528 = vmatpush.msra.mxu0 %v2223
        %3529 = vmatpush.msra.mxu0 %v2216
        %3530 = vmatpush.msra.mxu0 %v2209
        %3531 = vmatpush.msra.mxu0 %v2202
        %3532 = vmatmul.f32.gmra.mxu0 %v1010
        %v3533 = vpop.f32.mrf.mxu0
        %v3534 = vadd.f32 %v3514, %v3533
        %3535 = vdwg.mxu0
        %3536 = vmatpush.msra.mxu0 %v2419
        %3537 = vmatpush.msra.mxu0 %v2412
        %3538 = vmatpush.msra.mxu0 %v2405
        %3539 = vmatpush.msra.mxu0 %v2398
        %3540 = vmatpush.msra.mxu0 %v2391
        %3541 = vmatpush.msra.mxu0 %v2384
        %3542 = vmatpush.msra.mxu0 %v2377
        %3543 = vmatpush.msra.mxu0 %v2370
        %3544 = vmatpush.msra.mxu0 %v2363
        %3545 = vmatpush.msra.mxu0 %v2356
        %3546 = vmatpush.msra.mxu0 %v2349
        %3547 = vmatpush.msra.mxu0 %v2342
        %3548 = vmatpush.msra.mxu0 %v2335
        %3549 = vmatpush.msra.mxu0 %v2328
        %3550 = vmatpush.msra.mxu0 %v2321
        %3551 = vmatpush.msra.mxu0 %v2314
        %3552 = vmatmul.f32.gmra.mxu0 %v1011
        %v3553 = vpop.f32.mrf.mxu0
        %v3554 = vadd.f32 %v3534, %v3553
        %3555 = vdwg.mxu0
        %v3556 = vld [vmem:[%s459] sm:$0xff]
        %v3557 = vld [vmem:[%s464] sm:$0xff]
        %v3558 = vsel %vm706, %v2594, 0.0
        %v3559 = vrot.slane %v3558, 4
        %v3560 = vadd.f32 %v3558, %v3559
        %v3561 = vrot.slane %v3560, 2
        %v3562 = vadd.f32 %v3560, %v3561
        %v3563 = vrot.slane %v3562, 1
        %v3564 = vadd.f32 %v3562, %v3563
        %v3565 = vsel %vm706, %v2754, 0.0
        %v3566 = vrot.slane %v3565, 4
        %v3567 = vadd.f32 %v3565, %v3566
        %v3568 = vrot.slane %v3567, 2
        %v3569 = vadd.f32 %v3567, %v3568
        %v3570 = vrot.slane %v3569, 1
        %v3571 = vadd.f32 %v3569, %v3570
        %v3572 = vsel %vm706, %v2914, 0.0
        %v3573 = vrot.slane %v3572, 4
        %v3574 = vadd.f32 %v3572, %v3573
        %v3575 = vrot.slane %v3574, 2
        %v3576 = vadd.f32 %v3574, %v3575
        %v3577 = vrot.slane %v3576, 1
        %v3578 = vadd.f32 %v3576, %v3577
        %v3579 = vsel %vm706, %v3074, 0.0
        %v3580 = vrot.slane %v3579, 4
        %v3581 = vadd.f32 %v3579, %v3580
        %v3582 = vrot.slane %v3581, 2
        %v3583 = vadd.f32 %v3581, %v3582
        %v3584 = vrot.slane %v3583, 1
        %v3585 = vadd.f32 %v3583, %v3584
        %v3586 = vsel %vm706, %v3234, 0.0
        %v3587 = vrot.slane %v3586, 4
        %v3588 = vadd.f32 %v3586, %v3587
        %v3589 = vrot.slane %v3588, 2
        %v3590 = vadd.f32 %v3588, %v3589
        %v3591 = vrot.slane %v3590, 1
        %v3592 = vadd.f32 %v3590, %v3591
        %v3593 = vsel %vm706, %v3394, 0.0
        %v3594 = vrot.slane %v3593, 4
        %v3595 = vadd.f32 %v3593, %v3594
        %v3596 = vrot.slane %v3595, 2
        %v3597 = vadd.f32 %v3595, %v3596
        %v3598 = vrot.slane %v3597, 1
        %v3599 = vadd.f32 %v3597, %v3598
        %v3600 = vsel %vm706, %v3554, 0.0
        %v3601 = vrot.slane %v3600, 4
        %v3602 = vadd.f32 %v3600, %v3601
        %v3603 = vrot.slane %v3602, 2
        %v3604 = vadd.f32 %v3602, %v3603
        %v3605 = vrot.slane %v3604, 1
        %v3606 = vadd.f32 %v3604, %v3605
        %v3607 = vmul.f32 %v3564, %v769
        %v3608 = vmul.f32 %v3571, %v769
        %v3609 = vmul.f32 %v3578, %v769
        %v3610 = vmul.f32 %v3585, %v769
        %v3611 = vmul.f32 %v3592, %v769
        %v3612 = vmul.f32 %v3599, %v769
        %v3613 = vmul.f32 %v3606, %v769
        %v3614 = vsub.f32 %v2594, %v3607
        %v3615 = vsub.f32 %v2754, %v3608
        %v3616 = vsub.f32 %v2914, %v3609
        %v3617 = vsub.f32 %v3074, %v3610
        %v3618 = vsub.f32 %v3234, %v3611
        %v3619 = vsub.f32 %v3394, %v3612
        %v3620 = vsub.f32 %v3554, %v3613
        %v3621 = vmul.f32 %v3614, %v3614
        %v3622 = vmul.f32 %v3615, %v3615
        %v3623 = vmul.f32 %v3616, %v3616
        %v3624 = vmul.f32 %v3617, %v3617
        %v3625 = vmul.f32 %v3618, %v3618
        %v3626 = vmul.f32 %v3619, %v3619
        %v3627 = vmul.f32 %v3620, %v3620
        %v3628 = vsel %vm706, %v3621, 0.0
        %v3629 = vrot.slane %v3628, 4
        %v3630 = vadd.f32 %v3628, %v3629
        %v3631 = vrot.slane %v3630, 2
        %v3632 = vadd.f32 %v3630, %v3631
        %v3633 = vrot.slane %v3632, 1
        %v3634 = vadd.f32 %v3632, %v3633
        %v3635 = vsel %vm706, %v3622, 0.0
        %v3636 = vrot.slane %v3635, 4
        %v3637 = vadd.f32 %v3635, %v3636
        %v3638 = vrot.slane %v3637, 2
        %v3639 = vadd.f32 %v3637, %v3638
        %v3640 = vrot.slane %v3639, 1
        %v3641 = vadd.f32 %v3639, %v3640
        %v3642 = vsel %vm706, %v3623, 0.0
        %v3643 = vrot.slane %v3642, 4
        %v3644 = vadd.f32 %v3642, %v3643
        %v3645 = vrot.slane %v3644, 2
        %v3646 = vadd.f32 %v3644, %v3645
        %v3647 = vrot.slane %v3646, 1
        %v3648 = vadd.f32 %v3646, %v3647
        %v3649 = vsel %vm706, %v3624, 0.0
        %v3650 = vrot.slane %v3649, 4
        %v3651 = vadd.f32 %v3649, %v3650
        %v3652 = vrot.slane %v3651, 2
        %v3653 = vadd.f32 %v3651, %v3652
        %v3654 = vrot.slane %v3653, 1
        %v3655 = vadd.f32 %v3653, %v3654
        %v3656 = vsel %vm706, %v3625, 0.0
        %v3657 = vrot.slane %v3656, 4
        %v3658 = vadd.f32 %v3656, %v3657
        %v3659 = vrot.slane %v3658, 2
        %v3660 = vadd.f32 %v3658, %v3659
        %v3661 = vrot.slane %v3660, 1
        %v3662 = vadd.f32 %v3660, %v3661
        %v3663 = vsel %vm706, %v3626, 0.0
        %v3664 = vrot.slane %v3663, 4
        %v3665 = vadd.f32 %v3663, %v3664
        %v3666 = vrot.slane %v3665, 2
        %v3667 = vadd.f32 %v3665, %v3666
        %v3668 = vrot.slane %v3667, 1
        %v3669 = vadd.f32 %v3667, %v3668
        %v3670 = vsel %vm706, %v3627, 0.0
        %v3671 = vrot.slane %v3670, 4
        %v3672 = vadd.f32 %v3670, %v3671
        %v3673 = vrot.slane %v3672, 2
        %v3674 = vadd.f32 %v3672, %v3673
        %v3675 = vrot.slane %v3674, 1
        %v3676 = vadd.f32 %v3674, %v3675
        %v3677 = vmul.f32 %v3634, %v769
        %v3678 = vmul.f32 %v3641, %v769
        %v3679 = vmul.f32 %v3648, %v769
        %v3680 = vmul.f32 %v3655, %v769
        %v3681 = vmul.f32 %v3662, %v769
        %v3682 = vmul.f32 %v3669, %v769
        %v3683 = vmul.f32 %v3676, %v769
        %v3684 = vadd.f32 %v3677, 1e-05
        %v3685 = vadd.f32 %v3678, 1e-05
        %v3686 = vadd.f32 %v3679, 1e-05
        %v3687 = vadd.f32 %v3680, 1e-05
        %v3688 = vadd.f32 %v3681, 1e-05
        %v3689 = vadd.f32 %v3682, 1e-05
        %v3690 = vadd.f32 %v3683, 1e-05
        %v3691 = vrsqrt.pop %v3684
        %v3692 = vmul.f32 %v3691, %v3684
        %v3693 = vmul.f32 %v3692, %v3691
        %v3694 = vmul.f32 0.5, %v3693
        %v3695 = vsub.f32 1.5, %v3694
        %v3696 = vmul.f32 %v3691, %v3695
        %vm3697 = vweird.f32 %v3684
        %vm3698 = vweird.f32 %v3691
        %vm3699 = vmor %vm3697, %vm3698
        %v3700 = vsel %vm3699, %v3691, %v3696
        %v3701 = vrsqrt.pop %v3685
        %v3702 = vmul.f32 %v3701, %v3685
        %v3703 = vmul.f32 %v3702, %v3701
        %v3704 = vmul.f32 0.5, %v3703
        %v3705 = vsub.f32 1.5, %v3704
        %v3706 = vmul.f32 %v3701, %v3705
        %vm3707 = vweird.f32 %v3685
        %vm3708 = vweird.f32 %v3701
        %vm3709 = vmor %vm3707, %vm3708
        %v3710 = vsel %vm3709, %v3701, %v3706
        %v3711 = vrsqrt.pop %v3686
        %v3712 = vmul.f32 %v3711, %v3686
        %v3713 = vmul.f32 %v3712, %v3711
        %v3714 = vmul.f32 0.5, %v3713
        %v3715 = vsub.f32 1.5, %v3714
        %v3716 = vmul.f32 %v3711, %v3715
        %vm3717 = vweird.f32 %v3686
        %vm3718 = vweird.f32 %v3711
        %vm3719 = vmor %vm3717, %vm3718
        %v3720 = vsel %vm3719, %v3711, %v3716
        %v3721 = vrsqrt.pop %v3687
        %v3722 = vmul.f32 %v3721, %v3687
        %v3723 = vmul.f32 %v3722, %v3721
        %v3724 = vmul.f32 0.5, %v3723
        %v3725 = vsub.f32 1.5, %v3724
        %v3726 = vmul.f32 %v3721, %v3725
        %vm3727 = vweird.f32 %v3687
        %vm3728 = vweird.f32 %v3721
        %vm3729 = vmor %vm3727, %vm3728
        %v3730 = vsel %vm3729, %v3721, %v3726
        %v3731 = vrsqrt.pop %v3688
        %v3732 = vmul.f32 %v3731, %v3688
        %v3733 = vmul.f32 %v3732, %v3731
        %v3734 = vmul.f32 0.5, %v3733
        %v3735 = vsub.f32 1.5, %v3734
        %v3736 = vmul.f32 %v3731, %v3735
        %vm3737 = vweird.f32 %v3688
        %vm3738 = vweird.f32 %v3731
        %vm3739 = vmor %vm3737, %vm3738
        %v3740 = vsel %vm3739, %v3731, %v3736
        %v3741 = vrsqrt.pop %v3689
        %v3742 = vmul.f32 %v3741, %v3689
        %v3743 = vmul.f32 %v3742, %v3741
        %v3744 = vmul.f32 0.5, %v3743
        %v3745 = vsub.f32 1.5, %v3744
        %v3746 = vmul.f32 %v3741, %v3745
        %vm3747 = vweird.f32 %v3689
        %vm3748 = vweird.f32 %v3741
        %vm3749 = vmor %vm3747, %vm3748
        %v3750 = vsel %vm3749, %v3741, %v3746
        %v3751 = vrsqrt.pop %v3690
        %v3752 = vmul.f32 %v3751, %v3690
        %v3753 = vmul.f32 %v3752, %v3751
        %v3754 = vmul.f32 0.5, %v3753
        %v3755 = vsub.f32 1.5, %v3754
        %v3756 = vmul.f32 %v3751, %v3755
        %vm3757 = vweird.f32 %v3690
        %vm3758 = vweird.f32 %v3751
        %vm3759 = vmor %vm3757, %vm3758
        %v3760 = vsel %vm3759, %v3751, %v3756
        %v3761 = vmul.f32 %v3614, %v3700
        %v3762 = vmul.f32 %v3615, %v3710
        %v3763 = vmul.f32 %v3616, %v3720
        %v3764 = vmul.f32 %v3617, %v3730
        %v3765 = vmul.f32 %v3618, %v3740
        %v3766 = vmul.f32 %v3619, %v3750
        %v3767 = vmul.f32 %v3620, %v3760
        %v3769 = vperm.slane %v3556, 0
        %v3770 = vperm.slane %v3556, 1
        %v3771 = vperm.slane %v3556, 2
        %v3772 = vperm.slane %v3556, 3
        %v3773 = vperm.slane %v3556, 4
        %v3774 = vperm.slane %v3556, 5
        %v3775 = vperm.slane %v3556, 6
        %v3783 = vmul.f32 %v3761, %v3769
        %v3784 = vmul.f32 %v3762, %v3770
        %v3785 = vmul.f32 %v3763, %v3771
        %v3786 = vmul.f32 %v3764, %v3772
        %v3787 = vmul.f32 %v3765, %v3773
        %v3788 = vmul.f32 %v3766, %v3774
        %v3789 = vmul.f32 %v3767, %v3775
        %v3791 = vperm.slane %v3557, 0
        %v3792 = vperm.slane %v3557, 1
        %v3793 = vperm.slane %v3557, 2
        %v3794 = vperm.slane %v3557, 3
        %v3795 = vperm.slane %v3557, 4
        %v3796 = vperm.slane %v3557, 5
        %v3797 = vperm.slane %v3557, 6
        %v3805 = vadd.f32 %v3783, %v3791
        %v3806 = vadd.f32 %v3784, %v3792
        %v3807 = vadd.f32 %v3785, %v3793
        %v3808 = vadd.f32 %v3786, %v3794
        %v3809 = vadd.f32 %v3787, %v3795
        %v3810 = vadd.f32 %v3788, %v3796
        %v3811 = vadd.f32 %v3789, %v3797
        %v3812 = vmax.f32 %v3805, 0.0
        %v3813 = vmax.f32 %v3806, 0.0
        %v3814 = vmax.f32 %v3807, 0.0
        %v3815 = vmax.f32 %v3808, 0.0
        %v3816 = vmax.f32 %v3809, 0.0
        %v3817 = vmax.f32 %v3810, 0.0
        %v3818 = vmax.f32 %v3811, 0.0
        %v3826 = vrot.slane %v3813, 6
        %v3827 = vrot.slane %v3814, 4
        %v3828 = vrot.slane %v3815, 2
        %v3829 = vrot.slane %v3817, 6
        %v3830 = vrot.slane %v3818, 4
        %v3831 = vsel %vm706, %v3812, %v3826
        %vm3832 = vcmask 1045508
        %v3833 = vsel %vm3832, %v3827, %v3828
        %v3834 = vsel %vm519, %v3831, %v3833
        %v3835 = vsel %vm706, %v3816, %v3829
        %v3836 = vsel %vm519, %v3835, %v3830
        %3839 = vst [vmem:[%s470] sm:$0xff] %v3834
        %3840 = vst [vmem:[%s470 + $0x8] sm:$0x3f] %v3836
        %s3841 = smul.u32 7, %s23
        %p3842 = scmp.lt.s32.totalorder %s3841, 48
        %s3843 = scalar_select %p3842, %s3841, 48
        %s3844 = smul.addr %s3843, 2
        %s3845 = scalar_lea.vmem %s9, %s3844
        // Predicated region
        $region77: #{generator_forward.3} parent=55 // pred_check
          %p3846 = pneg %p250
        $region78: #{generator_forward.3} parent=55 // pred_check_branch
          %3848 = sbr.rel (%p3846) target = $region80
        $region79: #{generator_forward.3} parent=55 // pred_region
          %s3849 = smul.u32 7, %s23
        $region80: #{generator_forward.3} parent=55 // pred_fallthru
          _
      $region56: #{generator_forward.3} parent=5 // pred_fallthru
        _
      %p3850 = scmp.le.s32.totalorder 2, %s18
      // Predicated region
      $region81: #{generator_forward.3} parent=5 // pred_check
        %p3851 = pneg %p3850
      $region82: #{generator_forward.3} parent=5 // pred_check_branch
        %3853 = sbr.rel (%p3851) target = $region84
      $region83: #{generator_forward.3} parent=5 // pred_region
        %s3854 = ssub.s32 %s18, 2
        // Predicated region
        $region85: #{generator_forward.3} parent=83 // pred_check
          %p3855 = pneg %p256
        $region86: #{generator_forward.3} parent=83 // pred_check_branch
          %3857 = sbr.rel (%p3855) target = $region88
        $region87: #{generator_forward.3} parent=83 // pred_region
          %s3858 = smul.u32 7, %s24
          %p3859 = scmp.lt.s32.totalorder %s3858, 48
          %s3860 = scalar_select %p3859, %s3858, 48
          %s3861 = smul.addr %s3860, 2
          %s3862 = scalar_lea.vmem %s9, %s3861
        $region88: #{generator_forward.3} parent=83 // pred_fallthru
          _
      $region84: #{generator_forward.3} parent=5 // pred_fallthru
        _
    $region6: #{generator_forward.3} parent=1 // loop_footer
      %s22 = sadd.s32 1, %s18
    $region7: #{generator_forward.3} parent=1 // loop_footer_branch
      %17 = sbr.rel target = $region3
    $region8: #{generator_forward.3} parent=1 // loop_exit
      _
    %3863 = vsyncpa [#allocation3], 1
    %s3864 = scalar_lea.sflag [#allocation3], 1
    %3865 = vsyncpa %s3864, 1
    %3866 = vsyncpa [#allocation5], 1
    %3867 = vsyncpa [#allocation8], 1

// kernel: generator_forward.4
$region0: #{generator_forward.4}
  #allocation0 [shape = 'u32[]', space=smem, size = 0x4, offset = 0x4, fixed_abs, tag = 'smem constant byte address 0x4 - core index']
  #allocation1 [shape = 'u32[72,128]{1,0:T(1,128)}', space=vmem, size = 0x9000, scoped, tag = 'internal scratch']
  %s0 = inlined_call_operand.vmem [shape: f32[4,98,512], index: 0, kind: input, shape index: {}]
  %s1 = inlined_call_operand.vmem [shape: bf16[4,512,128], index: 1, kind: input, shape index: {}]
  %s2 = inlined_call_operand.vmem [shape: f32[1,128], index: 2, kind: input, shape index: {}]
  %s3 = inlined_call_operand.vmem [shape: f32[1,128], index: 3, kind: input, shape index: {}]
  %s4 = inlined_call_operand.vmem [shape: f32[1,128], index: 4, kind: input, shape index: {}]
  %s5 = inlined_call_operand.vmem [shape: f32[4,98,128], index: 5, kind: output, shape index: {}]
  %s6 = sld [smem:[#allocation0]]
  $region30: #{generator_forward.4} parent=0
    _
  %s8 = ssub.s32 1, %s6
  %s9 = scalar_select 0, %s8, %s6
  // Predicated region
  $region2: #{generator_forward.4} parent=0 // pred_check
    _
  $region3: #{generator_forward.4} parent=0 // pred_check_branch
    %11 = sbr.rel (0) target = $region5
  $region4: #{generator_forward.4} parent=0 // pred_region
    _
  $region5: #{generator_forward.4} parent=0 // pred_fallthru
    _
  // Predicated region
  $region6: #{generator_forward.4} parent=0 // pred_check
    _
  $region7: #{generator_forward.4} parent=0 // pred_check_branch
    %13 = sbr.rel (0) target = $region9
  $region8: #{generator_forward.4} parent=0 // pred_region
    _
  $region9: #{generator_forward.4} parent=0 // pred_fallthru
    _
  // Predicated region
  $region10: #{generator_forward.4} parent=0 // pred_check
    _
  $region11: #{generator_forward.4} parent=0 // pred_check_branch
    %15 = sbr.rel (0) target = $region13
  $region12: #{generator_forward.4} parent=0 // pred_region
    _
  $region13: #{generator_forward.4} parent=0 // pred_fallthru
    _
  // Predicated region
  $region14: #{generator_forward.4} parent=0 // pred_check
    _
  $region15: #{generator_forward.4} parent=0 // pred_check_branch
    %17 = sbr.rel (0) target = $region17
  $region16: #{generator_forward.4} parent=0 // pred_region
    _
  $region17: #{generator_forward.4} parent=0 // pred_fallthru
    _
  // Predicated region
  $region18: #{generator_forward.4} parent=0 // pred_check
    _
  $region19: #{generator_forward.4} parent=0 // pred_check_branch
    %19 = sbr.rel (0) target = $region21
  $region20: #{generator_forward.4} parent=0 // pred_region
    _
  $region21: #{generator_forward.4} parent=0 // pred_fallthru
    _
  %v20 = vld [vmem:[%s0] sm:$0xff]
  %v21 = vld [vmem:[%s0 + $0x8] sm:$0xff]
  %v22 = vld [vmem:[%s0 + $0x10] sm:$0xff]
  %v23 = vld [vmem:[%s0 + $0x18] sm:$0xff]
  %v24 = vld [vmem:[%s0 + $0x20] sm:$0xff]
  %v25 = vld [vmem:[%s0 + $0x28] sm:$0xff]
  %v26 = vld [vmem:[%s0 + $0x30] sm:$0xff]
  %v27 = vld [vmem:[%s0 + $0x38] sm:$0xff]
  %v28 = vld [vmem:[%s0 + $0x40] sm:$0xff]
  %v29 = vld [vmem:[%s0 + $0x48] sm:$0xff]
  %v30 = vld [vmem:[%s0 + $0x50] sm:$0xff]
  %v31 = vld [vmem:[%s0 + $0x58] sm:$0xff]
  %v32 = vld [vmem:[%s0 + $0x60] sm:$0xff]
  %v33 = vld [vmem:[%s0 + $0x68] sm:$0xff]
  %v34 = vld [vmem:[%s0 + $0x70] sm:$0xff]
  %v35 = vld [vmem:[%s0 + $0x78] sm:$0xff]
  %v36 = vld [vmem:[%s0 + $0x80] sm:$0xff]
  %v37 = vld [vmem:[%s0 + $0x88] sm:$0xff]
  %v38 = vld [vmem:[%s0 + $0x90] sm:$0xff]
  %v39 = vld [vmem:[%s0 + $0x98] sm:$0xff]
  %v40 = vld [vmem:[%s0 + $0xa0] sm:$0xff]
  %v41 = vld [vmem:[%s0 + $0xa8] sm:$0xff]
  %v42 = vld [vmem:[%s0 + $0xb0] sm:$0xff]
  %v43 = vld [vmem:[%s0 + $0xb8] sm:$0xff]
  %v44 = vld [vmem:[%s0 + $0xc0] sm:$0xff]
  %v45 = vld [vmem:[%s0 + $0xc8] sm:$0xff]
  %v46 = vld [vmem:[%s0 + $0xd0] sm:$0xff]
  %v47 = vld [vmem:[%s0 + $0xd8] sm:$0xff]
  %v48 = vld [vmem:[%s0 + $0xe0] sm:$0xff]
  %v49 = vld [vmem:[%s0 + $0xe8] sm:$0xff]
  %v50 = vld [vmem:[%s0 + $0xf0] sm:$0xff]
  %v51 = vld [vmem:[%s0 + $0xf8] sm:$0xff]
  %v52 = vld [vmem:[%s0 + $0x100] sm:$0xff]
  %v53 = vld [vmem:[%s0 + $0x108] sm:$0xff]
  %v54 = vld [vmem:[%s0 + $0x110] sm:$0xff]
  %v55 = vld [vmem:[%s0 + $0x118] sm:$0xff]
  %v56 = vld [vmem:[%s0 + $0x120] sm:$0xff]
  %v57 = vld [vmem:[%s0 + $0x128] sm:$0xff]
  %v58 = vld [vmem:[%s0 + $0x130] sm:$0xff]
  %v59 = vld [vmem:[%s0 + $0x138] sm:$0xff]
  %v60 = vld [vmem:[%s0 + $0x140] sm:$0xff]
  %v61 = vld [vmem:[%s0 + $0x148] sm:$0xff]
  %v62 = vld [vmem:[%s0 + $0x150] sm:$0xff]
  %v63 = vld [vmem:[%s0 + $0x158] sm:$0xff]
  %v64 = vld [vmem:[%s0 + $0x160] sm:$0xff]
  %v65 = vld [vmem:[%s0 + $0x168] sm:$0xff]
  %v66 = vld [vmem:[%s0 + $0x170] sm:$0xff]
  %v67 = vld [vmem:[%s0 + $0x178] sm:$0xff]
  %v68 = vld [vmem:[%s0 + $0x180] sm:$0x3]
  %v69 = vld [vmem:[%s0 + $0x188] sm:$0x3]
  %v70 = vld [vmem:[%s0 + $0x190] sm:$0x3]
  %v71 = vld [vmem:[%s0 + $0x198] sm:$0x3]
  %v72 = vld [vmem:[%s1] sm:$0xf]
  %v73 = vld [vmem:[%s1 + $0x4] sm:$0xf]
  %v74 = vld [vmem:[%s1 + $0x8] sm:$0xf]
  %v75 = vld [vmem:[%s1 + $0xc] sm:$0xf]
  %v76 = vld [vmem:[%s1 + $0x10] sm:$0xf]
  %v77 = vld [vmem:[%s1 + $0x14] sm:$0xf]
  %v78 = vld [vmem:[%s1 + $0x18] sm:$0xf]
  %v79 = vld [vmem:[%s1 + $0x1c] sm:$0xf]
  %v80 = vld [vmem:[%s1 + $0x20] sm:$0xf]
  %v81 = vld [vmem:[%s1 + $0x24] sm:$0xf]
  %v82 = vld [vmem:[%s1 + $0x28] sm:$0xf]
  %v83 = vld [vmem:[%s1 + $0x2c] sm:$0xf]
  %v84 = vld [vmem:[%s1 + $0x30] sm:$0xf]
  %v85 = vld [vmem:[%s1 + $0x34] sm:$0xf]
  %v86 = vld [vmem:[%s1 + $0x38] sm:$0xf]
  %v87 = vld [vmem:[%s1 + $0x3c] sm:$0xf]
  %v88 = vld [vmem:[%s1 + $0x40] sm:$0xf]
  %v89 = vld [vmem:[%s1 + $0x44] sm:$0xf]
  %v90 = vld [vmem:[%s1 + $0x48] sm:$0xf]
  %v91 = vld [vmem:[%s1 + $0x4c] sm:$0xf]
  %v92 = vld [vmem:[%s1 + $0x50] sm:$0xf]
  %v93 = vld [vmem:[%s1 + $0x54] sm:$0xf]
  %v94 = vld [vmem:[%s1 + $0x58] sm:$0xf]
  %v95 = vld [vmem:[%s1 + $0x5c] sm:$0xf]
  %v96 = vld [vmem:[%s1 + $0x60] sm:$0xf]
  %v97 = vld [vmem:[%s1 + $0x64] sm:$0xf]
  %v98 = vld [vmem:[%s1 + $0x68] sm:$0xf]
  %v99 = vld [vmem:[%s1 + $0x6c] sm:$0xf]
  %v100 = vld [vmem:[%s1 + $0x70] sm:$0xf]
  %v101 = vld [vmem:[%s1 + $0x74] sm:$0xf]
  %v102 = vld [vmem:[%s1 + $0x78] sm:$0xf]
  %v103 = vld [vmem:[%s1 + $0x7c] sm:$0xf]
  %v104 = vld [vmem:[%s1 + $0x80] sm:$0xf]
  %v105 = vld [vmem:[%s1 + $0x84] sm:$0xf]
  %v106 = vld [vmem:[%s1 + $0x88] sm:$0xf]
  %v107 = vld [vmem:[%s1 + $0x8c] sm:$0xf]
  %v108 = vld [vmem:[%s1 + $0x90] sm:$0xf]
  %v109 = vld [vmem:[%s1 + $0x94] sm:$0xf]
  %v110 = vld [vmem:[%s1 + $0x98] sm:$0xf]
  %v111 = vld [vmem:[%s1 + $0x9c] sm:$0xf]
  %v112 = vld [vmem:[%s1 + $0xa0] sm:$0xf]
  %v113 = vld [vmem:[%s1 + $0xa4] sm:$0xf]
  %v114 = vld [vmem:[%s1 + $0xa8] sm:$0xf]
  %v115 = vld [vmem:[%s1 + $0xac] sm:$0xf]
  %v116 = vld [vmem:[%s1 + $0xb0] sm:$0xf]
  %v117 = vld [vmem:[%s1 + $0xb4] sm:$0xf]
  %v118 = vld [vmem:[%s1 + $0xb8] sm:$0xf]
  %v119 = vld [vmem:[%s1 + $0xbc] sm:$0xf]
  %v120 = vld [vmem:[%s1 + $0xc0] sm:$0xf]
  %v121 = vld [vmem:[%s1 + $0xc4] sm:$0xf]
  %v122 = vld [vmem:[%s1 + $0xc8] sm:$0xf]
  %v123 = vld [vmem:[%s1 + $0xcc] sm:$0xf]
  %v124 = vld [vmem:[%s1 + $0xd0] sm:$0xf]
  %v125 = vld [vmem:[%s1 + $0xd4] sm:$0xf]
  %v126 = vld [vmem:[%s1 + $0xd8] sm:$0xf]
  %v127 = vld [vmem:[%s1 + $0xdc] sm:$0xf]
  %v128 = vld [vmem:[%s1 + $0xe0] sm:$0xf]
  %v129 = vld [vmem:[%s1 + $0xe4] sm:$0xf]
  %v130 = vld [vmem:[%s1 + $0xe8] sm:$0xf]
  %v131 = vld [vmem:[%s1 + $0xec] sm:$0xf]
  %v132 = vld [vmem:[%s1 + $0xf0] sm:$0xf]
  %v133 = vld [vmem:[%s1 + $0xf4] sm:$0xf]
  %v134 = vld [vmem:[%s1 + $0xf8] sm:$0xf]
  %v135 = vld [vmem:[%s1 + $0xfc] sm:$0xf]
  %v136 = vunpack.c.l.bf16 %v72
  %v137 = vunpack.c.l.bf16 %v73
  %v138 = vunpack.c.l.bf16 %v74
  %v139 = vunpack.c.l.bf16 %v75
  %v140 = vunpack.c.l.bf16 %v76
  %v141 = vunpack.c.l.bf16 %v77
  %v142 = vunpack.c.l.bf16 %v78
  %v143 = vunpack.c.l.bf16 %v79
  %v144 = vunpack.c.l.bf16 %v80
  %v145 = vunpack.c.l.bf16 %v81
  %v146 = vunpack.c.l.bf16 %v82
  %v147 = vunpack.c.l.bf16 %v83
  %v148 = vunpack.c.l.bf16 %v84
  %v149 = vunpack.c.l.bf16 %v85
  %v150 = vunpack.c.l.bf16 %v86
  %v151 = vunpack.c.l.bf16 %v87
  %v152 = vunpack.c.l.bf16 %v88
  %v153 = vunpack.c.l.bf16 %v89
  %v154 = vunpack.c.l.bf16 %v90
  %v155 = vunpack.c.l.bf16 %v91
  %v156 = vunpack.c.l.bf16 %v92
  %v157 = vunpack.c.l.bf16 %v93
  %v158 = vunpack.c.l.bf16 %v94
  %v159 = vunpack.c.l.bf16 %v95
  %v160 = vunpack.c.l.bf16 %v96
  %v161 = vunpack.c.l.bf16 %v97
  %v162 = vunpack.c.l.bf16 %v98
  %v163 = vunpack.c.l.bf16 %v99
  %v164 = vunpack.c.l.bf16 %v100
  %v165 = vunpack.c.l.bf16 %v101
  %v166 = vunpack.c.l.bf16 %v102
  %v167 = vunpack.c.l.bf16 %v103
  %v168 = vunpack.c.l.bf16 %v104
  %v169 = vunpack.c.l.bf16 %v105
  %v170 = vunpack.c.l.bf16 %v106
  %v171 = vunpack.c.l.bf16 %v107
  %v172 = vunpack.c.l.bf16 %v108
  %v173 = vunpack.c.l.bf16 %v109
  %v174 = vunpack.c.l.bf16 %v110
  %v175 = vunpack.c.l.bf16 %v111
  %v176 = vunpack.c.l.bf16 %v112
  %v177 = vunpack.c.l.bf16 %v113
  %v178 = vunpack.c.l.bf16 %v114
  %v179 = vunpack.c.l.bf16 %v115
  %v180 = vunpack.c.l.bf16 %v116
  %v181 = vunpack.c.l.bf16 %v117
  %v182 = vunpack.c.l.bf16 %v118
  %v183 = vunpack.c.l.bf16 %v119
  %v184 = vunpack.c.l.bf16 %v120
  %v185 = vunpack.c.l.bf16 %v121
  %v186 = vunpack.c.l.bf16 %v122
  %v187 = vunpack.c.l.bf16 %v123
  %v188 = vunpack.c.l.bf16 %v124
  %v189 = vunpack.c.l.bf16 %v125
  %v190 = vunpack.c.l.bf16 %v126
  %v191 = vunpack.c.l.bf16 %v127
  %v192 = vunpack.c.l.bf16 %v128
  %v193 = vunpack.c.l.bf16 %v129
  %v194 = vunpack.c.l.bf16 %v130
  %v195 = vunpack.c.l.bf16 %v131
  %v196 = vunpack.c.l.bf16 %v132
  %v197 = vunpack.c.l.bf16 %v133
  %v198 = vunpack.c.l.bf16 %v134
  %v199 = vunpack.c.l.bf16 %v135
  %v200 = vld [vmem:[%s2] sm:$0x1]
  %v202 = vperm.slane %v200, 0
  %204 = vmatpush.msra.mxu0 %v151
  %205 = vmatpush.msra.mxu0 %v150
  %206 = vmatpush.msra.mxu0 %v149
  %207 = vmatpush.msra.mxu0 %v148
  %208 = vmatpush.msra.mxu0 %v147
  %209 = vmatpush.msra.mxu0 %v146
  %210 = vmatpush.msra.mxu0 %v145
  %211 = vmatpush.msra.mxu0 %v144
  %212 = vmatpush.msra.mxu0 %v143
  %213 = vmatpush.msra.mxu0 %v142
  %214 = vmatpush.msra.mxu0 %v141
  %215 = vmatpush.msra.mxu0 %v140
  %216 = vmatpush.msra.mxu0 %v139
  %217 = vmatpush.msra.mxu0 %v138
  %218 = vmatpush.msra.mxu0 %v137
  %219 = vmatpush.msra.mxu0 %v136
  %220 = vmatmul.f32.gmra.mxu0 %v20
  %v221 = vpop.f32.mrf.mxu0
  %v222 = vadd.f32 %v202, %v221
  %223 = vmatmul.f32.gmra.mxu0 %v24
  %v224 = vpop.f32.mrf.mxu0
  %v225 = vadd.f32 %v202, %v224
  %226 = vmatmul.f32.gmra.mxu0 %v28
  %v227 = vpop.f32.mrf.mxu0
  %v228 = vadd.f32 %v202, %v227
  %229 = vmatmul.f32.gmra.mxu0 %v32
  %v230 = vpop.f32.mrf.mxu0
  %v231 = vadd.f32 %v202, %v230
  %232 = vmatmul.f32.gmra.mxu0 %v36
  %v233 = vpop.f32.mrf.mxu0
  %v234 = vadd.f32 %v202, %v233
  %235 = vmatmul.f32.gmra.mxu0 %v40
  %v236 = vpop.f32.mrf.mxu0
  %v237 = vadd.f32 %v202, %v236
  %238 = vmatmul.f32.gmra.mxu0 %v44
  %v239 = vpop.f32.mrf.mxu0
  %v240 = vadd.f32 %v202, %v239
  %241 = vmatmul.f32.gmra.mxu0 %v48
  %v242 = vpop.f32.mrf.mxu0
  %v243 = vadd.f32 %v202, %v242
  %244 = vmatmul.f32.gmra.mxu0 %v52
  %v245 = vpop.f32.mrf.mxu0
  %v246 = vadd.f32 %v202, %v245
  %247 = vmatmul.f32.gmra.mxu0 %v56
  %v248 = vpop.f32.mrf.mxu0
  %v249 = vadd.f32 %v202, %v248
  %250 = vmatmul.f32.gmra.mxu0 %v60
  %v251 = vpop.f32.mrf.mxu0
  %v252 = vadd.f32 %v202, %v251
  %253 = vmatmul.f32.gmra.mxu0 %v64
  %v254 = vpop.f32.mrf.mxu0
  %v255 = vadd.f32 %v202, %v254
  %256 = vmatmul.f32.gmra.mxu0 %v68
  %v257 = vpop.f32.mrf.mxu0
  %v258 = vadd.f32 %v202, %v257
  %259 = vdwg.mxu0
  %260 = vmatpush.msra.mxu0 %v167
  %261 = vmatpush.msra.mxu0 %v166
  %262 = vmatpush.msra.mxu0 %v165
  %263 = vmatpush.msra.mxu0 %v164
  %264 = vmatpush.msra.mxu0 %v163
  %265 = vmatpush.msra.mxu0 %v162
  %266 = vmatpush.msra.mxu0 %v161
  %267 = vmatpush.msra.mxu0 %v160
  %268 = vmatpush.msra.mxu0 %v159
  %269 = vmatpush.msra.mxu0 %v158
  %270 = vmatpush.msra.mxu0 %v157
  %271 = vmatpush.msra.mxu0 %v156
  %272 = vmatpush.msra.mxu0 %v155
  %273 = vmatpush.msra.mxu0 %v154
  %274 = vmatpush.msra.mxu0 %v153
  %275 = vmatpush.msra.mxu0 %v152
  %276 = vmatmul.f32.gmra.mxu0 %v21
  %v277 = vpop.f32.mrf.mxu0
  %v278 = vadd.f32 %v222, %v277
  %279 = vmatmul.f32.gmra.mxu0 %v25
  %v280 = vpop.f32.mrf.mxu0
  %v281 = vadd.f32 %v225, %v280
  %282 = vmatmul.f32.gmra.mxu0 %v29
  %v283 = vpop.f32.mrf.mxu0
  %v284 = vadd.f32 %v228, %v283
  %285 = vmatmul.f32.gmra.mxu0 %v33
  %v286 = vpop.f32.mrf.mxu0
  %v287 = vadd.f32 %v231, %v286
  %288 = vmatmul.f32.gmra.mxu0 %v37
  %v289 = vpop.f32.mrf.mxu0
  %v290 = vadd.f32 %v234, %v289
  %291 = vmatmul.f32.gmra.mxu0 %v41
  %v292 = vpop.f32.mrf.mxu0
  %v293 = vadd.f32 %v237, %v292
  %294 = vmatmul.f32.gmra.mxu0 %v45
  %v295 = vpop.f32.mrf.mxu0
  %v296 = vadd.f32 %v240, %v295
  %297 = vmatmul.f32.gmra.mxu0 %v49
  %v298 = vpop.f32.mrf.mxu0
  %v299 = vadd.f32 %v243, %v298
  %300 = vmatmul.f32.gmra.mxu0 %v53
  %v301 = vpop.f32.mrf.mxu0
  %v302 = vadd.f32 %v246, %v301
  %303 = vmatmul.f32.gmra.mxu0 %v57
  %v304 = vpop.f32.mrf.mxu0
  %v305 = vadd.f32 %v249, %v304
  %306 = vmatmul.f32.gmra.mxu0 %v61
  %v307 = vpop.f32.mrf.mxu0
  %v308 = vadd.f32 %v252, %v307
  %309 = vmatmul.f32.gmra.mxu0 %v65
  %v310 = vpop.f32.mrf.mxu0
  %v311 = vadd.f32 %v255, %v310
  %312 = vmatmul.f32.gmra.mxu0 %v69
  %v313 = vpop.f32.mrf.mxu0
  %v314 = vadd.f32 %v258, %v313
  %315 = vdwg.mxu0
  %316 = vmatpush.msra.mxu0 %v183
  %317 = vmatpush.msra.mxu0 %v182
  %318 = vmatpush.msra.mxu0 %v181
  %319 = vmatpush.msra.mxu0 %v180
  %320 = vmatpush.msra.mxu0 %v179
  %321 = vmatpush.msra.mxu0 %v178
  %322 = vmatpush.msra.mxu0 %v177
  %323 = vmatpush.msra.mxu0 %v176
  %324 = vmatpush.msra.mxu0 %v175
  %325 = vmatpush.msra.mxu0 %v174
  %326 = vmatpush.msra.mxu0 %v173
  %327 = vmatpush.msra.mxu0 %v172
  %328 = vmatpush.msra.mxu0 %v171
  %329 = vmatpush.msra.mxu0 %v170
  %330 = vmatpush.msra.mxu0 %v169
  %331 = vmatpush.msra.mxu0 %v168
  %332 = vmatmul.f32.gmra.mxu0 %v22
  %v333 = vpop.f32.mrf.mxu0
  %v334 = vadd.f32 %v278, %v333
  %335 = vmatmul.f32.gmra.mxu0 %v26
  %v336 = vpop.f32.mrf.mxu0
  %v337 = vadd.f32 %v281, %v336
  %338 = vmatmul.f32.gmra.mxu0 %v30
  %v339 = vpop.f32.mrf.mxu0
  %v340 = vadd.f32 %v284, %v339
  %341 = vmatmul.f32.gmra.mxu0 %v34
  %v342 = vpop.f32.mrf.mxu0
  %v343 = vadd.f32 %v287, %v342
  %344 = vmatmul.f32.gmra.mxu0 %v38
  %v345 = vpop.f32.mrf.mxu0
  %v346 = vadd.f32 %v290, %v345
  %347 = vmatmul.f32.gmra.mxu0 %v42
  %v348 = vpop.f32.mrf.mxu0
  %v349 = vadd.f32 %v293, %v348
  %350 = vmatmul.f32.gmra.mxu0 %v46
  %v351 = vpop.f32.mrf.mxu0
  %v352 = vadd.f32 %v296, %v351
  %353 = vmatmul.f32.gmra.mxu0 %v50
  %v354 = vpop.f32.mrf.mxu0
  %v355 = vadd.f32 %v299, %v354
  %356 = vmatmul.f32.gmra.mxu0 %v54
  %v357 = vpop.f32.mrf.mxu0
  %v358 = vadd.f32 %v302, %v357
  %359 = vmatmul.f32.gmra.mxu0 %v58
  %v360 = vpop.f32.mrf.mxu0
  %v361 = vadd.f32 %v305, %v360
  %362 = vmatmul.f32.gmra.mxu0 %v62
  %v363 = vpop.f32.mrf.mxu0
  %v364 = vadd.f32 %v308, %v363
  %365 = vmatmul.f32.gmra.mxu0 %v66
  %v366 = vpop.f32.mrf.mxu0
  %v367 = vadd.f32 %v311, %v366
  %368 = vmatmul.f32.gmra.mxu0 %v70
  %v369 = vpop.f32.mrf.mxu0
  %v370 = vadd.f32 %v314, %v369
  %371 = vdwg.mxu0
  %372 = vmatpush.msra.mxu0 %v199
  %373 = vmatpush.msra.mxu0 %v198
  %374 = vmatpush.msra.mxu0 %v197
  %375 = vmatpush.msra.mxu0 %v196
  %376 = vmatpush.msra.mxu0 %v195
  %377 = vmatpush.msra.mxu0 %v194
  %378 = vmatpush.msra.mxu0 %v193
  %379 = vmatpush.msra.mxu0 %v192
  %380 = vmatpush.msra.mxu0 %v191
  %381 = vmatpush.msra.mxu0 %v190
  %382 = vmatpush.msra.mxu0 %v189
  %383 = vmatpush.msra.mxu0 %v188
  %384 = vmatpush.msra.mxu0 %v187
  %385 = vmatpush.msra.mxu0 %v186
  %386 = vmatpush.msra.mxu0 %v185
  %387 = vmatpush.msra.mxu0 %v184
  %388 = vmatmul.f32.gmra.mxu0 %v23
  %v389 = vpop.f32.mrf.mxu0
  %v390 = vadd.f32 %v334, %v389
  %391 = vmatmul.f32.gmra.mxu0 %v27
  %v392 = vpop.f32.mrf.mxu0
  %v393 = vadd.f32 %v337, %v392
  %394 = vmatmul.f32.gmra.mxu0 %v31
  %v395 = vpop.f32.mrf.mxu0
  %v396 = vadd.f32 %v340, %v395
  %397 = vmatmul.f32.gmra.mxu0 %v35
  %v398 = vpop.f32.mrf.mxu0
  %v399 = vadd.f32 %v343, %v398
  %400 = vmatmul.f32.gmra.mxu0 %v39
  %v401 = vpop.f32.mrf.mxu0
  %v402 = vadd.f32 %v346, %v401
  %403 = vmatmul.f32.gmra.mxu0 %v43
  %v404 = vpop.f32.mrf.mxu0
  %v405 = vadd.f32 %v349, %v404
  %406 = vmatmul.f32.gmra.mxu0 %v47
  %v407 = vpop.f32.mrf.mxu0
  %v408 = vadd.f32 %v352, %v407
  %409 = vmatmul.f32.gmra.mxu0 %v51
  %v410 = vpop.f32.mrf.mxu0
  %v411 = vadd.f32 %v355, %v410
  %412 = vmatmul.f32.gmra.mxu0 %v55
  %v413 = vpop.f32.mrf.mxu0
  %v414 = vadd.f32 %v358, %v413
  %415 = vmatmul.f32.gmra.mxu0 %v59
  %v416 = vpop.f32.mrf.mxu0
  %v417 = vadd.f32 %v361, %v416
  %418 = vmatmul.f32.gmra.mxu0 %v63
  %v419 = vpop.f32.mrf.mxu0
  %v420 = vadd.f32 %v364, %v419
  %421 = vmatmul.f32.gmra.mxu0 %v67
  %v422 = vpop.f32.mrf.mxu0
  %v423 = vadd.f32 %v367, %v422
  %424 = vmatmul.f32.gmra.mxu0 %v71
  %v425 = vpop.f32.mrf.mxu0
  %v426 = vadd.f32 %v370, %v425
  %427 = vdwg.mxu0
  %428 = vst [vmem:[%s5] sm:$0xff] %v390
  %429 = vst [vmem:[%s5 + $0x8] sm:$0xff] %v393
  %430 = vst [vmem:[%s5 + $0x10] sm:$0xff] %v396
  %431 = vst [vmem:[%s5 + $0x18] sm:$0xff] %v399
  %432 = vst [vmem:[%s5 + $0x20] sm:$0xff] %v402
  %433 = vst [vmem:[%s5 + $0x28] sm:$0xff] %v405
  %434 = vst [vmem:[%s5 + $0x30] sm:$0xff] %v408
  %435 = vst [vmem:[%s5 + $0x38] sm:$0xff] %v411
  %436 = vst [vmem:[%s5 + $0x40] sm:$0xff] %v414
  %437 = vst [vmem:[%s5 + $0x48] sm:$0xff] %v417
  %438 = vst [vmem:[%s5 + $0x50] sm:$0xff] %v420
  %439 = vst [vmem:[%s5 + $0x58] sm:$0xff] %v423
  %440 = vst [vmem:[%s5 + $0x60] sm:$0x3] %v426
  %s441 = scalar_lea.vmem %s0, 416
  %v442 = vld [vmem:[%s441] sm:$0xff]
  %v443 = vld [vmem:[%s441 + $0x8] sm:$0xff]
  %v444 = vld [vmem:[%s441 + $0x10] sm:$0xff]
  %v445 = vld [vmem:[%s441 + $0x18] sm:$0xff]
  %v446 = vld [vmem:[%s441 + $0x20] sm:$0xff]
  %v447 = vld [vmem:[%s441 + $0x28] sm:$0xff]
  %v448 = vld [vmem:[%s441 + $0x30] sm:$0xff]
  %v449 = vld [vmem:[%s441 + $0x38] sm:$0xff]
  %v450 = vld [vmem:[%s441 + $0x40] sm:$0xff]
  %v451 = vld [vmem:[%s441 + $0x48] sm:$0xff]
  %v452 = vld [vmem:[%s441 + $0x50] sm:$0xff]
  %v453 = vld [vmem:[%s441 + $0x58] sm:$0xff]
  %v454 = vld [vmem:[%s441 + $0x60] sm:$0xff]
  %v455 = vld [vmem:[%s441 + $0x68] sm:$0xff]
  %v456 = vld [vmem:[%s441 + $0x70] sm:$0xff]
  %v457 = vld [vmem:[%s441 + $0x78] sm:$0xff]
  %v458 = vld [vmem:[%s441 + $0x80] sm:$0xff]
  %v459 = vld [vmem:[%s441 + $0x88] sm:$0xff]
  %v460 = vld [vmem:[%s441 + $0x90] sm:$0xff]
  %v461 = vld [vmem:[%s441 + $0x98] sm:$0xff]
  %v462 = vld [vmem:[%s441 + $0xa0] sm:$0xff]
  %v463 = vld [vmem:[%s441 + $0xa8] sm:$0xff]
  %v464 = vld [vmem:[%s441 + $0xb0] sm:$0xff]
  %v465 = vld [vmem:[%s441 + $0xb8] sm:$0xff]
  %v466 = vld [vmem:[%s441 + $0xc0] sm:$0xff]
  %v467 = vld [vmem:[%s441 + $0xc8] sm:$0xff]
  %v468 = vld [vmem:[%s441 + $0xd0] sm:$0xff]
  %v469 = vld [vmem:[%s441 + $0xd8] sm:$0xff]
  %v470 = vld [vmem:[%s441 + $0xe0] sm:$0xff]
  %v471 = vld [vmem:[%s441 + $0xe8] sm:$0xff]
  %v472 = vld [vmem:[%s441 + $0xf0] sm:$0xff]
  %v473 = vld [vmem:[%s441 + $0xf8] sm:$0xff]
  %v474 = vld [vmem:[%s441 + $0x100] sm:$0xff]
  %v475 = vld [vmem:[%s441 + $0x108] sm:$0xff]
  %v476 = vld [vmem:[%s441 + $0x110] sm:$0xff]
  %v477 = vld [vmem:[%s441 + $0x118] sm:$0xff]
  %v478 = vld [vmem:[%s441 + $0x120] sm:$0xff]
  %v479 = vld [vmem:[%s441 + $0x128] sm:$0xff]
  %v480 = vld [vmem:[%s441 + $0x130] sm:$0xff]
  %v481 = vld [vmem:[%s441 + $0x138] sm:$0xff]
  %v482 = vld [vmem:[%s441 + $0x140] sm:$0xff]
  %v483 = vld [vmem:[%s441 + $0x148] sm:$0xff]
  %v484 = vld [vmem:[%s441 + $0x150] sm:$0xff]
  %v485 = vld [vmem:[%s441 + $0x158] sm:$0xff]
  %v486 = vld [vmem:[%s441 + $0x160] sm:$0xff]
  %v487 = vld [vmem:[%s441 + $0x168] sm:$0xff]
  %v488 = vld [vmem:[%s441 + $0x170] sm:$0xff]
  %v489 = vld [vmem:[%s441 + $0x178] sm:$0xff]
  %v490 = vld [vmem:[%s441 + $0x180] sm:$0x3]
  %v491 = vld [vmem:[%s441 + $0x188] sm:$0x3]
  %v492 = vld [vmem:[%s441 + $0x190] sm:$0x3]
  %v493 = vld [vmem:[%s441 + $0x198] sm:$0x3]
  %s494 = scalar_lea.vmem %s1, 256
  %v495 = vld [vmem:[%s494] sm:$0xf]
  %v496 = vld [vmem:[%s494 + $0x4] sm:$0xf]
  %v497 = vld [vmem:[%s494 + $0x8] sm:$0xf]
  %v498 = vld [vmem:[%s494 + $0xc] sm:$0xf]
  %v499 = vld [vmem:[%s494 + $0x10] sm:$0xf]
  %v500 = vld [vmem:[%s494 + $0x14] sm:$0xf]
  %v501 = vld [vmem:[%s494 + $0x18] sm:$0xf]
  %v502 = vld [vmem:[%s494 + $0x1c] sm:$0xf]
  %v503 = vld [vmem:[%s494 + $0x20] sm:$0xf]
  %v504 = vld [vmem:[%s494 + $0x24] sm:$0xf]
  %v505 = vld [vmem:[%s494 + $0x28] sm:$0xf]
  %v506 = vld [vmem:[%s494 + $0x2c] sm:$0xf]
  %v507 = vld [vmem:[%s494 + $0x30] sm:$0xf]
  %v508 = vld [vmem:[%s494 + $0x34] sm:$0xf]
  %v509 = vld [vmem:[%s494 + $0x38] sm:$0xf]
  %v510 = vld [vmem:[%s494 + $0x3c] sm:$0xf]
  %v511 = vld [vmem:[%s494 + $0x40] sm:$0xf]
  %v512 = vld [vmem:[%s494 + $0x44] sm:$0xf]
  %v513 = vld [vmem:[%s494 + $0x48] sm:$0xf]
  %v514 = vld [vmem:[%s494 + $0x4c] sm:$0xf]
  %v515 = vld [vmem:[%s494 + $0x50] sm:$0xf]
  %v516 = vld [vmem:[%s494 + $0x54] sm:$0xf]
  %v517 = vld [vmem:[%s494 + $0x58] sm:$0xf]
  %v518 = vld [vmem:[%s494 + $0x5c] sm:$0xf]
  %v519 = vld [vmem:[%s494 + $0x60] sm:$0xf]
  %v520 = vld [vmem:[%s494 + $0x64] sm:$0xf]
  %v521 = vld [vmem:[%s494 + $0x68] sm:$0xf]
  %v522 = vld [vmem:[%s494 + $0x6c] sm:$0xf]
  %v523 = vld [vmem:[%s494 + $0x70] sm:$0xf]
  %v524 = vld [vmem:[%s494 + $0x74] sm:$0xf]
  %v525 = vld [vmem:[%s494 + $0x78] sm:$0xf]
  %v526 = vld [vmem:[%s494 + $0x7c] sm:$0xf]
  %v527 = vld [vmem:[%s494 + $0x80] sm:$0xf]
  %v528 = vld [vmem:[%s494 + $0x84] sm:$0xf]
  %v529 = vld [vmem:[%s494 + $0x88] sm:$0xf]
  %v530 = vld [vmem:[%s494 + $0x8c] sm:$0xf]
  %v531 = vld [vmem:[%s494 + $0x90] sm:$0xf]
  %v532 = vld [vmem:[%s494 + $0x94] sm:$0xf]
  %v533 = vld [vmem:[%s494 + $0x98] sm:$0xf]
  %v534 = vld [vmem:[%s494 + $0x9c] sm:$0xf]
  %v535 = vld [vmem:[%s494 + $0xa0] sm:$0xf]
  %v536 = vld [vmem:[%s494 + $0xa4] sm:$0xf]
  %v537 = vld [vmem:[%s494 + $0xa8] sm:$0xf]
  %v538 = vld [vmem:[%s494 + $0xac] sm:$0xf]
  %v539 = vld [vmem:[%s494 + $0xb0] sm:$0xf]
  %v540 = vld [vmem:[%s494 + $0xb4] sm:$0xf]
  %v541 = vld [vmem:[%s494 + $0xb8] sm:$0xf]
  %v542 = vld [vmem:[%s494 + $0xbc] sm:$0xf]
  %v543 = vld [vmem:[%s494 + $0xc0] sm:$0xf]
  %v544 = vld [vmem:[%s494 + $0xc4] sm:$0xf]
  %v545 = vld [vmem:[%s494 + $0xc8] sm:$0xf]
  %v546 = vld [vmem:[%s494 + $0xcc] sm:$0xf]
  %v547 = vld [vmem:[%s494 + $0xd0] sm:$0xf]
  %v548 = vld [vmem:[%s494 + $0xd4] sm:$0xf]
  %v549 = vld [vmem:[%s494 + $0xd8] sm:$0xf]
  %v550 = vld [vmem:[%s494 + $0xdc] sm:$0xf]
  %v551 = vld [vmem:[%s494 + $0xe0] sm:$0xf]
  %v552 = vld [vmem:[%s494 + $0xe4] sm:$0xf]
  %v553 = vld [vmem:[%s494 + $0xe8] sm:$0xf]
  %v554 = vld [vmem:[%s494 + $0xec] sm:$0xf]
  %v555 = vld [vmem:[%s494 + $0xf0] sm:$0xf]
  %v556 = vld [vmem:[%s494 + $0xf4] sm:$0xf]
  %v557 = vld [vmem:[%s494 + $0xf8] sm:$0xf]
  %v558 = vld [vmem:[%s494 + $0xfc] sm:$0xf]
  %v559 = vunpack.c.l.bf16 %v495
  %v560 = vunpack.c.l.bf16 %v496
  %v561 = vunpack.c.l.bf16 %v497
  %v562 = vunpack.c.l.bf16 %v498
  %v563 = vunpack.c.l.bf16 %v499
  %v564 = vunpack.c.l.bf16 %v500
  %v565 = vunpack.c.l.bf16 %v501
  %v566 = vunpack.c.l.bf16 %v502
  %v567 = vunpack.c.l.bf16 %v503
  %v568 = vunpack.c.l.bf16 %v504
  %v569 = vunpack.c.l.bf16 %v505
  %v570 = vunpack.c.l.bf16 %v506
  %v571 = vunpack.c.l.bf16 %v507
  %v572 = vunpack.c.l.bf16 %v508
  %v573 = vunpack.c.l.bf16 %v509
  %v574 = vunpack.c.l.bf16 %v510
  %v575 = vunpack.c.l.bf16 %v511
  %v576 = vunpack.c.l.bf16 %v512
  %v577 = vunpack.c.l.bf16 %v513
  %v578 = vunpack.c.l.bf16 %v514
  %v579 = vunpack.c.l.bf16 %v515
  %v580 = vunpack.c.l.bf16 %v516
  %v581 = vunpack.c.l.bf16 %v517
  %v582 = vunpack.c.l.bf16 %v518
  %v583 = vunpack.c.l.bf16 %v519
  %v584 = vunpack.c.l.bf16 %v520
  %v585 = vunpack.c.l.bf16 %v521
  %v586 = vunpack.c.l.bf16 %v522
  %v587 = vunpack.c.l.bf16 %v523
  %v588 = vunpack.c.l.bf16 %v524
  %v589 = vunpack.c.l.bf16 %v525
  %v590 = vunpack.c.l.bf16 %v526
  %v591 = vunpack.c.l.bf16 %v527
  %v592 = vunpack.c.l.bf16 %v528
  %v593 = vunpack.c.l.bf16 %v529
  %v594 = vunpack.c.l.bf16 %v530
  %v595 = vunpack.c.l.bf16 %v531
  %v596 = vunpack.c.l.bf16 %v532
  %v597 = vunpack.c.l.bf16 %v533
  %v598 = vunpack.c.l.bf16 %v534
  %v599 = vunpack.c.l.bf16 %v535
  %v600 = vunpack.c.l.bf16 %v536
  %v601 = vunpack.c.l.bf16 %v537
  %v602 = vunpack.c.l.bf16 %v538
  %v603 = vunpack.c.l.bf16 %v539
  %v604 = vunpack.c.l.bf16 %v540
  %v605 = vunpack.c.l.bf16 %v541
  %v606 = vunpack.c.l.bf16 %v542
  %v607 = vunpack.c.l.bf16 %v543
  %v608 = vunpack.c.l.bf16 %v544
  %v609 = vunpack.c.l.bf16 %v545
  %v610 = vunpack.c.l.bf16 %v546
  %v611 = vunpack.c.l.bf16 %v547
  %v612 = vunpack.c.l.bf16 %v548
  %v613 = vunpack.c.l.bf16 %v549
  %v614 = vunpack.c.l.bf16 %v550
  %v615 = vunpack.c.l.bf16 %v551
  %v616 = vunpack.c.l.bf16 %v552
  %v617 = vunpack.c.l.bf16 %v553
  %v618 = vunpack.c.l.bf16 %v554
  %v619 = vunpack.c.l.bf16 %v555
  %v620 = vunpack.c.l.bf16 %v556
  %v621 = vunpack.c.l.bf16 %v557
  %v622 = vunpack.c.l.bf16 %v558
  %v623 = vld [vmem:[%s2] sm:$0x1]
  %v625 = vperm.slane %v623, 0
  %627 = vmatpush.msra.mxu0 %v574
  %628 = vmatpush.msra.mxu0 %v573
  %629 = vmatpush.msra.mxu0 %v572
  %630 = vmatpush.msra.mxu0 %v571
  %631 = vmatpush.msra.mxu0 %v570
  %632 = vmatpush.msra.mxu0 %v569
  %633 = vmatpush.msra.mxu0 %v568
  %634 = vmatpush.msra.mxu0 %v567
  %635 = vmatpush.msra.mxu0 %v566
  %636 = vmatpush.msra.mxu0 %v565
  %637 = vmatpush.msra.mxu0 %v564
  %638 = vmatpush.msra.mxu0 %v563
  %639 = vmatpush.msra.mxu0 %v562
  %640 = vmatpush.msra.mxu0 %v561
  %641 = vmatpush.msra.mxu0 %v560
  %642 = vmatpush.msra.mxu0 %v559
  %643 = vmatmul.f32.gmra.mxu0 %v442
  %v644 = vpop.f32.mrf.mxu0
  %v645 = vadd.f32 %v625, %v644
  %646 = vmatmul.f32.gmra.mxu0 %v446
  %v647 = vpop.f32.mrf.mxu0
  %v648 = vadd.f32 %v625, %v647
  %649 = vmatmul.f32.gmra.mxu0 %v450
  %v650 = vpop.f32.mrf.mxu0
  %v651 = vadd.f32 %v625, %v650
  %652 = vmatmul.f32.gmra.mxu0 %v454
  %v653 = vpop.f32.mrf.mxu0
  %v654 = vadd.f32 %v625, %v653
  %655 = vmatmul.f32.gmra.mxu0 %v458
  %v656 = vpop.f32.mrf.mxu0
  %v657 = vadd.f32 %v625, %v656
  %658 = vmatmul.f32.gmra.mxu0 %v462
  %v659 = vpop.f32.mrf.mxu0
  %v660 = vadd.f32 %v625, %v659
  %661 = vmatmul.f32.gmra.mxu0 %v466
  %v662 = vpop.f32.mrf.mxu0
  %v663 = vadd.f32 %v625, %v662
  %664 = vmatmul.f32.gmra.mxu0 %v470
  %v665 = vpop.f32.mrf.mxu0
  %v666 = vadd.f32 %v625, %v665
  %667 = vmatmul.f32.gmra.mxu0 %v474
  %v668 = vpop.f32.mrf.mxu0
  %v669 = vadd.f32 %v625, %v668
  %670 = vmatmul.f32.gmra.mxu0 %v478
  %v671 = vpop.f32.mrf.mxu0
  %v672 = vadd.f32 %v625, %v671
  %673 = vmatmul.f32.gmra.mxu0 %v482
  %v674 = vpop.f32.mrf.mxu0
  %v675 = vadd.f32 %v625, %v674
  %676 = vmatmul.f32.gmra.mxu0 %v486
  %v677 = vpop.f32.mrf.mxu0
  %v678 = vadd.f32 %v625, %v677
  %679 = vmatmul.f32.gmra.mxu0 %v490
  %v680 = vpop.f32.mrf.mxu0
  %v681 = vadd.f32 %v625, %v680
  %682 = vdwg.mxu0
  %683 = vmatpush.msra.mxu0 %v590
  %684 = vmatpush.msra.mxu0 %v589
  %685 = vmatpush.msra.mxu0 %v588
  %686 = vmatpush.msra.mxu0 %v587
  %687 = vmatpush.msra.mxu0 %v586
  %688 = vmatpush.msra.mxu0 %v585
  %689 = vmatpush.msra.mxu0 %v584
  %690 = vmatpush.msra.mxu0 %v583
  %691 = vmatpush.msra.mxu0 %v582
  %692 = vmatpush.msra.mxu0 %v581
  %693 = vmatpush.msra.mxu0 %v580
  %694 = vmatpush.msra.mxu0 %v579
  %695 = vmatpush.msra.mxu0 %v578
  %696 = vmatpush.msra.mxu0 %v577
  %697 = vmatpush.msra.mxu0 %v576
  %698 = vmatpush.msra.mxu0 %v575
  %699 = vmatmul.f32.gmra.mxu0 %v443
  %v700 = vpop.f32.mrf.mxu0
  %v701 = vadd.f32 %v645, %v700
  %702 = vmatmul.f32.gmra.mxu0 %v447
  %v703 = vpop.f32.mrf.mxu0
  %v704 = vadd.f32 %v648, %v703
  %705 = vmatmul.f32.gmra.mxu0 %v451
  %v706 = vpop.f32.mrf.mxu0
  %v707 = vadd.f32 %v651, %v706
  %708 = vmatmul.f32.gmra.mxu0 %v455
  %v709 = vpop.f32.mrf.mxu0
  %v710 = vadd.f32 %v654, %v709
  %711 = vmatmul.f32.gmra.mxu0 %v459
  %v712 = vpop.f32.mrf.mxu0
  %v713 = vadd.f32 %v657, %v712
  %714 = vmatmul.f32.gmra.mxu0 %v463
  %v715 = vpop.f32.mrf.mxu0
  %v716 = vadd.f32 %v660, %v715
  %717 = vmatmul.f32.gmra.mxu0 %v467
  %v718 = vpop.f32.mrf.mxu0
  %v719 = vadd.f32 %v663, %v718
  %720 = vmatmul.f32.gmra.mxu0 %v471
  %v721 = vpop.f32.mrf.mxu0
  %v722 = vadd.f32 %v666, %v721
  %723 = vmatmul.f32.gmra.mxu0 %v475
  %v724 = vpop.f32.mrf.mxu0
  %v725 = vadd.f32 %v669, %v724
  %726 = vmatmul.f32.gmra.mxu0 %v479
  %v727 = vpop.f32.mrf.mxu0
  %v728 = vadd.f32 %v672, %v727
  %729 = vmatmul.f32.gmra.mxu0 %v483
  %v730 = vpop.f32.mrf.mxu0
  %v731 = vadd.f32 %v675, %v730
  %732 = vmatmul.f32.gmra.mxu0 %v487
  %v733 = vpop.f32.mrf.mxu0
  %v734 = vadd.f32 %v678, %v733
  %735 = vmatmul.f32.gmra.mxu0 %v491
  %v736 = vpop.f32.mrf.mxu0
  %v737 = vadd.f32 %v681, %v736
  %738 = vdwg.mxu0
  %739 = vmatpush.msra.mxu0 %v606
  %740 = vmatpush.msra.mxu0 %v605
  %741 = vmatpush.msra.mxu0 %v604
  %742 = vmatpush.msra.mxu0 %v603
  %743 = vmatpush.msra.mxu0 %v602
  %744 = vmatpush.msra.mxu0 %v601
  %745 = vmatpush.msra.mxu0 %v600
  %746 = vmatpush.msra.mxu0 %v599
  %747 = vmatpush.msra.mxu0 %v598
  %748 = vmatpush.msra.mxu0 %v597
  %749 = vmatpush.msra.mxu0 %v596
  %750 = vmatpush.msra.mxu0 %v595
  %751 = vmatpush.msra.mxu0 %v594
  %752 = vmatpush.msra.mxu0 %v593
  %753 = vmatpush.msra.mxu0 %v592
  %754 = vmatpush.msra.mxu0 %v591
  %755 = vmatmul.f32.gmra.mxu0 %v444
  %v756 = vpop.f32.mrf.mxu0
  %v757 = vadd.f32 %v701, %v756
  %758 = vmatmul.f32.gmra.mxu0 %v448
  %v759 = vpop.f32.mrf.mxu0
  %v760 = vadd.f32 %v704, %v759
  %761 = vmatmul.f32.gmra.mxu0 %v452
  %v762 = vpop.f32.mrf.mxu0
  %v763 = vadd.f32 %v707, %v762
  %764 = vmatmul.f32.gmra.mxu0 %v456
  %v765 = vpop.f32.mrf.mxu0
  %v766 = vadd.f32 %v710, %v765
  %767 = vmatmul.f32.gmra.mxu0 %v460
  %v768 = vpop.f32.mrf.mxu0
  %v769 = vadd.f32 %v713, %v768
  %770 = vmatmul.f32.gmra.mxu0 %v464
  %v771 = vpop.f32.mrf.mxu0
  %v772 = vadd.f32 %v716, %v771
  %773 = vmatmul.f32.gmra.mxu0 %v468
  %v774 = vpop.f32.mrf.mxu0
  %v775 = vadd.f32 %v719, %v774
  %776 = vmatmul.f32.gmra.mxu0 %v472
  %v777 = vpop.f32.mrf.mxu0
  %v778 = vadd.f32 %v722, %v777
  %779 = vmatmul.f32.gmra.mxu0 %v476
  %v780 = vpop.f32.mrf.mxu0
  %v781 = vadd.f32 %v725, %v780
  %782 = vmatmul.f32.gmra.mxu0 %v480
  %v783 = vpop.f32.mrf.mxu0
  %v784 = vadd.f32 %v728, %v783
  %785 = vmatmul.f32.gmra.mxu0 %v484
  %v786 = vpop.f32.mrf.mxu0
  %v787 = vadd.f32 %v731, %v786
  %788 = vmatmul.f32.gmra.mxu0 %v488
  %v789 = vpop.f32.mrf.mxu0
  %v790 = vadd.f32 %v734, %v789
  %791 = vmatmul.f32.gmra.mxu0 %v492
  %v792 = vpop.f32.mrf.mxu0
  %v793 = vadd.f32 %v737, %v792
  %794 = vdwg.mxu0
  %795 = vmatpush.msra.mxu0 %v622
  %796 = vmatpush.msra.mxu0 %v621
  %797 = vmatpush.msra.mxu0 %v620
  %798 = vmatpush.msra.mxu0 %v619
  %799 = vmatpush.msra.mxu0 %v618
  %800 = vmatpush.msra.mxu0 %v617
  %801 = vmatpush.msra.mxu0 %v616
  %802 = vmatpush.msra.mxu0 %v615
  %803 = vmatpush.msra.mxu0 %v614
  %804 = vmatpush.msra.mxu0 %v613
  %805 = vmatpush.msra.mxu0 %v612
  %806 = vmatpush.msra.mxu0 %v611
  %807 = vmatpush.msra.mxu0 %v610
  %808 = vmatpush.msra.mxu0 %v609
  %809 = vmatpush.msra.mxu0 %v608
  %810 = vmatpush.msra.mxu0 %v607
  %811 = vmatmul.f32.gmra.mxu0 %v445
  %v812 = vpop.f32.mrf.mxu0
  %v813 = vadd.f32 %v757, %v812
  %814 = vmatmul.f32.gmra.mxu0 %v449
  %v815 = vpop.f32.mrf.mxu0
  %v816 = vadd.f32 %v760, %v815
  %817 = vmatmul.f32.gmra.mxu0 %v453
  %v818 = vpop.f32.mrf.mxu0
  %v819 = vadd.f32 %v763, %v818
  %820 = vmatmul.f32.gmra.mxu0 %v457
  %v821 = vpop.f32.mrf.mxu0
  %v822 = vadd.f32 %v766, %v821
  %823 = vmatmul.f32.gmra.mxu0 %v461
  %v824 = vpop.f32.mrf.mxu0
  %v825 = vadd.f32 %v769, %v824
  %826 = vmatmul.f32.gmra.mxu0 %v465
  %v827 = vpop.f32.mrf.mxu0
  %v828 = vadd.f32 %v772, %v827
  %829 = vmatmul.f32.gmra.mxu0 %v469
  %v830 = vpop.f32.mrf.mxu0
  %v831 = vadd.f32 %v775, %v830
  %832 = vmatmul.f32.gmra.mxu0 %v473
  %v833 = vpop.f32.mrf.mxu0
  %v834 = vadd.f32 %v778, %v833
  %835 = vmatmul.f32.gmra.mxu0 %v477
  %v836 = vpop.f32.mrf.mxu0
  %v837 = vadd.f32 %v781, %v836
  %838 = vmatmul.f32.gmra.mxu0 %v481
  %v839 = vpop.f32.mrf.mxu0
  %v840 = vadd.f32 %v784, %v839
  %841 = vmatmul.f32.gmra.mxu0 %v485
  %v842 = vpop.f32.mrf.mxu0
  %v843 = vadd.f32 %v787, %v842
  %844 = vmatmul.f32.gmra.mxu0 %v489
  %v845 = vpop.f32.mrf.mxu0
  %v846 = vadd.f32 %v790, %v845
  %847 = vmatmul.f32.gmra.mxu0 %v493
  %v848 = vpop.f32.mrf.mxu0
  %v849 = vadd.f32 %v793, %v848
  %850 = vdwg.mxu0
  %s851 = scalar_lea.vmem %s5, 104
  %852 = vst [vmem:[%s851] sm:$0xff] %v813
  %853 = vst [vmem:[%s851 + $0x8] sm:$0xff] %v816
  %854 = vst [vmem:[%s851 + $0x10] sm:$0xff] %v819
  %855 = vst [vmem:[%s851 + $0x18] sm:$0xff] %v822
  %856 = vst [vmem:[%s851 + $0x20] sm:$0xff] %v825
  %857 = vst [vmem:[%s851 + $0x28] sm:$0xff] %v828
  %858 = vst [vmem:[%s851 + $0x30] sm:$0xff] %v831
  %859 = vst [vmem:[%s851 + $0x38] sm:$0xff] %v834
  %860 = vst [vmem:[%s851 + $0x40] sm:$0xff] %v837
  %861 = vst [vmem:[%s851 + $0x48] sm:$0xff] %v840
  %862 = vst [vmem:[%s851 + $0x50] sm:$0xff] %v843
  %863 = vst [vmem:[%s851 + $0x58] sm:$0xff] %v846
  %864 = vst [vmem:[%s851 + $0x60] sm:$0x3] %v849
  %s865 = scalar_lea.vmem %s0, 832
  %v866 = vld [vmem:[%s865] sm:$0xff]
  %v867 = vld [vmem:[%s865 + $0x8] sm:$0xff]
  %v868 = vld [vmem:[%s865 + $0x10] sm:$0xff]
  %v869 = vld [vmem:[%s865 + $0x18] sm:$0xff]
  %v870 = vld [vmem:[%s865 + $0x20] sm:$0xff]
  %v871 = vld [vmem:[%s865 + $0x28] sm:$0xff]
  %v872 = vld [vmem:[%s865 + $0x30] sm:$0xff]
  %v873 = vld [vmem:[%s865 + $0x38] sm:$0xff]
  %v874 = vld [vmem:[%s865 + $0x40] sm:$0xff]
  %v875 = vld [vmem:[%s865 + $0x48] sm:$0xff]
  %v876 = vld [vmem:[%s865 + $0x50] sm:$0xff]
  %v877 = vld [vmem:[%s865 + $0x58] sm:$0xff]
  %v878 = vld [vmem:[%s865 + $0x60] sm:$0xff]
  %v879 = vld [vmem:[%s865 + $0x68] sm:$0xff]
  %v880 = vld [vmem:[%s865 + $0x70] sm:$0xff]
  %v881 = vld [vmem:[%s865 + $0x78] sm:$0xff]
  %v882 = vld [vmem:[%s865 + $0x80] sm:$0xff]
  %v883 = vld [vmem:[%s865 + $0x88] sm:$0xff]
  %v884 = vld [vmem:[%s865 + $0x90] sm:$0xff]
  %v885 = vld [vmem:[%s865 + $0x98] sm:$0xff]
  %v886 = vld [vmem:[%s865 + $0xa0] sm:$0xff]
  %v887 = vld [vmem:[%s865 + $0xa8] sm:$0xff]
  %v888 = vld [vmem:[%s865 + $0xb0] sm:$0xff]
  %v889 = vld [vmem:[%s865 + $0xb8] sm:$0xff]
  %v890 = vld [vmem:[%s865 + $0xc0] sm:$0xff]
  %v891 = vld [vmem:[%s865 + $0xc8] sm:$0xff]
  %v892 = vld [vmem:[%s865 + $0xd0] sm:$0xff]
  %v893 = vld [vmem:[%s865 + $0xd8] sm:$0xff]
  %v894 = vld [vmem:[%s865 + $0xe0] sm:$0xff]
  %v895 = vld [vmem:[%s865 + $0xe8] sm:$0xff]
  %v896 = vld [vmem:[%s865 + $0xf0] sm:$0xff]
  %v897 = vld [vmem:[%s865 + $0xf8] sm:$0xff]
  %v898 = vld [vmem:[%s865 + $0x100] sm:$0xff]
  %v899 = vld [vmem:[%s865 + $0x108] sm:$0xff]
  %v900 = vld [vmem:[%s865 + $0x110] sm:$0xff]
  %v901 = vld [vmem:[%s865 + $0x118] sm:$0xff]
  %v902 = vld [vmem:[%s865 + $0x120] sm:$0xff]
  %v903 = vld [vmem:[%s865 + $0x128] sm:$0xff]
  %v904 = vld [vmem:[%s865 + $0x130] sm:$0xff]
  %v905 = vld [vmem:[%s865 + $0x138] sm:$0xff]
  %v906 = vld [vmem:[%s865 + $0x140] sm:$0xff]
  %v907 = vld [vmem:[%s865 + $0x148] sm:$0xff]
  %v908 = vld [vmem:[%s865 + $0x150] sm:$0xff]
  %v909 = vld [vmem:[%s865 + $0x158] sm:$0xff]
  %v910 = vld [vmem:[%s865 + $0x160] sm:$0xff]
  %v911 = vld [vmem:[%s865 + $0x168] sm:$0xff]
  %v912 = vld [vmem:[%s865 + $0x170] sm:$0xff]
  %v913 = vld [vmem:[%s865 + $0x178] sm:$0xff]
  %v914 = vld [vmem:[%s865 + $0x180] sm:$0x3]
  %v915 = vld [vmem:[%s865 + $0x188] sm:$0x3]
  %v916 = vld [vmem:[%s865 + $0x190] sm:$0x3]
  %v917 = vld [vmem:[%s865 + $0x198] sm:$0x3]
  %s918 = scalar_lea.vmem %s1, 512
  %v919 = vld [vmem:[%s918] sm:$0xf]
  %v920 = vld [vmem:[%s918 + $0x4] sm:$0xf]
  %v921 = vld [vmem:[%s918 + $0x8] sm:$0xf]
  %v922 = vld [vmem:[%s918 + $0xc] sm:$0xf]
  %v923 = vld [vmem:[%s918 + $0x10] sm:$0xf]
  %v924 = vld [vmem:[%s918 + $0x14] sm:$0xf]
  %v925 = vld [vmem:[%s918 + $0x18] sm:$0xf]
  %v926 = vld [vmem:[%s918 + $0x1c] sm:$0xf]
  %v927 = vld [vmem:[%s918 + $0x20] sm:$0xf]
  %v928 = vld [vmem:[%s918 + $0x24] sm:$0xf]
  %v929 = vld [vmem:[%s918 + $0x28] sm:$0xf]
  %v930 = vld [vmem:[%s918 + $0x2c] sm:$0xf]
  %v931 = vld [vmem:[%s918 + $0x30] sm:$0xf]
  %v932 = vld [vmem:[%s918 + $0x34] sm:$0xf]
  %v933 = vld [vmem:[%s918 + $0x38] sm:$0xf]
  %v934 = vld [vmem:[%s918 + $0x3c] sm:$0xf]
  %v935 = vld [vmem:[%s918 + $0x40] sm:$0xf]
  %v936 = vld [vmem:[%s918 + $0x44] sm:$0xf]
  %v937 = vld [vmem:[%s918 + $0x48] sm:$0xf]
  %v938 = vld [vmem:[%s918 + $0x4c] sm:$0xf]
  %v939 = vld [vmem:[%s918 + $0x50] sm:$0xf]
  %v940 = vld [vmem:[%s918 + $0x54] sm:$0xf]
  %v941 = vld [vmem:[%s918 + $0x58] sm:$0xf]
  %v942 = vld [vmem:[%s918 + $0x5c] sm:$0xf]
  %v943 = vld [vmem:[%s918 + $0x60] sm:$0xf]
  %v944 = vld [vmem:[%s918 + $0x64] sm:$0xf]
  %v945 = vld [vmem:[%s918 + $0x68] sm:$0xf]
  %v946 = vld [vmem:[%s918 + $0x6c] sm:$0xf]
  %v947 = vld [vmem:[%s918 + $0x70] sm:$0xf]
  %v948 = vld [vmem:[%s918 + $0x74] sm:$0xf]
  %v949 = vld [vmem:[%s918 + $0x78] sm:$0xf]
  %v950 = vld [vmem:[%s918 + $0x7c] sm:$0xf]
  %v951 = vld [vmem:[%s918 + $0x80] sm:$0xf]
  %v952 = vld [vmem:[%s918 + $0x84] sm:$0xf]
  %v953 = vld [vmem:[%s918 + $0x88] sm:$0xf]
  %v954 = vld [vmem:[%s918 + $0x8c] sm:$0xf]
  %v955 = vld [vmem:[%s918 + $0x90] sm:$0xf]
  %v956 = vld [vmem:[%s918 + $0x94] sm:$0xf]
  %v957 = vld [vmem:[%s918 + $0x98] sm:$0xf]
  %v958 = vld [vmem:[%s918 + $0x9c] sm:$0xf]
  %v959 = vld [vmem:[%s918 + $0xa0] sm:$0xf]
  %v960 = vld [vmem:[%s918 + $0xa4] sm:$0xf]
  %v961 = vld [vmem:[%s918 + $0xa8] sm:$0xf]
  %v962 = vld [vmem:[%s918 + $0xac] sm:$0xf]
  %v963 = vld [vmem:[%s918 + $0xb0] sm:$0xf]
  %v964 = vld [vmem:[%s918 + $0xb4] sm:$0xf]
  %v965 = vld [vmem:[%s918 + $0xb8] sm:$0xf]
  %v966 = vld [vmem:[%s918 + $0xbc] sm:$0xf]
  %v967 = vld [vmem:[%s918 + $0xc0] sm:$0xf]
  %v968 = vld [vmem:[%s918 + $0xc4] sm:$0xf]
  %v969 = vld [vmem:[%s918 + $0xc8] sm:$0xf]
  %v970 = vld [vmem:[%s918 + $0xcc] sm:$0xf]
  %v971 = vld [vmem:[%s918 + $0xd0] sm:$0xf]
  %v972 = vld [vmem:[%s918 + $0xd4] sm:$0xf]
  %v973 = vld [vmem:[%s918 + $0xd8] sm:$0xf]
  %v974 = vld [vmem:[%s918 + $0xdc] sm:$0xf]
  %v975 = vld [vmem:[%s918 + $0xe0] sm:$0xf]
  %v976 = vld [vmem:[%s918 + $0xe4] sm:$0xf]
  %v977 = vld [vmem:[%s918 + $0xe8] sm:$0xf]
  %v978 = vld [vmem:[%s918 + $0xec] sm:$0xf]
  %v979 = vld [vmem:[%s918 + $0xf0] sm:$0xf]
  %v980 = vld [vmem:[%s918 + $0xf4] sm:$0xf]
  %v981 = vld [vmem:[%s918 + $0xf8] sm:$0xf]
  %v982 = vld [vmem:[%s918 + $0xfc] sm:$0xf]
  %v983 = vunpack.c.l.bf16 %v919
  %v984 = vunpack.c.l.bf16 %v920
  %v985 = vunpack.c.l.bf16 %v921
  %v986 = vunpack.c.l.bf16 %v922
  %v987 = vunpack.c.l.bf16 %v923
  %v988 = vunpack.c.l.bf16 %v924
  %v989 = vunpack.c.l.bf16 %v925
  %v990 = vunpack.c.l.bf16 %v926
  %v991 = vunpack.c.l.bf16 %v927
  %v992 = vunpack.c.l.bf16 %v928
  %v993 = vunpack.c.l.bf16 %v929
  %v994 = vunpack.c.l.bf16 %v930
  %v995 = vunpack.c.l.bf16 %v931
  %v996 = vunpack.c.l.bf16 %v932
  %v997 = vunpack.c.l.bf16 %v933
  %v998 = vunpack.c.l.bf16 %v934
  %v999 = vunpack.c.l.bf16 %v935
  %v1000 = vunpack.c.l.bf16 %v936
  %v1001 = vunpack.c.l.bf16 %v937
  %v1002 = vunpack.c.l.bf16 %v938
  %v1003 = vunpack.c.l.bf16 %v939
  %v1004 = vunpack.c.l.bf16 %v940
  %v1005 = vunpack.c.l.bf16 %v941
  %v1006 = vunpack.c.l.bf16 %v942
  %v1007 = vunpack.c.l.bf16 %v943
  %v1008 = vunpack.c.l.bf16 %v944
  %v1009 = vunpack.c.l.bf16 %v945
  %v1010 = vunpack.c.l.bf16 %v946
  %v1011 = vunpack.c.l.bf16 %v947
  %v1012 = vunpack.c.l.bf16 %v948
  %v1013 = vunpack.c.l.bf16 %v949
  %v1014 = vunpack.c.l.bf16 %v950
  %v1015 = vunpack.c.l.bf16 %v951
  %v1016 = vunpack.c.l.bf16 %v952
  %v1017 = vunpack.c.l.bf16 %v953
  %v1018 = vunpack.c.l.bf16 %v954
  %v1019 = vunpack.c.l.bf16 %v955
  %v1020 = vunpack.c.l.bf16 %v956
  %v1021 = vunpack.c.l.bf16 %v957
  %v1022 = vunpack.c.l.bf16 %v958
  %v1023 = vunpack.c.l.bf16 %v959
  %v1024 = vunpack.c.l.bf16 %v960
  %v1025 = vunpack.c.l.bf16 %v961
  %v1026 = vunpack.c.l.bf16 %v962
  %v1027 = vunpack.c.l.bf16 %v963
  %v1028 = vunpack.c.l.bf16 %v964
  %v1029 = vunpack.c.l.bf16 %v965
  %v1030 = vunpack.c.l.bf16 %v966
  %v1031 = vunpack.c.l.bf16 %v967
  %v1032 = vunpack.c.l.bf16 %v968
  %v1033 = vunpack.c.l.bf16 %v969
  %v1034 = vunpack.c.l.bf16 %v970
  %v1035 = vunpack.c.l.bf16 %v971
  %v1036 = vunpack.c.l.bf16 %v972
  %v1037 = vunpack.c.l.bf16 %v973
  %v1038 = vunpack.c.l.bf16 %v974
  %v1039 = vunpack.c.l.bf16 %v975
  %v1040 = vunpack.c.l.bf16 %v976
  %v1041 = vunpack.c.l.bf16 %v977
  %v1042 = vunpack.c.l.bf16 %v978
  %v1043 = vunpack.c.l.bf16 %v979
  %v1044 = vunpack.c.l.bf16 %v980
  %v1045 = vunpack.c.l.bf16 %v981
  %v1046 = vunpack.c.l.bf16 %v982
  %v1047 = vld [vmem:[%s2] sm:$0x1]
  %v1049 = vperm.slane %v1047, 0
  %1051 = vmatpush.msra.mxu0 %v998
  %1052 = vmatpush.msra.mxu0 %v997
  %1053 = vmatpush.msra.mxu0 %v996
  %1054 = vmatpush.msra.mxu0 %v995
  %1055 = vmatpush.msra.mxu0 %v994
  %1056 = vmatpush.msra.mxu0 %v993
  %1057 = vmatpush.msra.mxu0 %v992
  %1058 = vmatpush.msra.mxu0 %v991
  %1059 = vmatpush.msra.mxu0 %v990
  %1060 = vmatpush.msra.mxu0 %v989
  %1061 = vmatpush.msra.mxu0 %v988
  %1062 = vmatpush.msra.mxu0 %v987
  %1063 = vmatpush.msra.mxu0 %v986
  %1064 = vmatpush.msra.mxu0 %v985
  %1065 = vmatpush.msra.mxu0 %v984
  %1066 = vmatpush.msra.mxu0 %v983
  %1067 = vmatmul.f32.gmra.mxu0 %v866
  %v1068 = vpop.f32.mrf.mxu0
  %v1069 = vadd.f32 %v1049, %v1068
  %1070 = vmatmul.f32.gmra.mxu0 %v870
  %v1071 = vpop.f32.mrf.mxu0
  %v1072 = vadd.f32 %v1049, %v1071
  %1073 = vmatmul.f32.gmra.mxu0 %v874
  %v1074 = vpop.f32.mrf.mxu0
  %v1075 = vadd.f32 %v1049, %v1074
  %1076 = vmatmul.f32.gmra.mxu0 %v878
  %v1077 = vpop.f32.mrf.mxu0
  %v1078 = vadd.f32 %v1049, %v1077
  %1079 = vmatmul.f32.gmra.mxu0 %v882
  %v1080 = vpop.f32.mrf.mxu0
  %v1081 = vadd.f32 %v1049, %v1080
  %1082 = vmatmul.f32.gmra.mxu0 %v886
  %v1083 = vpop.f32.mrf.mxu0
  %v1084 = vadd.f32 %v1049, %v1083
  %1085 = vmatmul.f32.gmra.mxu0 %v890
  %v1086 = vpop.f32.mrf.mxu0
  %v1087 = vadd.f32 %v1049, %v1086
  %1088 = vmatmul.f32.gmra.mxu0 %v894
  %v1089 = vpop.f32.mrf.mxu0
  %v1090 = vadd.f32 %v1049, %v1089
  %1091 = vmatmul.f32.gmra.mxu0 %v898
  %v1092 = vpop.f32.mrf.mxu0
  %v1093 = vadd.f32 %v1049, %v1092
  %1094 = vmatmul.f32.gmra.mxu0 %v902
  %v1095 = vpop.f32.mrf.mxu0
  %v1096 = vadd.f32 %v1049, %v1095
  %1097 = vmatmul.f32.gmra.mxu0 %v906
  %v1098 = vpop.f32.mrf.mxu0
  %v1099 = vadd.f32 %v1049, %v1098
  %1100 = vmatmul.f32.gmra.mxu0 %v910
  %v1101 = vpop.f32.mrf.mxu0
  %v1102 = vadd.f32 %v1049, %v1101
  %1103 = vmatmul.f32.gmra.mxu0 %v914
  %v1104 = vpop.f32.mrf.mxu0
  %v1105 = vadd.f32 %v1049, %v1104
  %1106 = vdwg.mxu0
  %1107 = vmatpush.msra.mxu0 %v1014
  %1108 = vmatpush.msra.mxu0 %v1013
  %1109 = vmatpush.msra.mxu0 %v1012
  %1110 = vmatpush.msra.mxu0 %v1011
  %1111 = vmatpush.msra.mxu0 %v1010
  %1112 = vmatpush.msra.mxu0 %v1009
  %1113 = vmatpush.msra.mxu0 %v1008
  %1114 = vmatpush.msra.mxu0 %v1007
  %1115 = vmatpush.msra.mxu0 %v1006
  %1116 = vmatpush.msra.mxu0 %v1005
  %1117 = vmatpush.msra.mxu0 %v1004
  %1118 = vmatpush.msra.mxu0 %v1003
  %1119 = vmatpush.msra.mxu0 %v1002
  %1120 = vmatpush.msra.mxu0 %v1001
  %1121 = vmatpush.msra.mxu0 %v1000
  %1122 = vmatpush.msra.mxu0 %v999
  %1123 = vmatmul.f32.gmra.mxu0 %v867
  %v1124 = vpop.f32.mrf.mxu0
  %v1125 = vadd.f32 %v1069, %v1124
  %1126 = vmatmul.f32.gmra.mxu0 %v871
  %v1127 = vpop.f32.mrf.mxu0
  %v1128 = vadd.f32 %v1072, %v1127
  %1129 = vmatmul.f32.gmra.mxu0 %v875
  %v1130 = vpop.f32.mrf.mxu0
  %v1131 = vadd.f32 %v1075, %v1130
  %1132 = vmatmul.f32.gmra.mxu0 %v879
  %v1133 = vpop.f32.mrf.mxu0
  %v1134 = vadd.f32 %v1078, %v1133
  %1135 = vmatmul.f32.gmra.mxu0 %v883
  %v1136 = vpop.f32.mrf.mxu0
  %v1137 = vadd.f32 %v1081, %v1136
  %1138 = vmatmul.f32.gmra.mxu0 %v887
  %v1139 = vpop.f32.mrf.mxu0
  %v1140 = vadd.f32 %v1084, %v1139
  %1141 = vmatmul.f32.gmra.mxu0 %v891
  %v1142 = vpop.f32.mrf.mxu0
  %v1143 = vadd.f32 %v1087, %v1142
  %1144 = vmatmul.f32.gmra.mxu0 %v895
  %v1145 = vpop.f32.mrf.mxu0
  %v1146 = vadd.f32 %v1090, %v1145
  %1147 = vmatmul.f32.gmra.mxu0 %v899
  %v1148 = vpop.f32.mrf.mxu0
  %v1149 = vadd.f32 %v1093, %v1148
  %1150 = vmatmul.f32.gmra.mxu0 %v903
  %v1151 = vpop.f32.mrf.mxu0
  %v1152 = vadd.f32 %v1096, %v1151
  %1153 = vmatmul.f32.gmra.mxu0 %v907
  %v1154 = vpop.f32.mrf.mxu0
  %v1155 = vadd.f32 %v1099, %v1154
  %1156 = vmatmul.f32.gmra.mxu0 %v911
  %v1157 = vpop.f32.mrf.mxu0
  %v1158 = vadd.f32 %v1102, %v1157
  %1159 = vmatmul.f32.gmra.mxu0 %v915
  %v1160 = vpop.f32.mrf.mxu0
  %v1161 = vadd.f32 %v1105, %v1160
  %1162 = vdwg.mxu0
  %1163 = vmatpush.msra.mxu0 %v1030
  %1164 = vmatpush.msra.mxu0 %v1029
  %1165 = vmatpush.msra.mxu0 %v1028
  %1166 = vmatpush.msra.mxu0 %v1027
  %1167 = vmatpush.msra.mxu0 %v1026
  %1168 = vmatpush.msra.mxu0 %v1025
  %1169 = vmatpush.msra.mxu0 %v1024
  %1170 = vmatpush.msra.mxu0 %v1023
  %1171 = vmatpush.msra.mxu0 %v1022
  %1172 = vmatpush.msra.mxu0 %v1021
  %1173 = vmatpush.msra.mxu0 %v1020
  %1174 = vmatpush.msra.mxu0 %v1019
  %1175 = vmatpush.msra.mxu0 %v1018
  %1176 = vmatpush.msra.mxu0 %v1017
  %1177 = vmatpush.msra.mxu0 %v1016
  %1178 = vmatpush.msra.mxu0 %v1015
  %1179 = vmatmul.f32.gmra.mxu0 %v868
  %v1180 = vpop.f32.mrf.mxu0
  %v1181 = vadd.f32 %v1125, %v1180
  %1182 = vmatmul.f32.gmra.mxu0 %v872
  %v1183 = vpop.f32.mrf.mxu0
  %v1184 = vadd.f32 %v1128, %v1183
  %1185 = vmatmul.f32.gmra.mxu0 %v876
  %v1186 = vpop.f32.mrf.mxu0
  %v1187 = vadd.f32 %v1131, %v1186
  %1188 = vmatmul.f32.gmra.mxu0 %v880
  %v1189 = vpop.f32.mrf.mxu0
  %v1190 = vadd.f32 %v1134, %v1189
  %1191 = vmatmul.f32.gmra.mxu0 %v884
  %v1192 = vpop.f32.mrf.mxu0
  %v1193 = vadd.f32 %v1137, %v1192
  %1194 = vmatmul.f32.gmra.mxu0 %v888
  %v1195 = vpop.f32.mrf.mxu0
  %v1196 = vadd.f32 %v1140, %v1195
  %1197 = vmatmul.f32.gmra.mxu0 %v892
  %v1198 = vpop.f32.mrf.mxu0
  %v1199 = vadd.f32 %v1143, %v1198
  %1200 = vmatmul.f32.gmra.mxu0 %v896
  %v1201 = vpop.f32.mrf.mxu0
  %v1202 = vadd.f32 %v1146, %v1201
  %1203 = vmatmul.f32.gmra.mxu0 %v900
  %v1204 = vpop.f32.mrf.mxu0
  %v1205 = vadd.f32 %v1149, %v1204
  %1206 = vmatmul.f32.gmra.mxu0 %v904
  %v1207 = vpop.f32.mrf.mxu0
  %v1208 = vadd.f32 %v1152, %v1207
  %1209 = vmatmul.f32.gmra.mxu0 %v908
  %v1210 = vpop.f32.mrf.mxu0
  %v1211 = vadd.f32 %v1155, %v1210
  %1212 = vmatmul.f32.gmra.mxu0 %v912
  %v1213 = vpop.f32.mrf.mxu0
  %v1214 = vadd.f32 %v1158, %v1213
  %1215 = vmatmul.f32.gmra.mxu0 %v916
  %v1216 = vpop.f32.mrf.mxu0
  %v1217 = vadd.f32 %v1161, %v1216
  %1218 = vdwg.mxu0
  %1219 = vmatpush.msra.mxu0 %v1046
  %1220 = vmatpush.msra.mxu0 %v1045
  %1221 = vmatpush.msra.mxu0 %v1044
  %1222 = vmatpush.msra.mxu0 %v1043
  %1223 = vmatpush.msra.mxu0 %v1042
  %1224 = vmatpush.msra.mxu0 %v1041
  %1225 = vmatpush.msra.mxu0 %v1040
  %1226 = vmatpush.msra.mxu0 %v1039
  %1227 = vmatpush.msra.mxu0 %v1038
  %1228 = vmatpush.msra.mxu0 %v1037
  %1229 = vmatpush.msra.mxu0 %v1036
  %1230 = vmatpush.msra.mxu0 %v1035
  %1231 = vmatpush.msra.mxu0 %v1034
  %1232 = vmatpush.msra.mxu0 %v1033
  %1233 = vmatpush.msra.mxu0 %v1032
  %1234 = vmatpush.msra.mxu0 %v1031
  %1235 = vmatmul.f32.gmra.mxu0 %v869
  %v1236 = vpop.f32.mrf.mxu0
  %v1237 = vadd.f32 %v1181, %v1236
  %1238 = vmatmul.f32.gmra.mxu0 %v873
  %v1239 = vpop.f32.mrf.mxu0
  %v1240 = vadd.f32 %v1184, %v1239
  %1241 = vmatmul.f32.gmra.mxu0 %v877
  %v1242 = vpop.f32.mrf.mxu0
  %v1243 = vadd.f32 %v1187, %v1242
  %1244 = vmatmul.f32.gmra.mxu0 %v881
  %v1245 = vpop.f32.mrf.mxu0
  %v1246 = vadd.f32 %v1190, %v1245
  %1247 = vmatmul.f32.gmra.mxu0 %v885
  %v1248 = vpop.f32.mrf.mxu0
  %v1249 = vadd.f32 %v1193, %v1248
  %1250 = vmatmul.f32.gmra.mxu0 %v889
  %v1251 = vpop.f32.mrf.mxu0
  %v1252 = vadd.f32 %v1196, %v1251
  %1253 = vmatmul.f32.gmra.mxu0 %v893
  %v1254 = vpop.f32.mrf.mxu0
  %v1255 = vadd.f32 %v1199, %v1254
  %1256 = vmatmul.f32.gmra.mxu0 %v897
  %v1257 = vpop.f32.mrf.mxu0
  %v1258 = vadd.f32 %v1202, %v1257
  %1259 = vmatmul.f32.gmra.mxu0 %v901
  %v1260 = vpop.f32.mrf.mxu0
  %v1261 = vadd.f32 %v1205, %v1260
  %1262 = vmatmul.f32.gmra.mxu0 %v905
  %v1263 = vpop.f32.mrf.mxu0
  %v1264 = vadd.f32 %v1208, %v1263
  %1265 = vmatmul.f32.gmra.mxu0 %v909
  %v1266 = vpop.f32.mrf.mxu0
  %v1267 = vadd.f32 %v1211, %v1266
  %1268 = vmatmul.f32.gmra.mxu0 %v913
  %v1269 = vpop.f32.mrf.mxu0
  %v1270 = vadd.f32 %v1214, %v1269
  %1271 = vmatmul.f32.gmra.mxu0 %v917
  %v1272 = vpop.f32.mrf.mxu0
  %v1273 = vadd.f32 %v1217, %v1272
  %1274 = vdwg.mxu0
  %s1275 = scalar_lea.vmem %s5, 208
  %1276 = vst [vmem:[%s1275] sm:$0xff] %v1237
  %1277 = vst [vmem:[%s1275 + $0x8] sm:$0xff] %v1240
  %1278 = vst [vmem:[%s1275 + $0x10] sm:$0xff] %v1243
  %1279 = vst [vmem:[%s1275 + $0x18] sm:$0xff] %v1246
  %1280 = vst [vmem:[%s1275 + $0x20] sm:$0xff] %v1249
  %1281 = vst [vmem:[%s1275 + $0x28] sm:$0xff] %v1252
  %1282 = vst [vmem:[%s1275 + $0x30] sm:$0xff] %v1255
  %1283 = vst [vmem:[%s1275 + $0x38] sm:$0xff] %v1258
  %1284 = vst [vmem:[%s1275 + $0x40] sm:$0xff] %v1261
  %1285 = vst [vmem:[%s1275 + $0x48] sm:$0xff] %v1264
  %1286 = vst [vmem:[%s1275 + $0x50] sm:$0xff] %v1267
  %1287 = vst [vmem:[%s1275 + $0x58] sm:$0xff] %v1270
  %1288 = vst [vmem:[%s1275 + $0x60] sm:$0x3] %v1273
  %s1289 = scalar_lea.vmem %s0, 1248
  %v1290 = vld [vmem:[%s1289] sm:$0xff]
  %v1291 = vld [vmem:[%s1289 + $0x8] sm:$0xff]
  %v1292 = vld [vmem:[%s1289 + $0x10] sm:$0xff]
  %v1293 = vld [vmem:[%s1289 + $0x18] sm:$0xff]
  %v1294 = vld [vmem:[%s1289 + $0x20] sm:$0xff]
  %v1295 = vld [vmem:[%s1289 + $0x28] sm:$0xff]
  %v1296 = vld [vmem:[%s1289 + $0x30] sm:$0xff]
  %v1297 = vld [vmem:[%s1289 + $0x38] sm:$0xff]
  %v1298 = vld [vmem:[%s1289 + $0x40] sm:$0xff]
  %v1299 = vld [vmem:[%s1289 + $0x48] sm:$0xff]
  %v1300 = vld [vmem:[%s1289 + $0x50] sm:$0xff]
  %v1301 = vld [vmem:[%s1289 + $0x58] sm:$0xff]
  %v1302 = vld [vmem:[%s1289 + $0x60] sm:$0xff]
  %v1303 = vld [vmem:[%s1289 + $0x68] sm:$0xff]
  %v1304 = vld [vmem:[%s1289 + $0x70] sm:$0xff]
  %v1305 = vld [vmem:[%s1289 + $0x78] sm:$0xff]
  %v1306 = vld [vmem:[%s1289 + $0x80] sm:$0xff]
  %v1307 = vld [vmem:[%s1289 + $0x88] sm:$0xff]
  %v1308 = vld [vmem:[%s1289 + $0x90] sm:$0xff]
  %v1309 = vld [vmem:[%s1289 + $0x98] sm:$0xff]
  %v1310 = vld [vmem:[%s1289 + $0xa0] sm:$0xff]
  %v1311 = vld [vmem:[%s1289 + $0xa8] sm:$0xff]
  %v1312 = vld [vmem:[%s1289 + $0xb0] sm:$0xff]
  %v1313 = vld [vmem:[%s1289 + $0xb8] sm:$0xff]
  %v1314 = vld [vmem:[%s1289 + $0xc0] sm:$0xff]
  %v1315 = vld [vmem:[%s1289 + $0xc8] sm:$0xff]
  %v1316 = vld [vmem:[%s1289 + $0xd0] sm:$0xff]
  %v1317 = vld [vmem:[%s1289 + $0xd8] sm:$0xff]
  %v1318 = vld [vmem:[%s1289 + $0xe0] sm:$0xff]
  %v1319 = vld [vmem:[%s1289 + $0xe8] sm:$0xff]
  %v1320 = vld [vmem:[%s1289 + $0xf0] sm:$0xff]
  %v1321 = vld [vmem:[%s1289 + $0xf8] sm:$0xff]
  %v1322 = vld [vmem:[%s1289 + $0x100] sm:$0xff]
  %v1323 = vld [vmem:[%s1289 + $0x108] sm:$0xff]
  %v1324 = vld [vmem:[%s1289 + $0x110] sm:$0xff]
  %v1325 = vld [vmem:[%s1289 + $0x118] sm:$0xff]
  %v1326 = vld [vmem:[%s1289 + $0x120] sm:$0xff]
  %v1327 = vld [vmem:[%s1289 + $0x128] sm:$0xff]
  %v1328 = vld [vmem:[%s1289 + $0x130] sm:$0xff]
  %v1329 = vld [vmem:[%s1289 + $0x138] sm:$0xff]
  %v1330 = vld [vmem:[%s1289 + $0x140] sm:$0xff]
  %v1331 = vld [vmem:[%s1289 + $0x148] sm:$0xff]
  %v1332 = vld [vmem:[%s1289 + $0x150] sm:$0xff]
  %v1333 = vld [vmem:[%s1289 + $0x158] sm:$0xff]
  %v1334 = vld [vmem:[%s1289 + $0x160] sm:$0xff]
  %v1335 = vld [vmem:[%s1289 + $0x168] sm:$0xff]
  %v1336 = vld [vmem:[%s1289 + $0x170] sm:$0xff]
  %v1337 = vld [vmem:[%s1289 + $0x178] sm:$0xff]
  %v1338 = vld [vmem:[%s1289 + $0x180] sm:$0x3]
  %v1339 = vld [vmem:[%s1289 + $0x188] sm:$0x3]
  %v1340 = vld [vmem:[%s1289 + $0x190] sm:$0x3]
  %v1341 = vld [vmem:[%s1289 + $0x198] sm:$0x3]
  %s1342 = scalar_lea.vmem %s1, 768
  %v1343 = vld [vmem:[%s1342] sm:$0xf]
  %v1344 = vld [vmem:[%s1342 + $0x4] sm:$0xf]
  %v1345 = vld [vmem:[%s1342 + $0x8] sm:$0xf]
  %v1346 = vld [vmem:[%s1342 + $0xc] sm:$0xf]
  %v1347 = vld [vmem:[%s1342 + $0x10] sm:$0xf]
  %v1348 = vld [vmem:[%s1342 + $0x14] sm:$0xf]
  %v1349 = vld [vmem:[%s1342 + $0x18] sm:$0xf]
  %v1350 = vld [vmem:[%s1342 + $0x1c] sm:$0xf]
  %v1351 = vld [vmem:[%s1342 + $0x20] sm:$0xf]
  %v1352 = vld [vmem:[%s1342 + $0x24] sm:$0xf]
  %v1353 = vld [vmem:[%s1342 + $0x28] sm:$0xf]
  %v1354 = vld [vmem:[%s1342 + $0x2c] sm:$0xf]
  %v1355 = vld [vmem:[%s1342 + $0x30] sm:$0xf]
  %v1356 = vld [vmem:[%s1342 + $0x34] sm:$0xf]
  %v1357 = vld [vmem:[%s1342 + $0x38] sm:$0xf]
  %v1358 = vld [vmem:[%s1342 + $0x3c] sm:$0xf]
  %v1359 = vld [vmem:[%s1342 + $0x40] sm:$0xf]
  %v1360 = vld [vmem:[%s1342 + $0x44] sm:$0xf]
  %v1361 = vld [vmem:[%s1342 + $0x48] sm:$0xf]
  %v1362 = vld [vmem:[%s1342 + $0x4c] sm:$0xf]
  %v1363 = vld [vmem:[%s1342 + $0x50] sm:$0xf]
  %v1364 = vld [vmem:[%s1342 + $0x54] sm:$0xf]
  %v1365 = vld [vmem:[%s1342 + $0x58] sm:$0xf]
  %v1366 = vld [vmem:[%s1342 + $0x5c] sm:$0xf]
  %v1367 = vld [vmem:[%s1342 + $0x60] sm:$0xf]
  %v1368 = vld [vmem:[%s1342 + $0x64] sm:$0xf]
  %v1369 = vld [vmem:[%s1342 + $0x68] sm:$0xf]
  %v1370 = vld [vmem:[%s1342 + $0x6c] sm:$0xf]
  %v1371 = vld [vmem:[%s1342 + $0x70] sm:$0xf]
  %v1372 = vld [vmem:[%s1342 + $0x74] sm:$0xf]
  %v1373 = vld [vmem:[%s1342 + $0x78] sm:$0xf]
  %v1374 = vld [vmem:[%s1342 + $0x7c] sm:$0xf]
  %v1375 = vld [vmem:[%s1342 + $0x80] sm:$0xf]
  %v1376 = vld [vmem:[%s1342 + $0x84] sm:$0xf]
  %v1377 = vld [vmem:[%s1342 + $0x88] sm:$0xf]
  %v1378 = vld [vmem:[%s1342 + $0x8c] sm:$0xf]
  %v1379 = vld [vmem:[%s1342 + $0x90] sm:$0xf]
  %v1380 = vld [vmem:[%s1342 + $0x94] sm:$0xf]
  %v1381 = vld [vmem:[%s1342 + $0x98] sm:$0xf]
  %v1382 = vld [vmem:[%s1342 + $0x9c] sm:$0xf]
  %v1383 = vld [vmem:[%s1342 + $0xa0] sm:$0xf]
  %v1384 = vld [vmem:[%s1342 + $0xa4] sm:$0xf]
  %v1385 = vld [vmem:[%s1342 + $0xa8] sm:$0xf]
  %v1386 = vld [vmem:[%s1342 + $0xac] sm:$0xf]
  %v1387 = vld [vmem:[%s1342 + $0xb0] sm:$0xf]
  %v1388 = vld [vmem:[%s1342 + $0xb4] sm:$0xf]
  %v1389 = vld [vmem:[%s1342 + $0xb8] sm:$0xf]
  %v1390 = vld [vmem:[%s1342 + $0xbc] sm:$0xf]
  %v1391 = vld [vmem:[%s1342 + $0xc0] sm:$0xf]
  %v1392 = vld [vmem:[%s1342 + $0xc4] sm:$0xf]
  %v1393 = vld [vmem:[%s1342 + $0xc8] sm:$0xf]
  %v1394 = vld [vmem:[%s1342 + $0xcc] sm:$0xf]
  %v1395 = vld [vmem:[%s1342 + $0xd0] sm:$0xf]
  %v1396 = vld [vmem:[%s1342 + $0xd4] sm:$0xf]
  %v1397 = vld [vmem:[%s1342 + $0xd8] sm:$0xf]
  %v1398 = vld [vmem:[%s1342 + $0xdc] sm:$0xf]
  %v1399 = vld [vmem:[%s1342 + $0xe0] sm:$0xf]
  %v1400 = vld [vmem:[%s1342 + $0xe4] sm:$0xf]
  %v1401 = vld [vmem:[%s1342 + $0xe8] sm:$0xf]
  %v1402 = vld [vmem:[%s1342 + $0xec] sm:$0xf]
  %v1403 = vld [vmem:[%s1342 + $0xf0] sm:$0xf]
  %v1404 = vld [vmem:[%s1342 + $0xf4] sm:$0xf]
  %v1405 = vld [vmem:[%s1342 + $0xf8] sm:$0xf]
  %v1406 = vld [vmem:[%s1342 + $0xfc] sm:$0xf]
  %v1407 = vunpack.c.l.bf16 %v1343
  %v1408 = vunpack.c.l.bf16 %v1344
  %v1409 = vunpack.c.l.bf16 %v1345
  %v1410 = vunpack.c.l.bf16 %v1346
  %v1411 = vunpack.c.l.bf16 %v1347
  %v1412 = vunpack.c.l.bf16 %v1348
  %v1413 = vunpack.c.l.bf16 %v1349
  %v1414 = vunpack.c.l.bf16 %v1350
  %v1415 = vunpack.c.l.bf16 %v1351
  %v1416 = vunpack.c.l.bf16 %v1352
  %v1417 = vunpack.c.l.bf16 %v1353
  %v1418 = vunpack.c.l.bf16 %v1354
  %v1419 = vunpack.c.l.bf16 %v1355
  %v1420 = vunpack.c.l.bf16 %v1356
  %v1421 = vunpack.c.l.bf16 %v1357
  %v1422 = vunpack.c.l.bf16 %v1358
  %v1423 = vunpack.c.l.bf16 %v1359
  %v1424 = vunpack.c.l.bf16 %v1360
  %v1425 = vunpack.c.l.bf16 %v1361
  %v1426 = vunpack.c.l.bf16 %v1362
  %v1427 = vunpack.c.l.bf16 %v1363
  %v1428 = vunpack.c.l.bf16 %v1364
  %v1429 = vunpack.c.l.bf16 %v1365
  %v1430 = vunpack.c.l.bf16 %v1366
  %v1431 = vunpack.c.l.bf16 %v1367
  %v1432 = vunpack.c.l.bf16 %v1368
  %v1433 = vunpack.c.l.bf16 %v1369
  %v1434 = vunpack.c.l.bf16 %v1370
  %v1435 = vunpack.c.l.bf16 %v1371
  %v1436 = vunpack.c.l.bf16 %v1372
  %v1437 = vunpack.c.l.bf16 %v1373
  %v1438 = vunpack.c.l.bf16 %v1374
  %v1439 = vunpack.c.l.bf16 %v1375
  %v1440 = vunpack.c.l.bf16 %v1376
  %v1441 = vunpack.c.l.bf16 %v1377
  %v1442 = vunpack.c.l.bf16 %v1378
  %v1443 = vunpack.c.l.bf16 %v1379
  %v1444 = vunpack.c.l.bf16 %v1380
  %v1445 = vunpack.c.l.bf16 %v1381
  %v1446 = vunpack.c.l.bf16 %v1382
  %v1447 = vunpack.c.l.bf16 %v1383
  %v1448 = vunpack.c.l.bf16 %v1384
  %v1449 = vunpack.c.l.bf16 %v1385
  %v1450 = vunpack.c.l.bf16 %v1386
  %v1451 = vunpack.c.l.bf16 %v1387
  %v1452 = vunpack.c.l.bf16 %v1388
  %v1453 = vunpack.c.l.bf16 %v1389
  %v1454 = vunpack.c.l.bf16 %v1390
  %v1455 = vunpack.c.l.bf16 %v1391
  %v1456 = vunpack.c.l.bf16 %v1392
  %v1457 = vunpack.c.l.bf16 %v1393
  %v1458 = vunpack.c.l.bf16 %v1394
  %v1459 = vunpack.c.l.bf16 %v1395
  %v1460 = vunpack.c.l.bf16 %v1396
  %v1461 = vunpack.c.l.bf16 %v1397
  %v1462 = vunpack.c.l.bf16 %v1398
  %v1463 = vunpack.c.l.bf16 %v1399
  %v1464 = vunpack.c.l.bf16 %v1400
  %v1465 = vunpack.c.l.bf16 %v1401
  %v1466 = vunpack.c.l.bf16 %v1402
  %v1467 = vunpack.c.l.bf16 %v1403
  %v1468 = vunpack.c.l.bf16 %v1404
  %v1469 = vunpack.c.l.bf16 %v1405
  %v1470 = vunpack.c.l.bf16 %v1406
  %v1471 = vld [vmem:[%s2] sm:$0x1]
  %v1473 = vperm.slane %v1471, 0
  %1475 = vmatpush.msra.mxu0 %v1422
  %1476 = vmatpush.msra.mxu0 %v1421
  %1477 = vmatpush.msra.mxu0 %v1420
  %1478 = vmatpush.msra.mxu0 %v1419
  %1479 = vmatpush.msra.mxu0 %v1418
  %1480 = vmatpush.msra.mxu0 %v1417
  %1481 = vmatpush.msra.mxu0 %v1416
  %1482 = vmatpush.msra.mxu0 %v1415
  %1483 = vmatpush.msra.mxu0 %v1414
  %1484 = vmatpush.msra.mxu0 %v1413
  %1485 = vmatpush.msra.mxu0 %v1412
  %1486 = vmatpush.msra.mxu0 %v1411
  %1487 = vmatpush.msra.mxu0 %v1410
  %1488 = vmatpush.msra.mxu0 %v1409
  %1489 = vmatpush.msra.mxu0 %v1408
  %1490 = vmatpush.msra.mxu0 %v1407
  %1491 = vmatmul.f32.gmra.mxu0 %v1290
  %v1492 = vpop.f32.mrf.mxu0
  %v1493 = vadd.f32 %v1473, %v1492
  %1494 = vmatmul.f32.gmra.mxu0 %v1294
  %v1495 = vpop.f32.mrf.mxu0
  %v1496 = vadd.f32 %v1473, %v1495
  %1497 = vmatmul.f32.gmra.mxu0 %v1298
  %v1498 = vpop.f32.mrf.mxu0
  %v1499 = vadd.f32 %v1473, %v1498
  %1500 = vmatmul.f32.gmra.mxu0 %v1302
  %v1501 = vpop.f32.mrf.mxu0
  %v1502 = vadd.f32 %v1473, %v1501
  %1503 = vmatmul.f32.gmra.mxu0 %v1306
  %v1504 = vpop.f32.mrf.mxu0
  %v1505 = vadd.f32 %v1473, %v1504
  %1506 = vmatmul.f32.gmra.mxu0 %v1310
  %v1507 = vpop.f32.mrf.mxu0
  %v1508 = vadd.f32 %v1473, %v1507
  %1509 = vmatmul.f32.gmra.mxu0 %v1314
  %v1510 = vpop.f32.mrf.mxu0
  %v1511 = vadd.f32 %v1473, %v1510
  %1512 = vmatmul.f32.gmra.mxu0 %v1318
  %v1513 = vpop.f32.mrf.mxu0
  %v1514 = vadd.f32 %v1473, %v1513
  %1515 = vmatmul.f32.gmra.mxu0 %v1322
  %v1516 = vpop.f32.mrf.mxu0
  %v1517 = vadd.f32 %v1473, %v1516
  %1518 = vmatmul.f32.gmra.mxu0 %v1326
  %v1519 = vpop.f32.mrf.mxu0
  %v1520 = vadd.f32 %v1473, %v1519
  %1521 = vmatmul.f32.gmra.mxu0 %v1330
  %v1522 = vpop.f32.mrf.mxu0
  %v1523 = vadd.f32 %v1473, %v1522
  %1524 = vmatmul.f32.gmra.mxu0 %v1334
  %v1525 = vpop.f32.mrf.mxu0
  %v1526 = vadd.f32 %v1473, %v1525
  %1527 = vmatmul.f32.gmra.mxu0 %v1338
  %v1528 = vpop.f32.mrf.mxu0
  %v1529 = vadd.f32 %v1473, %v1528
  %1530 = vdwg.mxu0
  %1531 = vmatpush.msra.mxu0 %v1438
  %1532 = vmatpush.msra.mxu0 %v1437
  %1533 = vmatpush.msra.mxu0 %v1436
  %1534 = vmatpush.msra.mxu0 %v1435
  %1535 = vmatpush.msra.mxu0 %v1434
  %1536 = vmatpush.msra.mxu0 %v1433
  %1537 = vmatpush.msra.mxu0 %v1432
  %1538 = vmatpush.msra.mxu0 %v1431
  %1539 = vmatpush.msra.mxu0 %v1430
  %1540 = vmatpush.msra.mxu0 %v1429
  %1541 = vmatpush.msra.mxu0 %v1428
  %1542 = vmatpush.msra.mxu0 %v1427
  %1543 = vmatpush.msra.mxu0 %v1426
  %1544 = vmatpush.msra.mxu0 %v1425
  %1545 = vmatpush.msra.mxu0 %v1424
  %1546 = vmatpush.msra.mxu0 %v1423
  %1547 = vmatmul.f32.gmra.mxu0 %v1291
  %v1548 = vpop.f32.mrf.mxu0
  %v1549 = vadd.f32 %v1493, %v1548
  %1550 = vmatmul.f32.gmra.mxu0 %v1295
  %v1551 = vpop.f32.mrf.mxu0
  %v1552 = vadd.f32 %v1496, %v1551
  %1553 = vmatmul.f32.gmra.mxu0 %v1299
  %v1554 = vpop.f32.mrf.mxu0
  %v1555 = vadd.f32 %v1499, %v1554
  %1556 = vmatmul.f32.gmra.mxu0 %v1303
  %v1557 = vpop.f32.mrf.mxu0
  %v1558 = vadd.f32 %v1502, %v1557
  %1559 = vmatmul.f32.gmra.mxu0 %v1307
  %v1560 = vpop.f32.mrf.mxu0
  %v1561 = vadd.f32 %v1505, %v1560
  %1562 = vmatmul.f32.gmra.mxu0 %v1311
  %v1563 = vpop.f32.mrf.mxu0
  %v1564 = vadd.f32 %v1508, %v1563
  %1565 = vmatmul.f32.gmra.mxu0 %v1315
  %v1566 = vpop.f32.mrf.mxu0
  %v1567 = vadd.f32 %v1511, %v1566
  %1568 = vmatmul.f32.gmra.mxu0 %v1319
  %v1569 = vpop.f32.mrf.mxu0
  %v1570 = vadd.f32 %v1514, %v1569
  %1571 = vmatmul.f32.gmra.mxu0 %v1323
  %v1572 = vpop.f32.mrf.mxu0
  %v1573 = vadd.f32 %v1517, %v1572
  %1574 = vmatmul.f32.gmra.mxu0 %v1327
  %v1575 = vpop.f32.mrf.mxu0
  %v1576 = vadd.f32 %v1520, %v1575
  %1577 = vmatmul.f32.gmra.mxu0 %v1331
  %v1578 = vpop.f32.mrf.mxu0
  %v1579 = vadd.f32 %v1523, %v1578
  %1580 = vmatmul.f32.gmra.mxu0 %v1335
  %v1581 = vpop.f32.mrf.mxu0
  %v1582 = vadd.f32 %v1526, %v1581
  %1583 = vmatmul.f32.gmra.mxu0 %v1339
  %v1584 = vpop.f32.mrf.mxu0
  %v1585 = vadd.f32 %v1529, %v1584
  %1586 = vdwg.mxu0
  %1587 = vmatpush.msra.mxu0 %v1454
  %1588 = vmatpush.msra.mxu0 %v1453
  %1589 = vmatpush.msra.mxu0 %v1452
  %1590 = vmatpush.msra.mxu0 %v1451
  %1591 = vmatpush.msra.mxu0 %v1450
  %1592 = vmatpush.msra.mxu0 %v1449
  %1593 = vmatpush.msra.mxu0 %v1448
  %1594 = vmatpush.msra.mxu0 %v1447
  %1595 = vmatpush.msra.mxu0 %v1446
  %1596 = vmatpush.msra.mxu0 %v1445
  %1597 = vmatpush.msra.mxu0 %v1444
  %1598 = vmatpush.msra.mxu0 %v1443
  %1599 = vmatpush.msra.mxu0 %v1442
  %1600 = vmatpush.msra.mxu0 %v1441
  %1601 = vmatpush.msra.mxu0 %v1440
  %1602 = vmatpush.msra.mxu0 %v1439
  %1603 = vmatmul.f32.gmra.mxu0 %v1292
  %v1604 = vpop.f32.mrf.mxu0
  %v1605 = vadd.f32 %v1549, %v1604
  %1606 = vmatmul.f32.gmra.mxu0 %v1296
  %v1607 = vpop.f32.mrf.mxu0
  %v1608 = vadd.f32 %v1552, %v1607
  %1609 = vmatmul.f32.gmra.mxu0 %v1300
  %v1610 = vpop.f32.mrf.mxu0
  %v1611 = vadd.f32 %v1555, %v1610
  %1612 = vmatmul.f32.gmra.mxu0 %v1304
  %v1613 = vpop.f32.mrf.mxu0
  %v1614 = vadd.f32 %v1558, %v1613
  %1615 = vmatmul.f32.gmra.mxu0 %v1308
  %v1616 = vpop.f32.mrf.mxu0
  %v1617 = vadd.f32 %v1561, %v1616
  %1618 = vmatmul.f32.gmra.mxu0 %v1312
  %v1619 = vpop.f32.mrf.mxu0
  %v1620 = vadd.f32 %v1564, %v1619
  %1621 = vmatmul.f32.gmra.mxu0 %v1316
  %v1622 = vpop.f32.mrf.mxu0
  %v1623 = vadd.f32 %v1567, %v1622
  %1624 = vmatmul.f32.gmra.mxu0 %v1320
  %v1625 = vpop.f32.mrf.mxu0
  %v1626 = vadd.f32 %v1570, %v1625
  %1627 = vmatmul.f32.gmra.mxu0 %v1324
  %v1628 = vpop.f32.mrf.mxu0
  %v1629 = vadd.f32 %v1573, %v1628
  %1630 = vmatmul.f32.gmra.mxu0 %v1328
  %v1631 = vpop.f32.mrf.mxu0
  %v1632 = vadd.f32 %v1576, %v1631
  %1633 = vmatmul.f32.gmra.mxu0 %v1332
  %v1634 = vpop.f32.mrf.mxu0
  %v1635 = vadd.f32 %v1579, %v1634
  %1636 = vmatmul.f32.gmra.mxu0 %v1336
  %v1637 = vpop.f32.mrf.mxu0
  %v1638 = vadd.f32 %v1582, %v1637
  %1639 = vmatmul.f32.gmra.mxu0 %v1340
  %v1640 = vpop.f32.mrf.mxu0
  %v1641 = vadd.f32 %v1585, %v1640
  %1642 = vdwg.mxu0
  %1643 = vmatpush.msra.mxu0 %v1470
  %1644 = vmatpush.msra.mxu0 %v1469
  %1645 = vmatpush.msra.mxu0 %v1468
  %1646 = vmatpush.msra.mxu0 %v1467
  %1647 = vmatpush.msra.mxu0 %v1466
  %1648 = vmatpush.msra.mxu0 %v1465
  %1649 = vmatpush.msra.mxu0 %v1464
  %1650 = vmatpush.msra.mxu0 %v1463
  %1651 = vmatpush.msra.mxu0 %v1462
  %1652 = vmatpush.msra.mxu0 %v1461
  %1653 = vmatpush.msra.mxu0 %v1460
  %1654 = vmatpush.msra.mxu0 %v1459
  %1655 = vmatpush.msra.mxu0 %v1458
  %1656 = vmatpush.msra.mxu0 %v1457
  %1657 = vmatpush.msra.mxu0 %v1456
  %1658 = vmatpush.msra.mxu0 %v1455
  %1659 = vmatmul.f32.gmra.mxu0 %v1293
  %v1660 = vpop.f32.mrf.mxu0
  %v1661 = vadd.f32 %v1605, %v1660
  %1662 = vmatmul.f32.gmra.mxu0 %v1297
  %v1663 = vpop.f32.mrf.mxu0
  %v1664 = vadd.f32 %v1608, %v1663
  %1665 = vmatmul.f32.gmra.mxu0 %v1301
  %v1666 = vpop.f32.mrf.mxu0
  %v1667 = vadd.f32 %v1611, %v1666
  %1668 = vmatmul.f32.gmra.mxu0 %v1305
  %v1669 = vpop.f32.mrf.mxu0
  %v1670 = vadd.f32 %v1614, %v1669
  %1671 = vmatmul.f32.gmra.mxu0 %v1309
  %v1672 = vpop.f32.mrf.mxu0
  %v1673 = vadd.f32 %v1617, %v1672
  %1674 = vmatmul.f32.gmra.mxu0 %v1313
  %v1675 = vpop.f32.mrf.mxu0
  %v1676 = vadd.f32 %v1620, %v1675
  %1677 = vmatmul.f32.gmra.mxu0 %v1317
  %v1678 = vpop.f32.mrf.mxu0
  %v1679 = vadd.f32 %v1623, %v1678
  %1680 = vmatmul.f32.gmra.mxu0 %v1321
  %v1681 = vpop.f32.mrf.mxu0
  %v1682 = vadd.f32 %v1626, %v1681
  %1683 = vmatmul.f32.gmra.mxu0 %v1325
  %v1684 = vpop.f32.mrf.mxu0
  %v1685 = vadd.f32 %v1629, %v1684
  %1686 = vmatmul.f32.gmra.mxu0 %v1329
  %v1687 = vpop.f32.mrf.mxu0
  %v1688 = vadd.f32 %v1632, %v1687
  %1689 = vmatmul.f32.gmra.mxu0 %v1333
  %v1690 = vpop.f32.mrf.mxu0
  %v1691 = vadd.f32 %v1635, %v1690
  %1692 = vmatmul.f32.gmra.mxu0 %v1337
  %v1693 = vpop.f32.mrf.mxu0
  %v1694 = vadd.f32 %v1638, %v1693
  %1695 = vmatmul.f32.gmra.mxu0 %v1341
  %v1696 = vpop.f32.mrf.mxu0
  %v1697 = vadd.f32 %v1641, %v1696
  %1698 = vdwg.mxu0
  %s1699 = scalar_lea.vmem %s5, 312
  %1700 = vst [vmem:[%s1699] sm:$0xff] %v1661
  %1701 = vst [vmem:[%s1699 + $0x8] sm:$0xff] %v1664
  %1702 = vst [vmem:[%s1699 + $0x10] sm:$0xff] %v1667
  %1703 = vst [vmem:[%s1699 + $0x18] sm:$0xff] %v1670
  %1704 = vst [vmem:[%s1699 + $0x20] sm:$0xff] %v1673
  %1705 = vst [vmem:[%s1699 + $0x28] sm:$0xff] %v1676
  %1706 = vst [vmem:[%s1699 + $0x30] sm:$0xff] %v1679
  %1707 = vst [vmem:[%s1699 + $0x38] sm:$0xff] %v1682
  %1708 = vst [vmem:[%s1699 + $0x40] sm:$0xff] %v1685
  %1709 = vst [vmem:[%s1699 + $0x48] sm:$0xff] %v1688
  %1710 = vst [vmem:[%s1699 + $0x50] sm:$0xff] %v1691
  %1711 = vst [vmem:[%s1699 + $0x58] sm:$0xff] %v1694
  %1712 = vst [vmem:[%s1699 + $0x60] sm:$0x3] %v1697
  %v1713 = vld [vmem:[%s5] sm:$0xff]
  %v1714 = vld [vmem:[%s5 + $0x8] sm:$0xff]
  %v1715 = vld [vmem:[%s5 + $0x10] sm:$0xff]
  %v1716 = vld [vmem:[%s5 + $0x18] sm:$0xff]
  %v1717 = vld [vmem:[%s5 + $0x20] sm:$0xff]
  %v1718 = vld [vmem:[%s5 + $0x28] sm:$0xff]
  %v1719 = vld [vmem:[%s5 + $0x30] sm:$0xff]
  %v1720 = vld [vmem:[%s5 + $0x38] sm:$0xff]
  %v1721 = vld [vmem:[%s5 + $0x40] sm:$0xff]
  %v1722 = vld [vmem:[%s5 + $0x48] sm:$0xff]
  %v1723 = vld [vmem:[%s5 + $0x50] sm:$0xff]
  %v1724 = vld [vmem:[%s5 + $0x58] sm:$0xff]
  %v1725 = vld [vmem:[%s5 + $0x60] sm:$0x3]
  %v1726 = vld [vmem:[%s5 + $0x68] sm:$0xff]
  %v1727 = vld [vmem:[%s5 + $0x70] sm:$0xff]
  %v1728 = vld [vmem:[%s5 + $0x78] sm:$0xff]
  %v1729 = vld [vmem:[%s5 + $0x80] sm:$0xff]
  %v1730 = vld [vmem:[%s5 + $0x88] sm:$0xff]
  %v1731 = vld [vmem:[%s5 + $0x90] sm:$0xff]
  %v1732 = vld [vmem:[%s5 + $0x98] sm:$0xff]
  %v1733 = vld [vmem:[%s5 + $0xa0] sm:$0xff]
  %v1734 = vld [vmem:[%s5 + $0xa8] sm:$0xff]
  %v1735 = vld [vmem:[%s5 + $0xb0] sm:$0xff]
  %v1736 = vld [vmem:[%s5 + $0xb8] sm:$0xff]
  %v1737 = vld [vmem:[%s5 + $0xc0] sm:$0xff]
  %v1738 = vld [vmem:[%s5 + $0xc8] sm:$0x3]
  %v1739 = vld [vmem:[%s5 + $0xd0] sm:$0xff]
  %v1740 = vld [vmem:[%s5 + $0xd8] sm:$0xff]
  %v1741 = vld [vmem:[%s5 + $0xe0] sm:$0xff]
  %v1742 = vld [vmem:[%s5 + $0xe8] sm:$0xff]
  %v1743 = vld [vmem:[%s5 + $0xf0] sm:$0xff]
  %v1744 = vld [vmem:[%s5 + $0xf8] sm:$0xff]
  %v1745 = vld [vmem:[%s5 + $0x100] sm:$0xff]
  %v1746 = vld [vmem:[%s5 + $0x108] sm:$0xff]
  %v1747 = vld [vmem:[%s5 + $0x110] sm:$0xff]
  %v1748 = vld [vmem:[%s5 + $0x118] sm:$0xff]
  %v1749 = vld [vmem:[%s5 + $0x120] sm:$0xff]
  %v1750 = vld [vmem:[%s5 + $0x128] sm:$0xff]
  %v1751 = vld [vmem:[%s5 + $0x130] sm:$0x3]
  %v1752 = vld [vmem:[%s5 + $0x138] sm:$0xff]
  %v1753 = vld [vmem:[%s5 + $0x140] sm:$0xff]
  %v1754 = vld [vmem:[%s5 + $0x148] sm:$0xff]
  %v1755 = vld [vmem:[%s5 + $0x150] sm:$0xff]
  %v1756 = vld [vmem:[%s5 + $0x158] sm:$0xff]
  %v1757 = vld [vmem:[%s5 + $0x160] sm:$0xff]
  %v1758 = vld [vmem:[%s5 + $0x168] sm:$0xff]
  %v1759 = vld [vmem:[%s5 + $0x170] sm:$0xff]
  %v1760 = vld [vmem:[%s5 + $0x178] sm:$0xff]
  %v1761 = vld [vmem:[%s5 + $0x180] sm:$0xff]
  %v1762 = vld [vmem:[%s5 + $0x188] sm:$0xff]
  %v1763 = vld [vmem:[%s5 + $0x190] sm:$0xff]
  %v1764 = vld [vmem:[%s5 + $0x198] sm:$0x3]
  %v1765 = vadd.f32 %v1713, %v1714
  %v1766 = vadd.f32 %v1765, %v1715
  %v1767 = vadd.f32 %v1766, %v1716
  %v1768 = vadd.f32 %v1767, %v1717
  %v1769 = vadd.f32 %v1768, %v1718
  %v1770 = vadd.f32 %v1769, %v1719
  %v1771 = vadd.f32 %v1770, %v1720
  %v1772 = vadd.f32 %v1771, %v1721
  %v1773 = vadd.f32 %v1772, %v1722
  %v1774 = vadd.f32 %v1773, %v1723
  %v1775 = vadd.f32 %v1774, %v1724
  %vm1776 = vcmask 1041408
  %v1777 = vsel %vm1776, %v1725, 0.0
  %v1778 = vadd.f32 %v1775, %v1777
  %v1779 = vrot.slane %v1778, 4
  %v1780 = vadd.f32 %v1778, %v1779
  %v1781 = vrot.slane %v1780, 2
  %v1782 = vadd.f32 %v1780, %v1781
  %v1783 = vrot.slane %v1782, 1
  %v1784 = vadd.f32 %v1782, %v1783
  %v1785 = vadd.f32 %v1726, %v1727
  %v1786 = vadd.f32 %v1785, %v1728
  %v1787 = vadd.f32 %v1786, %v1729
  %v1788 = vadd.f32 %v1787, %v1730
  %v1789 = vadd.f32 %v1788, %v1731
  %v1790 = vadd.f32 %v1789, %v1732
  %v1791 = vadd.f32 %v1790, %v1733
  %v1792 = vadd.f32 %v1791, %v1734
  %v1793 = vadd.f32 %v1792, %v1735
  %v1794 = vadd.f32 %v1793, %v1736
  %v1795 = vadd.f32 %v1794, %v1737
  %v1796 = vsel %vm1776, %v1738, 0.0
  %v1797 = vadd.f32 %v1795, %v1796
  %v1798 = vrot.slane %v1797, 4
  %v1799 = vadd.f32 %v1797, %v1798
  %v1800 = vrot.slane %v1799, 2
  %v1801 = vadd.f32 %v1799, %v1800
  %v1802 = vrot.slane %v1801, 1
  %v1803 = vadd.f32 %v1801, %v1802
  %v1804 = vadd.f32 %v1739, %v1740
  %v1805 = vadd.f32 %v1804, %v1741
  %v1806 = vadd.f32 %v1805, %v1742
  %v1807 = vadd.f32 %v1806, %v1743
  %v1808 = vadd.f32 %v1807, %v1744
  %v1809 = vadd.f32 %v1808, %v1745
  %v1810 = vadd.f32 %v1809, %v1746
  %v1811 = vadd.f32 %v1810, %v1747
  %v1812 = vadd.f32 %v1811, %v1748
  %v1813 = vadd.f32 %v1812, %v1749
  %v1814 = vadd.f32 %v1813, %v1750
  %v1815 = vsel %vm1776, %v1751, 0.0
  %v1816 = vadd.f32 %v1814, %v1815
  %v1817 = vrot.slane %v1816, 4
  %v1818 = vadd.f32 %v1816, %v1817
  %v1819 = vrot.slane %v1818, 2
  %v1820 = vadd.f32 %v1818, %v1819
  %v1821 = vrot.slane %v1820, 1
  %v1822 = vadd.f32 %v1820, %v1821
  %v1823 = vadd.f32 %v1752, %v1753
  %v1824 = vadd.f32 %v1823, %v1754
  %v1825 = vadd.f32 %v1824, %v1755
  %v1826 = vadd.f32 %v1825, %v1756
  %v1827 = vadd.f32 %v1826, %v1757
  %v1828 = vadd.f32 %v1827, %v1758
  %v1829 = vadd.f32 %v1828, %v1759
  %v1830 = vadd.f32 %v1829, %v1760
  %v1831 = vadd.f32 %v1830, %v1761
  %v1832 = vadd.f32 %v1831, %v1762
  %v1833 = vadd.f32 %v1832, %v1763
  %v1834 = vsel %vm1776, %v1764, 0.0
  %v1835 = vadd.f32 %v1833, %v1834
  %v1836 = vrot.slane %v1835, 4
  %v1837 = vadd.f32 %v1835, %v1836
  %v1838 = vrot.slane %v1837, 2
  %v1839 = vadd.f32 %v1837, %v1838
  %v1840 = vrot.slane %v1839, 1
  %v1841 = vadd.f32 %v1839, %v1840
  %v1842 = vadd.f32 %v1784, %v1803
  %v1843 = vadd.f32 %v1842, %v1822
  %v1844 = vadd.f32 %v1843, %v1841
  %v1845 = vrcp.pop 392.0
  %v1846 = vmul.f32 392.0, %v1845
  %v1847 = vsub.f32 1.0, %v1846
  %v1848 = vmul.f32 %v1845, %v1847
  %v1849 = vadd.f32 %v1845, %v1848
  %vm1850 = vweird.f32 %v1845
  %v1851 = vsel %vm1850, %v1845, %v1849
  %v1852 = vmul.f32 %v1844, %v1851
  %v1853 = vsub.f32 %v1713, %v1852
  %v1854 = vsub.f32 %v1714, %v1852
  %v1855 = vsub.f32 %v1715, %v1852
  %v1856 = vsub.f32 %v1716, %v1852
  %v1857 = vsub.f32 %v1717, %v1852
  %v1858 = vsub.f32 %v1718, %v1852
  %v1859 = vsub.f32 %v1719, %v1852
  %v1860 = vsub.f32 %v1720, %v1852
  %v1861 = vsub.f32 %v1721, %v1852
  %v1862 = vsub.f32 %v1722, %v1852
  %v1863 = vsub.f32 %v1723, %v1852
  %v1864 = vsub.f32 %v1724, %v1852
  %v1865 = vsub.f32 %v1725, %v1852
  %v1866 = vsub.f32 %v1726, %v1852
  %v1867 = vsub.f32 %v1727, %v1852
  %v1868 = vsub.f32 %v1728, %v1852
  %v1869 = vsub.f32 %v1729, %v1852
  %v1870 = vsub.f32 %v1730, %v1852
  %v1871 = vsub.f32 %v1731, %v1852
  %v1872 = vsub.f32 %v1732, %v1852
  %v1873 = vsub.f32 %v1733, %v1852
  %v1874 = vsub.f32 %v1734, %v1852
  %v1875 = vsub.f32 %v1735, %v1852
  %v1876 = vsub.f32 %v1736, %v1852
  %v1877 = vsub.f32 %v1737, %v1852
  %v1878 = vsub.f32 %v1738, %v1852
  %v1879 = vsub.f32 %v1739, %v1852
  %v1880 = vsub.f32 %v1740, %v1852
  %v1881 = vsub.f32 %v1741, %v1852
  %v1882 = vsub.f32 %v1742, %v1852
  %v1883 = vsub.f32 %v1743, %v1852
  %v1884 = vsub.f32 %v1744, %v1852
  %v1885 = vsub.f32 %v1745, %v1852
  %v1886 = vsub.f32 %v1746, %v1852
  %v1887 = vsub.f32 %v1747, %v1852
  %v1888 = vsub.f32 %v1748, %v1852
  %v1889 = vsub.f32 %v1749, %v1852
  %v1890 = vsub.f32 %v1750, %v1852
  %v1891 = vsub.f32 %v1751, %v1852
  %v1892 = vsub.f32 %v1752, %v1852
  %v1893 = vsub.f32 %v1753, %v1852
  %v1894 = vsub.f32 %v1754, %v1852
  %v1895 = vsub.f32 %v1755, %v1852
  %v1896 = vsub.f32 %v1756, %v1852
  %v1897 = vsub.f32 %v1757, %v1852
  %v1898 = vsub.f32 %v1758, %v1852
  %v1899 = vsub.f32 %v1759, %v1852
  %v1900 = vsub.f32 %v1760, %v1852
  %v1901 = vsub.f32 %v1761, %v1852
  %v1902 = vsub.f32 %v1762, %v1852
  %v1903 = vsub.f32 %v1763, %v1852
  %v1904 = vsub.f32 %v1764, %v1852
  %v1905 = vmul.f32 %v1853, %v1853
  %v1906 = vmul.f32 %v1854, %v1854
  %v1907 = vmul.f32 %v1855, %v1855
  %v1908 = vmul.f32 %v1856, %v1856
  %v1909 = vmul.f32 %v1857, %v1857
  %v1910 = vmul.f32 %v1858, %v1858
  %v1911 = vmul.f32 %v1859, %v1859
  %v1912 = vmul.f32 %v1860, %v1860
  %v1913 = vmul.f32 %v1861, %v1861
  %v1914 = vmul.f32 %v1862, %v1862
  %v1915 = vmul.f32 %v1863, %v1863
  %v1916 = vmul.f32 %v1864, %v1864
  %v1917 = vmul.f32 %v1865, %v1865
  %v1918 = vmul.f32 %v1866, %v1866
  %v1919 = vmul.f32 %v1867, %v1867
  %v1920 = vmul.f32 %v1868, %v1868
  %v1921 = vmul.f32 %v1869, %v1869
  %v1922 = vmul.f32 %v1870, %v1870
  %v1923 = vmul.f32 %v1871, %v1871
  %v1924 = vmul.f32 %v1872, %v1872
  %v1925 = vmul.f32 %v1873, %v1873
  %v1926 = vmul.f32 %v1874, %v1874
  %v1927 = vmul.f32 %v1875, %v1875
  %v1928 = vmul.f32 %v1876, %v1876
  %v1929 = vmul.f32 %v1877, %v1877
  %v1930 = vmul.f32 %v1878, %v1878
  %v1931 = vmul.f32 %v1879, %v1879
  %v1932 = vmul.f32 %v1880, %v1880
  %v1933 = vmul.f32 %v1881, %v1881
  %v1934 = vmul.f32 %v1882, %v1882
  %v1935 = vmul.f32 %v1883, %v1883
  %v1936 = vmul.f32 %v1884, %v1884
  %v1937 = vmul.f32 %v1885, %v1885
  %v1938 = vmul.f32 %v1886, %v1886
  %v1939 = vmul.f32 %v1887, %v1887
  %v1940 = vmul.f32 %v1888, %v1888
  %v1941 = vmul.f32 %v1889, %v1889
  %v1942 = vmul.f32 %v1890, %v1890
  %v1943 = vmul.f32 %v1891, %v1891
  %v1944 = vmul.f32 %v1892, %v1892
  %v1945 = vmul.f32 %v1893, %v1893
  %v1946 = vmul.f32 %v1894, %v1894
  %v1947 = vmul.f32 %v1895, %v1895
  %v1948 = vmul.f32 %v1896, %v1896
  %v1949 = vmul.f32 %v1897, %v1897
  %v1950 = vmul.f32 %v1898, %v1898
  %v1951 = vmul.f32 %v1899, %v1899
  %v1952 = vmul.f32 %v1900, %v1900
  %v1953 = vmul.f32 %v1901, %v1901
  %v1954 = vmul.f32 %v1902, %v1902
  %v1955 = vmul.f32 %v1903, %v1903
  %v1956 = vmul.f32 %v1904, %v1904
  %v1957 = vadd.f32 %v1905, %v1906
  %v1958 = vadd.f32 %v1957, %v1907
  %v1959 = vadd.f32 %v1958, %v1908
  %v1960 = vadd.f32 %v1959, %v1909
  %v1961 = vadd.f32 %v1960, %v1910
  %v1962 = vadd.f32 %v1961, %v1911
  %v1963 = vadd.f32 %v1962, %v1912
  %v1964 = vadd.f32 %v1963, %v1913
  %v1965 = vadd.f32 %v1964, %v1914
  %v1966 = vadd.f32 %v1965, %v1915
  %v1967 = vadd.f32 %v1966, %v1916
  %v1968 = vsel %vm1776, %v1917, 0.0
  %v1969 = vadd.f32 %v1967, %v1968
  %v1970 = vrot.slane %v1969, 4
  %v1971 = vadd.f32 %v1969, %v1970
  %v1972 = vrot.slane %v1971, 2
  %v1973 = vadd.f32 %v1971, %v1972
  %v1974 = vrot.slane %v1973, 1
  %v1975 = vadd.f32 %v1973, %v1974
  %v1976 = vadd.f32 %v1918, %v1919
  %v1977 = vadd.f32 %v1976, %v1920
  %v1978 = vadd.f32 %v1977, %v1921
  %v1979 = vadd.f32 %v1978, %v1922
  %v1980 = vadd.f32 %v1979, %v1923
  %v1981 = vadd.f32 %v1980, %v1924
  %v1982 = vadd.f32 %v1981, %v1925
  %v1983 = vadd.f32 %v1982, %v1926
  %v1984 = vadd.f32 %v1983, %v1927
  %v1985 = vadd.f32 %v1984, %v1928
  %v1986 = vadd.f32 %v1985, %v1929
  %v1987 = vsel %vm1776, %v1930, 0.0
  %v1988 = vadd.f32 %v1986, %v1987
  %v1989 = vrot.slane %v1988, 4
  %v1990 = vadd.f32 %v1988, %v1989
  %v1991 = vrot.slane %v1990, 2
  %v1992 = vadd.f32 %v1990, %v1991
  %v1993 = vrot.slane %v1992, 1
  %v1994 = vadd.f32 %v1992, %v1993
  %v1995 = vadd.f32 %v1931, %v1932
  %v1996 = vadd.f32 %v1995, %v1933
  %v1997 = vadd.f32 %v1996, %v1934
  %v1998 = vadd.f32 %v1997, %v1935
  %v1999 = vadd.f32 %v1998, %v1936
  %v2000 = vadd.f32 %v1999, %v1937
  %v2001 = vadd.f32 %v2000, %v1938
  %v2002 = vadd.f32 %v2001, %v1939
  %v2003 = vadd.f32 %v2002, %v1940
  %v2004 = vadd.f32 %v2003, %v1941
  %v2005 = vadd.f32 %v2004, %v1942
  %v2006 = vsel %vm1776, %v1943, 0.0
  %v2007 = vadd.f32 %v2005, %v2006
  %v2008 = vrot.slane %v2007, 4
  %v2009 = vadd.f32 %v2007, %v2008
  %v2010 = vrot.slane %v2009, 2
  %v2011 = vadd.f32 %v2009, %v2010
  %v2012 = vrot.slane %v2011, 1
  %v2013 = vadd.f32 %v2011, %v2012
  %v2014 = vadd.f32 %v1944, %v1945
  %v2015 = vadd.f32 %v2014, %v1946
  %v2016 = vadd.f32 %v2015, %v1947
  %v2017 = vadd.f32 %v2016, %v1948
  %v2018 = vadd.f32 %v2017, %v1949
  %v2019 = vadd.f32 %v2018, %v1950
  %v2020 = vadd.f32 %v2019, %v1951
  %v2021 = vadd.f32 %v2020, %v1952
  %v2022 = vadd.f32 %v2021, %v1953
  %v2023 = vadd.f32 %v2022, %v1954
  %v2024 = vadd.f32 %v2023, %v1955
  %v2025 = vsel %vm1776, %v1956, 0.0
  %v2026 = vadd.f32 %v2024, %v2025
  %v2027 = vrot.slane %v2026, 4
  %v2028 = vadd.f32 %v2026, %v2027
  %v2029 = vrot.slane %v2028, 2
  %v2030 = vadd.f32 %v2028, %v2029
  %v2031 = vrot.slane %v2030, 1
  %v2032 = vadd.f32 %v2030, %v2031
  %v2033 = vadd.f32 %v1975, %v1994
  %v2034 = vadd.f32 %v2033, %v2013
  %v2035 = vadd.f32 %v2034, %v2032
  %v2036 = vmul.f32 %v2035, %v1851
  %v2037 = vadd.f32 %v2036, 1e-05
  %v2038 = vrsqrt.pop %v2037
  %v2039 = vmul.f32 %v2038, %v2037
  %v2040 = vmul.f32 %v2039, %v2038
  %v2041 = vmul.f32 0.5, %v2040
  %v2042 = vsub.f32 1.5, %v2041
  %v2043 = vmul.f32 %v2038, %v2042
  %vm2044 = vweird.f32 %v2037
  %vm2045 = vweird.f32 %v2038
  %vm2046 = vmor %vm2044, %vm2045
  %v2047 = vsel %vm2046, %v2038, %v2043
  %v2048 = vmul.f32 %v1853, %v2047
  %v2049 = vmul.f32 %v1854, %v2047
  %v2050 = vmul.f32 %v1855, %v2047
  %v2051 = vmul.f32 %v1856, %v2047
  %v2052 = vmul.f32 %v1857, %v2047
  %v2053 = vmul.f32 %v1858, %v2047
  %v2054 = vmul.f32 %v1859, %v2047
  %v2055 = vmul.f32 %v1860, %v2047
  %v2056 = vmul.f32 %v1861, %v2047
  %v2057 = vmul.f32 %v1862, %v2047
  %v2058 = vmul.f32 %v1863, %v2047
  %v2059 = vmul.f32 %v1864, %v2047
  %v2060 = vmul.f32 %v1865, %v2047
  %v2061 = vmul.f32 %v1866, %v2047
  %v2062 = vmul.f32 %v1867, %v2047
  %v2063 = vmul.f32 %v1868, %v2047
  %v2064 = vmul.f32 %v1869, %v2047
  %v2065 = vmul.f32 %v1870, %v2047
  %v2066 = vmul.f32 %v1871, %v2047
  %v2067 = vmul.f32 %v1872, %v2047
  %v2068 = vmul.f32 %v1873, %v2047
  %v2069 = vmul.f32 %v1874, %v2047
  %v2070 = vmul.f32 %v1875, %v2047
  %v2071 = vmul.f32 %v1876, %v2047
  %v2072 = vmul.f32 %v1877, %v2047
  %v2073 = vmul.f32 %v1878, %v2047
  %v2074 = vmul.f32 %v1879, %v2047
  %v2075 = vmul.f32 %v1880, %v2047
  %v2076 = vmul.f32 %v1881, %v2047
  %v2077 = vmul.f32 %v1882, %v2047
  %v2078 = vmul.f32 %v1883, %v2047
  %v2079 = vmul.f32 %v1884, %v2047
  %v2080 = vmul.f32 %v1885, %v2047
  %v2081 = vmul.f32 %v1886, %v2047
  %v2082 = vmul.f32 %v1887, %v2047
  %v2083 = vmul.f32 %v1888, %v2047
  %v2084 = vmul.f32 %v1889, %v2047
  %v2085 = vmul.f32 %v1890, %v2047
  %v2086 = vmul.f32 %v1891, %v2047
  %v2087 = vmul.f32 %v1892, %v2047
  %v2088 = vmul.f32 %v1893, %v2047
  %v2089 = vmul.f32 %v1894, %v2047
  %v2090 = vmul.f32 %v1895, %v2047
  %v2091 = vmul.f32 %v1896, %v2047
  %v2092 = vmul.f32 %v1897, %v2047
  %v2093 = vmul.f32 %v1898, %v2047
  %v2094 = vmul.f32 %v1899, %v2047
  %v2095 = vmul.f32 %v1900, %v2047
  %v2096 = vmul.f32 %v1901, %v2047
  %v2097 = vmul.f32 %v1902, %v2047
  %v2098 = vmul.f32 %v1903, %v2047
  %v2099 = vmul.f32 %v1904, %v2047
  %v2100 = vld [vmem:[%s3] sm:$0x1]
  %v2102 = vperm.slane %v2100, 0
  %v2104 = vmul.f32 %v2048, %v2102
  %v2105 = vmul.f32 %v2049, %v2102
  %v2106 = vmul.f32 %v2050, %v2102
  %v2107 = vmul.f32 %v2051, %v2102
  %v2108 = vmul.f32 %v2052, %v2102
  %v2109 = vmul.f32 %v2053, %v2102
  %v2110 = vmul.f32 %v2054, %v2102
  %v2111 = vmul.f32 %v2055, %v2102
  %v2112 = vmul.f32 %v2056, %v2102
  %v2113 = vmul.f32 %v2057, %v2102
  %v2114 = vmul.f32 %v2058, %v2102
  %v2115 = vmul.f32 %v2059, %v2102
  %v2116 = vmul.f32 %v2060, %v2102
  %v2117 = vmul.f32 %v2061, %v2102
  %v2118 = vmul.f32 %v2062, %v2102
  %v2119 = vmul.f32 %v2063, %v2102
  %v2120 = vmul.f32 %v2064, %v2102
  %v2121 = vmul.f32 %v2065, %v2102
  %v2122 = vmul.f32 %v2066, %v2102
  %v2123 = vmul.f32 %v2067, %v2102
  %v2124 = vmul.f32 %v2068, %v2102
  %v2125 = vmul.f32 %v2069, %v2102
  %v2126 = vmul.f32 %v2070, %v2102
  %v2127 = vmul.f32 %v2071, %v2102
  %v2128 = vmul.f32 %v2072, %v2102
  %v2129 = vmul.f32 %v2073, %v2102
  %v2130 = vmul.f32 %v2074, %v2102
  %v2131 = vmul.f32 %v2075, %v2102
  %v2132 = vmul.f32 %v2076, %v2102
  %v2133 = vmul.f32 %v2077, %v2102
  %v2134 = vmul.f32 %v2078, %v2102
  %v2135 = vmul.f32 %v2079, %v2102
  %v2136 = vmul.f32 %v2080, %v2102
  %v2137 = vmul.f32 %v2081, %v2102
  %v2138 = vmul.f32 %v2082, %v2102
  %v2139 = vmul.f32 %v2083, %v2102
  %v2140 = vmul.f32 %v2084, %v2102
  %v2141 = vmul.f32 %v2085, %v2102
  %v2142 = vmul.f32 %v2086, %v2102
  %v2143 = vmul.f32 %v2087, %v2102
  %v2144 = vmul.f32 %v2088, %v2102
  %v2145 = vmul.f32 %v2089, %v2102
  %v2146 = vmul.f32 %v2090, %v2102
  %v2147 = vmul.f32 %v2091, %v2102
  %v2148 = vmul.f32 %v2092, %v2102
  %v2149 = vmul.f32 %v2093, %v2102
  %v2150 = vmul.f32 %v2094, %v2102
  %v2151 = vmul.f32 %v2095, %v2102
  %v2152 = vmul.f32 %v2096, %v2102
  %v2153 = vmul.f32 %v2097, %v2102
  %v2154 = vmul.f32 %v2098, %v2102
  %v2155 = vmul.f32 %v2099, %v2102
  %v2156 = vld [vmem:[%s4] sm:$0x1]
  %v2158 = vperm.slane %v2156, 0
  %v2160 = vadd.f32 %v2104, %v2158
  %v2161 = vadd.f32 %v2105, %v2158
  %v2162 = vadd.f32 %v2106, %v2158
  %v2163 = vadd.f32 %v2107, %v2158
  %v2164 = vadd.f32 %v2108, %v2158
  %v2165 = vadd.f32 %v2109, %v2158
  %v2166 = vadd.f32 %v2110, %v2158
  %v2167 = vadd.f32 %v2111, %v2158
  %v2168 = vadd.f32 %v2112, %v2158
  %v2169 = vadd.f32 %v2113, %v2158
  %v2170 = vadd.f32 %v2114, %v2158
  %v2171 = vadd.f32 %v2115, %v2158
  %v2172 = vadd.f32 %v2116, %v2158
  %v2173 = vadd.f32 %v2117, %v2158
  %v2174 = vadd.f32 %v2118, %v2158
  %v2175 = vadd.f32 %v2119, %v2158
  %v2176 = vadd.f32 %v2120, %v2158
  %v2177 = vadd.f32 %v2121, %v2158
  %v2178 = vadd.f32 %v2122, %v2158
  %v2179 = vadd.f32 %v2123, %v2158
  %v2180 = vadd.f32 %v2124, %v2158
  %v2181 = vadd.f32 %v2125, %v2158
  %v2182 = vadd.f32 %v2126, %v2158
  %v2183 = vadd.f32 %v2127, %v2158
  %v2184 = vadd.f32 %v2128, %v2158
  %v2185 = vadd.f32 %v2129, %v2158
  %v2186 = vadd.f32 %v2130, %v2158
  %v2187 = vadd.f32 %v2131, %v2158
  %v2188 = vadd.f32 %v2132, %v2158
  %v2189 = vadd.f32 %v2133, %v2158
  %v2190 = vadd.f32 %v2134, %v2158
  %v2191 = vadd.f32 %v2135, %v2158
  %v2192 = vadd.f32 %v2136, %v2158
  %v2193 = vadd.f32 %v2137, %v2158
  %v2194 = vadd.f32 %v2138, %v2158
  %v2195 = vadd.f32 %v2139, %v2158
  %v2196 = vadd.f32 %v2140, %v2158
  %v2197 = vadd.f32 %v2141, %v2158
  %v2198 = vadd.f32 %v2142, %v2158
  %v2199 = vadd.f32 %v2143, %v2158
  %v2200 = vadd.f32 %v2144, %v2158
  %v2201 = vadd.f32 %v2145, %v2158
  %v2202 = vadd.f32 %v2146, %v2158
  %v2203 = vadd.f32 %v2147, %v2158
  %v2204 = vadd.f32 %v2148, %v2158
  %v2205 = vadd.f32 %v2149, %v2158
  %v2206 = vadd.f32 %v2150, %v2158
  %v2207 = vadd.f32 %v2151, %v2158
  %v2208 = vadd.f32 %v2152, %v2158
  %v2209 = vadd.f32 %v2153, %v2158
  %v2210 = vadd.f32 %v2154, %v2158
  %v2211 = vadd.f32 %v2155, %v2158
  %v2212 = vmax.f32 %v2160, 0.0
  %v2213 = vmax.f32 %v2161, 0.0
  %v2214 = vmax.f32 %v2162, 0.0
  %v2215 = vmax.f32 %v2163, 0.0
  %v2216 = vmax.f32 %v2164, 0.0
  %v2217 = vmax.f32 %v2165, 0.0
  %v2218 = vmax.f32 %v2166, 0.0
  %v2219 = vmax.f32 %v2167, 0.0
  %v2220 = vmax.f32 %v2168, 0.0
  %v2221 = vmax.f32 %v2169, 0.0
  %v2222 = vmax.f32 %v2170, 0.0
  %v2223 = vmax.f32 %v2171, 0.0
  %v2224 = vmax.f32 %v2172, 0.0
  %v2225 = vmax.f32 %v2173, 0.0
  %v2226 = vmax.f32 %v2174, 0.0
  %v2227 = vmax.f32 %v2175, 0.0
  %v2228 = vmax.f32 %v2176, 0.0
  %v2229 = vmax.f32 %v2177, 0.0
  %v2230 = vmax.f32 %v2178, 0.0
  %v2231 = vmax.f32 %v2179, 0.0
  %v2232 = vmax.f32 %v2180, 0.0
  %v2233 = vmax.f32 %v2181, 0.0
  %v2234 = vmax.f32 %v2182, 0.0
  %v2235 = vmax.f32 %v2183, 0.0
  %v2236 = vmax.f32 %v2184, 0.0
  %v2237 = vmax.f32 %v2185, 0.0
  %v2238 = vmax.f32 %v2186, 0.0
  %v2239 = vmax.f32 %v2187, 0.0
  %v2240 = vmax.f32 %v2188, 0.0
  %v2241 = vmax.f32 %v2189, 0.0
  %v2242 = vmax.f32 %v2190, 0.0
  %v2243 = vmax.f32 %v2191, 0.0
  %v2244 = vmax.f32 %v2192, 0.0
  %v2245 = vmax.f32 %v2193, 0.0
  %v2246 = vmax.f32 %v2194, 0.0
  %v2247 = vmax.f32 %v2195, 0.0
  %v2248 = vmax.f32 %v2196, 0.0
  %v2249 = vmax.f32 %v2197, 0.0
  %v2250 = vmax.f32 %v2198, 0.0
  %v2251 = vmax.f32 %v2199, 0.0
  %v2252 = vmax.f32 %v2200, 0.0
  %v2253 = vmax.f32 %v2201, 0.0
  %v2254 = vmax.f32 %v2202, 0.0
  %v2255 = vmax.f32 %v2203, 0.0
  %v2256 = vmax.f32 %v2204, 0.0
  %v2257 = vmax.f32 %v2205, 0.0
  %v2258 = vmax.f32 %v2206, 0.0
  %v2259 = vmax.f32 %v2207, 0.0
  %v2260 = vmax.f32 %v2208, 0.0
  %v2261 = vmax.f32 %v2209, 0.0
  %v2262 = vmax.f32 %v2210, 0.0
  %v2263 = vmax.f32 %v2211, 0.0
  %2264 = vst [vmem:[%s5] sm:$0xff] %v2212
  %2265 = vst [vmem:[%s5 + $0x8] sm:$0xff] %v2213
  %2266 = vst [vmem:[%s5 + $0x10] sm:$0xff] %v2214
  %2267 = vst [vmem:[%s5 + $0x18] sm:$0xff] %v2215
  %2268 = vst [vmem:[%s5 + $0x20] sm:$0xff] %v2216
  %2269 = vst [vmem:[%s5 + $0x28] sm:$0xff] %v2217
  %2270 = vst [vmem:[%s5 + $0x30] sm:$0xff] %v2218
  %2271 = vst [vmem:[%s5 + $0x38] sm:$0xff] %v2219
  %2272 = vst [vmem:[%s5 + $0x40] sm:$0xff] %v2220
  %2273 = vst [vmem:[%s5 + $0x48] sm:$0xff] %v2221
  %2274 = vst [vmem:[%s5 + $0x50] sm:$0xff] %v2222
  %2275 = vst [vmem:[%s5 + $0x58] sm:$0xff] %v2223
  %2276 = vst [vmem:[%s5 + $0x60] sm:$0x3] %v2224
  %2277 = vst [vmem:[%s5 + $0x68] sm:$0xff] %v2225
  %2278 = vst [vmem:[%s5 + $0x70] sm:$0xff] %v2226
  %2279 = vst [vmem:[%s5 + $0x78] sm:$0xff] %v2227
  %2280 = vst [vmem:[%s5 + $0x80] sm:$0xff] %v2228
  %2281 = vst [vmem:[%s5 + $0x88] sm:$0xff] %v2229
  %2282 = vst [vmem:[%s5 + $0x90] sm:$0xff] %v2230
  %2283 = vst [vmem:[%s5 + $0x98] sm:$0xff] %v2231
  %2284 = vst [vmem:[%s5 + $0xa0] sm:$0xff] %v2232
  %2285 = vst [vmem:[%s5 + $0xa8] sm:$0xff] %v2233
  %2286 = vst [vmem:[%s5 + $0xb0] sm:$0xff] %v2234
  %2287 = vst [vmem:[%s5 + $0xb8] sm:$0xff] %v2235
  %2288 = vst [vmem:[%s5 + $0xc0] sm:$0xff] %v2236
  %2289 = vst [vmem:[%s5 + $0xc8] sm:$0x3] %v2237
  %2290 = vst [vmem:[%s5 + $0xd0] sm:$0xff] %v2238
  %2291 = vst [vmem:[%s5 + $0xd8] sm:$0xff] %v2239
  %2292 = vst [vmem:[%s5 + $0xe0] sm:$0xff] %v2240
  %2293 = vst [vmem:[%s5 + $0xe8] sm:$0xff] %v2241
  %2294 = vst [vmem:[%s5 + $0xf0] sm:$0xff] %v2242
  %2295 = vst [vmem:[%s5 + $0xf8] sm:$0xff] %v2243
  %2296 = vst [vmem:[%s5 + $0x100] sm:$0xff] %v2244
  %2297 = vst [vmem:[%s5 + $0x108] sm:$0xff] %v2245
  %2298 = vst [vmem:[%s5 + $0x110] sm:$0xff] %v2246
  %2299 = vst [vmem:[%s5 + $0x118] sm:$0xff] %v2247
  %2300 = vst [vmem:[%s5 + $0x120] sm:$0xff] %v2248
  %2301 = vst [vmem:[%s5 + $0x128] sm:$0xff] %v2249
  %2302 = vst [vmem:[%s5 + $0x130] sm:$0x3] %v2250
  %2303 = vst [vmem:[%s5 + $0x138] sm:$0xff] %v2251
  %2304 = vst [vmem:[%s5 + $0x140] sm:$0xff] %v2252
  %2305 = vst [vmem:[%s5 + $0x148] sm:$0xff] %v2253
  %2306 = vst [vmem:[%s5 + $0x150] sm:$0xff] %v2254
  %2307 = vst [vmem:[%s5 + $0x158] sm:$0xff] %v2255
  %2308 = vst [vmem:[%s5 + $0x160] sm:$0xff] %v2256
  %2309 = vst [vmem:[%s5 + $0x168] sm:$0xff] %v2257
  %2310 = vst [vmem:[%s5 + $0x170] sm:$0xff] %v2258
  %2311 = vst [vmem:[%s5 + $0x178] sm:$0xff] %v2259
  %2312 = vst [vmem:[%s5 + $0x180] sm:$0xff] %v2260
  %2313 = vst [vmem:[%s5 + $0x188] sm:$0xff] %v2261
  %2314 = vst [vmem:[%s5 + $0x190] sm:$0xff] %v2262
  %2315 = vst [vmem:[%s5 + $0x198] sm:$0x3] %v2263
  // Predicated region
  $region22: #{generator_forward.4} parent=0 // pred_check
    _
  $region23: #{generator_forward.4} parent=0 // pred_check_branch
    %2317 = sbr.rel (0) target = $region25
  $region24: #{generator_forward.4} parent=0 // pred_region
    _
  $region25: #{generator_forward.4} parent=0 // pred_fallthru
    _
  // Predicated region
  $region26: #{generator_forward.4} parent=0 // pred_check
    _
  $region27: #{generator_forward.4} parent=0 // pred_check_branch
    %2319 = sbr.rel (0) target = $region29
  $region28: #{generator_forward.4} parent=0 // pred_region
    _
  $region29: #{generator_forward.4} parent=0 // pred_fallthru
    _

// kernel: generator_forward.5
$region0: #{generator_forward.5}
  #allocation0 [shape = 'u32[]', space=smem, size = 0x4, offset = 0x4, fixed_abs, tag = 'smem constant byte address 0x4 - core index']
  #allocation1 [shape = 'u32[72,128]{1,0:T(1,128)}', space=vmem, size = 0x9000, scoped, tag = 'internal scratch']
  %s0 = inlined_call_operand.vmem [shape: f32[4,392,256], index: 0, kind: input, shape index: {}]
  %s1 = inlined_call_operand.vmem [shape: bf16[4,256,128], index: 1, kind: input, shape index: {}]
  %s2 = inlined_call_operand.vmem [shape: f32[1,128], index: 2, kind: input, shape index: {}]
  %s3 = inlined_call_operand.vmem [shape: f32[4,392,128], index: 3, kind: output, shape index: {}]
  %s4 = sld [smem:[#allocation0]]
  $region22: #{generator_forward.5} parent=0
    _
  %s6 = ssub.s32 1, %s4
  %s7 = scalar_select 0, %s6, %s4
  // Predicated region
  $region2: #{generator_forward.5} parent=0 // pred_check
    _
  $region3: #{generator_forward.5} parent=0 // pred_check_branch
    %9 = sbr.rel (0) target = $region5
  $region4: #{generator_forward.5} parent=0 // pred_region
    _
  $region5: #{generator_forward.5} parent=0 // pred_fallthru
    _
  // Predicated region
  $region6: #{generator_forward.5} parent=0 // pred_check
    _
  $region7: #{generator_forward.5} parent=0 // pred_check_branch
    %11 = sbr.rel (0) target = $region9
  $region8: #{generator_forward.5} parent=0 // pred_region
    _
  $region9: #{generator_forward.5} parent=0 // pred_fallthru
    _
  // Predicated region
  $region10: #{generator_forward.5} parent=0 // pred_check
    _
  $region11: #{generator_forward.5} parent=0 // pred_check_branch
    %13 = sbr.rel (0) target = $region13
  $region12: #{generator_forward.5} parent=0 // pred_region
    _
  $region13: #{generator_forward.5} parent=0 // pred_fallthru
    _
  %v14 = vld [vmem:[%s0] sm:$0xff]
  %v15 = vld [vmem:[%s0 + $0x8] sm:$0xff]
  %v16 = vld [vmem:[%s0 + $0x10] sm:$0xff]
  %v17 = vld [vmem:[%s0 + $0x18] sm:$0xff]
  %v18 = vld [vmem:[%s0 + $0x20] sm:$0xff]
  %v19 = vld [vmem:[%s0 + $0x28] sm:$0xff]
  %v20 = vld [vmem:[%s0 + $0x30] sm:$0xff]
  %v21 = vld [vmem:[%s0 + $0x38] sm:$0xff]
  %v22 = vld [vmem:[%s0 + $0x40] sm:$0xff]
  %v23 = vld [vmem:[%s0 + $0x48] sm:$0xff]
  %v24 = vld [vmem:[%s0 + $0x50] sm:$0xff]
  %v25 = vld [vmem:[%s0 + $0x58] sm:$0xff]
  %v26 = vld [vmem:[%s0 + $0x60] sm:$0xff]
  %v27 = vld [vmem:[%s0 + $0x68] sm:$0xff]
  %v28 = vld [vmem:[%s0 + $0x70] sm:$0xff]
  %v29 = vld [vmem:[%s0 + $0x78] sm:$0xff]
  %v30 = vld [vmem:[%s0 + $0x80] sm:$0xff]
  %v31 = vld [vmem:[%s0 + $0x88] sm:$0xff]
  %v32 = vld [vmem:[%s0 + $0x90] sm:$0xff]
  %v33 = vld [vmem:[%s0 + $0x98] sm:$0xff]
  %v34 = vld [vmem:[%s0 + $0xa0] sm:$0xff]
  %v35 = vld [vmem:[%s0 + $0xa8] sm:$0xff]
  %v36 = vld [vmem:[%s0 + $0xb0] sm:$0xff]
  %v37 = vld [vmem:[%s0 + $0xb8] sm:$0xff]
  %v38 = vld [vmem:[%s0 + $0xc0] sm:$0xff]
  %v39 = vld [vmem:[%s0 + $0xc8] sm:$0xff]
  %v40 = vld [vmem:[%s0 + $0xd0] sm:$0xff]
  %v41 = vld [vmem:[%s0 + $0xd8] sm:$0xff]
  %v42 = vld [vmem:[%s0 + $0xe0] sm:$0xff]
  %v43 = vld [vmem:[%s0 + $0xe8] sm:$0xff]
  %v44 = vld [vmem:[%s0 + $0xf0] sm:$0xff]
  %v45 = vld [vmem:[%s0 + $0xf8] sm:$0xff]
  %v46 = vld [vmem:[%s0 + $0x100] sm:$0xff]
  %v47 = vld [vmem:[%s0 + $0x108] sm:$0xff]
  %v48 = vld [vmem:[%s0 + $0x110] sm:$0xff]
  %v49 = vld [vmem:[%s0 + $0x118] sm:$0xff]
  %v50 = vld [vmem:[%s0 + $0x120] sm:$0xff]
  %v51 = vld [vmem:[%s0 + $0x128] sm:$0xff]
  %v52 = vld [vmem:[%s0 + $0x130] sm:$0xff]
  %v53 = vld [vmem:[%s0 + $0x138] sm:$0xff]
  %v54 = vld [vmem:[%s0 + $0x140] sm:$0xff]
  %v55 = vld [vmem:[%s0 + $0x148] sm:$0xff]
  %v56 = vld [vmem:[%s0 + $0x150] sm:$0xff]
  %v57 = vld [vmem:[%s0 + $0x158] sm:$0xff]
  %v58 = vld [vmem:[%s0 + $0x160] sm:$0xff]
  %v59 = vld [vmem:[%s0 + $0x168] sm:$0xff]
  %v60 = vld [vmem:[%s0 + $0x170] sm:$0xff]
  %v61 = vld [vmem:[%s0 + $0x178] sm:$0xff]
  %v62 = vld [vmem:[%s0 + $0x180] sm:$0xff]
  %v63 = vld [vmem:[%s0 + $0x188] sm:$0xff]
  %v64 = vld [vmem:[%s0 + $0x190] sm:$0xff]
  %v65 = vld [vmem:[%s0 + $0x198] sm:$0xff]
  %v66 = vld [vmem:[%s0 + $0x1a0] sm:$0xff]
  %v67 = vld [vmem:[%s0 + $0x1a8] sm:$0xff]
  %v68 = vld [vmem:[%s0 + $0x1b0] sm:$0xff]
  %v69 = vld [vmem:[%s0 + $0x1b8] sm:$0xff]
  %v70 = vld [vmem:[%s0 + $0x1c0] sm:$0xff]
  %v71 = vld [vmem:[%s0 + $0x1c8] sm:$0xff]
  %v72 = vld [vmem:[%s0 + $0x1d0] sm:$0xff]
  %v73 = vld [vmem:[%s0 + $0x1d8] sm:$0xff]
  %v74 = vld [vmem:[%s0 + $0x1e0] sm:$0xff]
  %v75 = vld [vmem:[%s0 + $0x1e8] sm:$0xff]
  %v76 = vld [vmem:[%s0 + $0x1f0] sm:$0xff]
  %v77 = vld [vmem:[%s0 + $0x1f8] sm:$0xff]
  %v78 = vld [vmem:[%s0 + $0x200] sm:$0xff]
  %v79 = vld [vmem:[%s0 + $0x208] sm:$0xff]
  %v80 = vld [vmem:[%s0 + $0x210] sm:$0xff]
  %v81 = vld [vmem:[%s0 + $0x218] sm:$0xff]
  %v82 = vld [vmem:[%s0 + $0x220] sm:$0xff]
  %v83 = vld [vmem:[%s0 + $0x228] sm:$0xff]
  %v84 = vld [vmem:[%s0 + $0x230] sm:$0xff]
  %v85 = vld [vmem:[%s0 + $0x238] sm:$0xff]
  %v86 = vld [vmem:[%s0 + $0x240] sm:$0xff]
  %v87 = vld [vmem:[%s0 + $0x248] sm:$0xff]
  %v88 = vld [vmem:[%s0 + $0x250] sm:$0xff]
  %v89 = vld [vmem:[%s0 + $0x258] sm:$0xff]
  %v90 = vld [vmem:[%s0 + $0x260] sm:$0xff]
  %v91 = vld [vmem:[%s0 + $0x268] sm:$0xff]
  %v92 = vld [vmem:[%s0 + $0x270] sm:$0xff]
  %v93 = vld [vmem:[%s0 + $0x278] sm:$0xff]
  %v94 = vld [vmem:[%s0 + $0x280] sm:$0xff]
  %v95 = vld [vmem:[%s0 + $0x288] sm:$0xff]
  %v96 = vld [vmem:[%s0 + $0x290] sm:$0xff]
  %v97 = vld [vmem:[%s0 + $0x298] sm:$0xff]
  %v98 = vld [vmem:[%s0 + $0x2a0] sm:$0xff]
  %v99 = vld [vmem:[%s0 + $0x2a8] sm:$0xff]
  %v100 = vld [vmem:[%s0 + $0x2b0] sm:$0xff]
  %v101 = vld [vmem:[%s0 + $0x2b8] sm:$0xff]
  %v102 = vld [vmem:[%s0 + $0x2c0] sm:$0xff]
  %v103 = vld [vmem:[%s0 + $0x2c8] sm:$0xff]
  %v104 = vld [vmem:[%s0 + $0x2d0] sm:$0xff]
  %v105 = vld [vmem:[%s0 + $0x2d8] sm:$0xff]
  %v106 = vld [vmem:[%s0 + $0x2e0] sm:$0xff]
  %v107 = vld [vmem:[%s0 + $0x2e8] sm:$0xff]
  %v108 = vld [vmem:[%s0 + $0x2f0] sm:$0xff]
  %v109 = vld [vmem:[%s0 + $0x2f8] sm:$0xff]
  %v110 = vld [vmem:[%s0 + $0x300] sm:$0xff]
  %v111 = vld [vmem:[%s0 + $0x308] sm:$0xff]
  %v112 = vld [vmem:[%s1] sm:$0xf]
  %v113 = vld [vmem:[%s1 + $0x4] sm:$0xf]
  %v114 = vld [vmem:[%s1 + $0x8] sm:$0xf]
  %v115 = vld [vmem:[%s1 + $0xc] sm:$0xf]
  %v116 = vld [vmem:[%s1 + $0x10] sm:$0xf]
  %v117 = vld [vmem:[%s1 + $0x14] sm:$0xf]
  %v118 = vld [vmem:[%s1 + $0x18] sm:$0xf]
  %v119 = vld [vmem:[%s1 + $0x1c] sm:$0xf]
  %v120 = vld [vmem:[%s1 + $0x20] sm:$0xf]
  %v121 = vld [vmem:[%s1 + $0x24] sm:$0xf]
  %v122 = vld [vmem:[%s1 + $0x28] sm:$0xf]
  %v123 = vld [vmem:[%s1 + $0x2c] sm:$0xf]
  %v124 = vld [vmem:[%s1 + $0x30] sm:$0xf]
  %v125 = vld [vmem:[%s1 + $0x34] sm:$0xf]
  %v126 = vld [vmem:[%s1 + $0x38] sm:$0xf]
  %v127 = vld [vmem:[%s1 + $0x3c] sm:$0xf]
  %v128 = vld [vmem:[%s1 + $0x40] sm:$0xf]
  %v129 = vld [vmem:[%s1 + $0x44] sm:$0xf]
  %v130 = vld [vmem:[%s1 + $0x48] sm:$0xf]
  %v131 = vld [vmem:[%s1 + $0x4c] sm:$0xf]
  %v132 = vld [vmem:[%s1 + $0x50] sm:$0xf]
  %v133 = vld [vmem:[%s1 + $0x54] sm:$0xf]
  %v134 = vld [vmem:[%s1 + $0x58] sm:$0xf]
  %v135 = vld [vmem:[%s1 + $0x5c] sm:$0xf]
  %v136 = vld [vmem:[%s1 + $0x60] sm:$0xf]
  %v137 = vld [vmem:[%s1 + $0x64] sm:$0xf]
  %v138 = vld [vmem:[%s1 + $0x68] sm:$0xf]
  %v139 = vld [vmem:[%s1 + $0x6c] sm:$0xf]
  %v140 = vld [vmem:[%s1 + $0x70] sm:$0xf]
  %v141 = vld [vmem:[%s1 + $0x74] sm:$0xf]
  %v142 = vld [vmem:[%s1 + $0x78] sm:$0xf]
  %v143 = vld [vmem:[%s1 + $0x7c] sm:$0xf]
  %v144 = vunpack.c.l.bf16 %v112
  %v145 = vunpack.c.l.bf16 %v113
  %v146 = vunpack.c.l.bf16 %v114
  %v147 = vunpack.c.l.bf16 %v115
  %v148 = vunpack.c.l.bf16 %v116
  %v149 = vunpack.c.l.bf16 %v117
  %v150 = vunpack.c.l.bf16 %v118
  %v151 = vunpack.c.l.bf16 %v119
  %v152 = vunpack.c.l.bf16 %v120
  %v153 = vunpack.c.l.bf16 %v121
  %v154 = vunpack.c.l.bf16 %v122
  %v155 = vunpack.c.l.bf16 %v123
  %v156 = vunpack.c.l.bf16 %v124
  %v157 = vunpack.c.l.bf16 %v125
  %v158 = vunpack.c.l.bf16 %v126
  %v159 = vunpack.c.l.bf16 %v127
  %v160 = vunpack.c.l.bf16 %v128
  %v161 = vunpack.c.l.bf16 %v129
  %v162 = vunpack.c.l.bf16 %v130
  %v163 = vunpack.c.l.bf16 %v131
  %v164 = vunpack.c.l.bf16 %v132
  %v165 = vunpack.c.l.bf16 %v133
  %v166 = vunpack.c.l.bf16 %v134
  %v167 = vunpack.c.l.bf16 %v135
  %v168 = vunpack.c.l.bf16 %v136
  %v169 = vunpack.c.l.bf16 %v137
  %v170 = vunpack.c.l.bf16 %v138
  %v171 = vunpack.c.l.bf16 %v139
  %v172 = vunpack.c.l.bf16 %v140
  %v173 = vunpack.c.l.bf16 %v141
  %v174 = vunpack.c.l.bf16 %v142
  %v175 = vunpack.c.l.bf16 %v143
  %v176 = vld [vmem:[%s2] sm:$0x1]
  %v178 = vperm.slane %v176, 0
  %180 = vmatpush.msra.mxu0 %v159
  %181 = vmatpush.msra.mxu0 %v158
  %182 = vmatpush.msra.mxu0 %v157
  %183 = vmatpush.msra.mxu0 %v156
  %184 = vmatpush.msra.mxu0 %v155
  %185 = vmatpush.msra.mxu0 %v154
  %186 = vmatpush.msra.mxu0 %v153
  %187 = vmatpush.msra.mxu0 %v152
  %188 = vmatpush.msra.mxu0 %v151
  %189 = vmatpush.msra.mxu0 %v150
  %190 = vmatpush.msra.mxu0 %v149
  %191 = vmatpush.msra.mxu0 %v148
  %192 = vmatpush.msra.mxu0 %v147
  %193 = vmatpush.msra.mxu0 %v146
  %194 = vmatpush.msra.mxu0 %v145
  %195 = vmatpush.msra.mxu0 %v144
  %196 = vmatmul.f32.gmra.mxu0 %v14
  %v197 = vpop.f32.mrf.mxu0
  %v198 = vadd.f32 %v178, %v197
  %199 = vmatmul.f32.gmra.mxu0 %v16
  %v200 = vpop.f32.mrf.mxu0
  %v201 = vadd.f32 %v178, %v200
  %202 = vmatmul.f32.gmra.mxu0 %v18
  %v203 = vpop.f32.mrf.mxu0
  %v204 = vadd.f32 %v178, %v203
  %205 = vmatmul.f32.gmra.mxu0 %v20
  %v206 = vpop.f32.mrf.mxu0
  %v207 = vadd.f32 %v178, %v206
  %208 = vmatmul.f32.gmra.mxu0 %v22
  %v209 = vpop.f32.mrf.mxu0
  %v210 = vadd.f32 %v178, %v209
  %211 = vmatmul.f32.gmra.mxu0 %v24
  %v212 = vpop.f32.mrf.mxu0
  %v213 = vadd.f32 %v178, %v212
  %214 = vmatmul.f32.gmra.mxu0 %v26
  %v215 = vpop.f32.mrf.mxu0
  %v216 = vadd.f32 %v178, %v215
  %217 = vmatmul.f32.gmra.mxu0 %v28
  %v218 = vpop.f32.mrf.mxu0
  %v219 = vadd.f32 %v178, %v218
  %220 = vmatmul.f32.gmra.mxu0 %v30
  %v221 = vpop.f32.mrf.mxu0
  %v222 = vadd.f32 %v178, %v221
  %223 = vmatmul.f32.gmra.mxu0 %v32
  %v224 = vpop.f32.mrf.mxu0
  %v225 = vadd.f32 %v178, %v224
  %226 = vmatmul.f32.gmra.mxu0 %v34
  %v227 = vpop.f32.mrf.mxu0
  %v228 = vadd.f32 %v178, %v227
  %229 = vmatmul.f32.gmra.mxu0 %v36
  %v230 = vpop.f32.mrf.mxu0
  %v231 = vadd.f32 %v178, %v230
  %232 = vmatmul.f32.gmra.mxu0 %v38
  %v233 = vpop.f32.mrf.mxu0
  %v234 = vadd.f32 %v178, %v233
  %235 = vmatmul.f32.gmra.mxu0 %v40
  %v236 = vpop.f32.mrf.mxu0
  %v237 = vadd.f32 %v178, %v236
  %238 = vmatmul.f32.gmra.mxu0 %v42
  %v239 = vpop.f32.mrf.mxu0
  %v240 = vadd.f32 %v178, %v239
  %241 = vmatmul.f32.gmra.mxu0 %v44
  %v242 = vpop.f32.mrf.mxu0
  %v243 = vadd.f32 %v178, %v242
  %244 = vmatmul.f32.gmra.mxu0 %v46
  %v245 = vpop.f32.mrf.mxu0
  %v246 = vadd.f32 %v178, %v245
  %247 = vmatmul.f32.gmra.mxu0 %v48
  %v248 = vpop.f32.mrf.mxu0
  %v249 = vadd.f32 %v178, %v248
  %250 = vmatmul.f32.gmra.mxu0 %v50
  %v251 = vpop.f32.mrf.mxu0
  %v252 = vadd.f32 %v178, %v251
  %253 = vmatmul.f32.gmra.mxu0 %v52
  %v254 = vpop.f32.mrf.mxu0
  %v255 = vadd.f32 %v178, %v254
  %256 = vmatmul.f32.gmra.mxu0 %v54
  %v257 = vpop.f32.mrf.mxu0
  %v258 = vadd.f32 %v178, %v257
  %259 = vmatmul.f32.gmra.mxu0 %v56
  %v260 = vpop.f32.mrf.mxu0
  %v261 = vadd.f32 %v178, %v260
  %262 = vmatmul.f32.gmra.mxu0 %v58
  %v263 = vpop.f32.mrf.mxu0
  %v264 = vadd.f32 %v178, %v263
  %265 = vmatmul.f32.gmra.mxu0 %v60
  %v266 = vpop.f32.mrf.mxu0
  %v267 = vadd.f32 %v178, %v266
  %268 = vmatmul.f32.gmra.mxu0 %v62
  %v269 = vpop.f32.mrf.mxu0
  %v270 = vadd.f32 %v178, %v269
  %271 = vmatmul.f32.gmra.mxu0 %v64
  %v272 = vpop.f32.mrf.mxu0
  %v273 = vadd.f32 %v178, %v272
  %274 = vmatmul.f32.gmra.mxu0 %v66
  %v275 = vpop.f32.mrf.mxu0
  %v276 = vadd.f32 %v178, %v275
  %277 = vmatmul.f32.gmra.mxu0 %v68
  %v278 = vpop.f32.mrf.mxu0
  %v279 = vadd.f32 %v178, %v278
  %280 = vmatmul.f32.gmra.mxu0 %v70
  %v281 = vpop.f32.mrf.mxu0
  %v282 = vadd.f32 %v178, %v281
  %283 = vmatmul.f32.gmra.mxu0 %v72
  %v284 = vpop.f32.mrf.mxu0
  %v285 = vadd.f32 %v178, %v284
  %286 = vmatmul.f32.gmra.mxu0 %v74
  %v287 = vpop.f32.mrf.mxu0
  %v288 = vadd.f32 %v178, %v287
  %289 = vmatmul.f32.gmra.mxu0 %v76
  %v290 = vpop.f32.mrf.mxu0
  %v291 = vadd.f32 %v178, %v290
  %292 = vmatmul.f32.gmra.mxu0 %v78
  %v293 = vpop.f32.mrf.mxu0
  %v294 = vadd.f32 %v178, %v293
  %295 = vmatmul.f32.gmra.mxu0 %v80
  %v296 = vpop.f32.mrf.mxu0
  %v297 = vadd.f32 %v178, %v296
  %298 = vmatmul.f32.gmra.mxu0 %v82
  %v299 = vpop.f32.mrf.mxu0
  %v300 = vadd.f32 %v178, %v299
  %301 = vmatmul.f32.gmra.mxu0 %v84
  %v302 = vpop.f32.mrf.mxu0
  %v303 = vadd.f32 %v178, %v302
  %304 = vmatmul.f32.gmra.mxu0 %v86
  %v305 = vpop.f32.mrf.mxu0
  %v306 = vadd.f32 %v178, %v305
  %307 = vmatmul.f32.gmra.mxu0 %v88
  %v308 = vpop.f32.mrf.mxu0
  %v309 = vadd.f32 %v178, %v308
  %310 = vmatmul.f32.gmra.mxu0 %v90
  %v311 = vpop.f32.mrf.mxu0
  %v312 = vadd.f32 %v178, %v311
  %313 = vmatmul.f32.gmra.mxu0 %v92
  %v314 = vpop.f32.mrf.mxu0
  %v315 = vadd.f32 %v178, %v314
  %316 = vmatmul.f32.gmra.mxu0 %v94
  %v317 = vpop.f32.mrf.mxu0
  %v318 = vadd.f32 %v178, %v317
  %319 = vmatmul.f32.gmra.mxu0 %v96
  %v320 = vpop.f32.mrf.mxu0
  %v321 = vadd.f32 %v178, %v320
  %322 = vmatmul.f32.gmra.mxu0 %v98
  %v323 = vpop.f32.mrf.mxu0
  %v324 = vadd.f32 %v178, %v323
  %325 = vmatmul.f32.gmra.mxu0 %v100
  %v326 = vpop.f32.mrf.mxu0
  %v327 = vadd.f32 %v178, %v326
  %328 = vmatmul.f32.gmra.mxu0 %v102
  %v329 = vpop.f32.mrf.mxu0
  %v330 = vadd.f32 %v178, %v329
  %331 = vmatmul.f32.gmra.mxu0 %v104
  %v332 = vpop.f32.mrf.mxu0
  %v333 = vadd.f32 %v178, %v332
  %334 = vmatmul.f32.gmra.mxu0 %v106
  %v335 = vpop.f32.mrf.mxu0
  %v336 = vadd.f32 %v178, %v335
  %337 = vmatmul.f32.gmra.mxu0 %v108
  %v338 = vpop.f32.mrf.mxu0
  %v339 = vadd.f32 %v178, %v338
  %340 = vmatmul.f32.gmra.mxu0 %v110
  %v341 = vpop.f32.mrf.mxu0
  %v342 = vadd.f32 %v178, %v341
  %343 = vdwg.mxu0
  %344 = vmatpush.msra.mxu0 %v175
  %345 = vmatpush.msra.mxu0 %v174
  %346 = vmatpush.msra.mxu0 %v173
  %347 = vmatpush.msra.mxu0 %v172
  %348 = vmatpush.msra.mxu0 %v171
  %349 = vmatpush.msra.mxu0 %v170
  %350 = vmatpush.msra.mxu0 %v169
  %351 = vmatpush.msra.mxu0 %v168
  %352 = vmatpush.msra.mxu0 %v167
  %353 = vmatpush.msra.mxu0 %v166
  %354 = vmatpush.msra.mxu0 %v165
  %355 = vmatpush.msra.mxu0 %v164
  %356 = vmatpush.msra.mxu0 %v163
  %357 = vmatpush.msra.mxu0 %v162
  %358 = vmatpush.msra.mxu0 %v161
  %359 = vmatpush.msra.mxu0 %v160
  %360 = vmatmul.f32.gmra.mxu0 %v15
  %v361 = vpop.f32.mrf.mxu0
  %v362 = vadd.f32 %v198, %v361
  %363 = vmatmul.f32.gmra.mxu0 %v17
  %v364 = vpop.f32.mrf.mxu0
  %v365 = vadd.f32 %v201, %v364
  %366 = vmatmul.f32.gmra.mxu0 %v19
  %v367 = vpop.f32.mrf.mxu0
  %v368 = vadd.f32 %v204, %v367
  %369 = vmatmul.f32.gmra.mxu0 %v21
  %v370 = vpop.f32.mrf.mxu0
  %v371 = vadd.f32 %v207, %v370
  %372 = vmatmul.f32.gmra.mxu0 %v23
  %v373 = vpop.f32.mrf.mxu0
  %v374 = vadd.f32 %v210, %v373
  %375 = vmatmul.f32.gmra.mxu0 %v25
  %v376 = vpop.f32.mrf.mxu0
  %v377 = vadd.f32 %v213, %v376
  %378 = vmatmul.f32.gmra.mxu0 %v27
  %v379 = vpop.f32.mrf.mxu0
  %v380 = vadd.f32 %v216, %v379
  %381 = vmatmul.f32.gmra.mxu0 %v29
  %v382 = vpop.f32.mrf.mxu0
  %v383 = vadd.f32 %v219, %v382
  %384 = vmatmul.f32.gmra.mxu0 %v31
  %v385 = vpop.f32.mrf.mxu0
  %v386 = vadd.f32 %v222, %v385
  %387 = vmatmul.f32.gmra.mxu0 %v33
  %v388 = vpop.f32.mrf.mxu0
  %v389 = vadd.f32 %v225, %v388
  %390 = vmatmul.f32.gmra.mxu0 %v35
  %v391 = vpop.f32.mrf.mxu0
  %v392 = vadd.f32 %v228, %v391
  %393 = vmatmul.f32.gmra.mxu0 %v37
  %v394 = vpop.f32.mrf.mxu0
  %v395 = vadd.f32 %v231, %v394
  %396 = vmatmul.f32.gmra.mxu0 %v39
  %v397 = vpop.f32.mrf.mxu0
  %v398 = vadd.f32 %v234, %v397
  %399 = vmatmul.f32.gmra.mxu0 %v41
  %v400 = vpop.f32.mrf.mxu0
  %v401 = vadd.f32 %v237, %v400
  %402 = vmatmul.f32.gmra.mxu0 %v43
  %v403 = vpop.f32.mrf.mxu0
  %v404 = vadd.f32 %v240, %v403
  %405 = vmatmul.f32.gmra.mxu0 %v45
  %v406 = vpop.f32.mrf.mxu0
  %v407 = vadd.f32 %v243, %v406
  %408 = vmatmul.f32.gmra.mxu0 %v47
  %v409 = vpop.f32.mrf.mxu0
  %v410 = vadd.f32 %v246, %v409
  %411 = vmatmul.f32.gmra.mxu0 %v49
  %v412 = vpop.f32.mrf.mxu0
  %v413 = vadd.f32 %v249, %v412
  %414 = vmatmul.f32.gmra.mxu0 %v51
  %v415 = vpop.f32.mrf.mxu0
  %v416 = vadd.f32 %v252, %v415
  %417 = vmatmul.f32.gmra.mxu0 %v53
  %v418 = vpop.f32.mrf.mxu0
  %v419 = vadd.f32 %v255, %v418
  %420 = vmatmul.f32.gmra.mxu0 %v55
  %v421 = vpop.f32.mrf.mxu0
  %v422 = vadd.f32 %v258, %v421
  %423 = vmatmul.f32.gmra.mxu0 %v57
  %v424 = vpop.f32.mrf.mxu0
  %v425 = vadd.f32 %v261, %v424
  %426 = vmatmul.f32.gmra.mxu0 %v59
  %v427 = vpop.f32.mrf.mxu0
  %v428 = vadd.f32 %v264, %v427
  %429 = vmatmul.f32.gmra.mxu0 %v61
  %v430 = vpop.f32.mrf.mxu0
  %v431 = vadd.f32 %v267, %v430
  %432 = vmatmul.f32.gmra.mxu0 %v63
  %v433 = vpop.f32.mrf.mxu0
  %v434 = vadd.f32 %v270, %v433
  %435 = vmatmul.f32.gmra.mxu0 %v65
  %v436 = vpop.f32.mrf.mxu0
  %v437 = vadd.f32 %v273, %v436
  %438 = vmatmul.f32.gmra.mxu0 %v67
  %v439 = vpop.f32.mrf.mxu0
  %v440 = vadd.f32 %v276, %v439
  %441 = vmatmul.f32.gmra.mxu0 %v69
  %v442 = vpop.f32.mrf.mxu0
  %v443 = vadd.f32 %v279, %v442
  %444 = vmatmul.f32.gmra.mxu0 %v71
  %v445 = vpop.f32.mrf.mxu0
  %v446 = vadd.f32 %v282, %v445
  %447 = vmatmul.f32.gmra.mxu0 %v73
  %v448 = vpop.f32.mrf.mxu0
  %v449 = vadd.f32 %v285, %v448
  %450 = vmatmul.f32.gmra.mxu0 %v75
  %v451 = vpop.f32.mrf.mxu0
  %v452 = vadd.f32 %v288, %v451
  %453 = vmatmul.f32.gmra.mxu0 %v77
  %v454 = vpop.f32.mrf.mxu0
  %v455 = vadd.f32 %v291, %v454
  %456 = vmatmul.f32.gmra.mxu0 %v79
  %v457 = vpop.f32.mrf.mxu0
  %v458 = vadd.f32 %v294, %v457
  %459 = vmatmul.f32.gmra.mxu0 %v81
  %v460 = vpop.f32.mrf.mxu0
  %v461 = vadd.f32 %v297, %v460
  %462 = vmatmul.f32.gmra.mxu0 %v83
  %v463 = vpop.f32.mrf.mxu0
  %v464 = vadd.f32 %v300, %v463
  %465 = vmatmul.f32.gmra.mxu0 %v85
  %v466 = vpop.f32.mrf.mxu0
  %v467 = vadd.f32 %v303, %v466
  %468 = vmatmul.f32.gmra.mxu0 %v87
  %v469 = vpop.f32.mrf.mxu0
  %v470 = vadd.f32 %v306, %v469
  %471 = vmatmul.f32.gmra.mxu0 %v89
  %v472 = vpop.f32.mrf.mxu0
  %v473 = vadd.f32 %v309, %v472
  %474 = vmatmul.f32.gmra.mxu0 %v91
  %v475 = vpop.f32.mrf.mxu0
  %v476 = vadd.f32 %v312, %v475
  %477 = vmatmul.f32.gmra.mxu0 %v93
  %v478 = vpop.f32.mrf.mxu0
  %v479 = vadd.f32 %v315, %v478
  %480 = vmatmul.f32.gmra.mxu0 %v95
  %v481 = vpop.f32.mrf.mxu0
  %v482 = vadd.f32 %v318, %v481
  %483 = vmatmul.f32.gmra.mxu0 %v97
  %v484 = vpop.f32.mrf.mxu0
  %v485 = vadd.f32 %v321, %v484
  %486 = vmatmul.f32.gmra.mxu0 %v99
  %v487 = vpop.f32.mrf.mxu0
  %v488 = vadd.f32 %v324, %v487
  %489 = vmatmul.f32.gmra.mxu0 %v101
  %v490 = vpop.f32.mrf.mxu0
  %v491 = vadd.f32 %v327, %v490
  %492 = vmatmul.f32.gmra.mxu0 %v103
  %v493 = vpop.f32.mrf.mxu0
  %v494 = vadd.f32 %v330, %v493
  %495 = vmatmul.f32.gmra.mxu0 %v105
  %v496 = vpop.f32.mrf.mxu0
  %v497 = vadd.f32 %v333, %v496
  %498 = vmatmul.f32.gmra.mxu0 %v107
  %v499 = vpop.f32.mrf.mxu0
  %v500 = vadd.f32 %v336, %v499
  %501 = vmatmul.f32.gmra.mxu0 %v109
  %v502 = vpop.f32.mrf.mxu0
  %v503 = vadd.f32 %v339, %v502
  %504 = vmatmul.f32.gmra.mxu0 %v111
  %v505 = vpop.f32.mrf.mxu0
  %v506 = vadd.f32 %v342, %v505
  %507 = vdwg.mxu0
  %v508 = vtanh.pop %v362
  %v509 = vtanh.pop %v365
  %v510 = vtanh.pop %v368
  %v511 = vtanh.pop %v371
  %v512 = vtanh.pop %v374
  %v513 = vtanh.pop %v377
  %v514 = vtanh.pop %v380
  %v515 = vtanh.pop %v383
  %v516 = vtanh.pop %v386
  %v517 = vtanh.pop %v389
  %v518 = vtanh.pop %v392
  %v519 = vtanh.pop %v395
  %v520 = vtanh.pop %v398
  %v521 = vtanh.pop %v401
  %v522 = vtanh.pop %v404
  %v523 = vtanh.pop %v407
  %v524 = vtanh.pop %v410
  %v525 = vtanh.pop %v413
  %v526 = vtanh.pop %v416
  %v527 = vtanh.pop %v419
  %v528 = vtanh.pop %v422
  %v529 = vtanh.pop %v425
  %v530 = vtanh.pop %v428
  %v531 = vtanh.pop %v431
  %v532 = vtanh.pop %v434
  %v533 = vtanh.pop %v437
  %v534 = vtanh.pop %v440
  %v535 = vtanh.pop %v443
  %v536 = vtanh.pop %v446
  %v537 = vtanh.pop %v449
  %v538 = vtanh.pop %v452
  %v539 = vtanh.pop %v455
  %v540 = vtanh.pop %v458
  %v541 = vtanh.pop %v461
  %v542 = vtanh.pop %v464
  %v543 = vtanh.pop %v467
  %v544 = vtanh.pop %v470
  %v545 = vtanh.pop %v473
  %v546 = vtanh.pop %v476
  %v547 = vtanh.pop %v479
  %v548 = vtanh.pop %v482
  %v549 = vtanh.pop %v485
  %v550 = vtanh.pop %v488
  %v551 = vtanh.pop %v491
  %v552 = vtanh.pop %v494
  %v553 = vtanh.pop %v497
  %v554 = vtanh.pop %v500
  %v555 = vtanh.pop %v503
  %v556 = vtanh.pop %v506
  %557 = vst [vmem:[%s3] sm:$0xff] %v508
  %558 = vst [vmem:[%s3 + $0x8] sm:$0xff] %v509
  %559 = vst [vmem:[%s3 + $0x10] sm:$0xff] %v510
  %560 = vst [vmem:[%s3 + $0x18] sm:$0xff] %v511
  %561 = vst [vmem:[%s3 + $0x20] sm:$0xff] %v512
  %562 = vst [vmem:[%s3 + $0x28] sm:$0xff] %v513
  %563 = vst [vmem:[%s3 + $0x30] sm:$0xff] %v514
  %564 = vst [vmem:[%s3 + $0x38] sm:$0xff] %v515
  %565 = vst [vmem:[%s3 + $0x40] sm:$0xff] %v516
  %566 = vst [vmem:[%s3 + $0x48] sm:$0xff] %v517
  %567 = vst [vmem:[%s3 + $0x50] sm:$0xff] %v518
  %568 = vst [vmem:[%s3 + $0x58] sm:$0xff] %v519
  %569 = vst [vmem:[%s3 + $0x60] sm:$0xff] %v520
  %570 = vst [vmem:[%s3 + $0x68] sm:$0xff] %v521
  %571 = vst [vmem:[%s3 + $0x70] sm:$0xff] %v522
  %572 = vst [vmem:[%s3 + $0x78] sm:$0xff] %v523
  %573 = vst [vmem:[%s3 + $0x80] sm:$0xff] %v524
  %574 = vst [vmem:[%s3 + $0x88] sm:$0xff] %v525
  %575 = vst [vmem:[%s3 + $0x90] sm:$0xff] %v526
  %576 = vst [vmem:[%s3 + $0x98] sm:$0xff] %v527
  %577 = vst [vmem:[%s3 + $0xa0] sm:$0xff] %v528
  %578 = vst [vmem:[%s3 + $0xa8] sm:$0xff] %v529
  %579 = vst [vmem:[%s3 + $0xb0] sm:$0xff] %v530
  %580 = vst [vmem:[%s3 + $0xb8] sm:$0xff] %v531
  %581 = vst [vmem:[%s3 + $0xc0] sm:$0xff] %v532
  %582 = vst [vmem:[%s3 + $0xc8] sm:$0xff] %v533
  %583 = vst [vmem:[%s3 + $0xd0] sm:$0xff] %v534
  %584 = vst [vmem:[%s3 + $0xd8] sm:$0xff] %v535
  %585 = vst [vmem:[%s3 + $0xe0] sm:$0xff] %v536
  %586 = vst [vmem:[%s3 + $0xe8] sm:$0xff] %v537
  %587 = vst [vmem:[%s3 + $0xf0] sm:$0xff] %v538
  %588 = vst [vmem:[%s3 + $0xf8] sm:$0xff] %v539
  %589 = vst [vmem:[%s3 + $0x100] sm:$0xff] %v540
  %590 = vst [vmem:[%s3 + $0x108] sm:$0xff] %v541
  %591 = vst [vmem:[%s3 + $0x110] sm:$0xff] %v542
  %592 = vst [vmem:[%s3 + $0x118] sm:$0xff] %v543
  %593 = vst [vmem:[%s3 + $0x120] sm:$0xff] %v544
  %594 = vst [vmem:[%s3 + $0x128] sm:$0xff] %v545
  %595 = vst [vmem:[%s3 + $0x130] sm:$0xff] %v546
  %596 = vst [vmem:[%s3 + $0x138] sm:$0xff] %v547
  %597 = vst [vmem:[%s3 + $0x140] sm:$0xff] %v548
  %598 = vst [vmem:[%s3 + $0x148] sm:$0xff] %v549
  %599 = vst [vmem:[%s3 + $0x150] sm:$0xff] %v550
  %600 = vst [vmem:[%s3 + $0x158] sm:$0xff] %v551
  %601 = vst [vmem:[%s3 + $0x160] sm:$0xff] %v552
  %602 = vst [vmem:[%s3 + $0x168] sm:$0xff] %v553
  %603 = vst [vmem:[%s3 + $0x170] sm:$0xff] %v554
  %604 = vst [vmem:[%s3 + $0x178] sm:$0xff] %v555
  %605 = vst [vmem:[%s3 + $0x180] sm:$0xff] %v556
  %s606 = scalar_lea.vmem %s0, 784
  %v607 = vld [vmem:[%s606] sm:$0xff]
  %v608 = vld [vmem:[%s606 + $0x8] sm:$0xff]
  %v609 = vld [vmem:[%s606 + $0x10] sm:$0xff]
  %v610 = vld [vmem:[%s606 + $0x18] sm:$0xff]
  %v611 = vld [vmem:[%s606 + $0x20] sm:$0xff]
  %v612 = vld [vmem:[%s606 + $0x28] sm:$0xff]
  %v613 = vld [vmem:[%s606 + $0x30] sm:$0xff]
  %v614 = vld [vmem:[%s606 + $0x38] sm:$0xff]
  %v615 = vld [vmem:[%s606 + $0x40] sm:$0xff]
  %v616 = vld [vmem:[%s606 + $0x48] sm:$0xff]
  %v617 = vld [vmem:[%s606 + $0x50] sm:$0xff]
  %v618 = vld [vmem:[%s606 + $0x58] sm:$0xff]
  %v619 = vld [vmem:[%s606 + $0x60] sm:$0xff]
  %v620 = vld [vmem:[%s606 + $0x68] sm:$0xff]
  %v621 = vld [vmem:[%s606 + $0x70] sm:$0xff]
  %v622 = vld [vmem:[%s606 + $0x78] sm:$0xff]
  %v623 = vld [vmem:[%s606 + $0x80] sm:$0xff]
  %v624 = vld [vmem:[%s606 + $0x88] sm:$0xff]
  %v625 = vld [vmem:[%s606 + $0x90] sm:$0xff]
  %v626 = vld [vmem:[%s606 + $0x98] sm:$0xff]
  %v627 = vld [vmem:[%s606 + $0xa0] sm:$0xff]
  %v628 = vld [vmem:[%s606 + $0xa8] sm:$0xff]
  %v629 = vld [vmem:[%s606 + $0xb0] sm:$0xff]
  %v630 = vld [vmem:[%s606 + $0xb8] sm:$0xff]
  %v631 = vld [vmem:[%s606 + $0xc0] sm:$0xff]
  %v632 = vld [vmem:[%s606 + $0xc8] sm:$0xff]
  %v633 = vld [vmem:[%s606 + $0xd0] sm:$0xff]
  %v634 = vld [vmem:[%s606 + $0xd8] sm:$0xff]
  %v635 = vld [vmem:[%s606 + $0xe0] sm:$0xff]
  %v636 = vld [vmem:[%s606 + $0xe8] sm:$0xff]
  %v637 = vld [vmem:[%s606 + $0xf0] sm:$0xff]
  %v638 = vld [vmem:[%s606 + $0xf8] sm:$0xff]
  %v639 = vld [vmem:[%s606 + $0x100] sm:$0xff]
  %v640 = vld [vmem:[%s606 + $0x108] sm:$0xff]
  %v641 = vld [vmem:[%s606 + $0x110] sm:$0xff]
  %v642 = vld [vmem:[%s606 + $0x118] sm:$0xff]
  %v643 = vld [vmem:[%s606 + $0x120] sm:$0xff]
  %v644 = vld [vmem:[%s606 + $0x128] sm:$0xff]
  %v645 = vld [vmem:[%s606 + $0x130] sm:$0xff]
  %v646 = vld [vmem:[%s606 + $0x138] sm:$0xff]
  %v647 = vld [vmem:[%s606 + $0x140] sm:$0xff]
  %v648 = vld [vmem:[%s606 + $0x148] sm:$0xff]
  %v649 = vld [vmem:[%s606 + $0x150] sm:$0xff]
  %v650 = vld [vmem:[%s606 + $0x158] sm:$0xff]
  %v651 = vld [vmem:[%s606 + $0x160] sm:$0xff]
  %v652 = vld [vmem:[%s606 + $0x168] sm:$0xff]
  %v653 = vld [vmem:[%s606 + $0x170] sm:$0xff]
  %v654 = vld [vmem:[%s606 + $0x178] sm:$0xff]
  %v655 = vld [vmem:[%s606 + $0x180] sm:$0xff]
  %v656 = vld [vmem:[%s606 + $0x188] sm:$0xff]
  %v657 = vld [vmem:[%s606 + $0x190] sm:$0xff]
  %v658 = vld [vmem:[%s606 + $0x198] sm:$0xff]
  %v659 = vld [vmem:[%s606 + $0x1a0] sm:$0xff]
  %v660 = vld [vmem:[%s606 + $0x1a8] sm:$0xff]
  %v661 = vld [vmem:[%s606 + $0x1b0] sm:$0xff]
  %v662 = vld [vmem:[%s606 + $0x1b8] sm:$0xff]
  %v663 = vld [vmem:[%s606 + $0x1c0] sm:$0xff]
  %v664 = vld [vmem:[%s606 + $0x1c8] sm:$0xff]
  %v665 = vld [vmem:[%s606 + $0x1d0] sm:$0xff]
  %v666 = vld [vmem:[%s606 + $0x1d8] sm:$0xff]
  %v667 = vld [vmem:[%s606 + $0x1e0] sm:$0xff]
  %v668 = vld [vmem:[%s606 + $0x1e8] sm:$0xff]
  %v669 = vld [vmem:[%s606 + $0x1f0] sm:$0xff]
  %v670 = vld [vmem:[%s606 + $0x1f8] sm:$0xff]
  %v671 = vld [vmem:[%s606 + $0x200] sm:$0xff]
  %v672 = vld [vmem:[%s606 + $0x208] sm:$0xff]
  %v673 = vld [vmem:[%s606 + $0x210] sm:$0xff]
  %v674 = vld [vmem:[%s606 + $0x218] sm:$0xff]
  %v675 = vld [vmem:[%s606 + $0x220] sm:$0xff]
  %v676 = vld [vmem:[%s606 + $0x228] sm:$0xff]
  %v677 = vld [vmem:[%s606 + $0x230] sm:$0xff]
  %v678 = vld [vmem:[%s606 + $0x238] sm:$0xff]
  %v679 = vld [vmem:[%s606 + $0x240] sm:$0xff]
  %v680 = vld [vmem:[%s606 + $0x248] sm:$0xff]
  %v681 = vld [vmem:[%s606 + $0x250] sm:$0xff]
  %v682 = vld [vmem:[%s606 + $0x258] sm:$0xff]
  %v683 = vld [vmem:[%s606 + $0x260] sm:$0xff]
  %v684 = vld [vmem:[%s606 + $0x268] sm:$0xff]
  %v685 = vld [vmem:[%s606 + $0x270] sm:$0xff]
  %v686 = vld [vmem:[%s606 + $0x278] sm:$0xff]
  %v687 = vld [vmem:[%s606 + $0x280] sm:$0xff]
  %v688 = vld [vmem:[%s606 + $0x288] sm:$0xff]
  %v689 = vld [vmem:[%s606 + $0x290] sm:$0xff]
  %v690 = vld [vmem:[%s606 + $0x298] sm:$0xff]
  %v691 = vld [vmem:[%s606 + $0x2a0] sm:$0xff]
  %v692 = vld [vmem:[%s606 + $0x2a8] sm:$0xff]
  %v693 = vld [vmem:[%s606 + $0x2b0] sm:$0xff]
  %v694 = vld [vmem:[%s606 + $0x2b8] sm:$0xff]
  %v695 = vld [vmem:[%s606 + $0x2c0] sm:$0xff]
  %v696 = vld [vmem:[%s606 + $0x2c8] sm:$0xff]
  %v697 = vld [vmem:[%s606 + $0x2d0] sm:$0xff]
  %v698 = vld [vmem:[%s606 + $0x2d8] sm:$0xff]
  %v699 = vld [vmem:[%s606 + $0x2e0] sm:$0xff]
  %v700 = vld [vmem:[%s606 + $0x2e8] sm:$0xff]
  %v701 = vld [vmem:[%s606 + $0x2f0] sm:$0xff]
  %v702 = vld [vmem:[%s606 + $0x2f8] sm:$0xff]
  %v703 = vld [vmem:[%s606 + $0x300] sm:$0xff]
  %v704 = vld [vmem:[%s606 + $0x308] sm:$0xff]
  %s705 = scalar_lea.vmem %s1, 128
  %v706 = vld [vmem:[%s705] sm:$0xf]
  %v707 = vld [vmem:[%s705 + $0x4] sm:$0xf]
  %v708 = vld [vmem:[%s705 + $0x8] sm:$0xf]
  %v709 = vld [vmem:[%s705 + $0xc] sm:$0xf]
  %v710 = vld [vmem:[%s705 + $0x10] sm:$0xf]
  %v711 = vld [vmem:[%s705 + $0x14] sm:$0xf]
  %v712 = vld [vmem:[%s705 + $0x18] sm:$0xf]
  %v713 = vld [vmem:[%s705 + $0x1c] sm:$0xf]
  %v714 = vld [vmem:[%s705 + $0x20] sm:$0xf]
  %v715 = vld [vmem:[%s705 + $0x24] sm:$0xf]
  %v716 = vld [vmem:[%s705 + $0x28] sm:$0xf]
  %v717 = vld [vmem:[%s705 + $0x2c] sm:$0xf]
  %v718 = vld [vmem:[%s705 + $0x30] sm:$0xf]
  %v719 = vld [vmem:[%s705 + $0x34] sm:$0xf]
  %v720 = vld [vmem:[%s705 + $0x38] sm:$0xf]
  %v721 = vld [vmem:[%s705 + $0x3c] sm:$0xf]
  %v722 = vld [vmem:[%s705 + $0x40] sm:$0xf]
  %v723 = vld [vmem:[%s705 + $0x44] sm:$0xf]
  %v724 = vld [vmem:[%s705 + $0x48] sm:$0xf]
  %v725 = vld [vmem:[%s705 + $0x4c] sm:$0xf]
  %v726 = vld [vmem:[%s705 + $0x50] sm:$0xf]
  %v727 = vld [vmem:[%s705 + $0x54] sm:$0xf]
  %v728 = vld [vmem:[%s705 + $0x58] sm:$0xf]
  %v729 = vld [vmem:[%s705 + $0x5c] sm:$0xf]
  %v730 = vld [vmem:[%s705 + $0x60] sm:$0xf]
  %v731 = vld [vmem:[%s705 + $0x64] sm:$0xf]
  %v732 = vld [vmem:[%s705 + $0x68] sm:$0xf]
  %v733 = vld [vmem:[%s705 + $0x6c] sm:$0xf]
  %v734 = vld [vmem:[%s705 + $0x70] sm:$0xf]
  %v735 = vld [vmem:[%s705 + $0x74] sm:$0xf]
  %v736 = vld [vmem:[%s705 + $0x78] sm:$0xf]
  %v737 = vld [vmem:[%s705 + $0x7c] sm:$0xf]
  %v738 = vunpack.c.l.bf16 %v706
  %v739 = vunpack.c.l.bf16 %v707
  %v740 = vunpack.c.l.bf16 %v708
  %v741 = vunpack.c.l.bf16 %v709
  %v742 = vunpack.c.l.bf16 %v710
  %v743 = vunpack.c.l.bf16 %v711
  %v744 = vunpack.c.l.bf16 %v712
  %v745 = vunpack.c.l.bf16 %v713
  %v746 = vunpack.c.l.bf16 %v714
  %v747 = vunpack.c.l.bf16 %v715
  %v748 = vunpack.c.l.bf16 %v716
  %v749 = vunpack.c.l.bf16 %v717
  %v750 = vunpack.c.l.bf16 %v718
  %v751 = vunpack.c.l.bf16 %v719
  %v752 = vunpack.c.l.bf16 %v720
  %v753 = vunpack.c.l.bf16 %v721
  %v754 = vunpack.c.l.bf16 %v722
  %v755 = vunpack.c.l.bf16 %v723
  %v756 = vunpack.c.l.bf16 %v724
  %v757 = vunpack.c.l.bf16 %v725
  %v758 = vunpack.c.l.bf16 %v726
  %v759 = vunpack.c.l.bf16 %v727
  %v760 = vunpack.c.l.bf16 %v728
  %v761 = vunpack.c.l.bf16 %v729
  %v762 = vunpack.c.l.bf16 %v730
  %v763 = vunpack.c.l.bf16 %v731
  %v764 = vunpack.c.l.bf16 %v732
  %v765 = vunpack.c.l.bf16 %v733
  %v766 = vunpack.c.l.bf16 %v734
  %v767 = vunpack.c.l.bf16 %v735
  %v768 = vunpack.c.l.bf16 %v736
  %v769 = vunpack.c.l.bf16 %v737
  %v770 = vld [vmem:[%s2] sm:$0x1]
  %v772 = vperm.slane %v770, 0
  %774 = vmatpush.msra.mxu0 %v753
  %775 = vmatpush.msra.mxu0 %v752
  %776 = vmatpush.msra.mxu0 %v751
  %777 = vmatpush.msra.mxu0 %v750
  %778 = vmatpush.msra.mxu0 %v749
  %779 = vmatpush.msra.mxu0 %v748
  %780 = vmatpush.msra.mxu0 %v747
  %781 = vmatpush.msra.mxu0 %v746
  %782 = vmatpush.msra.mxu0 %v745
  %783 = vmatpush.msra.mxu0 %v744
  %784 = vmatpush.msra.mxu0 %v743
  %785 = vmatpush.msra.mxu0 %v742
  %786 = vmatpush.msra.mxu0 %v741
  %787 = vmatpush.msra.mxu0 %v740
  %788 = vmatpush.msra.mxu0 %v739
  %789 = vmatpush.msra.mxu0 %v738
  %790 = vmatmul.f32.gmra.mxu0 %v607
  %v791 = vpop.f32.mrf.mxu0
  %v792 = vadd.f32 %v772, %v791
  %793 = vmatmul.f32.gmra.mxu0 %v609
  %v794 = vpop.f32.mrf.mxu0
  %v795 = vadd.f32 %v772, %v794
  %796 = vmatmul.f32.gmra.mxu0 %v611
  %v797 = vpop.f32.mrf.mxu0
  %v798 = vadd.f32 %v772, %v797
  %799 = vmatmul.f32.gmra.mxu0 %v613
  %v800 = vpop.f32.mrf.mxu0
  %v801 = vadd.f32 %v772, %v800
  %802 = vmatmul.f32.gmra.mxu0 %v615
  %v803 = vpop.f32.mrf.mxu0
  %v804 = vadd.f32 %v772, %v803
  %805 = vmatmul.f32.gmra.mxu0 %v617
  %v806 = vpop.f32.mrf.mxu0
  %v807 = vadd.f32 %v772, %v806
  %808 = vmatmul.f32.gmra.mxu0 %v619
  %v809 = vpop.f32.mrf.mxu0
  %v810 = vadd.f32 %v772, %v809
  %811 = vmatmul.f32.gmra.mxu0 %v621
  %v812 = vpop.f32.mrf.mxu0
  %v813 = vadd.f32 %v772, %v812
  %814 = vmatmul.f32.gmra.mxu0 %v623
  %v815 = vpop.f32.mrf.mxu0
  %v816 = vadd.f32 %v772, %v815
  %817 = vmatmul.f32.gmra.mxu0 %v625
  %v818 = vpop.f32.mrf.mxu0
  %v819 = vadd.f32 %v772, %v818
  %820 = vmatmul.f32.gmra.mxu0 %v627
  %v821 = vpop.f32.mrf.mxu0
  %v822 = vadd.f32 %v772, %v821
  %823 = vmatmul.f32.gmra.mxu0 %v629
  %v824 = vpop.f32.mrf.mxu0
  %v825 = vadd.f32 %v772, %v824
  %826 = vmatmul.f32.gmra.mxu0 %v631
  %v827 = vpop.f32.mrf.mxu0
  %v828 = vadd.f32 %v772, %v827
  %829 = vmatmul.f32.gmra.mxu0 %v633
  %v830 = vpop.f32.mrf.mxu0
  %v831 = vadd.f32 %v772, %v830
  %832 = vmatmul.f32.gmra.mxu0 %v635
  %v833 = vpop.f32.mrf.mxu0
  %v834 = vadd.f32 %v772, %v833
  %835 = vmatmul.f32.gmra.mxu0 %v637
  %v836 = vpop.f32.mrf.mxu0
  %v837 = vadd.f32 %v772, %v836
  %838 = vmatmul.f32.gmra.mxu0 %v639
  %v839 = vpop.f32.mrf.mxu0
  %v840 = vadd.f32 %v772, %v839
  %841 = vmatmul.f32.gmra.mxu0 %v641
  %v842 = vpop.f32.mrf.mxu0
  %v843 = vadd.f32 %v772, %v842
  %844 = vmatmul.f32.gmra.mxu0 %v643
  %v845 = vpop.f32.mrf.mxu0
  %v846 = vadd.f32 %v772, %v845
  %847 = vmatmul.f32.gmra.mxu0 %v645
  %v848 = vpop.f32.mrf.mxu0
  %v849 = vadd.f32 %v772, %v848
  %850 = vmatmul.f32.gmra.mxu0 %v647
  %v851 = vpop.f32.mrf.mxu0
  %v852 = vadd.f32 %v772, %v851
  %853 = vmatmul.f32.gmra.mxu0 %v649
  %v854 = vpop.f32.mrf.mxu0
  %v855 = vadd.f32 %v772, %v854
  %856 = vmatmul.f32.gmra.mxu0 %v651
  %v857 = vpop.f32.mrf.mxu0
  %v858 = vadd.f32 %v772, %v857
  %859 = vmatmul.f32.gmra.mxu0 %v653
  %v860 = vpop.f32.mrf.mxu0
  %v861 = vadd.f32 %v772, %v860
  %862 = vmatmul.f32.gmra.mxu0 %v655
  %v863 = vpop.f32.mrf.mxu0
  %v864 = vadd.f32 %v772, %v863
  %865 = vmatmul.f32.gmra.mxu0 %v657
  %v866 = vpop.f32.mrf.mxu0
  %v867 = vadd.f32 %v772, %v866
  %868 = vmatmul.f32.gmra.mxu0 %v659
  %v869 = vpop.f32.mrf.mxu0
  %v870 = vadd.f32 %v772, %v869
  %871 = vmatmul.f32.gmra.mxu0 %v661
  %v872 = vpop.f32.mrf.mxu0
  %v873 = vadd.f32 %v772, %v872
  %874 = vmatmul.f32.gmra.mxu0 %v663
  %v875 = vpop.f32.mrf.mxu0
  %v876 = vadd.f32 %v772, %v875
  %877 = vmatmul.f32.gmra.mxu0 %v665
  %v878 = vpop.f32.mrf.mxu0
  %v879 = vadd.f32 %v772, %v878
  %880 = vmatmul.f32.gmra.mxu0 %v667
  %v881 = vpop.f32.mrf.mxu0
  %v882 = vadd.f32 %v772, %v881
  %883 = vmatmul.f32.gmra.mxu0 %v669
  %v884 = vpop.f32.mrf.mxu0
  %v885 = vadd.f32 %v772, %v884
  %886 = vmatmul.f32.gmra.mxu0 %v671
  %v887 = vpop.f32.mrf.mxu0
  %v888 = vadd.f32 %v772, %v887
  %889 = vmatmul.f32.gmra.mxu0 %v673
  %v890 = vpop.f32.mrf.mxu0
  %v891 = vadd.f32 %v772, %v890
  %892 = vmatmul.f32.gmra.mxu0 %v675
  %v893 = vpop.f32.mrf.mxu0
  %v894 = vadd.f32 %v772, %v893
  %895 = vmatmul.f32.gmra.mxu0 %v677
  %v896 = vpop.f32.mrf.mxu0
  %v897 = vadd.f32 %v772, %v896
  %898 = vmatmul.f32.gmra.mxu0 %v679
  %v899 = vpop.f32.mrf.mxu0
  %v900 = vadd.f32 %v772, %v899
  %901 = vmatmul.f32.gmra.mxu0 %v681
  %v902 = vpop.f32.mrf.mxu0
  %v903 = vadd.f32 %v772, %v902
  %904 = vmatmul.f32.gmra.mxu0 %v683
  %v905 = vpop.f32.mrf.mxu0
  %v906 = vadd.f32 %v772, %v905
  %907 = vmatmul.f32.gmra.mxu0 %v685
  %v908 = vpop.f32.mrf.mxu0
  %v909 = vadd.f32 %v772, %v908
  %910 = vmatmul.f32.gmra.mxu0 %v687
  %v911 = vpop.f32.mrf.mxu0
  %v912 = vadd.f32 %v772, %v911
  %913 = vmatmul.f32.gmra.mxu0 %v689
  %v914 = vpop.f32.mrf.mxu0
  %v915 = vadd.f32 %v772, %v914
  %916 = vmatmul.f32.gmra.mxu0 %v691
  %v917 = vpop.f32.mrf.mxu0
  %v918 = vadd.f32 %v772, %v917
  %919 = vmatmul.f32.gmra.mxu0 %v693
  %v920 = vpop.f32.mrf.mxu0
  %v921 = vadd.f32 %v772, %v920
  %922 = vmatmul.f32.gmra.mxu0 %v695
  %v923 = vpop.f32.mrf.mxu0
  %v924 = vadd.f32 %v772, %v923
  %925 = vmatmul.f32.gmra.mxu0 %v697
  %v926 = vpop.f32.mrf.mxu0
  %v927 = vadd.f32 %v772, %v926
  %928 = vmatmul.f32.gmra.mxu0 %v699
  %v929 = vpop.f32.mrf.mxu0
  %v930 = vadd.f32 %v772, %v929
  %931 = vmatmul.f32.gmra.mxu0 %v701
  %v932 = vpop.f32.mrf.mxu0
  %v933 = vadd.f32 %v772, %v932
  %934 = vmatmul.f32.gmra.mxu0 %v703
  %v935 = vpop.f32.mrf.mxu0
  %v936 = vadd.f32 %v772, %v935
  %937 = vdwg.mxu0
  %938 = vmatpush.msra.mxu0 %v769
  %939 = vmatpush.msra.mxu0 %v768
  %940 = vmatpush.msra.mxu0 %v767
  %941 = vmatpush.msra.mxu0 %v766
  %942 = vmatpush.msra.mxu0 %v765
  %943 = vmatpush.msra.mxu0 %v764
  %944 = vmatpush.msra.mxu0 %v763
  %945 = vmatpush.msra.mxu0 %v762
  %946 = vmatpush.msra.mxu0 %v761
  %947 = vmatpush.msra.mxu0 %v760
  %948 = vmatpush.msra.mxu0 %v759
  %949 = vmatpush.msra.mxu0 %v758
  %950 = vmatpush.msra.mxu0 %v757
  %951 = vmatpush.msra.mxu0 %v756
  %952 = vmatpush.msra.mxu0 %v755
  %953 = vmatpush.msra.mxu0 %v754
  %954 = vmatmul.f32.gmra.mxu0 %v608
  %v955 = vpop.f32.mrf.mxu0
  %v956 = vadd.f32 %v792, %v955
  %957 = vmatmul.f32.gmra.mxu0 %v610
  %v958 = vpop.f32.mrf.mxu0
  %v959 = vadd.f32 %v795, %v958
  %960 = vmatmul.f32.gmra.mxu0 %v612
  %v961 = vpop.f32.mrf.mxu0
  %v962 = vadd.f32 %v798, %v961
  %963 = vmatmul.f32.gmra.mxu0 %v614
  %v964 = vpop.f32.mrf.mxu0
  %v965 = vadd.f32 %v801, %v964
  %966 = vmatmul.f32.gmra.mxu0 %v616
  %v967 = vpop.f32.mrf.mxu0
  %v968 = vadd.f32 %v804, %v967
  %969 = vmatmul.f32.gmra.mxu0 %v618
  %v970 = vpop.f32.mrf.mxu0
  %v971 = vadd.f32 %v807, %v970
  %972 = vmatmul.f32.gmra.mxu0 %v620
  %v973 = vpop.f32.mrf.mxu0
  %v974 = vadd.f32 %v810, %v973
  %975 = vmatmul.f32.gmra.mxu0 %v622
  %v976 = vpop.f32.mrf.mxu0
  %v977 = vadd.f32 %v813, %v976
  %978 = vmatmul.f32.gmra.mxu0 %v624
  %v979 = vpop.f32.mrf.mxu0
  %v980 = vadd.f32 %v816, %v979
  %981 = vmatmul.f32.gmra.mxu0 %v626
  %v982 = vpop.f32.mrf.mxu0
  %v983 = vadd.f32 %v819, %v982
  %984 = vmatmul.f32.gmra.mxu0 %v628
  %v985 = vpop.f32.mrf.mxu0
  %v986 = vadd.f32 %v822, %v985
  %987 = vmatmul.f32.gmra.mxu0 %v630
  %v988 = vpop.f32.mrf.mxu0
  %v989 = vadd.f32 %v825, %v988
  %990 = vmatmul.f32.gmra.mxu0 %v632
  %v991 = vpop.f32.mrf.mxu0
  %v992 = vadd.f32 %v828, %v991
  %993 = vmatmul.f32.gmra.mxu0 %v634
  %v994 = vpop.f32.mrf.mxu0
  %v995 = vadd.f32 %v831, %v994
  %996 = vmatmul.f32.gmra.mxu0 %v636
  %v997 = vpop.f32.mrf.mxu0
  %v998 = vadd.f32 %v834, %v997
  %999 = vmatmul.f32.gmra.mxu0 %v638
  %v1000 = vpop.f32.mrf.mxu0
  %v1001 = vadd.f32 %v837, %v1000
  %1002 = vmatmul.f32.gmra.mxu0 %v640
  %v1003 = vpop.f32.mrf.mxu0
  %v1004 = vadd.f32 %v840, %v1003
  %1005 = vmatmul.f32.gmra.mxu0 %v642
  %v1006 = vpop.f32.mrf.mxu0
  %v1007 = vadd.f32 %v843, %v1006
  %1008 = vmatmul.f32.gmra.mxu0 %v644
  %v1009 = vpop.f32.mrf.mxu0
  %v1010 = vadd.f32 %v846, %v1009
  %1011 = vmatmul.f32.gmra.mxu0 %v646
  %v1012 = vpop.f32.mrf.mxu0
  %v1013 = vadd.f32 %v849, %v1012
  %1014 = vmatmul.f32.gmra.mxu0 %v648
  %v1015 = vpop.f32.mrf.mxu0
  %v1016 = vadd.f32 %v852, %v1015
  %1017 = vmatmul.f32.gmra.mxu0 %v650
  %v1018 = vpop.f32.mrf.mxu0
  %v1019 = vadd.f32 %v855, %v1018
  %1020 = vmatmul.f32.gmra.mxu0 %v652
  %v1021 = vpop.f32.mrf.mxu0
  %v1022 = vadd.f32 %v858, %v1021
  %1023 = vmatmul.f32.gmra.mxu0 %v654
  %v1024 = vpop.f32.mrf.mxu0
  %v1025 = vadd.f32 %v861, %v1024
  %1026 = vmatmul.f32.gmra.mxu0 %v656
  %v1027 = vpop.f32.mrf.mxu0
  %v1028 = vadd.f32 %v864, %v1027
  %1029 = vmatmul.f32.gmra.mxu0 %v658
  %v1030 = vpop.f32.mrf.mxu0
  %v1031 = vadd.f32 %v867, %v1030
  %1032 = vmatmul.f32.gmra.mxu0 %v660
  %v1033 = vpop.f32.mrf.mxu0
  %v1034 = vadd.f32 %v870, %v1033
  %1035 = vmatmul.f32.gmra.mxu0 %v662
  %v1036 = vpop.f32.mrf.mxu0
  %v1037 = vadd.f32 %v873, %v1036
  %1038 = vmatmul.f32.gmra.mxu0 %v664
  %v1039 = vpop.f32.mrf.mxu0
  %v1040 = vadd.f32 %v876, %v1039
  %1041 = vmatmul.f32.gmra.mxu0 %v666
  %v1042 = vpop.f32.mrf.mxu0
  %v1043 = vadd.f32 %v879, %v1042
  %1044 = vmatmul.f32.gmra.mxu0 %v668
  %v1045 = vpop.f32.mrf.mxu0
  %v1046 = vadd.f32 %v882, %v1045
  %1047 = vmatmul.f32.gmra.mxu0 %v670
  %v1048 = vpop.f32.mrf.mxu0
  %v1049 = vadd.f32 %v885, %v1048
  %1050 = vmatmul.f32.gmra.mxu0 %v672
  %v1051 = vpop.f32.mrf.mxu0
  %v1052 = vadd.f32 %v888, %v1051
  %1053 = vmatmul.f32.gmra.mxu0 %v674
  %v1054 = vpop.f32.mrf.mxu0
  %v1055 = vadd.f32 %v891, %v1054
  %1056 = vmatmul.f32.gmra.mxu0 %v676
  %v1057 = vpop.f32.mrf.mxu0
  %v1058 = vadd.f32 %v894, %v1057
  %1059 = vmatmul.f32.gmra.mxu0 %v678
  %v1060 = vpop.f32.mrf.mxu0
  %v1061 = vadd.f32 %v897, %v1060
  %1062 = vmatmul.f32.gmra.mxu0 %v680
  %v1063 = vpop.f32.mrf.mxu0
  %v1064 = vadd.f32 %v900, %v1063
  %1065 = vmatmul.f32.gmra.mxu0 %v682
  %v1066 = vpop.f32.mrf.mxu0
  %v1067 = vadd.f32 %v903, %v1066
  %1068 = vmatmul.f32.gmra.mxu0 %v684
  %v1069 = vpop.f32.mrf.mxu0
  %v1070 = vadd.f32 %v906, %v1069
  %1071 = vmatmul.f32.gmra.mxu0 %v686
  %v1072 = vpop.f32.mrf.mxu0
  %v1073 = vadd.f32 %v909, %v1072
  %1074 = vmatmul.f32.gmra.mxu0 %v688
  %v1075 = vpop.f32.mrf.mxu0
  %v1076 = vadd.f32 %v912, %v1075
  %1077 = vmatmul.f32.gmra.mxu0 %v690
  %v1078 = vpop.f32.mrf.mxu0
  %v1079 = vadd.f32 %v915, %v1078
  %1080 = vmatmul.f32.gmra.mxu0 %v692
  %v1081 = vpop.f32.mrf.mxu0
  %v1082 = vadd.f32 %v918, %v1081
  %1083 = vmatmul.f32.gmra.mxu0 %v694
  %v1084 = vpop.f32.mrf.mxu0
  %v1085 = vadd.f32 %v921, %v1084
  %1086 = vmatmul.f32.gmra.mxu0 %v696
  %v1087 = vpop.f32.mrf.mxu0
  %v1088 = vadd.f32 %v924, %v1087
  %1089 = vmatmul.f32.gmra.mxu0 %v698
  %v1090 = vpop.f32.mrf.mxu0
  %v1091 = vadd.f32 %v927, %v1090
  %1092 = vmatmul.f32.gmra.mxu0 %v700
  %v1093 = vpop.f32.mrf.mxu0
  %v1094 = vadd.f32 %v930, %v1093
  %1095 = vmatmul.f32.gmra.mxu0 %v702
  %v1096 = vpop.f32.mrf.mxu0
  %v1097 = vadd.f32 %v933, %v1096
  %1098 = vmatmul.f32.gmra.mxu0 %v704
  %v1099 = vpop.f32.mrf.mxu0
  %v1100 = vadd.f32 %v936, %v1099
  %1101 = vdwg.mxu0
  %v1102 = vtanh.pop %v956
  %v1103 = vtanh.pop %v959
  %v1104 = vtanh.pop %v962
  %v1105 = vtanh.pop %v965
  %v1106 = vtanh.pop %v968
  %v1107 = vtanh.pop %v971
  %v1108 = vtanh.pop %v974
  %v1109 = vtanh.pop %v977
  %v1110 = vtanh.pop %v980
  %v1111 = vtanh.pop %v983
  %v1112 = vtanh.pop %v986
  %v1113 = vtanh.pop %v989
  %v1114 = vtanh.pop %v992
  %v1115 = vtanh.pop %v995
  %v1116 = vtanh.pop %v998
  %v1117 = vtanh.pop %v1001
  %v1118 = vtanh.pop %v1004
  %v1119 = vtanh.pop %v1007
  %v1120 = vtanh.pop %v1010
  %v1121 = vtanh.pop %v1013
  %v1122 = vtanh.pop %v1016
  %v1123 = vtanh.pop %v1019
  %v1124 = vtanh.pop %v1022
  %v1125 = vtanh.pop %v1025
  %v1126 = vtanh.pop %v1028
  %v1127 = vtanh.pop %v1031
  %v1128 = vtanh.pop %v1034
  %v1129 = vtanh.pop %v1037
  %v1130 = vtanh.pop %v1040
  %v1131 = vtanh.pop %v1043
  %v1132 = vtanh.pop %v1046
  %v1133 = vtanh.pop %v1049
  %v1134 = vtanh.pop %v1052
  %v1135 = vtanh.pop %v1055
  %v1136 = vtanh.pop %v1058
  %v1137 = vtanh.pop %v1061
  %v1138 = vtanh.pop %v1064
  %v1139 = vtanh.pop %v1067
  %v1140 = vtanh.pop %v1070
  %v1141 = vtanh.pop %v1073
  %v1142 = vtanh.pop %v1076
  %v1143 = vtanh.pop %v1079
  %v1144 = vtanh.pop %v1082
  %v1145 = vtanh.pop %v1085
  %v1146 = vtanh.pop %v1088
  %v1147 = vtanh.pop %v1091
  %v1148 = vtanh.pop %v1094
  %v1149 = vtanh.pop %v1097
  %v1150 = vtanh.pop %v1100
  %s1151 = scalar_lea.vmem %s3, 392
  %1152 = vst [vmem:[%s1151] sm:$0xff] %v1102
  %1153 = vst [vmem:[%s1151 + $0x8] sm:$0xff] %v1103
  %1154 = vst [vmem:[%s1151 + $0x10] sm:$0xff] %v1104
  %1155 = vst [vmem:[%s1151 + $0x18] sm:$0xff] %v1105
  %1156 = vst [vmem:[%s1151 + $0x20] sm:$0xff] %v1106
  %1157 = vst [vmem:[%s1151 + $0x28] sm:$0xff] %v1107
  %1158 = vst [vmem:[%s1151 + $0x30] sm:$0xff] %v1108
  %1159 = vst [vmem:[%s1151 + $0x38] sm:$0xff] %v1109
  %1160 = vst [vmem:[%s1151 + $0x40] sm:$0xff] %v1110
  %1161 = vst [vmem:[%s1151 + $0x48] sm:$0xff] %v1111
  %1162 = vst [vmem:[%s1151 + $0x50] sm:$0xff] %v1112
  %1163 = vst [vmem:[%s1151 + $0x58] sm:$0xff] %v1113
  %1164 = vst [vmem:[%s1151 + $0x60] sm:$0xff] %v1114
  %1165 = vst [vmem:[%s1151 + $0x68] sm:$0xff] %v1115
  %1166 = vst [vmem:[%s1151 + $0x70] sm:$0xff] %v1116
  %1167 = vst [vmem:[%s1151 + $0x78] sm:$0xff] %v1117
  %1168 = vst [vmem:[%s1151 + $0x80] sm:$0xff] %v1118
  %1169 = vst [vmem:[%s1151 + $0x88] sm:$0xff] %v1119
  %1170 = vst [vmem:[%s1151 + $0x90] sm:$0xff] %v1120
  %1171 = vst [vmem:[%s1151 + $0x98] sm:$0xff] %v1121
  %1172 = vst [vmem:[%s1151 + $0xa0] sm:$0xff] %v1122
  %1173 = vst [vmem:[%s1151 + $0xa8] sm:$0xff] %v1123
  %1174 = vst [vmem:[%s1151 + $0xb0] sm:$0xff] %v1124
  %1175 = vst [vmem:[%s1151 + $0xb8] sm:$0xff] %v1125
  %1176 = vst [vmem:[%s1151 + $0xc0] sm:$0xff] %v1126
  %1177 = vst [vmem:[%s1151 + $0xc8] sm:$0xff] %v1127
  %1178 = vst [vmem:[%s1151 + $0xd0] sm:$0xff] %v1128
  %1179 = vst [vmem:[%s1151 + $0xd8] sm:$0xff] %v1129
  %1180 = vst [vmem:[%s1151 + $0xe0] sm:$0xff] %v1130
  %1181 = vst [vmem:[%s1151 + $0xe8] sm:$0xff] %v1131
  %1182 = vst [vmem:[%s1151 + $0xf0] sm:$0xff] %v1132
  %1183 = vst [vmem:[%s1151 + $0xf8] sm:$0xff] %v1133
  %1184 = vst [vmem:[%s1151 + $0x100] sm:$0xff] %v1134
  %1185 = vst [vmem:[%s1151 + $0x108] sm:$0xff] %v1135
  %1186 = vst [vmem:[%s1151 + $0x110] sm:$0xff] %v1136
  %1187 = vst [vmem:[%s1151 + $0x118] sm:$0xff] %v1137
  %1188 = vst [vmem:[%s1151 + $0x120] sm:$0xff] %v1138
  %1189 = vst [vmem:[%s1151 + $0x128] sm:$0xff] %v1139
  %1190 = vst [vmem:[%s1151 + $0x130] sm:$0xff] %v1140
  %1191 = vst [vmem:[%s1151 + $0x138] sm:$0xff] %v1141
  %1192 = vst [vmem:[%s1151 + $0x140] sm:$0xff] %v1142
  %1193 = vst [vmem:[%s1151 + $0x148] sm:$0xff] %v1143
  %1194 = vst [vmem:[%s1151 + $0x150] sm:$0xff] %v1144
  %1195 = vst [vmem:[%s1151 + $0x158] sm:$0xff] %v1145
  %1196 = vst [vmem:[%s1151 + $0x160] sm:$0xff] %v1146
  %1197 = vst [vmem:[%s1151 + $0x168] sm:$0xff] %v1147
  %1198 = vst [vmem:[%s1151 + $0x170] sm:$0xff] %v1148
  %1199 = vst [vmem:[%s1151 + $0x178] sm:$0xff] %v1149
  %1200 = vst [vmem:[%s1151 + $0x180] sm:$0xff] %v1150
  %s1201 = scalar_lea.vmem %s0, 1568
  %v1202 = vld [vmem:[%s1201] sm:$0xff]
  %v1203 = vld [vmem:[%s1201 + $0x8] sm:$0xff]
  %v1204 = vld [vmem:[%s1201 + $0x10] sm:$0xff]
  %v1205 = vld [vmem:[%s1201 + $0x18] sm:$0xff]
  %v1206 = vld [vmem:[%s1201 + $0x20] sm:$0xff]
  %v1207 = vld [vmem:[%s1201 + $0x28] sm:$0xff]
  %v1208 = vld [vmem:[%s1201 + $0x30] sm:$0xff]
  %v1209 = vld [vmem:[%s1201 + $0x38] sm:$0xff]
  %v1210 = vld [vmem:[%s1201 + $0x40] sm:$0xff]
  %v1211 = vld [vmem:[%s1201 + $0x48] sm:$0xff]
  %v1212 = vld [vmem:[%s1201 + $0x50] sm:$0xff]
  %v1213 = vld [vmem:[%s1201 + $0x58] sm:$0xff]
  %v1214 = vld [vmem:[%s1201 + $0x60] sm:$0xff]
  %v1215 = vld [vmem:[%s1201 + $0x68] sm:$0xff]
  %v1216 = vld [vmem:[%s1201 + $0x70] sm:$0xff]
  %v1217 = vld [vmem:[%s1201 + $0x78] sm:$0xff]
  %v1218 = vld [vmem:[%s1201 + $0x80] sm:$0xff]
  %v1219 = vld [vmem:[%s1201 + $0x88] sm:$0xff]
  %v1220 = vld [vmem:[%s1201 + $0x90] sm:$0xff]
  %v1221 = vld [vmem:[%s1201 + $0x98] sm:$0xff]
  %v1222 = vld [vmem:[%s1201 + $0xa0] sm:$0xff]
  %v1223 = vld [vmem:[%s1201 + $0xa8] sm:$0xff]
  %v1224 = vld [vmem:[%s1201 + $0xb0] sm:$0xff]
  %v1225 = vld [vmem:[%s1201 + $0xb8] sm:$0xff]
  %v1226 = vld [vmem:[%s1201 + $0xc0] sm:$0xff]
  %v1227 = vld [vmem:[%s1201 + $0xc8] sm:$0xff]
  %v1228 = vld [vmem:[%s1201 + $0xd0] sm:$0xff]
  %v1229 = vld [vmem:[%s1201 + $0xd8] sm:$0xff]
  %v1230 = vld [vmem:[%s1201 + $0xe0] sm:$0xff]
  %v1231 = vld [vmem:[%s1201 + $0xe8] sm:$0xff]
  %v1232 = vld [vmem:[%s1201 + $0xf0] sm:$0xff]
  %v1233 = vld [vmem:[%s1201 + $0xf8] sm:$0xff]
  %v1234 = vld [vmem:[%s1201 + $0x100] sm:$0xff]
  %v1235 = vld [vmem:[%s1201 + $0x108] sm:$0xff]
  %v1236 = vld [vmem:[%s1201 + $0x110] sm:$0xff]
  %v1237 = vld [vmem:[%s1201 + $0x118] sm:$0xff]
  %v1238 = vld [vmem:[%s1201 + $0x120] sm:$0xff]
  %v1239 = vld [vmem:[%s1201 + $0x128] sm:$0xff]
  %v1240 = vld [vmem:[%s1201 + $0x130] sm:$0xff]
  %v1241 = vld [vmem:[%s1201 + $0x138] sm:$0xff]
  %v1242 = vld [vmem:[%s1201 + $0x140] sm:$0xff]
  %v1243 = vld [vmem:[%s1201 + $0x148] sm:$0xff]
  %v1244 = vld [vmem:[%s1201 + $0x150] sm:$0xff]
  %v1245 = vld [vmem:[%s1201 + $0x158] sm:$0xff]
  %v1246 = vld [vmem:[%s1201 + $0x160] sm:$0xff]
  %v1247 = vld [vmem:[%s1201 + $0x168] sm:$0xff]
  %v1248 = vld [vmem:[%s1201 + $0x170] sm:$0xff]
  %v1249 = vld [vmem:[%s1201 + $0x178] sm:$0xff]
  %v1250 = vld [vmem:[%s1201 + $0x180] sm:$0xff]
  %v1251 = vld [vmem:[%s1201 + $0x188] sm:$0xff]
  %v1252 = vld [vmem:[%s1201 + $0x190] sm:$0xff]
  %v1253 = vld [vmem:[%s1201 + $0x198] sm:$0xff]
  %v1254 = vld [vmem:[%s1201 + $0x1a0] sm:$0xff]
  %v1255 = vld [vmem:[%s1201 + $0x1a8] sm:$0xff]
  %v1256 = vld [vmem:[%s1201 + $0x1b0] sm:$0xff]
  %v1257 = vld [vmem:[%s1201 + $0x1b8] sm:$0xff]
  %v1258 = vld [vmem:[%s1201 + $0x1c0] sm:$0xff]
  %v1259 = vld [vmem:[%s1201 + $0x1c8] sm:$0xff]
  %v1260 = vld [vmem:[%s1201 + $0x1d0] sm:$0xff]
  %v1261 = vld [vmem:[%s1201 + $0x1d8] sm:$0xff]
  %v1262 = vld [vmem:[%s1201 + $0x1e0] sm:$0xff]
  %v1263 = vld [vmem:[%s1201 + $0x1e8] sm:$0xff]
  %v1264 = vld [vmem:[%s1201 + $0x1f0] sm:$0xff]
  %v1265 = vld [vmem:[%s1201 + $0x1f8] sm:$0xff]
  %v1266 = vld [vmem:[%s1201 + $0x200] sm:$0xff]
  %v1267 = vld [vmem:[%s1201 + $0x208] sm:$0xff]
  %v1268 = vld [vmem:[%s1201 + $0x210] sm:$0xff]
  %v1269 = vld [vmem:[%s1201 + $0x218] sm:$0xff]
  %v1270 = vld [vmem:[%s1201 + $0x220] sm:$0xff]
  %v1271 = vld [vmem:[%s1201 + $0x228] sm:$0xff]
  %v1272 = vld [vmem:[%s1201 + $0x230] sm:$0xff]
  %v1273 = vld [vmem:[%s1201 + $0x238] sm:$0xff]
  %v1274 = vld [vmem:[%s1201 + $0x240] sm:$0xff]
  %v1275 = vld [vmem:[%s1201 + $0x248] sm:$0xff]
  %v1276 = vld [vmem:[%s1201 + $0x250] sm:$0xff]
  %v1277 = vld [vmem:[%s1201 + $0x258] sm:$0xff]
  %v1278 = vld [vmem:[%s1201 + $0x260] sm:$0xff]
  %v1279 = vld [vmem:[%s1201 + $0x268] sm:$0xff]
  %v1280 = vld [vmem:[%s1201 + $0x270] sm:$0xff]
  %v1281 = vld [vmem:[%s1201 + $0x278] sm:$0xff]
  %v1282 = vld [vmem:[%s1201 + $0x280] sm:$0xff]
  %v1283 = vld [vmem:[%s1201 + $0x288] sm:$0xff]
  %v1284 = vld [vmem:[%s1201 + $0x290] sm:$0xff]
  %v1285 = vld [vmem:[%s1201 + $0x298] sm:$0xff]
  %v1286 = vld [vmem:[%s1201 + $0x2a0] sm:$0xff]
  %v1287 = vld [vmem:[%s1201 + $0x2a8] sm:$0xff]
  %v1288 = vld [vmem:[%s1201 + $0x2b0] sm:$0xff]
  %v1289 = vld [vmem:[%s1201 + $0x2b8] sm:$0xff]
  %v1290 = vld [vmem:[%s1201 + $0x2c0] sm:$0xff]
  %v1291 = vld [vmem:[%s1201 + $0x2c8] sm:$0xff]
  %v1292 = vld [vmem:[%s1201 + $0x2d0] sm:$0xff]
  %v1293 = vld [vmem:[%s1201 + $0x2d8] sm:$0xff]
  %v1294 = vld [vmem:[%s1201 + $0x2e0] sm:$0xff]
  %v1295 = vld [vmem:[%s1201 + $0x2e8] sm:$0xff]
  %v1296 = vld [vmem:[%s1201 + $0x2f0] sm:$0xff]
  %v1297 = vld [vmem:[%s1201 + $0x2f8] sm:$0xff]
  %v1298 = vld [vmem:[%s1201 + $0x300] sm:$0xff]
  %v1299 = vld [vmem:[%s1201 + $0x308] sm:$0xff]
  %s1300 = scalar_lea.vmem %s1, 256
  %v1301 = vld [vmem:[%s1300] sm:$0xf]
  %v1302 = vld [vmem:[%s1300 + $0x4] sm:$0xf]
  %v1303 = vld [vmem:[%s1300 + $0x8] sm:$0xf]
  %v1304 = vld [vmem:[%s1300 + $0xc] sm:$0xf]
  %v1305 = vld [vmem:[%s1300 + $0x10] sm:$0xf]
  %v1306 = vld [vmem:[%s1300 + $0x14] sm:$0xf]
  %v1307 = vld [vmem:[%s1300 + $0x18] sm:$0xf]
  %v1308 = vld [vmem:[%s1300 + $0x1c] sm:$0xf]
  %v1309 = vld [vmem:[%s1300 + $0x20] sm:$0xf]
  %v1310 = vld [vmem:[%s1300 + $0x24] sm:$0xf]
  %v1311 = vld [vmem:[%s1300 + $0x28] sm:$0xf]
  %v1312 = vld [vmem:[%s1300 + $0x2c] sm:$0xf]
  %v1313 = vld [vmem:[%s1300 + $0x30] sm:$0xf]
  %v1314 = vld [vmem:[%s1300 + $0x34] sm:$0xf]
  %v1315 = vld [vmem:[%s1300 + $0x38] sm:$0xf]
  %v1316 = vld [vmem:[%s1300 + $0x3c] sm:$0xf]
  %v1317 = vld [vmem:[%s1300 + $0x40] sm:$0xf]
  %v1318 = vld [vmem:[%s1300 + $0x44] sm:$0xf]
  %v1319 = vld [vmem:[%s1300 + $0x48] sm:$0xf]
  %v1320 = vld [vmem:[%s1300 + $0x4c] sm:$0xf]
  %v1321 = vld [vmem:[%s1300 + $0x50] sm:$0xf]
  %v1322 = vld [vmem:[%s1300 + $0x54] sm:$0xf]
  %v1323 = vld [vmem:[%s1300 + $0x58] sm:$0xf]
  %v1324 = vld [vmem:[%s1300 + $0x5c] sm:$0xf]
  %v1325 = vld [vmem:[%s1300 + $0x60] sm:$0xf]
  %v1326 = vld [vmem:[%s1300 + $0x64] sm:$0xf]
  %v1327 = vld [vmem:[%s1300 + $0x68] sm:$0xf]
  %v1328 = vld [vmem:[%s1300 + $0x6c] sm:$0xf]
  %v1329 = vld [vmem:[%s1300 + $0x70] sm:$0xf]
  %v1330 = vld [vmem:[%s1300 + $0x74] sm:$0xf]
  %v1331 = vld [vmem:[%s1300 + $0x78] sm:$0xf]
  %v1332 = vld [vmem:[%s1300 + $0x7c] sm:$0xf]
  %v1333 = vunpack.c.l.bf16 %v1301
  %v1334 = vunpack.c.l.bf16 %v1302
  %v1335 = vunpack.c.l.bf16 %v1303
  %v1336 = vunpack.c.l.bf16 %v1304
  %v1337 = vunpack.c.l.bf16 %v1305
  %v1338 = vunpack.c.l.bf16 %v1306
  %v1339 = vunpack.c.l.bf16 %v1307
  %v1340 = vunpack.c.l.bf16 %v1308
  %v1341 = vunpack.c.l.bf16 %v1309
  %v1342 = vunpack.c.l.bf16 %v1310
  %v1343 = vunpack.c.l.bf16 %v1311
  %v1344 = vunpack.c.l.bf16 %v1312
  %v1345 = vunpack.c.l.bf16 %v1313
  %v1346 = vunpack.c.l.bf16 %v1314
  %v1347 = vunpack.c.l.bf16 %v1315
  %v1348 = vunpack.c.l.bf16 %v1316
  %v1349 = vunpack.c.l.bf16 %v1317
  %v1350 = vunpack.c.l.bf16 %v1318
  %v1351 = vunpack.c.l.bf16 %v1319
  %v1352 = vunpack.c.l.bf16 %v1320
  %v1353 = vunpack.c.l.bf16 %v1321
  %v1354 = vunpack.c.l.bf16 %v1322
  %v1355 = vunpack.c.l.bf16 %v1323
  %v1356 = vunpack.c.l.bf16 %v1324
  %v1357 = vunpack.c.l.bf16 %v1325
  %v1358 = vunpack.c.l.bf16 %v1326
  %v1359 = vunpack.c.l.bf16 %v1327
  %v1360 = vunpack.c.l.bf16 %v1328
  %v1361 = vunpack.c.l.bf16 %v1329
  %v1362 = vunpack.c.l.bf16 %v1330
  %v1363 = vunpack.c.l.bf16 %v1331
  %v1364 = vunpack.c.l.bf16 %v1332
  %v1365 = vld [vmem:[%s2] sm:$0x1]
  %v1367 = vperm.slane %v1365, 0
  %1369 = vmatpush.msra.mxu0 %v1348
  %1370 = vmatpush.msra.mxu0 %v1347
  %1371 = vmatpush.msra.mxu0 %v1346
  %1372 = vmatpush.msra.mxu0 %v1345
  %1373 = vmatpush.msra.mxu0 %v1344
  %1374 = vmatpush.msra.mxu0 %v1343
  %1375 = vmatpush.msra.mxu0 %v1342
  %1376 = vmatpush.msra.mxu0 %v1341
  %1377 = vmatpush.msra.mxu0 %v1340
  %1378 = vmatpush.msra.mxu0 %v1339
  %1379 = vmatpush.msra.mxu0 %v1338
  %1380 = vmatpush.msra.mxu0 %v1337
  %1381 = vmatpush.msra.mxu0 %v1336
  %1382 = vmatpush.msra.mxu0 %v1335
  %1383 = vmatpush.msra.mxu0 %v1334
  %1384 = vmatpush.msra.mxu0 %v1333
  %1385 = vmatmul.f32.gmra.mxu0 %v1202
  %v1386 = vpop.f32.mrf.mxu0
  %v1387 = vadd.f32 %v1367, %v1386
  %1388 = vmatmul.f32.gmra.mxu0 %v1204
  %v1389 = vpop.f32.mrf.mxu0
  %v1390 = vadd.f32 %v1367, %v1389
  %1391 = vmatmul.f32.gmra.mxu0 %v1206
  %v1392 = vpop.f32.mrf.mxu0
  %v1393 = vadd.f32 %v1367, %v1392
  %1394 = vmatmul.f32.gmra.mxu0 %v1208
  %v1395 = vpop.f32.mrf.mxu0
  %v1396 = vadd.f32 %v1367, %v1395
  %1397 = vmatmul.f32.gmra.mxu0 %v1210
  %v1398 = vpop.f32.mrf.mxu0
  %v1399 = vadd.f32 %v1367, %v1398
  %1400 = vmatmul.f32.gmra.mxu0 %v1212
  %v1401 = vpop.f32.mrf.mxu0
  %v1402 = vadd.f32 %v1367, %v1401
  %1403 = vmatmul.f32.gmra.mxu0 %v1214
  %v1404 = vpop.f32.mrf.mxu0
  %v1405 = vadd.f32 %v1367, %v1404
  %1406 = vmatmul.f32.gmra.mxu0 %v1216
  %v1407 = vpop.f32.mrf.mxu0
  %v1408 = vadd.f32 %v1367, %v1407
  %1409 = vmatmul.f32.gmra.mxu0 %v1218
  %v1410 = vpop.f32.mrf.mxu0
  %v1411 = vadd.f32 %v1367, %v1410
  %1412 = vmatmul.f32.gmra.mxu0 %v1220
  %v1413 = vpop.f32.mrf.mxu0
  %v1414 = vadd.f32 %v1367, %v1413
  %1415 = vmatmul.f32.gmra.mxu0 %v1222
  %v1416 = vpop.f32.mrf.mxu0
  %v1417 = vadd.f32 %v1367, %v1416
  %1418 = vmatmul.f32.gmra.mxu0 %v1224
  %v1419 = vpop.f32.mrf.mxu0
  %v1420 = vadd.f32 %v1367, %v1419
  %1421 = vmatmul.f32.gmra.mxu0 %v1226
  %v1422 = vpop.f32.mrf.mxu0
  %v1423 = vadd.f32 %v1367, %v1422
  %1424 = vmatmul.f32.gmra.mxu0 %v1228
  %v1425 = vpop.f32.mrf.mxu0
  %v1426 = vadd.f32 %v1367, %v1425
  %1427 = vmatmul.f32.gmra.mxu0 %v1230
  %v1428 = vpop.f32.mrf.mxu0
  %v1429 = vadd.f32 %v1367, %v1428
  %1430 = vmatmul.f32.gmra.mxu0 %v1232
  %v1431 = vpop.f32.mrf.mxu0
  %v1432 = vadd.f32 %v1367, %v1431
  %1433 = vmatmul.f32.gmra.mxu0 %v1234
  %v1434 = vpop.f32.mrf.mxu0
  %v1435 = vadd.f32 %v1367, %v1434
  %1436 = vmatmul.f32.gmra.mxu0 %v1236
  %v1437 = vpop.f32.mrf.mxu0
  %v1438 = vadd.f32 %v1367, %v1437
  %1439 = vmatmul.f32.gmra.mxu0 %v1238
  %v1440 = vpop.f32.mrf.mxu0
  %v1441 = vadd.f32 %v1367, %v1440
  %1442 = vmatmul.f32.gmra.mxu0 %v1240
  %v1443 = vpop.f32.mrf.mxu0
  %v1444 = vadd.f32 %v1367, %v1443
  %1445 = vmatmul.f32.gmra.mxu0 %v1242
  %v1446 = vpop.f32.mrf.mxu0
  %v1447 = vadd.f32 %v1367, %v1446
  %1448 = vmatmul.f32.gmra.mxu0 %v1244
  %v1449 = vpop.f32.mrf.mxu0
  %v1450 = vadd.f32 %v1367, %v1449
  %1451 = vmatmul.f32.gmra.mxu0 %v1246
  %v1452 = vpop.f32.mrf.mxu0
  %v1453 = vadd.f32 %v1367, %v1452
  %1454 = vmatmul.f32.gmra.mxu0 %v1248
  %v1455 = vpop.f32.mrf.mxu0
  %v1456 = vadd.f32 %v1367, %v1455
  %1457 = vmatmul.f32.gmra.mxu0 %v1250
  %v1458 = vpop.f32.mrf.mxu0
  %v1459 = vadd.f32 %v1367, %v1458
  %1460 = vmatmul.f32.gmra.mxu0 %v1252
  %v1461 = vpop.f32.mrf.mxu0
  %v1462 = vadd.f32 %v1367, %v1461
  %1463 = vmatmul.f32.gmra.mxu0 %v1254
  %v1464 = vpop.f32.mrf.mxu0
  %v1465 = vadd.f32 %v1367, %v1464
  %1466 = vmatmul.f32.gmra.mxu0 %v1256
  %v1467 = vpop.f32.mrf.mxu0
  %v1468 = vadd.f32 %v1367, %v1467
  %1469 = vmatmul.f32.gmra.mxu0 %v1258
  %v1470 = vpop.f32.mrf.mxu0
  %v1471 = vadd.f32 %v1367, %v1470
  %1472 = vmatmul.f32.gmra.mxu0 %v1260
  %v1473 = vpop.f32.mrf.mxu0
  %v1474 = vadd.f32 %v1367, %v1473
  %1475 = vmatmul.f32.gmra.mxu0 %v1262
  %v1476 = vpop.f32.mrf.mxu0
  %v1477 = vadd.f32 %v1367, %v1476
  %1478 = vmatmul.f32.gmra.mxu0 %v1264
  %v1479 = vpop.f32.mrf.mxu0
  %v1480 = vadd.f32 %v1367, %v1479
  %1481 = vmatmul.f32.gmra.mxu0 %v1266
  %v1482 = vpop.f32.mrf.mxu0
  %v1483 = vadd.f32 %v1367, %v1482
  %1484 = vmatmul.f32.gmra.mxu0 %v1268
  %v1485 = vpop.f32.mrf.mxu0
  %v1486 = vadd.f32 %v1367, %v1485
  %1487 = vmatmul.f32.gmra.mxu0 %v1270
  %v1488 = vpop.f32.mrf.mxu0
  %v1489 = vadd.f32 %v1367, %v1488
  %1490 = vmatmul.f32.gmra.mxu0 %v1272
  %v1491 = vpop.f32.mrf.mxu0
  %v1492 = vadd.f32 %v1367, %v1491
  %1493 = vmatmul.f32.gmra.mxu0 %v1274
  %v1494 = vpop.f32.mrf.mxu0
  %v1495 = vadd.f32 %v1367, %v1494
  %1496 = vmatmul.f32.gmra.mxu0 %v1276
  %v1497 = vpop.f32.mrf.mxu0
  %v1498 = vadd.f32 %v1367, %v1497
  %1499 = vmatmul.f32.gmra.mxu0 %v1278
  %v1500 = vpop.f32.mrf.mxu0
  %v1501 = vadd.f32 %v1367, %v1500
  %1502 = vmatmul.f32.gmra.mxu0 %v1280
  %v1503 = vpop.f32.mrf.mxu0
  %v1504 = vadd.f32 %v1367, %v1503
  %1505 = vmatmul.f32.gmra.mxu0 %v1282
  %v1506 = vpop.f32.mrf.mxu0
  %v1507 = vadd.f32 %v1367, %v1506
  %1508 = vmatmul.f32.gmra.mxu0 %v1284
  %v1509 = vpop.f32.mrf.mxu0
  %v1510 = vadd.f32 %v1367, %v1509
  %1511 = vmatmul.f32.gmra.mxu0 %v1286
  %v1512 = vpop.f32.mrf.mxu0
  %v1513 = vadd.f32 %v1367, %v1512
  %1514 = vmatmul.f32.gmra.mxu0 %v1288
  %v1515 = vpop.f32.mrf.mxu0
  %v1516 = vadd.f32 %v1367, %v1515
  %1517 = vmatmul.f32.gmra.mxu0 %v1290
  %v1518 = vpop.f32.mrf.mxu0
  %v1519 = vadd.f32 %v1367, %v1518
  %1520 = vmatmul.f32.gmra.mxu0 %v1292
  %v1521 = vpop.f32.mrf.mxu0
  %v1522 = vadd.f32 %v1367, %v1521
  %1523 = vmatmul.f32.gmra.mxu0 %v1294
  %v1524 = vpop.f32.mrf.mxu0
  %v1525 = vadd.f32 %v1367, %v1524
  %1526 = vmatmul.f32.gmra.mxu0 %v1296
  %v1527 = vpop.f32.mrf.mxu0
  %v1528 = vadd.f32 %v1367, %v1527
  %1529 = vmatmul.f32.gmra.mxu0 %v1298
  %v1530 = vpop.f32.mrf.mxu0
  %v1531 = vadd.f32 %v1367, %v1530
  %1532 = vdwg.mxu0
  %1533 = vmatpush.msra.mxu0 %v1364
  %1534 = vmatpush.msra.mxu0 %v1363
  %1535 = vmatpush.msra.mxu0 %v1362
  %1536 = vmatpush.msra.mxu0 %v1361
  %1537 = vmatpush.msra.mxu0 %v1360
  %1538 = vmatpush.msra.mxu0 %v1359
  %1539 = vmatpush.msra.mxu0 %v1358
  %1540 = vmatpush.msra.mxu0 %v1357
  %1541 = vmatpush.msra.mxu0 %v1356
  %1542 = vmatpush.msra.mxu0 %v1355
  %1543 = vmatpush.msra.mxu0 %v1354
  %1544 = vmatpush.msra.mxu0 %v1353
  %1545 = vmatpush.msra.mxu0 %v1352
  %1546 = vmatpush.msra.mxu0 %v1351
  %1547 = vmatpush.msra.mxu0 %v1350
  %1548 = vmatpush.msra.mxu0 %v1349
  %1549 = vmatmul.f32.gmra.mxu0 %v1203
  %v1550 = vpop.f32.mrf.mxu0
  %v1551 = vadd.f32 %v1387, %v1550
  %1552 = vmatmul.f32.gmra.mxu0 %v1205
  %v1553 = vpop.f32.mrf.mxu0
  %v1554 = vadd.f32 %v1390, %v1553
  %1555 = vmatmul.f32.gmra.mxu0 %v1207
  %v1556 = vpop.f32.mrf.mxu0
  %v1557 = vadd.f32 %v1393, %v1556
  %1558 = vmatmul.f32.gmra.mxu0 %v1209
  %v1559 = vpop.f32.mrf.mxu0
  %v1560 = vadd.f32 %v1396, %v1559
  %1561 = vmatmul.f32.gmra.mxu0 %v1211
  %v1562 = vpop.f32.mrf.mxu0
  %v1563 = vadd.f32 %v1399, %v1562
  %1564 = vmatmul.f32.gmra.mxu0 %v1213
  %v1565 = vpop.f32.mrf.mxu0
  %v1566 = vadd.f32 %v1402, %v1565
  %1567 = vmatmul.f32.gmra.mxu0 %v1215
  %v1568 = vpop.f32.mrf.mxu0
  %v1569 = vadd.f32 %v1405, %v1568
  %1570 = vmatmul.f32.gmra.mxu0 %v1217
  %v1571 = vpop.f32.mrf.mxu0
  %v1572 = vadd.f32 %v1408, %v1571
  %1573 = vmatmul.f32.gmra.mxu0 %v1219
  %v1574 = vpop.f32.mrf.mxu0
  %v1575 = vadd.f32 %v1411, %v1574
  %1576 = vmatmul.f32.gmra.mxu0 %v1221
  %v1577 = vpop.f32.mrf.mxu0
  %v1578 = vadd.f32 %v1414, %v1577
  %1579 = vmatmul.f32.gmra.mxu0 %v1223
  %v1580 = vpop.f32.mrf.mxu0
  %v1581 = vadd.f32 %v1417, %v1580
  %1582 = vmatmul.f32.gmra.mxu0 %v1225
  %v1583 = vpop.f32.mrf.mxu0
  %v1584 = vadd.f32 %v1420, %v1583
  %1585 = vmatmul.f32.gmra.mxu0 %v1227
  %v1586 = vpop.f32.mrf.mxu0
  %v1587 = vadd.f32 %v1423, %v1586
  %1588 = vmatmul.f32.gmra.mxu0 %v1229
  %v1589 = vpop.f32.mrf.mxu0
  %v1590 = vadd.f32 %v1426, %v1589
  %1591 = vmatmul.f32.gmra.mxu0 %v1231
  %v1592 = vpop.f32.mrf.mxu0
  %v1593 = vadd.f32 %v1429, %v1592
  %1594 = vmatmul.f32.gmra.mxu0 %v1233
  %v1595 = vpop.f32.mrf.mxu0
  %v1596 = vadd.f32 %v1432, %v1595
  %1597 = vmatmul.f32.gmra.mxu0 %v1235
  %v1598 = vpop.f32.mrf.mxu0
  %v1599 = vadd.f32 %v1435, %v1598
  %1600 = vmatmul.f32.gmra.mxu0 %v1237
  %v1601 = vpop.f32.mrf.mxu0
  %v1602 = vadd.f32 %v1438, %v1601
  %1603 = vmatmul.f32.gmra.mxu0 %v1239
  %v1604 = vpop.f32.mrf.mxu0
  %v1605 = vadd.f32 %v1441, %v1604
  %1606 = vmatmul.f32.gmra.mxu0 %v1241
  %v1607 = vpop.f32.mrf.mxu0
  %v1608 = vadd.f32 %v1444, %v1607
  %1609 = vmatmul.f32.gmra.mxu0 %v1243
  %v1610 = vpop.f32.mrf.mxu0
  %v1611 = vadd.f32 %v1447, %v1610
  %1612 = vmatmul.f32.gmra.mxu0 %v1245
  %v1613 = vpop.f32.mrf.mxu0
  %v1614 = vadd.f32 %v1450, %v1613
  %1615 = vmatmul.f32.gmra.mxu0 %v1247
  %v1616 = vpop.f32.mrf.mxu0
  %v1617 = vadd.f32 %v1453, %v1616
  %1618 = vmatmul.f32.gmra.mxu0 %v1249
  %v1619 = vpop.f32.mrf.mxu0
  %v1620 = vadd.f32 %v1456, %v1619
  %1621 = vmatmul.f32.gmra.mxu0 %v1251
  %v1622 = vpop.f32.mrf.mxu0
  %v1623 = vadd.f32 %v1459, %v1622
  %1624 = vmatmul.f32.gmra.mxu0 %v1253
  %v1625 = vpop.f32.mrf.mxu0
  %v1626 = vadd.f32 %v1462, %v1625
  %1627 = vmatmul.f32.gmra.mxu0 %v1255
  %v1628 = vpop.f32.mrf.mxu0
  %v1629 = vadd.f32 %v1465, %v1628
  %1630 = vmatmul.f32.gmra.mxu0 %v1257
  %v1631 = vpop.f32.mrf.mxu0
  %v1632 = vadd.f32 %v1468, %v1631
  %1633 = vmatmul.f32.gmra.mxu0 %v1259
  %v1634 = vpop.f32.mrf.mxu0
  %v1635 = vadd.f32 %v1471, %v1634
  %1636 = vmatmul.f32.gmra.mxu0 %v1261
  %v1637 = vpop.f32.mrf.mxu0
  %v1638 = vadd.f32 %v1474, %v1637
  %1639 = vmatmul.f32.gmra.mxu0 %v1263
  %v1640 = vpop.f32.mrf.mxu0
  %v1641 = vadd.f32 %v1477, %v1640
  %1642 = vmatmul.f32.gmra.mxu0 %v1265
  %v1643 = vpop.f32.mrf.mxu0
  %v1644 = vadd.f32 %v1480, %v1643
  %1645 = vmatmul.f32.gmra.mxu0 %v1267
  %v1646 = vpop.f32.mrf.mxu0
  %v1647 = vadd.f32 %v1483, %v1646
  %1648 = vmatmul.f32.gmra.mxu0 %v1269
  %v1649 = vpop.f32.mrf.mxu0
  %v1650 = vadd.f32 %v1486, %v1649
  %1651 = vmatmul.f32.gmra.mxu0 %v1271
  %v1652 = vpop.f32.mrf.mxu0
  %v1653 = vadd.f32 %v1489, %v1652
  %1654 = vmatmul.f32.gmra.mxu0 %v1273
  %v1655 = vpop.f32.mrf.mxu0
  %v1656 = vadd.f32 %v1492, %v1655
  %1657 = vmatmul.f32.gmra.mxu0 %v1275
  %v1658 = vpop.f32.mrf.mxu0
  %v1659 = vadd.f32 %v1495, %v1658
  %1660 = vmatmul.f32.gmra.mxu0 %v1277
  %v1661 = vpop.f32.mrf.mxu0
  %v1662 = vadd.f32 %v1498, %v1661
  %1663 = vmatmul.f32.gmra.mxu0 %v1279
  %v1664 = vpop.f32.mrf.mxu0
  %v1665 = vadd.f32 %v1501, %v1664
  %1666 = vmatmul.f32.gmra.mxu0 %v1281
  %v1667 = vpop.f32.mrf.mxu0
  %v1668 = vadd.f32 %v1504, %v1667
  %1669 = vmatmul.f32.gmra.mxu0 %v1283
  %v1670 = vpop.f32.mrf.mxu0
  %v1671 = vadd.f32 %v1507, %v1670
  %1672 = vmatmul.f32.gmra.mxu0 %v1285
  %v1673 = vpop.f32.mrf.mxu0
  %v1674 = vadd.f32 %v1510, %v1673
  %1675 = vmatmul.f32.gmra.mxu0 %v1287
  %v1676 = vpop.f32.mrf.mxu0
  %v1677 = vadd.f32 %v1513, %v1676
  %1678 = vmatmul.f32.gmra.mxu0 %v1289
  %v1679 = vpop.f32.mrf.mxu0
  %v1680 = vadd.f32 %v1516, %v1679
  %1681 = vmatmul.f32.gmra.mxu0 %v1291
  %v1682 = vpop.f32.mrf.mxu0
  %v1683 = vadd.f32 %v1519, %v1682
  %1684 = vmatmul.f32.gmra.mxu0 %v1293
  %v1685 = vpop.f32.mrf.mxu0
  %v1686 = vadd.f32 %v1522, %v1685
  %1687 = vmatmul.f32.gmra.mxu0 %v1295
  %v1688 = vpop.f32.mrf.mxu0
  %v1689 = vadd.f32 %v1525, %v1688
  %1690 = vmatmul.f32.gmra.mxu0 %v1297
  %v1691 = vpop.f32.mrf.mxu0
  %v1692 = vadd.f32 %v1528, %v1691
  %1693 = vmatmul.f32.gmra.mxu0 %v1299
  %v1694 = vpop.f32.mrf.mxu0
  %v1695 = vadd.f32 %v1531, %v1694
  %1696 = vdwg.mxu0
  %v1697 = vtanh.pop %v1551
  %v1698 = vtanh.pop %v1554
  %v1699 = vtanh.pop %v1557
  %v1700 = vtanh.pop %v1560
  %v1701 = vtanh.pop %v1563
  %v1702 = vtanh.pop %v1566
  %v1703 = vtanh.pop %v1569
  %v1704 = vtanh.pop %v1572
  %v1705 = vtanh.pop %v1575
  %v1706 = vtanh.pop %v1578
  %v1707 = vtanh.pop %v1581
  %v1708 = vtanh.pop %v1584
  %v1709 = vtanh.pop %v1587
  %v1710 = vtanh.pop %v1590
  %v1711 = vtanh.pop %v1593
  %v1712 = vtanh.pop %v1596
  %v1713 = vtanh.pop %v1599
  %v1714 = vtanh.pop %v1602
  %v1715 = vtanh.pop %v1605
  %v1716 = vtanh.pop %v1608
  %v1717 = vtanh.pop %v1611
  %v1718 = vtanh.pop %v1614
  %v1719 = vtanh.pop %v1617
  %v1720 = vtanh.pop %v1620
  %v1721 = vtanh.pop %v1623
  %v1722 = vtanh.pop %v1626
  %v1723 = vtanh.pop %v1629
  %v1724 = vtanh.pop %v1632
  %v1725 = vtanh.pop %v1635
  %v1726 = vtanh.pop %v1638
  %v1727 = vtanh.pop %v1641
  %v1728 = vtanh.pop %v1644
  %v1729 = vtanh.pop %v1647
  %v1730 = vtanh.pop %v1650
  %v1731 = vtanh.pop %v1653
  %v1732 = vtanh.pop %v1656
  %v1733 = vtanh.pop %v1659
  %v1734 = vtanh.pop %v1662
  %v1735 = vtanh.pop %v1665
  %v1736 = vtanh.pop %v1668
  %v1737 = vtanh.pop %v1671
  %v1738 = vtanh.pop %v1674
  %v1739 = vtanh.pop %v1677
  %v1740 = vtanh.pop %v1680
  %v1741 = vtanh.pop %v1683
  %v1742 = vtanh.pop %v1686
  %v1743 = vtanh.pop %v1689
  %v1744 = vtanh.pop %v1692
  %v1745 = vtanh.pop %v1695
  %s1746 = scalar_lea.vmem %s3, 784
  %1747 = vst [vmem:[%s1746] sm:$0xff] %v1697
  %1748 = vst [vmem:[%s1746 + $0x8] sm:$0xff] %v1698
  %1749 = vst [vmem:[%s1746 + $0x10] sm:$0xff] %v1699
  %1750 = vst [vmem:[%s1746 + $0x18] sm:$0xff] %v1700
  %1751 = vst [vmem:[%s1746 + $0x20] sm:$0xff] %v1701
  %1752 = vst [vmem:[%s1746 + $0x28] sm:$0xff] %v1702
  %1753 = vst [vmem:[%s1746 + $0x30] sm:$0xff] %v1703
  %1754 = vst [vmem:[%s1746 + $0x38] sm:$0xff] %v1704
  %1755 = vst [vmem:[%s1746 + $0x40] sm:$0xff] %v1705
  %1756 = vst [vmem:[%s1746 + $0x48] sm:$0xff] %v1706
  %1757 = vst [vmem:[%s1746 + $0x50] sm:$0xff] %v1707
  %1758 = vst [vmem:[%s1746 + $0x58] sm:$0xff] %v1708
  %1759 = vst [vmem:[%s1746 + $0x60] sm:$0xff] %v1709
  %1760 = vst [vmem:[%s1746 + $0x68] sm:$0xff] %v1710
  %1761 = vst [vmem:[%s1746 + $0x70] sm:$0xff] %v1711
  %1762 = vst [vmem:[%s1746 + $0x78] sm:$0xff] %v1712
  %1763 = vst [vmem:[%s1746 + $0x80] sm:$0xff] %v1713
  %1764 = vst [vmem:[%s1746 + $0x88] sm:$0xff] %v1714
  %1765 = vst [vmem:[%s1746 + $0x90] sm:$0xff] %v1715
  %1766 = vst [vmem:[%s1746 + $0x98] sm:$0xff] %v1716
  %1767 = vst [vmem:[%s1746 + $0xa0] sm:$0xff] %v1717
  %1768 = vst [vmem:[%s1746 + $0xa8] sm:$0xff] %v1718
  %1769 = vst [vmem:[%s1746 + $0xb0] sm:$0xff] %v1719
  %1770 = vst [vmem:[%s1746 + $0xb8] sm:$0xff] %v1720
  %1771 = vst [vmem:[%s1746 + $0xc0] sm:$0xff] %v1721
  %1772 = vst [vmem:[%s1746 + $0xc8] sm:$0xff] %v1722
  %1773 = vst [vmem:[%s1746 + $0xd0] sm:$0xff] %v1723
  %1774 = vst [vmem:[%s1746 + $0xd8] sm:$0xff] %v1724
  %1775 = vst [vmem:[%s1746 + $0xe0] sm:$0xff] %v1725
  %1776 = vst [vmem:[%s1746 + $0xe8] sm:$0xff] %v1726
  %1777 = vst [vmem:[%s1746 + $0xf0] sm:$0xff] %v1727
  %1778 = vst [vmem:[%s1746 + $0xf8] sm:$0xff] %v1728
  %1779 = vst [vmem:[%s1746 + $0x100] sm:$0xff] %v1729
  %1780 = vst [vmem:[%s1746 + $0x108] sm:$0xff] %v1730
  %1781 = vst [vmem:[%s1746 + $0x110] sm:$0xff] %v1731
  %1782 = vst [vmem:[%s1746 + $0x118] sm:$0xff] %v1732
  %1783 = vst [vmem:[%s1746 + $0x120] sm:$0xff] %v1733
  %1784 = vst [vmem:[%s1746 + $0x128] sm:$0xff] %v1734
  %1785 = vst [vmem:[%s1746 + $0x130] sm:$0xff] %v1735
  %1786 = vst [vmem:[%s1746 + $0x138] sm:$0xff] %v1736
  %1787 = vst [vmem:[%s1746 + $0x140] sm:$0xff] %v1737
  %1788 = vst [vmem:[%s1746 + $0x148] sm:$0xff] %v1738
  %1789 = vst [vmem:[%s1746 + $0x150] sm:$0xff] %v1739
  %1790 = vst [vmem:[%s1746 + $0x158] sm:$0xff] %v1740
  %1791 = vst [vmem:[%s1746 + $0x160] sm:$0xff] %v1741
  %1792 = vst [vmem:[%s1746 + $0x168] sm:$0xff] %v1742
  %1793 = vst [vmem:[%s1746 + $0x170] sm:$0xff] %v1743
  %1794 = vst [vmem:[%s1746 + $0x178] sm:$0xff] %v1744
  %1795 = vst [vmem:[%s1746 + $0x180] sm:$0xff] %v1745
  %s1796 = scalar_lea.vmem %s0, 2352
  %v1797 = vld [vmem:[%s1796] sm:$0xff]
  %v1798 = vld [vmem:[%s1796 + $0x8] sm:$0xff]
  %v1799 = vld [vmem:[%s1796 + $0x10] sm:$0xff]
  %v1800 = vld [vmem:[%s1796 + $0x18] sm:$0xff]
  %v1801 = vld [vmem:[%s1796 + $0x20] sm:$0xff]
  %v1802 = vld [vmem:[%s1796 + $0x28] sm:$0xff]
  %v1803 = vld [vmem:[%s1796 + $0x30] sm:$0xff]
  %v1804 = vld [vmem:[%s1796 + $0x38] sm:$0xff]
  %v1805 = vld [vmem:[%s1796 + $0x40] sm:$0xff]
  %v1806 = vld [vmem:[%s1796 + $0x48] sm:$0xff]
  %v1807 = vld [vmem:[%s1796 + $0x50] sm:$0xff]
  %v1808 = vld [vmem:[%s1796 + $0x58] sm:$0xff]
  %v1809 = vld [vmem:[%s1796 + $0x60] sm:$0xff]
  %v1810 = vld [vmem:[%s1796 + $0x68] sm:$0xff]
  %v1811 = vld [vmem:[%s1796 + $0x70] sm:$0xff]
  %v1812 = vld [vmem:[%s1796 + $0x78] sm:$0xff]
  %v1813 = vld [vmem:[%s1796 + $0x80] sm:$0xff]
  %v1814 = vld [vmem:[%s1796 + $0x88] sm:$0xff]
  %v1815 = vld [vmem:[%s1796 + $0x90] sm:$0xff]
  %v1816 = vld [vmem:[%s1796 + $0x98] sm:$0xff]
  %v1817 = vld [vmem:[%s1796 + $0xa0] sm:$0xff]
  %v1818 = vld [vmem:[%s1796 + $0xa8] sm:$0xff]
  %v1819 = vld [vmem:[%s1796 + $0xb0] sm:$0xff]
  %v1820 = vld [vmem:[%s1796 + $0xb8] sm:$0xff]
  %v1821 = vld [vmem:[%s1796 + $0xc0] sm:$0xff]
  %v1822 = vld [vmem:[%s1796 + $0xc8] sm:$0xff]
  %v1823 = vld [vmem:[%s1796 + $0xd0] sm:$0xff]
  %v1824 = vld [vmem:[%s1796 + $0xd8] sm:$0xff]
  %v1825 = vld [vmem:[%s1796 + $0xe0] sm:$0xff]
  %v1826 = vld [vmem:[%s1796 + $0xe8] sm:$0xff]
  %v1827 = vld [vmem:[%s1796 + $0xf0] sm:$0xff]
  %v1828 = vld [vmem:[%s1796 + $0xf8] sm:$0xff]
  %v1829 = vld [vmem:[%s1796 + $0x100] sm:$0xff]
  %v1830 = vld [vmem:[%s1796 + $0x108] sm:$0xff]
  %v1831 = vld [vmem:[%s1796 + $0x110] sm:$0xff]
  %v1832 = vld [vmem:[%s1796 + $0x118] sm:$0xff]
  %v1833 = vld [vmem:[%s1796 + $0x120] sm:$0xff]
  %v1834 = vld [vmem:[%s1796 + $0x128] sm:$0xff]
  %v1835 = vld [vmem:[%s1796 + $0x130] sm:$0xff]
  %v1836 = vld [vmem:[%s1796 + $0x138] sm:$0xff]
  %v1837 = vld [vmem:[%s1796 + $0x140] sm:$0xff]
  %v1838 = vld [vmem:[%s1796 + $0x148] sm:$0xff]
  %v1839 = vld [vmem:[%s1796 + $0x150] sm:$0xff]
  %v1840 = vld [vmem:[%s1796 + $0x158] sm:$0xff]
  %v1841 = vld [vmem:[%s1796 + $0x160] sm:$0xff]
  %v1842 = vld [vmem:[%s1796 + $0x168] sm:$0xff]
  %v1843 = vld [vmem:[%s1796 + $0x170] sm:$0xff]
  %v1844 = vld [vmem:[%s1796 + $0x178] sm:$0xff]
  %v1845 = vld [vmem:[%s1796 + $0x180] sm:$0xff]
  %v1846 = vld [vmem:[%s1796 + $0x188] sm:$0xff]
  %v1847 = vld [vmem:[%s1796 + $0x190] sm:$0xff]
  %v1848 = vld [vmem:[%s1796 + $0x198] sm:$0xff]
  %v1849 = vld [vmem:[%s1796 + $0x1a0] sm:$0xff]
  %v1850 = vld [vmem:[%s1796 + $0x1a8] sm:$0xff]
  %v1851 = vld [vmem:[%s1796 + $0x1b0] sm:$0xff]
  %v1852 = vld [vmem:[%s1796 + $0x1b8] sm:$0xff]
  %v1853 = vld [vmem:[%s1796 + $0x1c0] sm:$0xff]
  %v1854 = vld [vmem:[%s1796 + $0x1c8] sm:$0xff]
  %v1855 = vld [vmem:[%s1796 + $0x1d0] sm:$0xff]
  %v1856 = vld [vmem:[%s1796 + $0x1d8] sm:$0xff]
  %v1857 = vld [vmem:[%s1796 + $0x1e0] sm:$0xff]
  %v1858 = vld [vmem:[%s1796 + $0x1e8] sm:$0xff]
  %v1859 = vld [vmem:[%s1796 + $0x1f0] sm:$0xff]
  %v1860 = vld [vmem:[%s1796 + $0x1f8] sm:$0xff]
  %v1861 = vld [vmem:[%s1796 + $0x200] sm:$0xff]
  %v1862 = vld [vmem:[%s1796 + $0x208] sm:$0xff]
  %v1863 = vld [vmem:[%s1796 + $0x210] sm:$0xff]
  %v1864 = vld [vmem:[%s1796 + $0x218] sm:$0xff]
  %v1865 = vld [vmem:[%s1796 + $0x220] sm:$0xff]
  %v1866 = vld [vmem:[%s1796 + $0x228] sm:$0xff]
  %v1867 = vld [vmem:[%s1796 + $0x230] sm:$0xff]
  %v1868 = vld [vmem:[%s1796 + $0x238] sm:$0xff]
  %v1869 = vld [vmem:[%s1796 + $0x240] sm:$0xff]
  %v1870 = vld [vmem:[%s1796 + $0x248] sm:$0xff]
  %v1871 = vld [vmem:[%s1796 + $0x250] sm:$0xff]
  %v1872 = vld [vmem:[%s1796 + $0x258] sm:$0xff]
  %v1873 = vld [vmem:[%s1796 + $0x260] sm:$0xff]
  %v1874 = vld [vmem:[%s1796 + $0x268] sm:$0xff]
  %v1875 = vld [vmem:[%s1796 + $0x270] sm:$0xff]
  %v1876 = vld [vmem:[%s1796 + $0x278] sm:$0xff]
  %v1877 = vld [vmem:[%s1796 + $0x280] sm:$0xff]
  %v1878 = vld [vmem:[%s1796 + $0x288] sm:$0xff]
  %v1879 = vld [vmem:[%s1796 + $0x290] sm:$0xff]
  %v1880 = vld [vmem:[%s1796 + $0x298] sm:$0xff]
  %v1881 = vld [vmem:[%s1796 + $0x2a0] sm:$0xff]
  %v1882 = vld [vmem:[%s1796 + $0x2a8] sm:$0xff]
  %v1883 = vld [vmem:[%s1796 + $0x2b0] sm:$0xff]
  %v1884 = vld [vmem:[%s1796 + $0x2b8] sm:$0xff]
  %v1885 = vld [vmem:[%s1796 + $0x2c0] sm:$0xff]
  %v1886 = vld [vmem:[%s1796 + $0x2c8] sm:$0xff]
  %v1887 = vld [vmem:[%s1796 + $0x2d0] sm:$0xff]
  %v1888 = vld [vmem:[%s1796 + $0x2d8] sm:$0xff]
  %v1889 = vld [vmem:[%s1796 + $0x2e0] sm:$0xff]
  %v1890 = vld [vmem:[%s1796 + $0x2e8] sm:$0xff]
  %v1891 = vld [vmem:[%s1796 + $0x2f0] sm:$0xff]
  %v1892 = vld [vmem:[%s1796 + $0x2f8] sm:$0xff]
  %v1893 = vld [vmem:[%s1796 + $0x300] sm:$0xff]
  %v1894 = vld [vmem:[%s1796 + $0x308] sm:$0xff]
  %s1895 = scalar_lea.vmem %s1, 384
  %v1896 = vld [vmem:[%s1895] sm:$0xf]
  %v1897 = vld [vmem:[%s1895 + $0x4] sm:$0xf]
  %v1898 = vld [vmem:[%s1895 + $0x8] sm:$0xf]
  %v1899 = vld [vmem:[%s1895 + $0xc] sm:$0xf]
  %v1900 = vld [vmem:[%s1895 + $0x10] sm:$0xf]
  %v1901 = vld [vmem:[%s1895 + $0x14] sm:$0xf]
  %v1902 = vld [vmem:[%s1895 + $0x18] sm:$0xf]
  %v1903 = vld [vmem:[%s1895 + $0x1c] sm:$0xf]
  %v1904 = vld [vmem:[%s1895 + $0x20] sm:$0xf]
  %v1905 = vld [vmem:[%s1895 + $0x24] sm:$0xf]
  %v1906 = vld [vmem:[%s1895 + $0x28] sm:$0xf]
  %v1907 = vld [vmem:[%s1895 + $0x2c] sm:$0xf]
  %v1908 = vld [vmem:[%s1895 + $0x30] sm:$0xf]
  %v1909 = vld [vmem:[%s1895 + $0x34] sm:$0xf]
  %v1910 = vld [vmem:[%s1895 + $0x38] sm:$0xf]
  %v1911 = vld [vmem:[%s1895 + $0x3c] sm:$0xf]
  %v1912 = vld [vmem:[%s1895 + $0x40] sm:$0xf]
  %v1913 = vld [vmem:[%s1895 + $0x44] sm:$0xf]
  %v1914 = vld [vmem:[%s1895 + $0x48] sm:$0xf]
  %v1915 = vld [vmem:[%s1895 + $0x4c] sm:$0xf]
  %v1916 = vld [vmem:[%s1895 + $0x50] sm:$0xf]
  %v1917 = vld [vmem:[%s1895 + $0x54] sm:$0xf]
  %v1918 = vld [vmem:[%s1895 + $0x58] sm:$0xf]
  %v1919 = vld [vmem:[%s1895 + $0x5c] sm:$0xf]
  %v1920 = vld [vmem:[%s1895 + $0x60] sm:$0xf]
  %v1921 = vld [vmem:[%s1895 + $0x64] sm:$0xf]
  %v1922 = vld [vmem:[%s1895 + $0x68] sm:$0xf]
  %v1923 = vld [vmem:[%s1895 + $0x6c] sm:$0xf]
  %v1924 = vld [vmem:[%s1895 + $0x70] sm:$0xf]
  %v1925 = vld [vmem:[%s1895 + $0x74] sm:$0xf]
  %v1926 = vld [vmem:[%s1895 + $0x78] sm:$0xf]
  %v1927 = vld [vmem:[%s1895 + $0x7c] sm:$0xf]
  %v1928 = vunpack.c.l.bf16 %v1896
  %v1929 = vunpack.c.l.bf16 %v1897
  %v1930 = vunpack.c.l.bf16 %v1898
  %v1931 = vunpack.c.l.bf16 %v1899
  %v1932 = vunpack.c.l.bf16 %v1900
  %v1933 = vunpack.c.l.bf16 %v1901
  %v1934 = vunpack.c.l.bf16 %v1902
  %v1935 = vunpack.c.l.bf16 %v1903
  %v1936 = vunpack.c.l.bf16 %v1904
  %v1937 = vunpack.c.l.bf16 %v1905
  %v1938 = vunpack.c.l.bf16 %v1906
  %v1939 = vunpack.c.l.bf16 %v1907
  %v1940 = vunpack.c.l.bf16 %v1908
  %v1941 = vunpack.c.l.bf16 %v1909
  %v1942 = vunpack.c.l.bf16 %v1910
  %v1943 = vunpack.c.l.bf16 %v1911
  %v1944 = vunpack.c.l.bf16 %v1912
  %v1945 = vunpack.c.l.bf16 %v1913
  %v1946 = vunpack.c.l.bf16 %v1914
  %v1947 = vunpack.c.l.bf16 %v1915
  %v1948 = vunpack.c.l.bf16 %v1916
  %v1949 = vunpack.c.l.bf16 %v1917
  %v1950 = vunpack.c.l.bf16 %v1918
  %v1951 = vunpack.c.l.bf16 %v1919
  %v1952 = vunpack.c.l.bf16 %v1920
  %v1953 = vunpack.c.l.bf16 %v1921
  %v1954 = vunpack.c.l.bf16 %v1922
  %v1955 = vunpack.c.l.bf16 %v1923
  %v1956 = vunpack.c.l.bf16 %v1924
  %v1957 = vunpack.c.l.bf16 %v1925
  %v1958 = vunpack.c.l.bf16 %v1926
  %v1959 = vunpack.c.l.bf16 %v1927
  %v1960 = vld [vmem:[%s2] sm:$0x1]
  %v1962 = vperm.slane %v1960, 0
  %1964 = vmatpush.msra.mxu0 %v1943
  %1965 = vmatpush.msra.mxu0 %v1942
  %1966 = vmatpush.msra.mxu0 %v1941
  %1967 = vmatpush.msra.mxu0 %v1940
  %1968 = vmatpush.msra.mxu0 %v1939
  %1969 = vmatpush.msra.mxu0 %v1938
  %1970 = vmatpush.msra.mxu0 %v1937
  %1971 = vmatpush.msra.mxu0 %v1936
  %1972 = vmatpush.msra.mxu0 %v1935
  %1973 = vmatpush.msra.mxu0 %v1934
  %1974 = vmatpush.msra.mxu0 %v1933
  %1975 = vmatpush.msra.mxu0 %v1932
  %1976 = vmatpush.msra.mxu0 %v1931
  %1977 = vmatpush.msra.mxu0 %v1930
  %1978 = vmatpush.msra.mxu0 %v1929
  %1979 = vmatpush.msra.mxu0 %v1928
  %1980 = vmatmul.f32.gmra.mxu0 %v1797
  %v1981 = vpop.f32.mrf.mxu0
  %v1982 = vadd.f32 %v1962, %v1981
  %1983 = vmatmul.f32.gmra.mxu0 %v1799
  %v1984 = vpop.f32.mrf.mxu0
  %v1985 = vadd.f32 %v1962, %v1984
  %1986 = vmatmul.f32.gmra.mxu0 %v1801
  %v1987 = vpop.f32.mrf.mxu0
  %v1988 = vadd.f32 %v1962, %v1987
  %1989 = vmatmul.f32.gmra.mxu0 %v1803
  %v1990 = vpop.f32.mrf.mxu0
  %v1991 = vadd.f32 %v1962, %v1990
  %1992 = vmatmul.f32.gmra.mxu0 %v1805
  %v1993 = vpop.f32.mrf.mxu0
  %v1994 = vadd.f32 %v1962, %v1993
  %1995 = vmatmul.f32.gmra.mxu0 %v1807
  %v1996 = vpop.f32.mrf.mxu0
  %v1997 = vadd.f32 %v1962, %v1996
  %1998 = vmatmul.f32.gmra.mxu0 %v1809
  %v1999 = vpop.f32.mrf.mxu0
  %v2000 = vadd.f32 %v1962, %v1999
  %2001 = vmatmul.f32.gmra.mxu0 %v1811
  %v2002 = vpop.f32.mrf.mxu0
  %v2003 = vadd.f32 %v1962, %v2002
  %2004 = vmatmul.f32.gmra.mxu0 %v1813
  %v2005 = vpop.f32.mrf.mxu0
  %v2006 = vadd.f32 %v1962, %v2005
  %2007 = vmatmul.f32.gmra.mxu0 %v1815
  %v2008 = vpop.f32.mrf.mxu0
  %v2009 = vadd.f32 %v1962, %v2008
  %2010 = vmatmul.f32.gmra.mxu0 %v1817
  %v2011 = vpop.f32.mrf.mxu0
  %v2012 = vadd.f32 %v1962, %v2011
  %2013 = vmatmul.f32.gmra.mxu0 %v1819
  %v2014 = vpop.f32.mrf.mxu0
  %v2015 = vadd.f32 %v1962, %v2014
  %2016 = vmatmul.f32.gmra.mxu0 %v1821
  %v2017 = vpop.f32.mrf.mxu0
  %v2018 = vadd.f32 %v1962, %v2017
  %2019 = vmatmul.f32.gmra.mxu0 %v1823
  %v2020 = vpop.f32.mrf.mxu0
  %v2021 = vadd.f32 %v1962, %v2020
  %2022 = vmatmul.f32.gmra.mxu0 %v1825
  %v2023 = vpop.f32.mrf.mxu0
  %v2024 = vadd.f32 %v1962, %v2023
  %2025 = vmatmul.f32.gmra.mxu0 %v1827
  %v2026 = vpop.f32.mrf.mxu0
  %v2027 = vadd.f32 %v1962, %v2026
  %2028 = vmatmul.f32.gmra.mxu0 %v1829
  %v2029 = vpop.f32.mrf.mxu0
  %v2030 = vadd.f32 %v1962, %v2029
  %2031 = vmatmul.f32.gmra.mxu0 %v1831
  %v2032 = vpop.f32.mrf.mxu0
  %v2033 = vadd.f32 %v1962, %v2032
  %2034 = vmatmul.f32.gmra.mxu0 %v1833
  %v2035 = vpop.f32.mrf.mxu0
  %v2036 = vadd.f32 %v1962, %v2035
  %2037 = vmatmul.f32.gmra.mxu0 %v1835
  %v2038 = vpop.f32.mrf.mxu0
  %v2039 = vadd.f32 %v1962, %v2038
  %2040 = vmatmul.f32.gmra.mxu0 %v1837
  %v2041 = vpop.f32.mrf.mxu0
  %v2042 = vadd.f32 %v1962, %v2041
  %2043 = vmatmul.f32.gmra.mxu0 %v1839
  %v2044 = vpop.f32.mrf.mxu0
  %v2045 = vadd.f32 %v1962, %v2044
  %2046 = vmatmul.f32.gmra.mxu0 %v1841
  %v2047 = vpop.f32.mrf.mxu0
  %v2048 = vadd.f32 %v1962, %v2047
  %2049 = vmatmul.f32.gmra.mxu0 %v1843
  %v2050 = vpop.f32.mrf.mxu0
  %v2051 = vadd.f32 %v1962, %v2050
  %2052 = vmatmul.f32.gmra.mxu0 %v1845
  %v2053 = vpop.f32.mrf.mxu0
  %v2054 = vadd.f32 %v1962, %v2053
  %2055 = vmatmul.f32.gmra.mxu0 %v1847
  %v2056 = vpop.f32.mrf.mxu0
  %v2057 = vadd.f32 %v1962, %v2056
  %2058 = vmatmul.f32.gmra.mxu0 %v1849
  %v2059 = vpop.f32.mrf.mxu0
  %v2060 = vadd.f32 %v1962, %v2059
  %2061 = vmatmul.f32.gmra.mxu0 %v1851
  %v2062 = vpop.f32.mrf.mxu0
  %v2063 = vadd.f32 %v1962, %v2062
  %2064 = vmatmul.f32.gmra.mxu0 %v1853
  %v2065 = vpop.f32.mrf.mxu0
  %v2066 = vadd.f32 %v1962, %v2065
  %2067 = vmatmul.f32.gmra.mxu0 %v1855
  %v2068 = vpop.f32.mrf.mxu0
  %v2069 = vadd.f32 %v1962, %v2068
  %2070 = vmatmul.f32.gmra.mxu0 %v1857
  %v2071 = vpop.f32.mrf.mxu0
  %v2072 = vadd.f32 %v1962, %v2071
  %2073 = vmatmul.f32.gmra.mxu0 %v1859
  %v2074 = vpop.f32.mrf.mxu0
  %v2075 = vadd.f32 %v1962, %v2074
  %2076 = vmatmul.f32.gmra.mxu0 %v1861
  %v2077 = vpop.f32.mrf.mxu0
  %v2078 = vadd.f32 %v1962, %v2077
  %2079 = vmatmul.f32.gmra.mxu0 %v1863
  %v2080 = vpop.f32.mrf.mxu0
  %v2081 = vadd.f32 %v1962, %v2080
  %2082 = vmatmul.f32.gmra.mxu0 %v1865
  %v2083 = vpop.f32.mrf.mxu0
  %v2084 = vadd.f32 %v1962, %v2083
  %2085 = vmatmul.f32.gmra.mxu0 %v1867
  %v2086 = vpop.f32.mrf.mxu0
  %v2087 = vadd.f32 %v1962, %v2086
  %2088 = vmatmul.f32.gmra.mxu0 %v1869
  %v2089 = vpop.f32.mrf.mxu0
  %v2090 = vadd.f32 %v1962, %v2089
  %2091 = vmatmul.f32.gmra.mxu0 %v1871
  %v2092 = vpop.f32.mrf.mxu0
  %v2093 = vadd.f32 %v1962, %v2092
  %2094 = vmatmul.f32.gmra.mxu0 %v1873
  %v2095 = vpop.f32.mrf.mxu0
  %v2096 = vadd.f32 %v1962, %v2095
  %2097 = vmatmul.f32.gmra.mxu0 %v1875
  %v2098 = vpop.f32.mrf.mxu0
  %v2099 = vadd.f32 %v1962, %v2098
  %2100 = vmatmul.f32.gmra.mxu0 %v1877
  %v2101 = vpop.f32.mrf.mxu0
  %v2102 = vadd.f32 %v1962, %v2101
  %2103 = vmatmul.f32.gmra.mxu0 %v1879
  %v2104 = vpop.f32.mrf.mxu0
  %v2105 = vadd.f32 %v1962, %v2104
  %2106 = vmatmul.f32.gmra.mxu0 %v1881
  %v2107 = vpop.f32.mrf.mxu0
  %v2108 = vadd.f32 %v1962, %v2107
  %2109 = vmatmul.f32.gmra.mxu0 %v1883
  %v2110 = vpop.f32.mrf.mxu0
  %v2111 = vadd.f32 %v1962, %v2110
  %2112 = vmatmul.f32.gmra.mxu0 %v1885
  %v2113 = vpop.f32.mrf.mxu0
  %v2114 = vadd.f32 %v1962, %v2113
  %2115 = vmatmul.f32.gmra.mxu0 %v1887
  %v2116 = vpop.f32.mrf.mxu0
  %v2117 = vadd.f32 %v1962, %v2116
  %2118 = vmatmul.f32.gmra.mxu0 %v1889
  %v2119 = vpop.f32.mrf.mxu0
  %v2120 = vadd.f32 %v1962, %v2119
  %2121 = vmatmul.f32.gmra.mxu0 %v1891
  %v2122 = vpop.f32.mrf.mxu0
  %v2123 = vadd.f32 %v1962, %v2122
  %2124 = vmatmul.f32.gmra.mxu0 %v1893
  %v2125 = vpop.f32.mrf.mxu0
  %v2126 = vadd.f32 %v1962, %v2125
  %2127 = vdwg.mxu0
  %2128 = vmatpush.msra.mxu0 %v1959
  %2129 = vmatpush.msra.mxu0 %v1958
  %2130 = vmatpush.msra.mxu0 %v1957
  %2131 = vmatpush.msra.mxu0 %v1956
  %2132 = vmatpush.msra.mxu0 %v1955
  %2133 = vmatpush.msra.mxu0 %v1954
  %2134 = vmatpush.msra.mxu0 %v1953
  %2135 = vmatpush.msra.mxu0 %v1952
  %2136 = vmatpush.msra.mxu0 %v1951
  %2137 = vmatpush.msra.mxu0 %v1950
  %2138 = vmatpush.msra.mxu0 %v1949
  %2139 = vmatpush.msra.mxu0 %v1948
  %2140 = vmatpush.msra.mxu0 %v1947
  %2141 = vmatpush.msra.mxu0 %v1946
  %2142 = vmatpush.msra.mxu0 %v1945
  %2143 = vmatpush.msra.mxu0 %v1944
  %2144 = vmatmul.f32.gmra.mxu0 %v1798
  %v2145 = vpop.f32.mrf.mxu0
  %v2146 = vadd.f32 %v1982, %v2145
  %2147 = vmatmul.f32.gmra.mxu0 %v1800
  %v2148 = vpop.f32.mrf.mxu0
  %v2149 = vadd.f32 %v1985, %v2148
  %2150 = vmatmul.f32.gmra.mxu0 %v1802
  %v2151 = vpop.f32.mrf.mxu0
  %v2152 = vadd.f32 %v1988, %v2151
  %2153 = vmatmul.f32.gmra.mxu0 %v1804
  %v2154 = vpop.f32.mrf.mxu0
  %v2155 = vadd.f32 %v1991, %v2154
  %2156 = vmatmul.f32.gmra.mxu0 %v1806
  %v2157 = vpop.f32.mrf.mxu0
  %v2158 = vadd.f32 %v1994, %v2157
  %2159 = vmatmul.f32.gmra.mxu0 %v1808
  %v2160 = vpop.f32.mrf.mxu0
  %v2161 = vadd.f32 %v1997, %v2160
  %2162 = vmatmul.f32.gmra.mxu0 %v1810
  %v2163 = vpop.f32.mrf.mxu0
  %v2164 = vadd.f32 %v2000, %v2163
  %2165 = vmatmul.f32.gmra.mxu0 %v1812
  %v2166 = vpop.f32.mrf.mxu0
  %v2167 = vadd.f32 %v2003, %v2166
  %2168 = vmatmul.f32.gmra.mxu0 %v1814
  %v2169 = vpop.f32.mrf.mxu0
  %v2170 = vadd.f32 %v2006, %v2169
  %2171 = vmatmul.f32.gmra.mxu0 %v1816
  %v2172 = vpop.f32.mrf.mxu0
  %v2173 = vadd.f32 %v2009, %v2172
  %2174 = vmatmul.f32.gmra.mxu0 %v1818
  %v2175 = vpop.f32.mrf.mxu0
  %v2176 = vadd.f32 %v2012, %v2175
  %2177 = vmatmul.f32.gmra.mxu0 %v1820
  %v2178 = vpop.f32.mrf.mxu0
  %v2179 = vadd.f32 %v2015, %v2178
  %2180 = vmatmul.f32.gmra.mxu0 %v1822
  %v2181 = vpop.f32.mrf.mxu0
  %v2182 = vadd.f32 %v2018, %v2181
  %2183 = vmatmul.f32.gmra.mxu0 %v1824
  %v2184 = vpop.f32.mrf.mxu0
  %v2185 = vadd.f32 %v2021, %v2184
  %2186 = vmatmul.f32.gmra.mxu0 %v1826
  %v2187 = vpop.f32.mrf.mxu0
  %v2188 = vadd.f32 %v2024, %v2187
  %2189 = vmatmul.f32.gmra.mxu0 %v1828
  %v2190 = vpop.f32.mrf.mxu0
  %v2191 = vadd.f32 %v2027, %v2190
  %2192 = vmatmul.f32.gmra.mxu0 %v1830
  %v2193 = vpop.f32.mrf.mxu0
  %v2194 = vadd.f32 %v2030, %v2193
  %2195 = vmatmul.f32.gmra.mxu0 %v1832
  %v2196 = vpop.f32.mrf.mxu0
  %v2197 = vadd.f32 %v2033, %v2196
  %2198 = vmatmul.f32.gmra.mxu0 %v1834
  %v2199 = vpop.f32.mrf.mxu0
  %v2200 = vadd.f32 %v2036, %v2199
  %2201 = vmatmul.f32.gmra.mxu0 %v1836
  %v2202 = vpop.f32.mrf.mxu0
  %v2203 = vadd.f32 %v2039, %v2202
  %2204 = vmatmul.f32.gmra.mxu0 %v1838
  %v2205 = vpop.f32.mrf.mxu0
  %v2206 = vadd.f32 %v2042, %v2205
  %2207 = vmatmul.f32.gmra.mxu0 %v1840
  %v2208 = vpop.f32.mrf.mxu0
  %v2209 = vadd.f32 %v2045, %v2208
  %2210 = vmatmul.f32.gmra.mxu0 %v1842
  %v2211 = vpop.f32.mrf.mxu0
  %v2212 = vadd.f32 %v2048, %v2211
  %2213 = vmatmul.f32.gmra.mxu0 %v1844
  %v2214 = vpop.f32.mrf.mxu0
  %v2215 = vadd.f32 %v2051, %v2214
  %2216 = vmatmul.f32.gmra.mxu0 %v1846
  %v2217 = vpop.f32.mrf.mxu0
  %v2218 = vadd.f32 %v2054, %v2217
  %2219 = vmatmul.f32.gmra.mxu0 %v1848
  %v2220 = vpop.f32.mrf.mxu0
  %v2221 = vadd.f32 %v2057, %v2220
  %2222 = vmatmul.f32.gmra.mxu0 %v1850
  %v2223 = vpop.f32.mrf.mxu0
  %v2224 = vadd.f32 %v2060, %v2223
  %2225 = vmatmul.f32.gmra.mxu0 %v1852
  %v2226 = vpop.f32.mrf.mxu0
  %v2227 = vadd.f32 %v2063, %v2226
  %2228 = vmatmul.f32.gmra.mxu0 %v1854
  %v2229 = vpop.f32.mrf.mxu0
  %v2230 = vadd.f32 %v2066, %v2229
  %2231 = vmatmul.f32.gmra.mxu0 %v1856
  %v2232 = vpop.f32.mrf.mxu0
  %v2233 = vadd.f32 %v2069, %v2232
  %2234 = vmatmul.f32.gmra.mxu0 %v1858
  %v2235 = vpop.f32.mrf.mxu0
  %v2236 = vadd.f32 %v2072, %v2235
  %2237 = vmatmul.f32.gmra.mxu0 %v1860
  %v2238 = vpop.f32.mrf.mxu0
  %v2239 = vadd.f32 %v2075, %v2238
  %2240 = vmatmul.f32.gmra.mxu0 %v1862
  %v2241 = vpop.f32.mrf.mxu0
  %v2242 = vadd.f32 %v2078, %v2241
  %2243 = vmatmul.f32.gmra.mxu0 %v1864
  %v2244 = vpop.f32.mrf.mxu0
  %v2245 = vadd.f32 %v2081, %v2244
  %2246 = vmatmul.f32.gmra.mxu0 %v1866
  %v2247 = vpop.f32.mrf.mxu0
  %v2248 = vadd.f32 %v2084, %v2247
  %2249 = vmatmul.f32.gmra.mxu0 %v1868
  %v2250 = vpop.f32.mrf.mxu0
  %v2251 = vadd.f32 %v2087, %v2250
  %2252 = vmatmul.f32.gmra.mxu0 %v1870
  %v2253 = vpop.f32.mrf.mxu0
  %v2254 = vadd.f32 %v2090, %v2253
  %2255 = vmatmul.f32.gmra.mxu0 %v1872
  %v2256 = vpop.f32.mrf.mxu0
  %v2257 = vadd.f32 %v2093, %v2256
  %2258 = vmatmul.f32.gmra.mxu0 %v1874
  %v2259 = vpop.f32.mrf.mxu0
  %v2260 = vadd.f32 %v2096, %v2259
  %2261 = vmatmul.f32.gmra.mxu0 %v1876
  %v2262 = vpop.f32.mrf.mxu0
  %v2263 = vadd.f32 %v2099, %v2262
  %2264 = vmatmul.f32.gmra.mxu0 %v1878
  %v2265 = vpop.f32.mrf.mxu0
  %v2266 = vadd.f32 %v2102, %v2265
  %2267 = vmatmul.f32.gmra.mxu0 %v1880
  %v2268 = vpop.f32.mrf.mxu0
  %v2269 = vadd.f32 %v2105, %v2268
  %2270 = vmatmul.f32.gmra.mxu0 %v1882
  %v2271 = vpop.f32.mrf.mxu0
  %v2272 = vadd.f32 %v2108, %v2271
  %2273 = vmatmul.f32.gmra.mxu0 %v1884
  %v2274 = vpop.f32.mrf.mxu0
  %v2275 = vadd.f32 %v2111, %v2274
  %2276 = vmatmul.f32.gmra.mxu0 %v1886
  %v2277 = vpop.f32.mrf.mxu0
  %v2278 = vadd.f32 %v2114, %v2277
  %2279 = vmatmul.f32.gmra.mxu0 %v1888
  %v2280 = vpop.f32.mrf.mxu0
  %v2281 = vadd.f32 %v2117, %v2280
  %2282 = vmatmul.f32.gmra.mxu0 %v1890
  %v2283 = vpop.f32.mrf.mxu0
  %v2284 = vadd.f32 %v2120, %v2283
  %2285 = vmatmul.f32.gmra.mxu0 %v1892
  %v2286 = vpop.f32.mrf.mxu0
  %v2287 = vadd.f32 %v2123, %v2286
  %2288 = vmatmul.f32.gmra.mxu0 %v1894
  %v2289 = vpop.f32.mrf.mxu0
  %v2290 = vadd.f32 %v2126, %v2289
  %2291 = vdwg.mxu0
  %v2292 = vtanh.pop %v2146
  %v2293 = vtanh.pop %v2149
  %v2294 = vtanh.pop %v2152
  %v2295 = vtanh.pop %v2155
  %v2296 = vtanh.pop %v2158
  %v2297 = vtanh.pop %v2161
  %v2298 = vtanh.pop %v2164
  %v2299 = vtanh.pop %v2167
  %v2300 = vtanh.pop %v2170
  %v2301 = vtanh.pop %v2173
  %v2302 = vtanh.pop %v2176
  %v2303 = vtanh.pop %v2179
  %v2304 = vtanh.pop %v2182
  %v2305 = vtanh.pop %v2185
  %v2306 = vtanh.pop %v2188
  %v2307 = vtanh.pop %v2191
  %v2308 = vtanh.pop %v2194
  %v2309 = vtanh.pop %v2197
  %v2310 = vtanh.pop %v2200
  %v2311 = vtanh.pop %v2203
  %v2312 = vtanh.pop %v2206
  %v2313 = vtanh.pop %v2209
  %v2314 = vtanh.pop %v2212
  %v2315 = vtanh.pop %v2215
  %v2316 = vtanh.pop %v2218
  %v2317 = vtanh.pop %v2221
  %v2318 = vtanh.pop %v2224
  %v2319 = vtanh.pop %v2227
  %v2320 = vtanh.pop %v2230
  %v2321 = vtanh.pop %v2233
  %v2322 = vtanh.pop %v2236
  %v2323 = vtanh.pop %v2239
  %v2324 = vtanh.pop %v2242
  %v2325 = vtanh.pop %v2245
  %v2326 = vtanh.pop %v2248
  %v2327 = vtanh.pop %v2251
  %v2328 = vtanh.pop %v2254
  %v2329 = vtanh.pop %v2257
  %v2330 = vtanh.pop %v2260
  %v2331 = vtanh.pop %v2263
  %v2332 = vtanh.pop %v2266
  %v2333 = vtanh.pop %v2269
  %v2334 = vtanh.pop %v2272
  %v2335 = vtanh.pop %v2275
  %v2336 = vtanh.pop %v2278
  %v2337 = vtanh.pop %v2281
  %v2338 = vtanh.pop %v2284
  %v2339 = vtanh.pop %v2287
  %v2340 = vtanh.pop %v2290
  %s2341 = scalar_lea.vmem %s3, 1176
  %2342 = vst [vmem:[%s2341] sm:$0xff] %v2292
  %2343 = vst [vmem:[%s2341 + $0x8] sm:$0xff] %v2293
  %2344 = vst [vmem:[%s2341 + $0x10] sm:$0xff] %v2294
  %2345 = vst [vmem:[%s2341 + $0x18] sm:$0xff] %v2295
  %2346 = vst [vmem:[%s2341 + $0x20] sm:$0xff] %v2296
  %2347 = vst [vmem:[%s2341 + $0x28] sm:$0xff] %v2297
  %2348 = vst [vmem:[%s2341 + $0x30] sm:$0xff] %v2298
  %2349 = vst [vmem:[%s2341 + $0x38] sm:$0xff] %v2299
  %2350 = vst [vmem:[%s2341 + $0x40] sm:$0xff] %v2300
  %2351 = vst [vmem:[%s2341 + $0x48] sm:$0xff] %v2301
  %2352 = vst [vmem:[%s2341 + $0x50] sm:$0xff] %v2302
  %2353 = vst [vmem:[%s2341 + $0x58] sm:$0xff] %v2303
  %2354 = vst [vmem:[%s2341 + $0x60] sm:$0xff] %v2304
  %2355 = vst [vmem:[%s2341 + $0x68] sm:$0xff] %v2305
  %2356 = vst [vmem:[%s2341 + $0x70] sm:$0xff] %v2306
  %2357 = vst [vmem:[%s2341 + $0x78] sm:$0xff] %v2307
  %2358 = vst [vmem:[%s2341 + $0x80] sm:$0xff] %v2308
  %2359 = vst [vmem:[%s2341 + $0x88] sm:$0xff] %v2309
  %2360 = vst [vmem:[%s2341 + $0x90] sm:$0xff] %v2310
  %2361 = vst [vmem:[%s2341 + $0x98] sm:$0xff] %v2311
  %2362 = vst [vmem:[%s2341 + $0xa0] sm:$0xff] %v2312
  %2363 = vst [vmem:[%s2341 + $0xa8] sm:$0xff] %v2313
  %2364 = vst [vmem:[%s2341 + $0xb0] sm:$0xff] %v2314
  %2365 = vst [vmem:[%s2341 + $0xb8] sm:$0xff] %v2315
  %2366 = vst [vmem:[%s2341 + $0xc0] sm:$0xff] %v2316
  %2367 = vst [vmem:[%s2341 + $0xc8] sm:$0xff] %v2317
  %2368 = vst [vmem:[%s2341 + $0xd0] sm:$0xff] %v2318
  %2369 = vst [vmem:[%s2341 + $0xd8] sm:$0xff] %v2319
  %2370 = vst [vmem:[%s2341 + $0xe0] sm:$0xff] %v2320
  %2371 = vst [vmem:[%s2341 + $0xe8] sm:$0xff] %v2321
  %2372 = vst [vmem:[%s2341 + $0xf0] sm:$0xff] %v2322
  %2373 = vst [vmem:[%s2341 + $0xf8] sm:$0xff] %v2323
  %2374 = vst [vmem:[%s2341 + $0x100] sm:$0xff] %v2324
  %2375 = vst [vmem:[%s2341 + $0x108] sm:$0xff] %v2325
  %2376 = vst [vmem:[%s2341 + $0x110] sm:$0xff] %v2326
  %2377 = vst [vmem:[%s2341 + $0x118] sm:$0xff] %v2327
  %2378 = vst [vmem:[%s2341 + $0x120] sm:$0xff] %v2328
  %2379 = vst [vmem:[%s2341 + $0x128] sm:$0xff] %v2329
  %2380 = vst [vmem:[%s2341 + $0x130] sm:$0xff] %v2330
  %2381 = vst [vmem:[%s2341 + $0x138] sm:$0xff] %v2331
  %2382 = vst [vmem:[%s2341 + $0x140] sm:$0xff] %v2332
  %2383 = vst [vmem:[%s2341 + $0x148] sm:$0xff] %v2333
  %2384 = vst [vmem:[%s2341 + $0x150] sm:$0xff] %v2334
  %2385 = vst [vmem:[%s2341 + $0x158] sm:$0xff] %v2335
  %2386 = vst [vmem:[%s2341 + $0x160] sm:$0xff] %v2336
  %2387 = vst [vmem:[%s2341 + $0x168] sm:$0xff] %v2337
  %2388 = vst [vmem:[%s2341 + $0x170] sm:$0xff] %v2338
  %2389 = vst [vmem:[%s2341 + $0x178] sm:$0xff] %v2339
  %2390 = vst [vmem:[%s2341 + $0x180] sm:$0xff] %v2340
  // Predicated region
  $region14: #{generator_forward.5} parent=0 // pred_check
    _
  $region15: #{generator_forward.5} parent=0 // pred_check_branch
    %2392 = sbr.rel (0) target = $region17
  $region16: #{generator_forward.5} parent=0 // pred_region
    _
  $region17: #{generator_forward.5} parent=0 // pred_fallthru
    _
  // Predicated region
  $region18: #{generator_forward.5} parent=0 // pred_check
    _
  $region19: #{generator_forward.5} parent=0 // pred_check_branch
    %2394 = sbr.rel (0) target = $region21
  $region20: #{generator_forward.5} parent=0 // pred_region
    _
  $region21: #{generator_forward.5} parent=0 // pred_fallthru
    _

</llo_original>
